<compile_context>
chip_gen: v5e
topology: v5e:2x2
jax: 0.10.0
libtpu: 0.0.40
codegen_flags: <defaults>
</compile_context>

<pallas_src>
import math
import functools

import numpy as np
import jax
import jax.numpy as jnp
from jax import lax
from jax.experimental import pallas as pl
from jax.experimental.pallas import tpu as pltpu

_EPS = 1e-5


# ----------------------------------------------------------------------------
# In-kernel helpers (traced inside Pallas kernels)
# ----------------------------------------------------------------------------

def _layernorm_rows(x, gamma, beta, eps):
    # x: [N, D], gamma/beta: [1, D]
    mu = jnp.mean(x, axis=-1, keepdims=True)
    xc = x - mu
    var = jnp.mean(xc * xc, axis=-1, keepdims=True)
    return xc * lax.rsqrt(var + eps) * gamma + beta


def _gelu_exact(x):
    # matches torch.nn.GELU() default (erf form)
    return 0.5 * x * (1.0 + lax.erf(x * (1.0 / math.sqrt(2.0))))


def _mha(q_all, k_all, v_all, B, Tq, Tk, num_heads, causal):
    """Multi-head attention on flattened rows.

    q_all: [B*Tq, D], k_all/v_all: [B*Tk, D]  ->  [B*Tq, D]
    Head split/merge, softmax and (optional causal) masking all stay in VMEM.
    """
    D = q_all.shape[-1]
    hd = D // num_heads
    scale = 1.0 / math.sqrt(hd)

    if causal:
        row = lax.broadcasted_iota(jnp.int32, (Tq, Tk), 0)
        col = lax.broadcasted_iota(jnp.int32, (Tq, Tk), 1)
        bias = jnp.where(col <= row, 0.0, -1e30)[None, :, :]   # additive mask

    heads = []
    for h in range(num_heads):
        sl = slice(h * hd, (h + 1) * hd)
        q = q_all[:, sl].reshape(B, Tq, hd)
        k = k_all[:, sl].reshape(B, Tk, hd)
        v = v_all[:, sl].reshape(B, Tk, hd)
        s = jnp.einsum('bqd,bkd->bqk', q, k,
                       preferred_element_type=jnp.float32) * scale
        if causal:
            s = s + bias
        s = s - jnp.max(s, axis=-1, keepdims=True)
        p = jnp.exp(s)
        p = p * pl.reciprocal(jnp.sum(p, axis=-1, keepdims=True), approx=True)
        o = jnp.einsum('bqk,bkd->bqd', p, v,
                       preferred_element_type=jnp.float32)
        heads.append(o.reshape(B * Tq, hd))
    return jnp.concatenate(heads, axis=-1)


# ----------------------------------------------------------------------------
# Fused kernels
# ----------------------------------------------------------------------------

def _encoder_stack_kernel(ehr_ref, we_ref, be_ref, cxr_ref, wc_ref, bc_ref, pe_ref,
                          ln1g_ref, ln1b_ref, wqkv_ref, bqkv_ref, wo_ref, bo_ref,
                          ln2g_ref, ln2b_ref, w1_ref, b1_ref, w2_ref, b2_ref,
                          lnfg_ref, lnfb_ref,
                          out_ref, x_scr, *, num_heads, eps):
    layer = pl.program_id(0)
    n_layers = pl.num_programs(0)
    B, T, D = out_ref.shape
    E = ehr_ref.shape[-1]

    # ---- layer 0: input embedding (ehr_embed + cxr_condition + positional) ----
    @pl.when(layer == 0)
    def _embed():
        x = jnp.dot(ehr_ref[...].reshape(B * T, E), we_ref[...],
                    preferred_element_type=jnp.float32) + be_ref[...]
        cond = jnp.dot(cxr_ref[...], wc_ref[...],
                       preferred_element_type=jnp.float32) + bc_ref[...]   # [B, D]
        x = x.reshape(B, T, D) + cond[:, None, :] + pe_ref[...][None, :, :]
        x_scr[...] = x.reshape(B * T, D)

    x = x_scr[...]                                            # [B*T, D]

    # ---- self-attention sub-block (pre-LN) ----
    xn = _layernorm_rows(x, ln1g_ref[0], ln1b_ref[0], eps)
    qkv = jnp.dot(xn, wqkv_ref[0], preferred_element_type=jnp.float32) + bqkv_ref[0]
    attn = _mha(qkv[:, :D], qkv[:, D:2 * D], qkv[:, 2 * D:],
                B, T, T, num_heads, causal=False)
    attn = jnp.dot(attn, wo_ref[0], preferred_element_type=jnp.float32) + bo_ref[0]
    x = x + attn

    # ---- MLP sub-block (pre-LN) ----
    xn = _layernorm_rows(x, ln2g_ref[0], ln2b_ref[0], eps)
    h = _gelu_exact(jnp.dot(xn, w1_ref[0],
                            preferred_element_type=jnp.float32) + b1_ref[0])
    h = jnp.dot(h, w2_ref[0], preferred_element_type=jnp.float32) + b2_ref[0]
    x = x + h

    x_scr[...] = x

    # ---- last layer: fuse the final encoder LayerNorm, single HBM write ----
    @pl.when(layer == n_layers - 1)
    def _store_final():
        xf = _layernorm_rows(x, lnfg_ref[...], lnfb_ref[...], eps)
        out_ref[...] = xf.reshape(B, T, D)


def _decoder_stack_kernel(db_ref, pe_ref, enc_ref,
                          ln1g_ref, ln1b_ref, wqkv_ref, bqkv_ref, wos_ref, bos_ref,
                          ln2g_ref, ln2b_ref, wqc_ref, bqc_ref, wkvc_ref, bkvc_ref,
                          woc_ref, boc_ref, ln3g_ref, ln3b_ref,
                          w1_ref, b1_ref, w2_ref, b2_ref,
                          lnhg_ref, lnhb_ref, wh_ref, bh_ref,
                          out_ref, x_scr, *, num_heads, eps):
    layer = pl.program_id(0)
    n_layers = pl.num_programs(0)
    B, T, C = out_ref.shape
    D = enc_ref.shape[-1]

    # ---- layer 0: decoder input = (fresh-Linear-on-zeros bias) + positional ----
    @pl.when(layer == 0)
    def _init():
        init = db_ref[...] + pe_ref[...]                      # [T, D]
        x0 = jnp.broadcast_to(init[None, :, :], (B, T, D))
        x_scr[...] = x0.reshape(B * T, D)

    x = x_scr[...]                                            # [B*T, D]
    enc = enc_ref[...].reshape(B * T, D)

    # ---- causal self-attention (pre-LN) ----
    xn = _layernorm_rows(x, ln1g_ref[0], ln1b_ref[0], eps)
    qkv = jnp.dot(xn, wqkv_ref[0], preferred_element_type=jnp.float32) + bqkv_ref[0]
    attn = _mha(qkv[:, :D], qkv[:, D:2 * D], qkv[:, 2 * D:],
                B, T, T, num_heads, causal=True)
    attn = jnp.dot(attn, wos_ref[0], preferred_element_type=jnp.float32) + bos_ref[0]
    x = x + attn

    # ---- cross-attention against encoder output (pre-LN) ----
    xn = _layernorm_rows(x, ln2g_ref[0], ln2b_ref[0], eps)
    q = jnp.dot(xn, wqc_ref[0], preferred_element_type=jnp.float32) + bqc_ref[0]
    kv = jnp.dot(enc, wkvc_ref[0], preferred_element_type=jnp.float32) + bkvc_ref[0]
    attn = _mha(q, kv[:, :D], kv[:, D:], B, T, T, num_heads, causal=False)
    attn = jnp.dot(attn, woc_ref[0], preferred_element_type=jnp.float32) + boc_ref[0]
    x = x + attn

    # ---- MLP (pre-LN) ----
    xn = _layernorm_rows(x, ln3g_ref[0], ln3b_ref[0], eps)
    h = _gelu_exact(jnp.dot(xn, w1_ref[0],
                            preferred_element_type=jnp.float32) + b1_ref[0])
    h = jnp.dot(h, w2_ref[0], preferred_element_type=jnp.float32) + b2_ref[0]
    x = x + h

    x_scr[...] = x

    # ---- last layer: fuse decoder_norm + head Linear; only HBM output ----
    @pl.when(layer == n_layers - 1)
    def _head():
        xn_f = _layernorm_rows(x, lnhg_ref[...], lnhb_ref[...], eps)
        y = jnp.dot(xn_f, wh_ref[...], preferred_element_type=jnp.float32) + bh_ref[...]
        out_ref[...] = y.reshape(B, T, C)


# ----------------------------------------------------------------------------
# BlockSpec helpers and pallas_call wrappers
# ----------------------------------------------------------------------------

def _const2(shape):
    return pl.BlockSpec(tuple(shape), lambda l: (0, 0))


def _const3(shape):
    return pl.BlockSpec(tuple(shape), lambda l: (0, 0, 0))


def _layered(shape):
    # per-layer stacked weight [L, *shape] -> block (1, *shape) indexed by layer
    return pl.BlockSpec((1,) + tuple(shape), lambda l: (l, 0, 0))


def encoder_stack(params, ehr, prev_cxr, cfg):
    B, T, E = ehr.shape
    D = cfg["d_model"]
    C = cfg["cxr_dim"]
    Hm = int(D * cfg["mlp_ratio"])
    L = cfg["num_encoder_layers"]
    p = params["enc"]
    pe = params["pe"][:T]
    cxr = prev_cxr.reshape(B, C)

    kernel = functools.partial(_encoder_stack_kernel,
                               num_heads=cfg["num_heads"], eps=_EPS)
    return pl.pallas_call(
        kernel,
        out_shape=jax.ShapeDtypeStruct((B, T, D), jnp.float32),
        grid=(L,),
        in_specs=[
            _const3((B, T, E)),
            _const2((E, D)), _const2((1, D)),
            _const2((B, C)), _const2((C, D)), _const2((1, D)),
            _const2((T, D)),
            _layered((1, D)), _layered((1, D)),
            _layered((D, 3 * D)), _layered((1, 3 * D)),
            _layered((D, D)), _layered((1, D)),
            _layered((1, D)), _layered((1, D)),
            _layered((D, Hm)), _layered((1, Hm)),
            _layered((Hm, D)), _layered((1, D)),
            _const2((1, D)), _const2((1, D)),
        ],
        out_specs=_const3((B, T, D)),
        scratch_shapes=[pltpu.VMEM((B * T, D), jnp.float32)],
        compiler_params=pltpu.CompilerParams(dimension_semantics=("arbitrary",)),
    )(ehr, params["ehr_w"], params["ehr_b"], cxr, params["cxr_w"], params["cxr_b"],
      pe,
      p["ln1_g"], p["ln1_b"], p["w_qkv"], p["b_qkv"], p["w_o"], p["b_o"],
      p["ln2_g"], p["ln2_b"], p["w1"], p["b1"], p["w2"], p["b2"],
      p["lnf_g"], p["lnf_b"])


def decoder_stack_and_head(params, enc_out, cfg):
    B, T, D = enc_out.shape
    C = cfg["cxr_dim"]
    Hm = int(D * cfg["mlp_ratio"])
    L = cfg["num_decoder_layers"]
    p = params["dec"]
    pe = params["pe"][:T]

    kernel = functools.partial(_decoder_stack_kernel,
                               num_heads=cfg["num_heads"], eps=_EPS)
    return pl.pallas_call(
        kernel,
        out_shape=jax.ShapeDtypeStruct((B, T, C), jnp.float32),
        grid=(L,),
        in_specs=[
            _const2((1, D)),
            _const2((T, D)),
            _const3((B, T, D)),
            _layered((1, D)), _layered((1, D)),
            _layered((D, 3 * D)), _layered((1, 3 * D)),
            _layered((D, D)), _layered((1, D)),
            _layered((1, D)), _layered((1, D)),
            _layered((D, D)), _layered((1, D)),
            _layered((D, 2 * D)), _layered((1, 2 * D)),
            _layered((D, D)), _layered((1, D)),
            _layered((1, D)), _layered((1, D)),
            _layered((D, Hm)), _layered((1, Hm)),
            _layered((Hm, D)), _layered((1, D)),
            _const2((1, D)), _const2((1, D)),
            _const2((D, C)), _const2((1, C)),
        ],
        out_specs=_const3((B, T, C)),
        scratch_shapes=[pltpu.VMEM((B * T, D), jnp.float32)],
        compiler_params=pltpu.CompilerParams(dimension_semantics=("arbitrary",)),
    )(params["dec_in_bias"], pe, enc_out,
      p["ln1_g"], p["ln1_b"], p["w_qkv"], p["b_qkv"], p["w_os"], p["b_os"],
      p["ln2_g"], p["ln2_b"], p["w_qc"], p["b_qc"], p["w_kvc"], p["b_kvc"],
      p["w_oc"], p["b_oc"], p["ln3_g"], p["ln3_b"],
      p["w1"], p["b1"], p["w2"], p["b2"],
      params["head_lng"], params["head_lnb"], params["head_w"], params["head_b"])


def model_forward(params, ehr, prev_cxr, cfg):
    """ehr: [B, T, ehr_dim], prev_cxr: [B, 1, cxr_dim] -> [B, T, cxr_dim].
    dropout = 0.0 (identity), no padding masks (default forward args)."""
    enc_out = encoder_stack(params, ehr, prev_cxr, cfg)
    return decoder_stack_and_head(params, enc_out, cfg)


# ----------------------------------------------------------------------------
# Parameter init (deterministic synthetic weights; shapes mirror the torch module)
# ----------------------------------------------------------------------------

def make_positional_table(max_len, d_model):
    position = np.arange(max_len, dtype=np.float32)[:, None]
    div_term = np.exp(np.arange(0, d_model, 2, dtype=np.float32)
                      * (-math.log(10000.0) / d_model))
    pe = np.zeros((max_len, d_model), np.float32)
    pe[:, 0::2] = np.sin(position * div_term)
    pe[:, 1::2] = np.cos(position * div_term)
    return jnp.asarray(pe)


def init_params(key, cfg):
    D = cfg["d_model"]
    E = cfg["ehr_dim"]
    C = cfg["cxr_dim"]
    Hm = int(D * cfg["mlp_ratio"])
    Le = cfg["num_encoder_layers"]
    Ld = cfg["num_decoder_layers"]

    keys = jax.random.split(key, 16)

    def w(k, shape):
        return 0.02 * jax.random.normal(k, shape, jnp.float32)   # normal_(std=0.02)

    params = {}
    params["pe"] = make_positional_table(cfg["max_seq_length"], D)
    params["ehr_w"] = w(keys[0], (E, D))
    params["ehr_b"] = jnp.zeros((1, D), jnp.float32)
    params["cxr_w"] = w(keys[1], (C, D))
    params["cxr_b"] = jnp.zeros((1, D), jnp.float32)

    # TODO(synk): torch forward() constructs a *fresh* nn.Linear(cxr_dim, d_model)
    # every call and applies it to an all-zeros decoder input, so only its
    # (randomly re-initialized) bias matters; modeled here as one fixed bias.
    bound = 1.0 / math.sqrt(C)
    params["dec_in_bias"] = jax.random.uniform(
        keys[2], (1, D), jnp.float32, minval=-bound, maxval=bound)

    params["enc"] = {
        "ln1_g": jnp.ones((Le, 1, D), jnp.float32),
        "ln1_b": jnp.zeros((Le, 1, D), jnp.float32),
        "w_qkv": w(keys[3], (Le, D, 3 * D)),
        "b_qkv": jnp.zeros((Le, 1, 3 * D), jnp.float32),
        "w_o": w(keys[4], (Le, D, D)),
        "b_o": jnp.zeros((Le, 1, D), jnp.float32),
        "ln2_g": jnp.ones((Le, 1, D), jnp.float32),
        "ln2_b": jnp.zeros((Le, 1, D), jnp.float32),
        "w1": w(keys[5], (Le, D, Hm)),
        "b1": jnp.zeros((Le, 1, Hm), jnp.float32),
        "w2": w(keys[6], (Le, Hm, D)),
        "b2": jnp.zeros((Le, 1, D), jnp.float32),
        "lnf_g": jnp.ones((1, D), jnp.float32),
        "lnf_b": jnp.zeros((1, D), jnp.float32),
    }

    params["dec"] = {
        "ln1_g": jnp.ones((Ld, 1, D), jnp.float32),
        "ln1_b": jnp.zeros((Ld, 1, D), jnp.float32),
        "w_qkv": w(keys[7], (Ld, D, 3 * D)),
        "b_qkv": jnp.zeros((Ld, 1, 3 * D), jnp.float32),
        "w_os": w(keys[8], (Ld, D, D)),
        "b_os": jnp.zeros((Ld, 1, D), jnp.float32),
        "ln2_g": jnp.ones((Ld, 1, D), jnp.float32),
        "ln2_b": jnp.zeros((Ld, 1, D), jnp.float32),
        "w_qc": w(keys[9], (Ld, D, D)),
        "b_qc": jnp.zeros((Ld, 1, D), jnp.float32),
        "w_kvc": w(keys[10], (Ld, D, 2 * D)),
        "b_kvc": jnp.zeros((Ld, 1, 2 * D), jnp.float32),
        "w_oc": w(keys[11], (Ld, D, D)),
        "b_oc": jnp.zeros((Ld, 1, D), jnp.float32),
        "ln3_g": jnp.ones((Ld, 1, D), jnp.float32),
        "ln3_b": jnp.zeros((Ld, 1, D), jnp.float32),
        "w1": w(keys[12], (Ld, D, Hm)),
        "b1": jnp.zeros((Ld, 1, Hm), jnp.float32),
        "w2": w(keys[13], (Ld, Hm, D)),
        "b2": jnp.zeros((Ld, 1, D), jnp.float32),
    }

    params["head_lng"] = jnp.ones((1, D), jnp.float32)
    params["head_lnb"] = jnp.zeros((1, D), jnp.float32)
    params["head_w"] = w(keys[14], (D, C))
    params["head_b"] = jnp.zeros((1, C), jnp.float32)
    return params


# ----------------------------------------------------------------------------
# main
# ----------------------------------------------------------------------------

if __name__ == "__main__":
    cfg = dict(
        ehr_dim=16,
        cxr_dim=32,
        d_model=32,
        num_heads=4,
        num_encoder_layers=2,
        num_decoder_layers=2,
        mlp_ratio=4.0,
        max_seq_length=64,
    )
    B, T = 2, 8

    key = jax.random.PRNGKey(0)
    k_params, k_ehr, k_cxr = jax.random.split(key, 3)
    params = init_params(k_params, cfg)

    ehr = jax.random.normal(k_ehr, (B, T, cfg["ehr_dim"]), jnp.float32)
    prev_cxr = jax.random.normal(k_cxr, (B, 1, cfg["cxr_dim"]), jnp.float32)

    fwd = jax.jit(functools.partial(model_forward, cfg=cfg))
    out = fwd(params, ehr, prev_cxr)
    out = jax.block_until_ready(out)

    assert out.shape == (B, T, cfg["cxr_dim"]), out.shape
    assert bool(jnp.all(jnp.isfinite(out)))
    print("KERNEL_OK")
</pallas_src>

<mosaic_0001>
module attributes {stable_mosaic.version = 11 : i64} {
  func.func @_encoder_stack_kernel(%arg0: i32, %arg1: memref<2x8x16xf32, #tpu.memory_space<vmem>>, %arg2: memref<16x32xf32, #tpu.memory_space<vmem>>, %arg3: memref<1x32xf32, #tpu.memory_space<vmem>>, %arg4: memref<2x32xf32, #tpu.memory_space<vmem>>, %arg5: memref<32x32xf32, #tpu.memory_space<vmem>>, %arg6: memref<1x32xf32, #tpu.memory_space<vmem>>, %arg7: memref<8x32xf32, #tpu.memory_space<vmem>>, %arg8: memref<1x1x32xf32, #tpu.memory_space<vmem>>, %arg9: memref<1x1x32xf32, #tpu.memory_space<vmem>>, %arg10: memref<1x32x96xf32, #tpu.memory_space<vmem>>, %arg11: memref<1x1x96xf32, #tpu.memory_space<vmem>>, %arg12: memref<1x32x32xf32, #tpu.memory_space<vmem>>, %arg13: memref<1x1x32xf32, #tpu.memory_space<vmem>>, %arg14: memref<1x1x32xf32, #tpu.memory_space<vmem>>, %arg15: memref<1x1x32xf32, #tpu.memory_space<vmem>>, %arg16: memref<1x32x128xf32, #tpu.memory_space<vmem>>, %arg17: memref<1x1x128xf32, #tpu.memory_space<vmem>>, %arg18: memref<1x128x32xf32, #tpu.memory_space<vmem>>, %arg19: memref<1x1x32xf32, #tpu.memory_space<vmem>>, %arg20: memref<1x32xf32, #tpu.memory_space<vmem>>, %arg21: memref<1x32xf32, #tpu.memory_space<vmem>>, %arg22: memref<2x8x32xf32, #tpu.memory_space<vmem>>, %arg23: memref<16x32xf32, #tpu.memory_space<vmem>>) attributes {dimension_semantics = [#tpu.dimension_semantics<arbitrary>], iteration_bounds = array<i64: 2>, scalar_prefetch = 0 : i64, scratch_operands = 1 : i64, tpu.core_type = #tpu.core_type<tc>, window_params = [{pipeline_mode = #tpu.pipeline_mode<synchronous>, transform_indices = @transform_0, window_bounds = array<i64: 2, 8, 16>}, {pipeline_mode = #tpu.pipeline_mode<synchronous>, transform_indices = @transform_1, window_bounds = array<i64: 16, 32>}, {pipeline_mode = #tpu.pipeline_mode<synchronous>, transform_indices = @transform_2, window_bounds = array<i64: 1, 32>}, {pipeline_mode = #tpu.pipeline_mode<synchronous>, transform_indices = @transform_3, window_bounds = array<i64: 2, 32>}, {pipeline_mode = #tpu.pipeline_mode<synchronous>, transform_indices = @transform_4, window_bounds = array<i64: 32, 32>}, {pipeline_mode = #tpu.pipeline_mode<synchronous>, transform_indices = @transform_5, window_bounds = array<i64: 1, 32>}, {pipeline_mode = #tpu.pipeline_mode<synchronous>, transform_indices = @transform_6, window_bounds = array<i64: 8, 32>}, {transform_indices = @transform_7, window_bounds = array<i64: 1, 1, 32>}, {transform_indices = @transform_8, window_bounds = array<i64: 1, 1, 32>}, {transform_indices = @transform_9, window_bounds = array<i64: 1, 32, 96>}, {transform_indices = @transform_10, window_bounds = array<i64: 1, 1, 96>}, {transform_indices = @transform_11, window_bounds = array<i64: 1, 32, 32>}, {transform_indices = @transform_12, window_bounds = array<i64: 1, 1, 32>}, {transform_indices = @transform_13, window_bounds = array<i64: 1, 1, 32>}, {transform_indices = @transform_14, window_bounds = array<i64: 1, 1, 32>}, {transform_indices = @transform_15, window_bounds = array<i64: 1, 32, 128>}, {transform_indices = @transform_16, window_bounds = array<i64: 1, 1, 128>}, {transform_indices = @transform_17, window_bounds = array<i64: 1, 128, 32>}, {transform_indices = @transform_18, window_bounds = array<i64: 1, 1, 32>}, {pipeline_mode = #tpu.pipeline_mode<synchronous>, transform_indices = @transform_19, window_bounds = array<i64: 1, 32>}, {pipeline_mode = #tpu.pipeline_mode<synchronous>, transform_indices = @transform_20, window_bounds = array<i64: 1, 32>}, {pipeline_mode = #tpu.pipeline_mode<synchronous>, transform_indices = @transform_21, window_bounds = array<i64: 2, 8, 32>}]} {
    %c0_i32 = arith.constant 0 : i32
    %0 = arith.cmpi eq, %arg0, %c0_i32 : i32
    %1 = arith.extui %0 : i1 to i32
    %c0_i32_0 = arith.constant 0 : i32
    %2 = arith.cmpi ne, %1, %c0_i32_0 : i32
    scf.if %2 {
      %c0_77 = arith.constant 0 : index
      %c0_78 = arith.constant 0 : index
      %c0_79 = arith.constant 0 : index
      %182 = vector.load %arg1[%c0_77, %c0_78, %c0_79] : memref<2x8x16xf32, #tpu.memory_space<vmem>>, vector<2x8x16xf32>
      %183 = vector.shape_cast %182 : vector<2x8x16xf32> to vector<16x16xf32>
      %c0_80 = arith.constant 0 : index
      %c0_81 = arith.constant 0 : index
      %184 = vector.load %arg2[%c0_80, %c0_81] : memref<16x32xf32, #tpu.memory_space<vmem>>, vector<16x32xf32>
      %cst_82 = arith.constant dense<0.000000e+00> : vector<16x32xf32>
      %185 = tpu.matmul %183, %184, %cst_82 {dimension_numbers = #tpu.dot_dimension_numbers<[1], [0], [0], [1], [0, 0, 1, 1], [], []>} : vector<16x16xf32>, vector<16x32xf32>, vector<16x32xf32> -> vector<16x32xf32>
      %c0_83 = arith.constant 0 : index
      %c0_84 = arith.constant 0 : index
      %186 = vector.load %arg3[%c0_83, %c0_84] : memref<1x32xf32, #tpu.memory_space<vmem>>, vector<1x32xf32>
      %187 = vector.broadcast %186 : vector<1x32xf32> to vector<16x32xf32>
      %188 = arith.addf %185, %187 : vector<16x32xf32>
      %c0_85 = arith.constant 0 : index
      %c0_86 = arith.constant 0 : index
      %189 = vector.load %arg4[%c0_85, %c0_86] : memref<2x32xf32, #tpu.memory_space<vmem>>, vector<2x32xf32>
      %c0_87 = arith.constant 0 : index
      %c0_88 = arith.constant 0 : index
      %190 = vector.load %arg5[%c0_87, %c0_88] : memref<32x32xf32, #tpu.memory_space<vmem>>, vector<32x32xf32>
      %cst_89 = arith.constant dense<0.000000e+00> : vector<2x32xf32>
      %191 = tpu.matmul %189, %190, %cst_89 {dimension_numbers = #tpu.dot_dimension_numbers<[1], [0], [0], [1], [0, 0, 1, 1], [], []>} : vector<2x32xf32>, vector<32x32xf32>, vector<2x32xf32> -> vector<2x32xf32>
      %c0_90 = arith.constant 0 : index
      %c0_91 = arith.constant 0 : index
      %192 = vector.load %arg6[%c0_90, %c0_91] : memref<1x32xf32, #tpu.memory_space<vmem>>, vector<1x32xf32>
      %193 = vector.broadcast %192 : vector<1x32xf32> to vector<2x32xf32>
      %194 = arith.addf %191, %193 : vector<2x32xf32>
      %195 = vector.shape_cast %188 : vector<16x32xf32> to vector<2x8x32xf32>
      %196 = vector.shape_cast %194 : vector<2x32xf32> to vector<2x1x32xf32>
      %197 = vector.broadcast %196 : vector<2x1x32xf32> to vector<2x8x32xf32>
      %198 = arith.addf %195, %197 : vector<2x8x32xf32>
      %c0_92 = arith.constant 0 : index
      %c0_93 = arith.constant 0 : index
      %199 = vector.load %arg7[%c0_92, %c0_93] : memref<8x32xf32, #tpu.memory_space<vmem>>, vector<8x32xf32>
      %200 = vector.shape_cast %199 : vector<8x32xf32> to vector<1x8x32xf32>
      %201 = vector.broadcast %200 : vector<1x8x32xf32> to vector<2x8x32xf32>
      %202 = arith.addf %198, %201 : vector<2x8x32xf32>
      %203 = vector.shape_cast %202 : vector<2x8x32xf32> to vector<16x32xf32>
      %c0_94 = arith.constant 0 : index
      %c0_95 = arith.constant 0 : index
      %204 = vector.load %arg23[%c0_94, %c0_95] : memref<16x32xf32, #tpu.memory_space<vmem>>, vector<16x32xf32>
      tpu.vector_store %arg23[%c0_94, %c0_95], %203 {strides = array<i32>} : memref<16x32xf32, #tpu.memory_space<vmem>>, vector<16x32xf32>,
    } else {
    }
    %c0 = arith.constant 0 : index
    %c0_1 = arith.constant 0 : index
    %3 = vector.load %arg23[%c0, %c0_1] : memref<16x32xf32, #tpu.memory_space<vmem>>, vector<16x32xf32>
    %c0_2 = arith.constant 0 : index
    %c0_3 = arith.constant 0 : index
    %c0_4 = arith.constant 0 : index
    %4 = vector.load %arg8[%c0_2, %c0_3, %c0_4] : memref<1x1x32xf32, #tpu.memory_space<vmem>>, vector<1x1x32xf32>
    %5 = vector.shape_cast %4 : vector<1x1x32xf32> to vector<1x32xf32>
    %c0_5 = arith.constant 0 : index
    %c0_6 = arith.constant 0 : index
    %c0_7 = arith.constant 0 : index
    %6 = vector.load %arg9[%c0_5, %c0_6, %c0_7] : memref<1x1x32xf32, #tpu.memory_space<vmem>>, vector<1x1x32xf32>
    %7 = vector.shape_cast %6 : vector<1x1x32xf32> to vector<1x32xf32>
    %cst = arith.constant dense<0.000000e+00> : vector<16xf32>
    %8 = vector.multi_reduction <add>, %3, %cst [1] : vector<16x32xf32> to vector<16xf32>
    %9 = vector.shape_cast %8 : vector<16xf32> to vector<16x1xf32>
    %cst_8 = arith.constant 3.200000e+01 : f32
    %10 = vector.broadcast %cst_8 : f32 to vector<16x1xf32>
    %11 = arith.divf %9, %10 : vector<16x1xf32>
    %12 = vector.broadcast %11 : vector<16x1xf32> to vector<16x32xf32>
    %13 = arith.subf %3, %12 : vector<16x32xf32>
    %14 = arith.mulf %13, %13 : vector<16x32xf32>
    %cst_9 = arith.constant dense<0.000000e+00> : vector<16xf32>
    %15 = vector.multi_reduction <add>, %14, %cst_9 [1] : vector<16x32xf32> to vector<16xf32>
    %16 = vector.shape_cast %15 : vector<16xf32> to vector<16x1xf32>
    %cst_10 = arith.constant 3.200000e+01 : f32
    %17 = vector.broadcast %cst_10 : f32 to vector<16x1xf32>
    %18 = arith.divf %16, %17 : vector<16x1xf32>
    %cst_11 = arith.constant 9.99999974E-6 : f32
    %19 = vector.broadcast %cst_11 : f32 to vector<16x1xf32>
    %20 = arith.addf %18, %19 : vector<16x1xf32>
    %21 = math.rsqrt %20 : vector<16x1xf32>
    %22 = vector.broadcast %21 : vector<16x1xf32> to vector<16x32xf32>
    %23 = arith.mulf %13, %22 : vector<16x32xf32>
    %24 = vector.broadcast %5 : vector<1x32xf32> to vector<16x32xf32>
    %25 = arith.mulf %23, %24 : vector<16x32xf32>
    %26 = vector.broadcast %7 : vector<1x32xf32> to vector<16x32xf32>
    %27 = arith.addf %25, %26 : vector<16x32xf32>
    %c0_12 = arith.constant 0 : index
    %c0_13 = arith.constant 0 : index
    %c0_14 = arith.constant 0 : index
    %28 = vector.load %arg10[%c0_12, %c0_13, %c0_14] : memref<1x32x96xf32, #tpu.memory_space<vmem>>, vector<1x32x96xf32>
    %29 = vector.shape_cast %28 : vector<1x32x96xf32> to vector<32x96xf32>
    %cst_15 = arith.constant dense<0.000000e+00> : vector<16x96xf32>
    %30 = tpu.matmul %27, %29, %cst_15 {dimension_numbers = #tpu.dot_dimension_numbers<[1], [0], [0], [1], [0, 0, 1, 1], [], []>} : vector<16x32xf32>, vector<32x96xf32>, vector<16x96xf32> -> vector<16x96xf32>
    %c0_16 = arith.constant 0 : index
    %c0_17 = arith.constant 0 : index
    %c0_18 = arith.constant 0 : index
    %31 = vector.load %arg11[%c0_16, %c0_17, %c0_18] : memref<1x1x96xf32, #tpu.memory_space<vmem>>, vector<1x1x96xf32>
    %32 = vector.shape_cast %31 : vector<1x1x96xf32> to vector<1x96xf32>
    %33 = vector.broadcast %32 : vector<1x96xf32> to vector<16x96xf32>
    %34 = arith.addf %30, %33 : vector<16x96xf32>
    %35 = vector.extract_strided_slice %34 {offsets = [0, 0], sizes = [16, 32], strides = [1, 1]} : vector<16x96xf32> to vector<16x32xf32>
    %36 = vector.extract_strided_slice %34 {offsets = [0, 32], sizes = [16, 32], strides = [1, 1]} : vector<16x96xf32> to vector<16x32xf32>
    %37 = vector.extract_strided_slice %34 {offsets = [0, 64], sizes = [16, 32], strides = [1, 1]} : vector<16x96xf32> to vector<16x32xf32>
    %38 = vector.extract_strided_slice %35 {offsets = [0, 0], sizes = [16, 8], strides = [1, 1]} : vector<16x32xf32> to vector<16x8xf32>
    %39 = vector.shape_cast %38 : vector<16x8xf32> to vector<2x8x8xf32>
    %40 = vector.extract_strided_slice %36 {offsets = [0, 0], sizes = [16, 8], strides = [1, 1]} : vector<16x32xf32> to vector<16x8xf32>
    %41 = vector.shape_cast %40 : vector<16x8xf32> to vector<2x8x8xf32>
    %42 = vector.extract_strided_slice %37 {offsets = [0, 0], sizes = [16, 8], strides = [1, 1]} : vector<16x32xf32> to vector<16x8xf32>
    %43 = vector.shape_cast %42 : vector<16x8xf32> to vector<2x8x8xf32>
    "tpu.trace_start"() <{level = 10 : i32, message = "bqd,bkd->bqk"}> : () -> ()
    %cst_19 = arith.constant dense<0.000000e+00> : vector<2x8x8xf32>
    %44 = tpu.matmul %39, %41, %cst_19 {dimension_numbers = #tpu.dot_dimension_numbers<[2], [2], [1], [1], [0, 0, 0, 1, 1, 1], [0], [0]>} : vector<2x8x8xf32>, vector<2x8x8xf32>, vector<2x8x8xf32> -> vector<2x8x8xf32>
    "tpu.trace_stop"() : () -> ()
    %cst_20 = arith.constant 0.353553385 : f32
    %45 = vector.broadcast %cst_20 : f32 to vector<2x8x8xf32>
    %46 = arith.mulf %44, %45 : vector<2x8x8xf32>
    %cst_21 = arith.constant dense<0xFF800000> : vector<2x8xf32>
    %47 = vector.multi_reduction <maximumf>, %46, %cst_21 [2] : vector<2x8x8xf32> to vector<2x8xf32>
    %48 = vector.shape_cast %47 : vector<2x8xf32> to vector<2x8x1xf32>
    %49 = vector.broadcast %48 : vector<2x8x1xf32> to vector<2x8x8xf32>
    %50 = arith.subf %46, %49 : vector<2x8x8xf32>
    %51 = math.exp %50 : vector<2x8x8xf32>
    %cst_22 = arith.constant dense<0.000000e+00> : vector<2x8xf32>
    %52 = vector.multi_reduction <add>, %51, %cst_22 [2] : vector<2x8x8xf32> to vector<2x8xf32>
    %53 = vector.shape_cast %52 : vector<2x8xf32> to vector<2x8x1xf32>
    %54 = tpu.reciprocal %53 {approx = true} : vector<2x8x1xf32> -> vector<2x8x1xf32>
    %55 = vector.broadcast %54 : vector<2x8x1xf32> to vector<2x8x8xf32>
    %56 = arith.mulf %51, %55 : vector<2x8x8xf32>
    "tpu.trace_start"() <{level = 10 : i32, message = "bqk,bkd->bqd"}> : () -> ()
    %cst_23 = arith.constant dense<0.000000e+00> : vector<2x8x8xf32>
    %57 = tpu.matmul %56, %43, %cst_23 {dimension_numbers = #tpu.dot_dimension_numbers<[2], [1], [1], [2], [0, 0, 0, 1, 1, 2], [0], [0]>} : vector<2x8x8xf32>, vector<2x8x8xf32>, vector<2x8x8xf32> -> vector<2x8x8xf32>
    "tpu.trace_stop"() : () -> ()
    %58 = vector.shape_cast %57 : vector<2x8x8xf32> to vector<16x8xf32>
    %59 = vector.extract_strided_slice %35 {offsets = [0, 8], sizes = [16, 8], strides = [1, 1]} : vector<16x32xf32> to vector<16x8xf32>
    %60 = vector.shape_cast %59 : vector<16x8xf32> to vector<2x8x8xf32>
    %61 = vector.extract_strided_slice %36 {offsets = [0, 8], sizes = [16, 8], strides = [1, 1]} : vector<16x32xf32> to vector<16x8xf32>
    %62 = vector.shape_cast %61 : vector<16x8xf32> to vector<2x8x8xf32>
    %63 = vector.extract_strided_slice %37 {offsets = [0, 8], sizes = [16, 8], strides = [1, 1]} : vector<16x32xf32> to vector<16x8xf32>
    %64 = vector.shape_cast %63 : vector<16x8xf32> to vector<2x8x8xf32>
    "tpu.trace_start"() <{level = 10 : i32, message = "bqd,bkd->bqk"}> : () -> ()
    %cst_24 = arith.constant dense<0.000000e+00> : vector<2x8x8xf32>
    %65 = tpu.matmul %60, %62, %cst_24 {dimension_numbers = #tpu.dot_dimension_numbers<[2], [2], [1], [1], [0, 0, 0, 1, 1, 1], [0], [0]>} : vector<2x8x8xf32>, vector<2x8x8xf32>, vector<2x8x8xf32> -> vector<2x8x8xf32>
    "tpu.trace_stop"() : () -> ()
    %cst_25 = arith.constant 0.353553385 : f32
    %66 = vector.broadcast %cst_25 : f32 to vector<2x8x8xf32>
    %67 = arith.mulf %65, %66 : vector<2x8x8xf32>
    %cst_26 = arith.constant dense<0xFF800000> : vector<2x8xf32>
    %68 = vector.multi_reduction <maximumf>, %67, %cst_26 [2] : vector<2x8x8xf32> to vector<2x8xf32>
    %69 = vector.shape_cast %68 : vector<2x8xf32> to vector<2x8x1xf32>
    %70 = vector.broadcast %69 : vector<2x8x1xf32> to vector<2x8x8xf32>
    %71 = arith.subf %67, %70 : vector<2x8x8xf32>
    %72 = math.exp %71 : vector<2x8x8xf32>
    %cst_27 = arith.constant dense<0.000000e+00> : vector<2x8xf32>
    %73 = vector.multi_reduction <add>, %72, %cst_27 [2] : vector<2x8x8xf32> to vector<2x8xf32>
    %74 = vector.shape_cast %73 : vector<2x8xf32> to vector<2x8x1xf32>
    %75 = tpu.reciprocal %74 {approx = true} : vector<2x8x1xf32> -> vector<2x8x1xf32>
    %76 = vector.broadcast %75 : vector<2x8x1xf32> to vector<2x8x8xf32>
    %77 = arith.mulf %72, %76 : vector<2x8x8xf32>
    "tpu.trace_start"() <{level = 10 : i32, message = "bqk,bkd->bqd"}> : () -> ()
    %cst_28 = arith.constant dense<0.000000e+00> : vector<2x8x8xf32>
    %78 = tpu.matmul %77, %64, %cst_28 {dimension_numbers = #tpu.dot_dimension_numbers<[2], [1], [1], [2], [0, 0, 0, 1, 1, 2], [0], [0]>} : vector<2x8x8xf32>, vector<2x8x8xf32>, vector<2x8x8xf32> -> vector<2x8x8xf32>
    "tpu.trace_stop"() : () -> ()
    %79 = vector.shape_cast %78 : vector<2x8x8xf32> to vector<16x8xf32>
    %80 = vector.extract_strided_slice %35 {offsets = [0, 16], sizes = [16, 8], strides = [1, 1]} : vector<16x32xf32> to vector<16x8xf32>
    %81 = vector.shape_cast %80 : vector<16x8xf32> to vector<2x8x8xf32>
    %82 = vector.extract_strided_slice %36 {offsets = [0, 16], sizes = [16, 8], strides = [1, 1]} : vector<16x32xf32> to vector<16x8xf32>
    %83 = vector.shape_cast %82 : vector<16x8xf32> to vector<2x8x8xf32>
    %84 = vector.extract_strided_slice %37 {offsets = [0, 16], sizes = [16, 8], strides = [1, 1]} : vector<16x32xf32> to vector<16x8xf32>
    %85 = vector.shape_cast %84 : vector<16x8xf32> to vector<2x8x8xf32>
    "tpu.trace_start"() <{level = 10 : i32, message = "bqd,bkd->bqk"}> : () -> ()
    %cst_29 = arith.constant dense<0.000000e+00> : vector<2x8x8xf32>
    %86 = tpu.matmul %81, %83, %cst_29 {dimension_numbers = #tpu.dot_dimension_numbers<[2], [2], [1], [1], [0, 0, 0, 1, 1, 1], [0], [0]>} : vector<2x8x8xf32>, vector<2x8x8xf32>, vector<2x8x8xf32> -> vector<2x8x8xf32>
    "tpu.trace_stop"() : () -> ()
    %cst_30 = arith.constant 0.353553385 : f32
    %87 = vector.broadcast %cst_30 : f32 to vector<2x8x8xf32>
    %88 = arith.mulf %86, %87 : vector<2x8x8xf32>
    %cst_31 = arith.constant dense<0xFF800000> : vector<2x8xf32>
    %89 = vector.multi_reduction <maximumf>, %88, %cst_31 [2] : vector<2x8x8xf32> to vector<2x8xf32>
    %90 = vector.shape_cast %89 : vector<2x8xf32> to vector<2x8x1xf32>
    %91 = vector.broadcast %90 : vector<2x8x1xf32> to vector<2x8x8xf32>
    %92 = arith.subf %88, %91 : vector<2x8x8xf32>
    %93 = math.exp %92 : vector<2x8x8xf32>
    %cst_32 = arith.constant dense<0.000000e+00> : vector<2x8xf32>
    %94 = vector.multi_reduction <add>, %93, %cst_32 [2] : vector<2x8x8xf32> to vector<2x8xf32>
    %95 = vector.shape_cast %94 : vector<2x8xf32> to vector<2x8x1xf32>
    %96 = tpu.reciprocal %95 {approx = true} : vector<2x8x1xf32> -> vector<2x8x1xf32>
    %97 = vector.broadcast %96 : vector<2x8x1xf32> to vector<2x8x8xf32>
    %98 = arith.mulf %93, %97 : vector<2x8x8xf32>
    "tpu.trace_start"() <{level = 10 : i32, message = "bqk,bkd->bqd"}> : () -> ()
    %cst_33 = arith.constant dense<0.000000e+00> : vector<2x8x8xf32>
    %99 = tpu.matmul %98, %85, %cst_33 {dimension_numbers = #tpu.dot_dimension_numbers<[2], [1], [1], [2], [0, 0, 0, 1, 1, 2], [0], [0]>} : vector<2x8x8xf32>, vector<2x8x8xf32>, vector<2x8x8xf32> -> vector<2x8x8xf32>
    "tpu.trace_stop"() : () -> ()
    %100 = vector.shape_cast %99 : vector<2x8x8xf32> to vector<16x8xf32>
    %101 = vector.extract_strided_slice %35 {offsets = [0, 24], sizes = [16, 8], strides = [1, 1]} : vector<16x32xf32> to vector<16x8xf32>
    %102 = vector.shape_cast %101 : vector<16x8xf32> to vector<2x8x8xf32>
    %103 = vector.extract_strided_slice %36 {offsets = [0, 24], sizes = [16, 8], strides = [1, 1]} : vector<16x32xf32> to vector<16x8xf32>
    %104 = vector.shape_cast %103 : vector<16x8xf32> to vector<2x8x8xf32>
    %105 = vector.extract_strided_slice %37 {offsets = [0, 24], sizes = [16, 8], strides = [1, 1]} : vector<16x32xf32> to vector<16x8xf32>
    %106 = vector.shape_cast %105 : vector<16x8xf32> to vector<2x8x8xf32>
    "tpu.trace_start"() <{level = 10 : i32, message = "bqd,bkd->bqk"}> : () -> ()
    %cst_34 = arith.constant dense<0.000000e+00> : vector<2x8x8xf32>
    %107 = tpu.matmul %102, %104, %cst_34 {dimension_numbers = #tpu.dot_dimension_numbers<[2], [2], [1], [1], [0, 0, 0, 1, 1, 1], [0], [0]>} : vector<2x8x8xf32>, vector<2x8x8xf32>, vector<2x8x8xf32> -> vector<2x8x8xf32>
    "tpu.trace_stop"() : () -> ()
    %cst_35 = arith.constant 0.353553385 : f32
    %108 = vector.broadcast %cst_35 : f32 to vector<2x8x8xf32>
    %109 = arith.mulf %107, %108 : vector<2x8x8xf32>
    %cst_36 = arith.constant dense<0xFF800000> : vector<2x8xf32>
    %110 = vector.multi_reduction <maximumf>, %109, %cst_36 [2] : vector<2x8x8xf32> to vector<2x8xf32>
    %111 = vector.shape_cast %110 : vector<2x8xf32> to vector<2x8x1xf32>
    %112 = vector.broadcast %111 : vector<2x8x1xf32> to vector<2x8x8xf32>
    %113 = arith.subf %109, %112 : vector<2x8x8xf32>
    %114 = math.exp %113 : vector<2x8x8xf32>
    %cst_37 = arith.constant dense<0.000000e+00> : vector<2x8xf32>
    %115 = vector.multi_reduction <add>, %114, %cst_37 [2] : vector<2x8x8xf32> to vector<2x8xf32>
    %116 = vector.shape_cast %115 : vector<2x8xf32> to vector<2x8x1xf32>
    %117 = tpu.reciprocal %116 {approx = true} : vector<2x8x1xf32> -> vector<2x8x1xf32>
    %118 = vector.broadcast %117 : vector<2x8x1xf32> to vector<2x8x8xf32>
    %119 = arith.mulf %114, %118 : vector<2x8x8xf32>
    "tpu.trace_start"() <{level = 10 : i32, message = "bqk,bkd->bqd"}> : () -> ()
    %cst_38 = arith.constant dense<0.000000e+00> : vector<2x8x8xf32>
    %120 = tpu.matmul %119, %106, %cst_38 {dimension_numbers = #tpu.dot_dimension_numbers<[2], [1], [1], [2], [0, 0, 0, 1, 1, 2], [0], [0]>} : vector<2x8x8xf32>, vector<2x8x8xf32>, vector<2x8x8xf32> -> vector<2x8x8xf32>
    "tpu.trace_stop"() : () -> ()
    %121 = vector.shape_cast %120 : vector<2x8x8xf32> to vector<16x8xf32>
    %122 = tpu.concatenate %58, %79, %100, %121 in 1 : vector<16x8xf32>, vector<16x8xf32>, vector<16x8xf32>, vector<16x8xf32> -> vector<16x32xf32>
    %c0_39 = arith.constant 0 : index
    %c0_40 = arith.constant 0 : index
    %c0_41 = arith.constant 0 : index
    %123 = vector.load %arg12[%c0_39, %c0_40, %c0_41] : memref<1x32x32xf32, #tpu.memory_space<vmem>>, vector<1x32x32xf32>
    %124 = vector.shape_cast %123 : vector<1x32x32xf32> to vector<32x32xf32>
    %cst_42 = arith.constant dense<0.000000e+00> : vector<16x32xf32>
    %125 = tpu.matmul %122, %124, %cst_42 {dimension_numbers = #tpu.dot_dimension_numbers<[1], [0], [0], [1], [0, 0, 1, 1], [], []>} : vector<16x32xf32>, vector<32x32xf32>, vector<16x32xf32> -> vector<16x32xf32>
    %c0_43 = arith.constant 0 : index
    %c0_44 = arith.constant 0 : index
    %c0_45 = arith.constant 0 : index
    %126 = vector.load %arg13[%c0_43, %c0_44, %c0_45] : memref<1x1x32xf32, #tpu.memory_space<vmem>>, vector<1x1x32xf32>
    %127 = vector.shape_cast %126 : vector<1x1x32xf32> to vector<1x32xf32>
    %128 = vector.broadcast %127 : vector<1x32xf32> to vector<16x32xf32>
    %129 = arith.addf %125, %128 : vector<16x32xf32>
    %130 = arith.addf %3, %129 : vector<16x32xf32>
    %c0_46 = arith.constant 0 : index
    %c0_47 = arith.constant 0 : index
    %c0_48 = arith.constant 0 : index
    %131 = vector.load %arg14[%c0_46, %c0_47, %c0_48] : memref<1x1x32xf32, #tpu.memory_space<vmem>>, vector<1x1x32xf32>
    %132 = vector.shape_cast %131 : vector<1x1x32xf32> to vector<1x32xf32>
    %c0_49 = arith.constant 0 : index
    %c0_50 = arith.constant 0 : index
    %c0_51 = arith.constant 0 : index
    %133 = vector.load %arg15[%c0_49, %c0_50, %c0_51] : memref<1x1x32xf32, #tpu.memory_space<vmem>>, vector<1x1x32xf32>
    %134 = vector.shape_cast %133 : vector<1x1x32xf32> to vector<1x32xf32>
    %cst_52 = arith.constant dense<0.000000e+00> : vector<16xf32>
    %135 = vector.multi_reduction <add>, %130, %cst_52 [1] : vector<16x32xf32> to vector<16xf32>
    %136 = vector.shape_cast %135 : vector<16xf32> to vector<16x1xf32>
    %cst_53 = arith.constant 3.200000e+01 : f32
    %137 = vector.broadcast %cst_53 : f32 to vector<16x1xf32>
    %138 = arith.divf %136, %137 : vector<16x1xf32>
    %139 = vector.broadcast %138 : vector<16x1xf32> to vector<16x32xf32>
    %140 = arith.subf %130, %139 : vector<16x32xf32>
    %141 = arith.mulf %140, %140 : vector<16x32xf32>
    %cst_54 = arith.constant dense<0.000000e+00> : vector<16xf32>
    %142 = vector.multi_reduction <add>, %141, %cst_54 [1] : vector<16x32xf32> to vector<16xf32>
    %143 = vector.shape_cast %142 : vector<16xf32> to vector<16x1xf32>
    %cst_55 = arith.constant 3.200000e+01 : f32
    %144 = vector.broadcast %cst_55 : f32 to vector<16x1xf32>
    %145 = arith.divf %143, %144 : vector<16x1xf32>
    %cst_56 = arith.constant 9.99999974E-6 : f32
    %146 = vector.broadcast %cst_56 : f32 to vector<16x1xf32>
    %147 = arith.addf %145, %146 : vector<16x1xf32>
    %148 = math.rsqrt %147 : vector<16x1xf32>
    %149 = vector.broadcast %148 : vector<16x1xf32> to vector<16x32xf32>
    %150 = arith.mulf %140, %149 : vector<16x32xf32>
    %151 = vector.broadcast %132 : vector<1x32xf32> to vector<16x32xf32>
    %152 = arith.mulf %150, %151 : vector<16x32xf32>
    %153 = vector.broadcast %134 : vector<1x32xf32> to vector<16x32xf32>
    %154 = arith.addf %152, %153 : vector<16x32xf32>
    %c0_57 = arith.constant 0 : index
    %c0_58 = arith.constant 0 : index
    %c0_59 = arith.constant 0 : index
    %155 = vector.load %arg16[%c0_57, %c0_58, %c0_59] : memref<1x32x128xf32, #tpu.memory_space<vmem>>, vector<1x32x128xf32>
    %156 = vector.shape_cast %155 : vector<1x32x128xf32> to vector<32x128xf32>
    %cst_60 = arith.constant dense<0.000000e+00> : vector<16x128xf32>
    %157 = tpu.matmul %154, %156, %cst_60 {dimension_numbers = #tpu.dot_dimension_numbers<[1], [0], [0], [1], [0, 0, 1, 1], [], []>} : vector<16x32xf32>, vector<32x128xf32>, vector<16x128xf32> -> vector<16x128xf32>
    %c0_61 = arith.constant 0 : index
    %c0_62 = arith.constant 0 : index
    %c0_63 = arith.constant 0 : index
    %158 = vector.load %arg17[%c0_61, %c0_62, %c0_63] : memref<1x1x128xf32, #tpu.memory_space<vmem>>, vector<1x1x128xf32>
    %159 = vector.shape_cast %158 : vector<1x1x128xf32> to vector<1x128xf32>
    %160 = vector.broadcast %159 : vector<1x128xf32> to vector<16x128xf32>
    %161 = arith.addf %157, %160 : vector<16x128xf32>
    %cst_64 = arith.constant 5.000000e-01 : f32
    %162 = vector.broadcast %cst_64 : f32 to vector<16x128xf32>
    %163 = arith.mulf %162, %161 : vector<16x128xf32>
    %cst_65 = arith.constant 0.707106769 : f32
    %164 = vector.broadcast %cst_65 : f32 to vector<16x128xf32>
    %165 = arith.mulf %161, %164 : vector<16x128xf32>
    %166 = math.erf %165 : vector<16x128xf32>
    %cst_66 = arith.constant 1.000000e+00 : f32
    %167 = vector.broadcast %cst_66 : f32 to vector<16x128xf32>
    %168 = arith.addf %167, %166 : vector<16x128xf32>
    %169 = arith.mulf %163, %168 : vector<16x128xf32>
    %c0_67 = arith.constant 0 : index
    %c0_68 = arith.constant 0 : index
    %c0_69 = arith.constant 0 : index
    %170 = vector.load %arg18[%c0_67, %c0_68, %c0_69] : memref<1x128x32xf32, #tpu.memory_space<vmem>>, vector<1x128x32xf32>
    %171 = vector.shape_cast %170 : vector<1x128x32xf32> to vector<128x32xf32>
    %cst_70 = arith.constant dense<0.000000e+00> : vector<16x32xf32>
    %172 = tpu.matmul %169, %171, %cst_70 {dimension_numbers = #tpu.dot_dimension_numbers<[1], [0], [0], [1], [0, 0, 1, 1], [], []>} : vector<16x128xf32>, vector<128x32xf32>, vector<16x32xf32> -> vector<16x32xf32>
    %c0_71 = arith.constant 0 : index
    %c0_72 = arith.constant 0 : index
    %c0_73 = arith.constant 0 : index
    %173 = vector.load %arg19[%c0_71, %c0_72, %c0_73] : memref<1x1x32xf32, #tpu.memory_space<vmem>>, vector<1x1x32xf32>
    %174 = vector.shape_cast %173 : vector<1x1x32xf32> to vector<1x32xf32>
    %175 = vector.broadcast %174 : vector<1x32xf32> to vector<16x32xf32>
    %176 = arith.addf %172, %175 : vector<16x32xf32>
    %177 = arith.addf %130, %176 : vector<16x32xf32>
    %c0_74 = arith.constant 0 : index
    %c0_75 = arith.constant 0 : index
    %178 = vector.load %arg23[%c0_74, %c0_75] : memref<16x32xf32, #tpu.memory_space<vmem>>, vector<16x32xf32>
    tpu.vector_store %arg23[%c0_74, %c0_75], %177 {strides = array<i32>} : memref<16x32xf32, #tpu.memory_space<vmem>>, vector<16x32xf32>,
    %c1_i32 = arith.constant 1 : i32
    %179 = arith.cmpi eq, %arg0, %c1_i32 : i32
    %180 = arith.extui %179 : i1 to i32
    %c0_i32_76 = arith.constant 0 : i32
    %181 = arith.cmpi ne, %180, %c0_i32_76 : i32
    scf.if %181 {
      %c0_77 = arith.constant 0 : index
      %c0_78 = arith.constant 0 : index
      %182 = vector.load %arg20[%c0_77, %c0_78] : memref<1x32xf32, #tpu.memory_space<vmem>>, vector<1x32xf32>
      %c0_79 = arith.constant 0 : index
      %c0_80 = arith.constant 0 : index
      %183 = vector.load %arg21[%c0_79, %c0_80] : memref<1x32xf32, #tpu.memory_space<vmem>>, vector<1x32xf32>
      %cst_81 = arith.constant dense<0.000000e+00> : vector<16xf32>
      %184 = vector.multi_reduction <add>, %177, %cst_81 [1] : vector<16x32xf32> to vector<16xf32>
      %185 = vector.shape_cast %184 : vector<16xf32> to vector<16x1xf32>
      %cst_82 = arith.constant 3.200000e+01 : f32
      %186 = vector.broadcast %cst_82 : f32 to vector<16x1xf32>
      %187 = arith.divf %185, %186 : vector<16x1xf32>
      %188 = vector.broadcast %187 : vector<16x1xf32> to vector<16x32xf32>
      %189 = arith.subf %177, %188 : vector<16x32xf32>
      %190 = arith.mulf %189, %189 : vector<16x32xf32>
      %cst_83 = arith.constant dense<0.000000e+00> : vector<16xf32>
      %191 = vector.multi_reduction <add>, %190, %cst_83 [1] : vector<16x32xf32> to vector<16xf32>
      %192 = vector.shape_cast %191 : vector<16xf32> to vector<16x1xf32>
      %cst_84 = arith.constant 3.200000e+01 : f32
      %193 = vector.broadcast %cst_84 : f32 to vector<16x1xf32>
      %194 = arith.divf %192, %193 : vector<16x1xf32>
      %cst_85 = arith.constant 9.99999974E-6 : f32
      %195 = vector.broadcast %cst_85 : f32 to vector<16x1xf32>
      %196 = arith.addf %194, %195 : vector<16x1xf32>
      %197 = math.rsqrt %196 : vector<16x1xf32>
      %198 = vector.broadcast %197 : vector<16x1xf32> to vector<16x32xf32>
      %199 = arith.mulf %189, %198 : vector<16x32xf32>
      %200 = vector.broadcast %182 : vector<1x32xf32> to vector<16x32xf32>
      %201 = arith.mulf %199, %200 : vector<16x32xf32>
      %202 = vector.broadcast %183 : vector<1x32xf32> to vector<16x32xf32>
      %203 = arith.addf %201, %202 : vector<16x32xf32>
      %204 = vector.shape_cast %203 : vector<16x32xf32> to vector<2x8x32xf32>
      %c0_86 = arith.constant 0 : index
      %c0_87 = arith.constant 0 : index
      %c0_88 = arith.constant 0 : index
      %205 = vector.load %arg22[%c0_86, %c0_87, %c0_88] : memref<2x8x32xf32, #tpu.memory_space<vmem>>, vector<2x8x32xf32>
      tpu.vector_store %arg22[%c0_86, %c0_87, %c0_88], %204 {strides = array<i32>} : memref<2x8x32xf32, #tpu.memory_space<vmem>>, vector<2x8x32xf32>,
    } else {
    }
    return
  }
  func.func @transform_0(%arg0: i32) -> (i32, i32, i32) {
    %c0_i32 = arith.constant 0 : i32
    %c0_i32_0 = arith.constant 0 : i32
    %c0_i32_1 = arith.constant 0 : i32
    %c0_i32_2 = arith.constant 0 : i32
    return %c0_i32, %c0_i32_0, %c0_i32_1 : i32, i32, i32
  }
  func.func @transform_1(%arg0: i32) -> (i32, i32) {
    %c0_i32 = arith.constant 0 : i32
    %c0_i32_0 = arith.constant 0 : i32
    %c0_i32_1 = arith.constant 0 : i32
    return %c0_i32, %c0_i32_0 : i32, i32
  }
  func.func @transform_2(%arg0: i32) -> (i32, i32) {
    %c0_i32 = arith.constant 0 : i32
    %c0_i32_0 = arith.constant 0 : i32
    %c0_i32_1 = arith.constant 0 : i32
    return %c0_i32, %c0_i32_0 : i32, i32
  }
  func.func @transform_3(%arg0: i32) -> (i32, i32) {
    %c0_i32 = arith.constant 0 : i32
    %c0_i32_0 = arith.constant 0 : i32
    %c0_i32_1 = arith.constant 0 : i32
    return %c0_i32, %c0_i32_0 : i32, i32
  }
  func.func @transform_4(%arg0: i32) -> (i32, i32) {
    %c0_i32 = arith.constant 0 : i32
    %c0_i32_0 = arith.constant 0 : i32
    %c0_i32_1 = arith.constant 0 : i32
    return %c0_i32, %c0_i32_0 : i32, i32
  }
  func.func @transform_5(%arg0: i32) -> (i32, i32) {
    %c0_i32 = arith.constant 0 : i32
    %c0_i32_0 = arith.constant 0 : i32
    %c0_i32_1 = arith.constant 0 : i32
    return %c0_i32, %c0_i32_0 : i32, i32
  }
  func.func @transform_6(%arg0: i32) -> (i32, i32) {
    %c0_i32 = arith.constant 0 : i32
    %c0_i32_0 = arith.constant 0 : i32
    %c0_i32_1 = arith.constant 0 : i32
    return %c0_i32, %c0_i32_0 : i32, i32
  }
  func.func @transform_7(%arg0: i32) -> (i32, i32, i32) {
    %c0_i32 = arith.constant 0 : i32
    %c0_i32_0 = arith.constant 0 : i32
    %c0_i32_1 = arith.constant 0 : i32
    return %arg0, %c0_i32, %c0_i32_0 : i32, i32, i32
  }
  func.func @transform_8(%arg0: i32) -> (i32, i32, i32) {
    %c0_i32 = arith.constant 0 : i32
    %c0_i32_0 = arith.constant 0 : i32
    %c0_i32_1 = arith.constant 0 : i32
    return %arg0, %c0_i32, %c0_i32_0 : i32, i32, i32
  }
  func.func @transform_9(%arg0: i32) -> (i32, i32, i32) {
    %c0_i32 = arith.constant 0 : i32
    %c0_i32_0 = arith.constant 0 : i32
    %c0_i32_1 = arith.constant 0 : i32
    return %arg0, %c0_i32, %c0_i32_0 : i32, i32, i32
  }
  func.func @transform_10(%arg0: i32) -> (i32, i32, i32) {
    %c0_i32 = arith.constant 0 : i32
    %c0_i32_0 = arith.constant 0 : i32
    %c0_i32_1 = arith.constant 0 : i32
    return %arg0, %c0_i32, %c0_i32_0 : i32, i32, i32
  }
  func.func @transform_11(%arg0: i32) -> (i32, i32, i32) {
    %c0_i32 = arith.constant 0 : i32
    %c0_i32_0 = arith.constant 0 : i32
    %c0_i32_1 = arith.constant 0 : i32
    return %arg0, %c0_i32, %c0_i32_0 : i32, i32, i32
  }
  func.func @transform_12(%arg0: i32) -> (i32, i32, i32) {
    %c0_i32 = arith.constant 0 : i32
    %c0_i32_0 = arith.constant 0 : i32
    %c0_i32_1 = arith.constant 0 : i32
    return %arg0, %c0_i32, %c0_i32_0 : i32, i32, i32
  }
  func.func @transform_13(%arg0: i32) -> (i32, i32, i32) {
    %c0_i32 = arith.constant 0 : i32
    %c0_i32_0 = arith.constant 0 : i32
    %c0_i32_1 = arith.constant 0 : i32
    return %arg0, %c0_i32, %c0_i32_0 : i32, i32, i32
  }
  func.func @transform_14(%arg0: i32) -> (i32, i32, i32) {
    %c0_i32 = arith.constant 0 : i32
    %c0_i32_0 = arith.constant 0 : i32
    %c0_i32_1 = arith.constant 0 : i32
    return %arg0, %c0_i32, %c0_i32_0 : i32, i32, i32
  }
  func.func @transform_15(%arg0: i32) -> (i32, i32, i32) {
    %c0_i32 = arith.constant 0 : i32
    %c0_i32_0 = arith.constant 0 : i32
    %c0_i32_1 = arith.constant 0 : i32
    return %arg0, %c0_i32, %c0_i32_0 : i32, i32, i32
  }
  func.func @transform_16(%arg0: i32) -> (i32, i32, i32) {
    %c0_i32 = arith.constant 0 : i32
    %c0_i32_0 = arith.constant 0 : i32
    %c0_i32_1 = arith.constant 0 : i32
    return %arg0, %c0_i32, %c0_i32_0 : i32, i32, i32
  }
  func.func @transform_17(%arg0: i32) -> (i32, i32, i32) {
    %c0_i32 = arith.constant 0 : i32
    %c0_i32_0 = arith.constant 0 : i32
    %c0_i32_1 = arith.constant 0 : i32
    return %arg0, %c0_i32, %c0_i32_0 : i32, i32, i32
  }
  func.func @transform_18(%arg0: i32) -> (i32, i32, i32) {
    %c0_i32 = arith.constant 0 : i32
    %c0_i32_0 = arith.constant 0 : i32
    %c0_i32_1 = arith.constant 0 : i32
    return %arg0, %c0_i32, %c0_i32_0 : i32, i32, i32
  }
  func.func @transform_19(%arg0: i32) -> (i32, i32) {
    %c0_i32 = arith.constant 0 : i32
    %c0_i32_0 = arith.constant 0 : i32
    %c0_i32_1 = arith.constant 0 : i32
    return %c0_i32, %c0_i32_0 : i32, i32
  }
  func.func @transform_20(%arg0: i32) -> (i32, i32) {
    %c0_i32 = arith.constant 0 : i32
    %c0_i32_0 = arith.constant 0 : i32
    %c0_i32_1 = arith.constant 0 : i32
    return %c0_i32, %c0_i32_0 : i32, i32
  }
  func.func @transform_21(%arg0: i32) -> (i32, i32, i32) {
    %c0_i32 = arith.constant 0 : i32
    %c0_i32_0 = arith.constant 0 : i32
    %c0_i32_1 = arith.constant 0 : i32
    %c0_i32_2 = arith.constant 0 : i32
    return %c0_i32, %c0_i32_0, %c0_i32_1 : i32, i32, i32
  }
}

module attributes {stable_mosaic.version = 11 : i64} {
  func.func @_decoder_stack_kernel(%arg0: i32, %arg1: memref<1x32xf32, #tpu.memory_space<vmem>>, %arg2: memref<8x32xf32, #tpu.memory_space<vmem>>, %arg3: memref<2x8x32xf32, #tpu.memory_space<vmem>>, %arg4: memref<1x1x32xf32, #tpu.memory_space<vmem>>, %arg5: memref<1x1x32xf32, #tpu.memory_space<vmem>>, %arg6: memref<1x32x96xf32, #tpu.memory_space<vmem>>, %arg7: memref<1x1x96xf32, #tpu.memory_space<vmem>>, %arg8: memref<1x32x32xf32, #tpu.memory_space<vmem>>, %arg9: memref<1x1x32xf32, #tpu.memory_space<vmem>>, %arg10: memref<1x1x32xf32, #tpu.memory_space<vmem>>, %arg11: memref<1x1x32xf32, #tpu.memory_space<vmem>>, %arg12: memref<1x32x32xf32, #tpu.memory_space<vmem>>, %arg13: memref<1x1x32xf32, #tpu.memory_space<vmem>>, %arg14: memref<1x32x64xf32, #tpu.memory_space<vmem>>, %arg15: memref<1x1x64xf32, #tpu.memory_space<vmem>>, %arg16: memref<1x32x32xf32, #tpu.memory_space<vmem>>, %arg17: memref<1x1x32xf32, #tpu.memory_space<vmem>>, %arg18: memref<1x1x32xf32, #tpu.memory_space<vmem>>, %arg19: memref<1x1x32xf32, #tpu.memory_space<vmem>>, %arg20: memref<1x32x128xf32, #tpu.memory_space<vmem>>, %arg21: memref<1x1x128xf32, #tpu.memory_space<vmem>>, %arg22: memref<1x128x32xf32, #tpu.memory_space<vmem>>, %arg23: memref<1x1x32xf32, #tpu.memory_space<vmem>>, %arg24: memref<1x32xf32, #tpu.memory_space<vmem>>, %arg25: memref<1x32xf32, #tpu.memory_space<vmem>>, %arg26: memref<32x32xf32, #tpu.memory_space<vmem>>, %arg27: memref<1x32xf32, #tpu.memory_space<vmem>>, %arg28: memref<2x8x32xf32, #tpu.memory_space<vmem>>, %arg29: memref<16x32xf32, #tpu.memory_space<vmem>>) attributes {dimension_semantics = [#tpu.dimension_semantics<arbitrary>], iteration_bounds = array<i64: 2>, scalar_prefetch = 0 : i64, scratch_operands = 1 : i64, tpu.core_type = #tpu.core_type<tc>, window_params = [{pipeline_mode = #tpu.pipeline_mode<synchronous>, transform_indices = @transform_0, window_bounds = array<i64: 1, 32>}, {pipeline_mode = #tpu.pipeline_mode<synchronous>, transform_indices = @transform_1, window_bounds = array<i64: 8, 32>}, {pipeline_mode = #tpu.pipeline_mode<synchronous>, transform_indices = @transform_2, window_bounds = array<i64: 2, 8, 32>}, {transform_indices = @transform_3, window_bounds = array<i64: 1, 1, 32>}, {transform_indices = @transform_4, window_bounds = array<i64: 1, 1, 32>}, {transform_indices = @transform_5, window_bounds = array<i64: 1, 32, 96>}, {transform_indices = @transform_6, window_bounds = array<i64: 1, 1, 96>}, {transform_indices = @transform_7, window_bounds = array<i64: 1, 32, 32>}, {transform_indices = @transform_8, window_bounds = array<i64: 1, 1, 32>}, {transform_indices = @transform_9, window_bounds = array<i64: 1, 1, 32>}, {transform_indices = @transform_10, window_bounds = array<i64: 1, 1, 32>}, {transform_indices = @transform_11, window_bounds = array<i64: 1, 32, 32>}, {transform_indices = @transform_12, window_bounds = array<i64: 1, 1, 32>}, {transform_indices = @transform_13, window_bounds = array<i64: 1, 32, 64>}, {transform_indices = @transform_14, window_bounds = array<i64: 1, 1, 64>}, {transform_indices = @transform_15, window_bounds = array<i64: 1, 32, 32>}, {transform_indices = @transform_16, window_bounds = array<i64: 1, 1, 32>}, {transform_indices = @transform_17, window_bounds = array<i64: 1, 1, 32>}, {transform_indices = @transform_18, window_bounds = array<i64: 1, 1, 32>}, {transform_indices = @transform_19, window_bounds = array<i64: 1, 32, 128>}, {transform_indices = @transform_20, window_bounds = array<i64: 1, 1, 128>}, {transform_indices = @transform_21, window_bounds = array<i64: 1, 128, 32>}, {transform_indices = @transform_22, window_bounds = array<i64: 1, 1, 32>}, {pipeline_mode = #tpu.pipeline_mode<synchronous>, transform_indices = @transform_23, window_bounds = array<i64: 1, 32>}, {pipeline_mode = #tpu.pipeline_mode<synchronous>, transform_indices = @transform_24, window_bounds = array<i64: 1, 32>}, {pipeline_mode = #tpu.pipeline_mode<synchronous>, transform_indices = @transform_25, window_bounds = array<i64: 32, 32>}, {pipeline_mode = #tpu.pipeline_mode<synchronous>, transform_indices = @transform_26, window_bounds = array<i64: 1, 32>}, {pipeline_mode = #tpu.pipeline_mode<synchronous>, transform_indices = @transform_27, window_bounds = array<i64: 2, 8, 32>}]} {
    %c0_i32 = arith.constant 0 : i32
    %0 = arith.cmpi eq, %arg0, %c0_i32 : i32
    %1 = arith.extui %0 : i1 to i32
    %c0_i32_0 = arith.constant 0 : i32
    %2 = arith.cmpi ne, %1, %c0_i32_0 : i32
    scf.if %2 {
      %c0_134 = arith.constant 0 : index
      %c0_135 = arith.constant 0 : index
      %332 = vector.load %arg1[%c0_134, %c0_135] : memref<1x32xf32, #tpu.memory_space<vmem>>, vector<1x32xf32>
      %c0_136 = arith.constant 0 : index
      %c0_137 = arith.constant 0 : index
      %333 = vector.load %arg2[%c0_136, %c0_137] : memref<8x32xf32, #tpu.memory_space<vmem>>, vector<8x32xf32>
      %334 = vector.broadcast %332 : vector<1x32xf32> to vector<8x32xf32>
      %335 = arith.addf %334, %333 : vector<8x32xf32>
      %336 = vector.shape_cast %335 : vector<8x32xf32> to vector<1x8x32xf32>
      %337 = vector.shape_cast %336 : vector<1x8x32xf32> to vector<1x8x32xf32>
      %338 = vector.broadcast %337 : vector<1x8x32xf32> to vector<2x8x32xf32>
      %339 = vector.shape_cast %338 : vector<2x8x32xf32> to vector<16x32xf32>
      %c0_138 = arith.constant 0 : index
      %c0_139 = arith.constant 0 : index
      %340 = vector.load %arg29[%c0_138, %c0_139] : memref<16x32xf32, #tpu.memory_space<vmem>>, vector<16x32xf32>
      tpu.vector_store %arg29[%c0_138, %c0_139], %339 {strides = array<i32>} : memref<16x32xf32, #tpu.memory_space<vmem>>, vector<16x32xf32>,
    } else {
    }
    %c0 = arith.constant 0 : index
    %c0_1 = arith.constant 0 : index
    %3 = vector.load %arg29[%c0, %c0_1] : memref<16x32xf32, #tpu.memory_space<vmem>>, vector<16x32xf32>
    %c0_2 = arith.constant 0 : index
    %c0_3 = arith.constant 0 : index
    %c0_4 = arith.constant 0 : index
    %4 = vector.load %arg3[%c0_2, %c0_3, %c0_4] : memref<2x8x32xf32, #tpu.memory_space<vmem>>, vector<2x8x32xf32>
    %5 = vector.shape_cast %4 : vector<2x8x32xf32> to vector<16x32xf32>
    %c0_5 = arith.constant 0 : index
    %c0_6 = arith.constant 0 : index
    %c0_7 = arith.constant 0 : index
    %6 = vector.load %arg4[%c0_5, %c0_6, %c0_7] : memref<1x1x32xf32, #tpu.memory_space<vmem>>, vector<1x1x32xf32>
    %7 = vector.shape_cast %6 : vector<1x1x32xf32> to vector<1x32xf32>
    %c0_8 = arith.constant 0 : index
    %c0_9 = arith.constant 0 : index
    %c0_10 = arith.constant 0 : index
    %8 = vector.load %arg5[%c0_8, %c0_9, %c0_10] : memref<1x1x32xf32, #tpu.memory_space<vmem>>, vector<1x1x32xf32>
    %9 = vector.shape_cast %8 : vector<1x1x32xf32> to vector<1x32xf32>
    %cst = arith.constant dense<0.000000e+00> : vector<16xf32>
    %10 = vector.multi_reduction <add>, %3, %cst [1] : vector<16x32xf32> to vector<16xf32>
    %11 = vector.shape_cast %10 : vector<16xf32> to vector<16x1xf32>
    %cst_11 = arith.constant 3.200000e+01 : f32
    %12 = vector.broadcast %cst_11 : f32 to vector<16x1xf32>
    %13 = arith.divf %11, %12 : vector<16x1xf32>
    %14 = vector.broadcast %13 : vector<16x1xf32> to vector<16x32xf32>
    %15 = arith.subf %3, %14 : vector<16x32xf32>
    %16 = arith.mulf %15, %15 : vector<16x32xf32>
    %cst_12 = arith.constant dense<0.000000e+00> : vector<16xf32>
    %17 = vector.multi_reduction <add>, %16, %cst_12 [1] : vector<16x32xf32> to vector<16xf32>
    %18 = vector.shape_cast %17 : vector<16xf32> to vector<16x1xf32>
    %cst_13 = arith.constant 3.200000e+01 : f32
    %19 = vector.broadcast %cst_13 : f32 to vector<16x1xf32>
    %20 = arith.divf %18, %19 : vector<16x1xf32>
    %cst_14 = arith.constant 9.99999974E-6 : f32
    %21 = vector.broadcast %cst_14 : f32 to vector<16x1xf32>
    %22 = arith.addf %20, %21 : vector<16x1xf32>
    %23 = math.rsqrt %22 : vector<16x1xf32>
    %24 = vector.broadcast %23 : vector<16x1xf32> to vector<16x32xf32>
    %25 = arith.mulf %15, %24 : vector<16x32xf32>
    %26 = vector.broadcast %7 : vector<1x32xf32> to vector<16x32xf32>
    %27 = arith.mulf %25, %26 : vector<16x32xf32>
    %28 = vector.broadcast %9 : vector<1x32xf32> to vector<16x32xf32>
    %29 = arith.addf %27, %28 : vector<16x32xf32>
    %c0_15 = arith.constant 0 : index
    %c0_16 = arith.constant 0 : index
    %c0_17 = arith.constant 0 : index
    %30 = vector.load %arg6[%c0_15, %c0_16, %c0_17] : memref<1x32x96xf32, #tpu.memory_space<vmem>>, vector<1x32x96xf32>
    %31 = vector.shape_cast %30 : vector<1x32x96xf32> to vector<32x96xf32>
    %cst_18 = arith.constant dense<0.000000e+00> : vector<16x96xf32>
    %32 = tpu.matmul %29, %31, %cst_18 {dimension_numbers = #tpu.dot_dimension_numbers<[1], [0], [0], [1], [0, 0, 1, 1], [], []>} : vector<16x32xf32>, vector<32x96xf32>, vector<16x96xf32> -> vector<16x96xf32>
    %c0_19 = arith.constant 0 : index
    %c0_20 = arith.constant 0 : index
    %c0_21 = arith.constant 0 : index
    %33 = vector.load %arg7[%c0_19, %c0_20, %c0_21] : memref<1x1x96xf32, #tpu.memory_space<vmem>>, vector<1x1x96xf32>
    %34 = vector.shape_cast %33 : vector<1x1x96xf32> to vector<1x96xf32>
    %35 = vector.broadcast %34 : vector<1x96xf32> to vector<16x96xf32>
    %36 = arith.addf %32, %35 : vector<16x96xf32>
    %37 = vector.extract_strided_slice %36 {offsets = [0, 0], sizes = [16, 32], strides = [1, 1]} : vector<16x96xf32> to vector<16x32xf32>
    %38 = vector.extract_strided_slice %36 {offsets = [0, 32], sizes = [16, 32], strides = [1, 1]} : vector<16x96xf32> to vector<16x32xf32>
    %39 = vector.extract_strided_slice %36 {offsets = [0, 64], sizes = [16, 32], strides = [1, 1]} : vector<16x96xf32> to vector<16x32xf32>
    %40 = tpu.iota {dimensions = array<i32: 0>} : vector<8x8xi32>
    %41 = tpu.iota {dimensions = array<i32: 1>} : vector<8x8xi32>
    %42 = arith.cmpi sle, %41, %40 : vector<8x8xi32>
    %cst_22 = arith.constant 0.000000e+00 : f32
    %cst_23 = arith.constant -1.000000e+30 : f32
    %43 = vector.broadcast %cst_22 : f32 to vector<8x8xf32>
    %44 = vector.broadcast %cst_23 : f32 to vector<8x8xf32>
    %45 = arith.select %42, %43, %44 : vector<8x8xi1>, vector<8x8xf32>
    %46 = vector.shape_cast %45 : vector<8x8xf32> to vector<1x8x8xf32>
    %47 = vector.extract_strided_slice %37 {offsets = [0, 0], sizes = [16, 8], strides = [1, 1]} : vector<16x32xf32> to vector<16x8xf32>
    %48 = vector.shape_cast %47 : vector<16x8xf32> to vector<2x8x8xf32>
    %49 = vector.extract_strided_slice %38 {offsets = [0, 0], sizes = [16, 8], strides = [1, 1]} : vector<16x32xf32> to vector<16x8xf32>
    %50 = vector.shape_cast %49 : vector<16x8xf32> to vector<2x8x8xf32>
    %51 = vector.extract_strided_slice %39 {offsets = [0, 0], sizes = [16, 8], strides = [1, 1]} : vector<16x32xf32> to vector<16x8xf32>
    %52 = vector.shape_cast %51 : vector<16x8xf32> to vector<2x8x8xf32>
    "tpu.trace_start"() <{level = 10 : i32, message = "bqd,bkd->bqk"}> : () -> ()
    %cst_24 = arith.constant dense<0.000000e+00> : vector<2x8x8xf32>
    %53 = tpu.matmul %48, %50, %cst_24 {dimension_numbers = #tpu.dot_dimension_numbers<[2], [2], [1], [1], [0, 0, 0, 1, 1, 1], [0], [0]>} : vector<2x8x8xf32>, vector<2x8x8xf32>, vector<2x8x8xf32> -> vector<2x8x8xf32>
    "tpu.trace_stop"() : () -> ()
    %cst_25 = arith.constant 0.353553385 : f32
    %54 = vector.broadcast %cst_25 : f32 to vector<2x8x8xf32>
    %55 = arith.mulf %53, %54 : vector<2x8x8xf32>
    %56 = vector.broadcast %46 : vector<1x8x8xf32> to vector<2x8x8xf32>
    %57 = arith.addf %55, %56 : vector<2x8x8xf32>
    %cst_26 = arith.constant dense<0xFF800000> : vector<2x8xf32>
    %58 = vector.multi_reduction <maximumf>, %57, %cst_26 [2] : vector<2x8x8xf32> to vector<2x8xf32>
    %59 = vector.shape_cast %58 : vector<2x8xf32> to vector<2x8x1xf32>
    %60 = vector.broadcast %59 : vector<2x8x1xf32> to vector<2x8x8xf32>
    %61 = arith.subf %57, %60 : vector<2x8x8xf32>
    %62 = math.exp %61 : vector<2x8x8xf32>
    %cst_27 = arith.constant dense<0.000000e+00> : vector<2x8xf32>
    %63 = vector.multi_reduction <add>, %62, %cst_27 [2] : vector<2x8x8xf32> to vector<2x8xf32>
    %64 = vector.shape_cast %63 : vector<2x8xf32> to vector<2x8x1xf32>
    %65 = tpu.reciprocal %64 {approx = true} : vector<2x8x1xf32> -> vector<2x8x1xf32>
    %66 = vector.broadcast %65 : vector<2x8x1xf32> to vector<2x8x8xf32>
    %67 = arith.mulf %62, %66 : vector<2x8x8xf32>
    "tpu.trace_start"() <{level = 10 : i32, message = "bqk,bkd->bqd"}> : () -> ()
    %cst_28 = arith.constant dense<0.000000e+00> : vector<2x8x8xf32>
    %68 = tpu.matmul %67, %52, %cst_28 {dimension_numbers = #tpu.dot_dimension_numbers<[2], [1], [1], [2], [0, 0, 0, 1, 1, 2], [0], [0]>} : vector<2x8x8xf32>, vector<2x8x8xf32>, vector<2x8x8xf32> -> vector<2x8x8xf32>
    "tpu.trace_stop"() : () -> ()
    %69 = vector.shape_cast %68 : vector<2x8x8xf32> to vector<16x8xf32>
    %70 = vector.extract_strided_slice %37 {offsets = [0, 8], sizes = [16, 8], strides = [1, 1]} : vector<16x32xf32> to vector<16x8xf32>
    %71 = vector.shape_cast %70 : vector<16x8xf32> to vector<2x8x8xf32>
    %72 = vector.extract_strided_slice %38 {offsets = [0, 8], sizes = [16, 8], strides = [1, 1]} : vector<16x32xf32> to vector<16x8xf32>
    %73 = vector.shape_cast %72 : vector<16x8xf32> to vector<2x8x8xf32>
    %74 = vector.extract_strided_slice %39 {offsets = [0, 8], sizes = [16, 8], strides = [1, 1]} : vector<16x32xf32> to vector<16x8xf32>
    %75 = vector.shape_cast %74 : vector<16x8xf32> to vector<2x8x8xf32>
    "tpu.trace_start"() <{level = 10 : i32, message = "bqd,bkd->bqk"}> : () -> ()
    %cst_29 = arith.constant dense<0.000000e+00> : vector<2x8x8xf32>
    %76 = tpu.matmul %71, %73, %cst_29 {dimension_numbers = #tpu.dot_dimension_numbers<[2], [2], [1], [1], [0, 0, 0, 1, 1, 1], [0], [0]>} : vector<2x8x8xf32>, vector<2x8x8xf32>, vector<2x8x8xf32> -> vector<2x8x8xf32>
    "tpu.trace_stop"() : () -> ()
    %cst_30 = arith.constant 0.353553385 : f32
    %77 = vector.broadcast %cst_30 : f32 to vector<2x8x8xf32>
    %78 = arith.mulf %76, %77 : vector<2x8x8xf32>
    %79 = vector.broadcast %46 : vector<1x8x8xf32> to vector<2x8x8xf32>
    %80 = arith.addf %78, %79 : vector<2x8x8xf32>
    %cst_31 = arith.constant dense<0xFF800000> : vector<2x8xf32>
    %81 = vector.multi_reduction <maximumf>, %80, %cst_31 [2] : vector<2x8x8xf32> to vector<2x8xf32>
    %82 = vector.shape_cast %81 : vector<2x8xf32> to vector<2x8x1xf32>
    %83 = vector.broadcast %82 : vector<2x8x1xf32> to vector<2x8x8xf32>
    %84 = arith.subf %80, %83 : vector<2x8x8xf32>
    %85 = math.exp %84 : vector<2x8x8xf32>
    %cst_32 = arith.constant dense<0.000000e+00> : vector<2x8xf32>
    %86 = vector.multi_reduction <add>, %85, %cst_32 [2] : vector<2x8x8xf32> to vector<2x8xf32>
    %87 = vector.shape_cast %86 : vector<2x8xf32> to vector<2x8x1xf32>
    %88 = tpu.reciprocal %87 {approx = true} : vector<2x8x1xf32> -> vector<2x8x1xf32>
    %89 = vector.broadcast %88 : vector<2x8x1xf32> to vector<2x8x8xf32>
    %90 = arith.mulf %85, %89 : vector<2x8x8xf32>
    "tpu.trace_start"() <{level = 10 : i32, message = "bqk,bkd->bqd"}> : () -> ()
    %cst_33 = arith.constant dense<0.000000e+00> : vector<2x8x8xf32>
    %91 = tpu.matmul %90, %75, %cst_33 {dimension_numbers = #tpu.dot_dimension_numbers<[2], [1], [1], [2], [0, 0, 0, 1, 1, 2], [0], [0]>} : vector<2x8x8xf32>, vector<2x8x8xf32>, vector<2x8x8xf32> -> vector<2x8x8xf32>
    "tpu.trace_stop"() : () -> ()
    %92 = vector.shape_cast %91 : vector<2x8x8xf32> to vector<16x8xf32>
    %93 = vector.extract_strided_slice %37 {offsets = [0, 16], sizes = [16, 8], strides = [1, 1]} : vector<16x32xf32> to vector<16x8xf32>
    %94 = vector.shape_cast %93 : vector<16x8xf32> to vector<2x8x8xf32>
    %95 = vector.extract_strided_slice %38 {offsets = [0, 16], sizes = [16, 8], strides = [1, 1]} : vector<16x32xf32> to vector<16x8xf32>
    %96 = vector.shape_cast %95 : vector<16x8xf32> to vector<2x8x8xf32>
    %97 = vector.extract_strided_slice %39 {offsets = [0, 16], sizes = [16, 8], strides = [1, 1]} : vector<16x32xf32> to vector<16x8xf32>
    %98 = vector.shape_cast %97 : vector<16x8xf32> to vector<2x8x8xf32>
    "tpu.trace_start"() <{level = 10 : i32, message = "bqd,bkd->bqk"}> : () -> ()
    %cst_34 = arith.constant dense<0.000000e+00> : vector<2x8x8xf32>
    %99 = tpu.matmul %94, %96, %cst_34 {dimension_numbers = #tpu.dot_dimension_numbers<[2], [2], [1], [1], [0, 0, 0, 1, 1, 1], [0], [0]>} : vector<2x8x8xf32>, vector<2x8x8xf32>, vector<2x8x8xf32> -> vector<2x8x8xf32>
    "tpu.trace_stop"() : () -> ()
    %cst_35 = arith.constant 0.353553385 : f32
    %100 = vector.broadcast %cst_35 : f32 to vector<2x8x8xf32>
    %101 = arith.mulf %99, %100 : vector<2x8x8xf32>
    %102 = vector.broadcast %46 : vector<1x8x8xf32> to vector<2x8x8xf32>
    %103 = arith.addf %101, %102 : vector<2x8x8xf32>
    %cst_36 = arith.constant dense<0xFF800000> : vector<2x8xf32>
    %104 = vector.multi_reduction <maximumf>, %103, %cst_36 [2] : vector<2x8x8xf32> to vector<2x8xf32>
    %105 = vector.shape_cast %104 : vector<2x8xf32> to vector<2x8x1xf32>
    %106 = vector.broadcast %105 : vector<2x8x1xf32> to vector<2x8x8xf32>
    %107 = arith.subf %103, %106 : vector<2x8x8xf32>
    %108 = math.exp %107 : vector<2x8x8xf32>
    %cst_37 = arith.constant dense<0.000000e+00> : vector<2x8xf32>
    %109 = vector.multi_reduction <add>, %108, %cst_37 [2] : vector<2x8x8xf32> to vector<2x8xf32>
    %110 = vector.shape_cast %109 : vector<2x8xf32> to vector<2x8x1xf32>
    %111 = tpu.reciprocal %110 {approx = true} : vector<2x8x1xf32> -> vector<2x8x1xf32>
    %112 = vector.broadcast %111 : vector<2x8x1xf32> to vector<2x8x8xf32>
    %113 = arith.mulf %108, %112 : vector<2x8x8xf32>
    "tpu.trace_start"() <{level = 10 : i32, message = "bqk,bkd->bqd"}> : () -> ()
    %cst_38 = arith.constant dense<0.000000e+00> : vector<2x8x8xf32>
    %114 = tpu.matmul %113, %98, %cst_38 {dimension_numbers = #tpu.dot_dimension_numbers<[2], [1], [1], [2], [0, 0, 0, 1, 1, 2], [0], [0]>} : vector<2x8x8xf32>, vector<2x8x8xf32>, vector<2x8x8xf32> -> vector<2x8x8xf32>
    "tpu.trace_stop"() : () -> ()
    %115 = vector.shape_cast %114 : vector<2x8x8xf32> to vector<16x8xf32>
    %116 = vector.extract_strided_slice %37 {offsets = [0, 24], sizes = [16, 8], strides = [1, 1]} : vector<16x32xf32> to vector<16x8xf32>
    %117 = vector.shape_cast %116 : vector<16x8xf32> to vector<2x8x8xf32>
    %118 = vector.extract_strided_slice %38 {offsets = [0, 24], sizes = [16, 8], strides = [1, 1]} : vector<16x32xf32> to vector<16x8xf32>
    %119 = vector.shape_cast %118 : vector<16x8xf32> to vector<2x8x8xf32>
    %120 = vector.extract_strided_slice %39 {offsets = [0, 24], sizes = [16, 8], strides = [1, 1]} : vector<16x32xf32> to vector<16x8xf32>
    %121 = vector.shape_cast %120 : vector<16x8xf32> to vector<2x8x8xf32>
    "tpu.trace_start"() <{level = 10 : i32, message = "bqd,bkd->bqk"}> : () -> ()
    %cst_39 = arith.constant dense<0.000000e+00> : vector<2x8x8xf32>
    %122 = tpu.matmul %117, %119, %cst_39 {dimension_numbers = #tpu.dot_dimension_numbers<[2], [2], [1], [1], [0, 0, 0, 1, 1, 1], [0], [0]>} : vector<2x8x8xf32>, vector<2x8x8xf32>, vector<2x8x8xf32> -> vector<2x8x8xf32>
    "tpu.trace_stop"() : () -> ()
    %cst_40 = arith.constant 0.353553385 : f32
    %123 = vector.broadcast %cst_40 : f32 to vector<2x8x8xf32>
    %124 = arith.mulf %122, %123 : vector<2x8x8xf32>
    %125 = vector.broadcast %46 : vector<1x8x8xf32> to vector<2x8x8xf32>
    %126 = arith.addf %124, %125 : vector<2x8x8xf32>
    %cst_41 = arith.constant dense<0xFF800000> : vector<2x8xf32>
    %127 = vector.multi_reduction <maximumf>, %126, %cst_41 [2] : vector<2x8x8xf32> to vector<2x8xf32>
    %128 = vector.shape_cast %127 : vector<2x8xf32> to vector<2x8x1xf32>
    %129 = vector.broadcast %128 : vector<2x8x1xf32> to vector<2x8x8xf32>
    %130 = arith.subf %126, %129 : vector<2x8x8xf32>
    %131 = math.exp %130 : vector<2x8x8xf32>
    %cst_42 = arith.constant dense<0.000000e+00> : vector<2x8xf32>
    %132 = vector.multi_reduction <add>, %131, %cst_42 [2] : vector<2x8x8xf32> to vector<2x8xf32>
    %133 = vector.shape_cast %132 : vector<2x8xf32> to vector<2x8x1xf32>
    %134 = tpu.reciprocal %133 {approx = true} : vector<2x8x1xf32> -> vector<2x8x1xf32>
    %135 = vector.broadcast %134 : vector<2x8x1xf32> to vector<2x8x8xf32>
    %136 = arith.mulf %131, %135 : vector<2x8x8xf32>
    "tpu.trace_start"() <{level = 10 : i32, message = "bqk,bkd->bqd"}> : () -> ()
    %cst_43 = arith.constant dense<0.000000e+00> : vector<2x8x8xf32>
    %137 = tpu.matmul %136, %121, %cst_43 {dimension_numbers = #tpu.dot_dimension_numbers<[2], [1], [1], [2], [0, 0, 0, 1, 1, 2], [0], [0]>} : vector<2x8x8xf32>, vector<2x8x8xf32>, vector<2x8x8xf32> -> vector<2x8x8xf32>
    "tpu.trace_stop"() : () -> ()
    %138 = vector.shape_cast %137 : vector<2x8x8xf32> to vector<16x8xf32>
    %139 = tpu.concatenate %69, %92, %115, %138 in 1 : vector<16x8xf32>, vector<16x8xf32>, vector<16x8xf32>, vector<16x8xf32> -> vector<16x32xf32>
    %c0_44 = arith.constant 0 : index
    %c0_45 = arith.constant 0 : index
    %c0_46 = arith.constant 0 : index
    %140 = vector.load %arg8[%c0_44, %c0_45, %c0_46] : memref<1x32x32xf32, #tpu.memory_space<vmem>>, vector<1x32x32xf32>
    %141 = vector.shape_cast %140 : vector<1x32x32xf32> to vector<32x32xf32>
    %cst_47 = arith.constant dense<0.000000e+00> : vector<16x32xf32>
    %142 = tpu.matmul %139, %141, %cst_47 {dimension_numbers = #tpu.dot_dimension_numbers<[1], [0], [0], [1], [0, 0, 1, 1], [], []>} : vector<16x32xf32>, vector<32x32xf32>, vector<16x32xf32> -> vector<16x32xf32>
    %c0_48 = arith.constant 0 : index
    %c0_49 = arith.constant 0 : index
    %c0_50 = arith.constant 0 : index
    %143 = vector.load %arg9[%c0_48, %c0_49, %c0_50] : memref<1x1x32xf32, #tpu.memory_space<vmem>>, vector<1x1x32xf32>
    %144 = vector.shape_cast %143 : vector<1x1x32xf32> to vector<1x32xf32>
    %145 = vector.broadcast %144 : vector<1x32xf32> to vector<16x32xf32>
    %146 = arith.addf %142, %145 : vector<16x32xf32>
    %147 = arith.addf %3, %146 : vector<16x32xf32>
    %c0_51 = arith.constant 0 : index
    %c0_52 = arith.constant 0 : index
    %c0_53 = arith.constant 0 : index
    %148 = vector.load %arg10[%c0_51, %c0_52, %c0_53] : memref<1x1x32xf32, #tpu.memory_space<vmem>>, vector<1x1x32xf32>
    %149 = vector.shape_cast %148 : vector<1x1x32xf32> to vector<1x32xf32>
    %c0_54 = arith.constant 0 : index
    %c0_55 = arith.constant 0 : index
    %c0_56 = arith.constant 0 : index
    %150 = vector.load %arg11[%c0_54, %c0_55, %c0_56] : memref<1x1x32xf32, #tpu.memory_space<vmem>>, vector<1x1x32xf32>
    %151 = vector.shape_cast %150 : vector<1x1x32xf32> to vector<1x32xf32>
    %cst_57 = arith.constant dense<0.000000e+00> : vector<16xf32>
    %152 = vector.multi_reduction <add>, %147, %cst_57 [1] : vector<16x32xf32> to vector<16xf32>
    %153 = vector.shape_cast %152 : vector<16xf32> to vector<16x1xf32>
    %cst_58 = arith.constant 3.200000e+01 : f32
    %154 = vector.broadcast %cst_58 : f32 to vector<16x1xf32>
    %155 = arith.divf %153, %154 : vector<16x1xf32>
    %156 = vector.broadcast %155 : vector<16x1xf32> to vector<16x32xf32>
    %157 = arith.subf %147, %156 : vector<16x32xf32>
    %158 = arith.mulf %157, %157 : vector<16x32xf32>
    %cst_59 = arith.constant dense<0.000000e+00> : vector<16xf32>
    %159 = vector.multi_reduction <add>, %158, %cst_59 [1] : vector<16x32xf32> to vector<16xf32>
    %160 = vector.shape_cast %159 : vector<16xf32> to vector<16x1xf32>
    %cst_60 = arith.constant 3.200000e+01 : f32
    %161 = vector.broadcast %cst_60 : f32 to vector<16x1xf32>
    %162 = arith.divf %160, %161 : vector<16x1xf32>
    %cst_61 = arith.constant 9.99999974E-6 : f32
    %163 = vector.broadcast %cst_61 : f32 to vector<16x1xf32>
    %164 = arith.addf %162, %163 : vector<16x1xf32>
    %165 = math.rsqrt %164 : vector<16x1xf32>
    %166 = vector.broadcast %165 : vector<16x1xf32> to vector<16x32xf32>
    %167 = arith.mulf %157, %166 : vector<16x32xf32>
    %168 = vector.broadcast %149 : vector<1x32xf32> to vector<16x32xf32>
    %169 = arith.mulf %167, %168 : vector<16x32xf32>
    %170 = vector.broadcast %151 : vector<1x32xf32> to vector<16x32xf32>
    %171 = arith.addf %169, %170 : vector<16x32xf32>
    %c0_62 = arith.constant 0 : index
    %c0_63 = arith.constant 0 : index
    %c0_64 = arith.constant 0 : index
    %172 = vector.load %arg12[%c0_62, %c0_63, %c0_64] : memref<1x32x32xf32, #tpu.memory_space<vmem>>, vector<1x32x32xf32>
    %173 = vector.shape_cast %172 : vector<1x32x32xf32> to vector<32x32xf32>
    %cst_65 = arith.constant dense<0.000000e+00> : vector<16x32xf32>
    %174 = tpu.matmul %171, %173, %cst_65 {dimension_numbers = #tpu.dot_dimension_numbers<[1], [0], [0], [1], [0, 0, 1, 1], [], []>} : vector<16x32xf32>, vector<32x32xf32>, vector<16x32xf32> -> vector<16x32xf32>
    %c0_66 = arith.constant 0 : index
    %c0_67 = arith.constant 0 : index
    %c0_68 = arith.constant 0 : index
    %175 = vector.load %arg13[%c0_66, %c0_67, %c0_68] : memref<1x1x32xf32, #tpu.memory_space<vmem>>, vector<1x1x32xf32>
    %176 = vector.shape_cast %175 : vector<1x1x32xf32> to vector<1x32xf32>
    %177 = vector.broadcast %176 : vector<1x32xf32> to vector<16x32xf32>
    %178 = arith.addf %174, %177 : vector<16x32xf32>
    %c0_69 = arith.constant 0 : index
    %c0_70 = arith.constant 0 : index
    %c0_71 = arith.constant 0 : index
    %179 = vector.load %arg14[%c0_69, %c0_70, %c0_71] : memref<1x32x64xf32, #tpu.memory_space<vmem>>, vector<1x32x64xf32>
    %180 = vector.shape_cast %179 : vector<1x32x64xf32> to vector<32x64xf32>
    %cst_72 = arith.constant dense<0.000000e+00> : vector<16x64xf32>
    %181 = tpu.matmul %5, %180, %cst_72 {dimension_numbers = #tpu.dot_dimension_numbers<[1], [0], [0], [1], [0, 0, 1, 1], [], []>} : vector<16x32xf32>, vector<32x64xf32>, vector<16x64xf32> -> vector<16x64xf32>
    %c0_73 = arith.constant 0 : index
    %c0_74 = arith.constant 0 : index
    %c0_75 = arith.constant 0 : index
    %182 = vector.load %arg15[%c0_73, %c0_74, %c0_75] : memref<1x1x64xf32, #tpu.memory_space<vmem>>, vector<1x1x64xf32>
    %183 = vector.shape_cast %182 : vector<1x1x64xf32> to vector<1x64xf32>
    %184 = vector.broadcast %183 : vector<1x64xf32> to vector<16x64xf32>
    %185 = arith.addf %181, %184 : vector<16x64xf32>
    %186 = vector.extract_strided_slice %185 {offsets = [0, 0], sizes = [16, 32], strides = [1, 1]} : vector<16x64xf32> to vector<16x32xf32>
    %187 = vector.extract_strided_slice %185 {offsets = [0, 32], sizes = [16, 32], strides = [1, 1]} : vector<16x64xf32> to vector<16x32xf32>
    %188 = vector.extract_strided_slice %178 {offsets = [0, 0], sizes = [16, 8], strides = [1, 1]} : vector<16x32xf32> to vector<16x8xf32>
    %189 = vector.shape_cast %188 : vector<16x8xf32> to vector<2x8x8xf32>
    %190 = vector.extract_strided_slice %186 {offsets = [0, 0], sizes = [16, 8], strides = [1, 1]} : vector<16x32xf32> to vector<16x8xf32>
    %191 = vector.shape_cast %190 : vector<16x8xf32> to vector<2x8x8xf32>
    %192 = vector.extract_strided_slice %187 {offsets = [0, 0], sizes = [16, 8], strides = [1, 1]} : vector<16x32xf32> to vector<16x8xf32>
    %193 = vector.shape_cast %192 : vector<16x8xf32> to vector<2x8x8xf32>
    "tpu.trace_start"() <{level = 10 : i32, message = "bqd,bkd->bqk"}> : () -> ()
    %cst_76 = arith.constant dense<0.000000e+00> : vector<2x8x8xf32>
    %194 = tpu.matmul %189, %191, %cst_76 {dimension_numbers = #tpu.dot_dimension_numbers<[2], [2], [1], [1], [0, 0, 0, 1, 1, 1], [0], [0]>} : vector<2x8x8xf32>, vector<2x8x8xf32>, vector<2x8x8xf32> -> vector<2x8x8xf32>
    "tpu.trace_stop"() : () -> ()
    %cst_77 = arith.constant 0.353553385 : f32
    %195 = vector.broadcast %cst_77 : f32 to vector<2x8x8xf32>
    %196 = arith.mulf %194, %195 : vector<2x8x8xf32>
    %cst_78 = arith.constant dense<0xFF800000> : vector<2x8xf32>
    %197 = vector.multi_reduction <maximumf>, %196, %cst_78 [2] : vector<2x8x8xf32> to vector<2x8xf32>
    %198 = vector.shape_cast %197 : vector<2x8xf32> to vector<2x8x1xf32>
    %199 = vector.broadcast %198 : vector<2x8x1xf32> to vector<2x8x8xf32>
    %200 = arith.subf %196, %199 : vector<2x8x8xf32>
    %201 = math.exp %200 : vector<2x8x8xf32>
    %cst_79 = arith.constant dense<0.000000e+00> : vector<2x8xf32>
    %202 = vector.multi_reduction <add>, %201, %cst_79 [2] : vector<2x8x8xf32> to vector<2x8xf32>
    %203 = vector.shape_cast %202 : vector<2x8xf32> to vector<2x8x1xf32>
    %204 = tpu.reciprocal %203 {approx = true} : vector<2x8x1xf32> -> vector<2x8x1xf32>
    %205 = vector.broadcast %204 : vector<2x8x1xf32> to vector<2x8x8xf32>
    %206 = arith.mulf %201, %205 : vector<2x8x8xf32>
    "tpu.trace_start"() <{level = 10 : i32, message = "bqk,bkd->bqd"}> : () -> ()
    %cst_80 = arith.constant dense<0.000000e+00> : vector<2x8x8xf32>
    %207 = tpu.matmul %206, %193, %cst_80 {dimension_numbers = #tpu.dot_dimension_numbers<[2], [1], [1], [2], [0, 0, 0, 1, 1, 2], [0], [0]>} : vector<2x8x8xf32>, vector<2x8x8xf32>, vector<2x8x8xf32> -> vector<2x8x8xf32>
    "tpu.trace_stop"() : () -> ()
    %208 = vector.shape_cast %207 : vector<2x8x8xf32> to vector<16x8xf32>
    %209 = vector.extract_strided_slice %178 {offsets = [0, 8], sizes = [16, 8], strides = [1, 1]} : vector<16x32xf32> to vector<16x8xf32>
    %210 = vector.shape_cast %209 : vector<16x8xf32> to vector<2x8x8xf32>
    %211 = vector.extract_strided_slice %186 {offsets = [0, 8], sizes = [16, 8], strides = [1, 1]} : vector<16x32xf32> to vector<16x8xf32>
    %212 = vector.shape_cast %211 : vector<16x8xf32> to vector<2x8x8xf32>
    %213 = vector.extract_strided_slice %187 {offsets = [0, 8], sizes = [16, 8], strides = [1, 1]} : vector<16x32xf32> to vector<16x8xf32>
    %214 = vector.shape_cast %213 : vector<16x8xf32> to vector<2x8x8xf32>
    "tpu.trace_start"() <{level = 10 : i32, message = "bqd,bkd->bqk"}> : () -> ()
    %cst_81 = arith.constant dense<0.000000e+00> : vector<2x8x8xf32>
    %215 = tpu.matmul %210, %212, %cst_81 {dimension_numbers = #tpu.dot_dimension_numbers<[2], [2], [1], [1], [0, 0, 0, 1, 1, 1], [0], [0]>} : vector<2x8x8xf32>, vector<2x8x8xf32>, vector<2x8x8xf32> -> vector<2x8x8xf32>
    "tpu.trace_stop"() : () -> ()
    %cst_82 = arith.constant 0.353553385 : f32
    %216 = vector.broadcast %cst_82 : f32 to vector<2x8x8xf32>
    %217 = arith.mulf %215, %216 : vector<2x8x8xf32>
    %cst_83 = arith.constant dense<0xFF800000> : vector<2x8xf32>
    %218 = vector.multi_reduction <maximumf>, %217, %cst_83 [2] : vector<2x8x8xf32> to vector<2x8xf32>
    %219 = vector.shape_cast %218 : vector<2x8xf32> to vector<2x8x1xf32>
    %220 = vector.broadcast %219 : vector<2x8x1xf32> to vector<2x8x8xf32>
    %221 = arith.subf %217, %220 : vector<2x8x8xf32>
    %222 = math.exp %221 : vector<2x8x8xf32>
    %cst_84 = arith.constant dense<0.000000e+00> : vector<2x8xf32>
    %223 = vector.multi_reduction <add>, %222, %cst_84 [2] : vector<2x8x8xf32> to vector<2x8xf32>
    %224 = vector.shape_cast %223 : vector<2x8xf32> to vector<2x8x1xf32>
    %225 = tpu.reciprocal %224 {approx = true} : vector<2x8x1xf32> -> vector<2x8x1xf32>
    %226 = vector.broadcast %225 : vector<2x8x1xf32> to vector<2x8x8xf32>
    %227 = arith.mulf %222, %226 : vector<2x8x8xf32>
    "tpu.trace_start"() <{level = 10 : i32, message = "bqk,bkd->bqd"}> : () -> ()
    %cst_85 = arith.constant dense<0.000000e+00> : vector<2x8x8xf32>
    %228 = tpu.matmul %227, %214, %cst_85 {dimension_numbers = #tpu.dot_dimension_numbers<[2], [1], [1], [2], [0, 0, 0, 1, 1, 2], [0], [0]>} : vector<2x8x8xf32>, vector<2x8x8xf32>, vector<2x8x8xf32> -> vector<2x8x8xf32>
    "tpu.trace_stop"() : () -> ()
    %229 = vector.shape_cast %228 : vector<2x8x8xf32> to vector<16x8xf32>
    %230 = vector.extract_strided_slice %178 {offsets = [0, 16], sizes = [16, 8], strides = [1, 1]} : vector<16x32xf32> to vector<16x8xf32>
    %231 = vector.shape_cast %230 : vector<16x8xf32> to vector<2x8x8xf32>
    %232 = vector.extract_strided_slice %186 {offsets = [0, 16], sizes = [16, 8], strides = [1, 1]} : vector<16x32xf32> to vector<16x8xf32>
    %233 = vector.shape_cast %232 : vector<16x8xf32> to vector<2x8x8xf32>
    %234 = vector.extract_strided_slice %187 {offsets = [0, 16], sizes = [16, 8], strides = [1, 1]} : vector<16x32xf32> to vector<16x8xf32>
    %235 = vector.shape_cast %234 : vector<16x8xf32> to vector<2x8x8xf32>
    "tpu.trace_start"() <{level = 10 : i32, message = "bqd,bkd->bqk"}> : () -> ()
    %cst_86 = arith.constant dense<0.000000e+00> : vector<2x8x8xf32>
    %236 = tpu.matmul %231, %233, %cst_86 {dimension_numbers = #tpu.dot_dimension_numbers<[2], [2], [1], [1], [0, 0, 0, 1, 1, 1], [0], [0]>} : vector<2x8x8xf32>, vector<2x8x8xf32>, vector<2x8x8xf32> -> vector<2x8x8xf32>
    "tpu.trace_stop"() : () -> ()
    %cst_87 = arith.constant 0.353553385 : f32
    %237 = vector.broadcast %cst_87 : f32 to vector<2x8x8xf32>
    %238 = arith.mulf %236, %237 : vector<2x8x8xf32>
    %cst_88 = arith.constant dense<0xFF800000> : vector<2x8xf32>
    %239 = vector.multi_reduction <maximumf>, %238, %cst_88 [2] : vector<2x8x8xf32> to vector<2x8xf32>
    %240 = vector.shape_cast %239 : vector<2x8xf32> to vector<2x8x1xf32>
    %241 = vector.broadcast %240 : vector<2x8x1xf32> to vector<2x8x8xf32>
    %242 = arith.subf %238, %241 : vector<2x8x8xf32>
    %243 = math.exp %242 : vector<2x8x8xf32>
    %cst_89 = arith.constant dense<0.000000e+00> : vector<2x8xf32>
    %244 = vector.multi_reduction <add>, %243, %cst_89 [2] : vector<2x8x8xf32> to vector<2x8xf32>
    %245 = vector.shape_cast %244 : vector<2x8xf32> to vector<2x8x1xf32>
    %246 = tpu.reciprocal %245 {approx = true} : vector<2x8x1xf32> -> vector<2x8x1xf32>
    %247 = vector.broadcast %246 : vector<2x8x1xf32> to vector<2x8x8xf32>
    %248 = arith.mulf %243, %247 : vector<2x8x8xf32>
    "tpu.trace_start"() <{level = 10 : i32, message = "bqk,bkd->bqd"}> : () -> ()
    %cst_90 = arith.constant dense<0.000000e+00> : vector<2x8x8xf32>
    %249 = tpu.matmul %248, %235, %cst_90 {dimension_numbers = #tpu.dot_dimension_numbers<[2], [1], [1], [2], [0, 0, 0, 1, 1, 2], [0], [0]>} : vector<2x8x8xf32>, vector<2x8x8xf32>, vector<2x8x8xf32> -> vector<2x8x8xf32>
    "tpu.trace_stop"() : () -> ()
    %250 = vector.shape_cast %249 : vector<2x8x8xf32> to vector<16x8xf32>
    %251 = vector.extract_strided_slice %178 {offsets = [0, 24], sizes = [16, 8], strides = [1, 1]} : vector<16x32xf32> to vector<16x8xf32>
    %252 = vector.shape_cast %251 : vector<16x8xf32> to vector<2x8x8xf32>
    %253 = vector.extract_strided_slice %186 {offsets = [0, 24], sizes = [16, 8], strides = [1, 1]} : vector<16x32xf32> to vector<16x8xf32>
    %254 = vector.shape_cast %253 : vector<16x8xf32> to vector<2x8x8xf32>
    %255 = vector.extract_strided_slice %187 {offsets = [0, 24], sizes = [16, 8], strides = [1, 1]} : vector<16x32xf32> to vector<16x8xf32>
    %256 = vector.shape_cast %255 : vector<16x8xf32> to vector<2x8x8xf32>
    "tpu.trace_start"() <{level = 10 : i32, message = "bqd,bkd->bqk"}> : () -> ()
    %cst_91 = arith.constant dense<0.000000e+00> : vector<2x8x8xf32>
    %257 = tpu.matmul %252, %254, %cst_91 {dimension_numbers = #tpu.dot_dimension_numbers<[2], [2], [1], [1], [0, 0, 0, 1, 1, 1], [0], [0]>} : vector<2x8x8xf32>, vector<2x8x8xf32>, vector<2x8x8xf32> -> vector<2x8x8xf32>
    "tpu.trace_stop"() : () -> ()
    %cst_92 = arith.constant 0.353553385 : f32
    %258 = vector.broadcast %cst_92 : f32 to vector<2x8x8xf32>
    %259 = arith.mulf %257, %258 : vector<2x8x8xf32>
    %cst_93 = arith.constant dense<0xFF800000> : vector<2x8xf32>
    %260 = vector.multi_reduction <maximumf>, %259, %cst_93 [2] : vector<2x8x8xf32> to vector<2x8xf32>
    %261 = vector.shape_cast %260 : vector<2x8xf32> to vector<2x8x1xf32>
    %262 = vector.broadcast %261 : vector<2x8x1xf32> to vector<2x8x8xf32>
    %263 = arith.subf %259, %262 : vector<2x8x8xf32>
    %264 = math.exp %263 : vector<2x8x8xf32>
    %cst_94 = arith.constant dense<0.000000e+00> : vector<2x8xf32>
    %265 = vector.multi_reduction <add>, %264, %cst_94 [2] : vector<2x8x8xf32> to vector<2x8xf32>
    %266 = vector.shape_cast %265 : vector<2x8xf32> to vector<2x8x1xf32>
    %267 = tpu.reciprocal %266 {approx = true} : vector<2x8x1xf32> -> vector<2x8x1xf32>
    %268 = vector.broadcast %267 : vector<2x8x1xf32> to vector<2x8x8xf32>
    %269 = arith.mulf %264, %268 : vector<2x8x8xf32>
    "tpu.trace_start"() <{level = 10 : i32, message = "bqk,bkd->bqd"}> : () -> ()
    %cst_95 = arith.constant dense<0.000000e+00> : vector<2x8x8xf32>
    %270 = tpu.matmul %269, %256, %cst_95 {dimension_numbers = #tpu.dot_dimension_numbers<[2], [1], [1], [2], [0, 0, 0, 1, 1, 2], [0], [0]>} : vector<2x8x8xf32>, vector<2x8x8xf32>, vector<2x8x8xf32> -> vector<2x8x8xf32>
    "tpu.trace_stop"() : () -> ()
    %271 = vector.shape_cast %270 : vector<2x8x8xf32> to vector<16x8xf32>
    %272 = tpu.concatenate %208, %229, %250, %271 in 1 : vector<16x8xf32>, vector<16x8xf32>, vector<16x8xf32>, vector<16x8xf32> -> vector<16x32xf32>
    %c0_96 = arith.constant 0 : index
    %c0_97 = arith.constant 0 : index
    %c0_98 = arith.constant 0 : index
    %273 = vector.load %arg16[%c0_96, %c0_97, %c0_98] : memref<1x32x32xf32, #tpu.memory_space<vmem>>, vector<1x32x32xf32>
    %274 = vector.shape_cast %273 : vector<1x32x32xf32> to vector<32x32xf32>
    %cst_99 = arith.constant dense<0.000000e+00> : vector<16x32xf32>
    %275 = tpu.matmul %272, %274, %cst_99 {dimension_numbers = #tpu.dot_dimension_numbers<[1], [0], [0], [1], [0, 0, 1, 1], [], []>} : vector<16x32xf32>, vector<32x32xf32>, vector<16x32xf32> -> vector<16x32xf32>
    %c0_100 = arith.constant 0 : index
    %c0_101 = arith.constant 0 : index
    %c0_102 = arith.constant 0 : index
    %276 = vector.load %arg17[%c0_100, %c0_101, %c0_102] : memref<1x1x32xf32, #tpu.memory_space<vmem>>, vector<1x1x32xf32>
    %277 = vector.shape_cast %276 : vector<1x1x32xf32> to vector<1x32xf32>
    %278 = vector.broadcast %277 : vector<1x32xf32> to vector<16x32xf32>
    %279 = arith.addf %275, %278 : vector<16x32xf32>
    %280 = arith.addf %147, %279 : vector<16x32xf32>
    %c0_103 = arith.constant 0 : index
    %c0_104 = arith.constant 0 : index
    %c0_105 = arith.constant 0 : index
    %281 = vector.load %arg18[%c0_103, %c0_104, %c0_105] : memref<1x1x32xf32, #tpu.memory_space<vmem>>, vector<1x1x32xf32>
    %282 = vector.shape_cast %281 : vector<1x1x32xf32> to vector<1x32xf32>
    %c0_106 = arith.constant 0 : index
    %c0_107 = arith.constant 0 : index
    %c0_108 = arith.constant 0 : index
    %283 = vector.load %arg19[%c0_106, %c0_107, %c0_108] : memref<1x1x32xf32, #tpu.memory_space<vmem>>, vector<1x1x32xf32>
    %284 = vector.shape_cast %283 : vector<1x1x32xf32> to vector<1x32xf32>
    %cst_109 = arith.constant dense<0.000000e+00> : vector<16xf32>
    %285 = vector.multi_reduction <add>, %280, %cst_109 [1] : vector<16x32xf32> to vector<16xf32>
    %286 = vector.shape_cast %285 : vector<16xf32> to vector<16x1xf32>
    %cst_110 = arith.constant 3.200000e+01 : f32
    %287 = vector.broadcast %cst_110 : f32 to vector<16x1xf32>
    %288 = arith.divf %286, %287 : vector<16x1xf32>
    %289 = vector.broadcast %288 : vector<16x1xf32> to vector<16x32xf32>
    %290 = arith.subf %280, %289 : vector<16x32xf32>
    %291 = arith.mulf %290, %290 : vector<16x32xf32>
    %cst_111 = arith.constant dense<0.000000e+00> : vector<16xf32>
    %292 = vector.multi_reduction <add>, %291, %cst_111 [1] : vector<16x32xf32> to vector<16xf32>
    %293 = vector.shape_cast %292 : vector<16xf32> to vector<16x1xf32>
    %cst_112 = arith.constant 3.200000e+01 : f32
    %294 = vector.broadcast %cst_112 : f32 to vector<16x1xf32>
    %295 = arith.divf %293, %294 : vector<16x1xf32>
    %cst_113 = arith.constant 9.99999974E-6 : f32
    %296 = vector.broadcast %cst_113 : f32 to vector<16x1xf32>
    %297 = arith.addf %295, %296 : vector<16x1xf32>
    %298 = math.rsqrt %297 : vector<16x1xf32>
    %299 = vector.broadcast %298 : vector<16x1xf32> to vector<16x32xf32>
    %300 = arith.mulf %290, %299 : vector<16x32xf32>
    %301 = vector.broadcast %282 : vector<1x32xf32> to vector<16x32xf32>
    %302 = arith.mulf %300, %301 : vector<16x32xf32>
    %303 = vector.broadcast %284 : vector<1x32xf32> to vector<16x32xf32>
    %304 = arith.addf %302, %303 : vector<16x32xf32>
    %c0_114 = arith.constant 0 : index
    %c0_115 = arith.constant 0 : index
    %c0_116 = arith.constant 0 : index
    %305 = vector.load %arg20[%c0_114, %c0_115, %c0_116] : memref<1x32x128xf32, #tpu.memory_space<vmem>>, vector<1x32x128xf32>
    %306 = vector.shape_cast %305 : vector<1x32x128xf32> to vector<32x128xf32>
    %cst_117 = arith.constant dense<0.000000e+00> : vector<16x128xf32>
    %307 = tpu.matmul %304, %306, %cst_117 {dimension_numbers = #tpu.dot_dimension_numbers<[1], [0], [0], [1], [0, 0, 1, 1], [], []>} : vector<16x32xf32>, vector<32x128xf32>, vector<16x128xf32> -> vector<16x128xf32>
    %c0_118 = arith.constant 0 : index
    %c0_119 = arith.constant 0 : index
    %c0_120 = arith.constant 0 : index
    %308 = vector.load %arg21[%c0_118, %c0_119, %c0_120] : memref<1x1x128xf32, #tpu.memory_space<vmem>>, vector<1x1x128xf32>
    %309 = vector.shape_cast %308 : vector<1x1x128xf32> to vector<1x128xf32>
    %310 = vector.broadcast %309 : vector<1x128xf32> to vector<16x128xf32>
    %311 = arith.addf %307, %310 : vector<16x128xf32>
    %cst_121 = arith.constant 5.000000e-01 : f32
    %312 = vector.broadcast %cst_121 : f32 to vector<16x128xf32>
    %313 = arith.mulf %312, %311 : vector<16x128xf32>
    %cst_122 = arith.constant 0.707106769 : f32
    %314 = vector.broadcast %cst_122 : f32 to vector<16x128xf32>
    %315 = arith.mulf %311, %314 : vector<16x128xf32>
    %316 = math.erf %315 : vector<16x128xf32>
    %cst_123 = arith.constant 1.000000e+00 : f32
    %317 = vector.broadcast %cst_123 : f32 to vector<16x128xf32>
    %318 = arith.addf %317, %316 : vector<16x128xf32>
    %319 = arith.mulf %313, %318 : vector<16x128xf32>
    %c0_124 = arith.constant 0 : index
    %c0_125 = arith.constant 0 : index
    %c0_126 = arith.constant 0 : index
    %320 = vector.load %arg22[%c0_124, %c0_125, %c0_126] : memref<1x128x32xf32, #tpu.memory_space<vmem>>, vector<1x128x32xf32>
    %321 = vector.shape_cast %320 : vector<1x128x32xf32> to vector<128x32xf32>
    %cst_127 = arith.constant dense<0.000000e+00> : vector<16x32xf32>
    %322 = tpu.matmul %319, %321, %cst_127 {dimension_numbers = #tpu.dot_dimension_numbers<[1], [0], [0], [1], [0, 0, 1, 1], [], []>} : vector<16x128xf32>, vector<128x32xf32>, vector<16x32xf32> -> vector<16x32xf32>
    %c0_128 = arith.constant 0 : index
    %c0_129 = arith.constant 0 : index
    %c0_130 = arith.constant 0 : index
    %323 = vector.load %arg23[%c0_128, %c0_129, %c0_130] : memref<1x1x32xf32, #tpu.memory_space<vmem>>, vector<1x1x32xf32>
    %324 = vector.shape_cast %323 : vector<1x1x32xf32> to vector<1x32xf32>
    %325 = vector.broadcast %324 : vector<1x32xf32> to vector<16x32xf32>
    %326 = arith.addf %322, %325 : vector<16x32xf32>
    %327 = arith.addf %280, %326 : vector<16x32xf32>
    %c0_131 = arith.constant 0 : index
    %c0_132 = arith.constant 0 : index
    %328 = vector.load %arg29[%c0_131, %c0_132] : memref<16x32xf32, #tpu.memory_space<vmem>>, vector<16x32xf32>
    tpu.vector_store %arg29[%c0_131, %c0_132], %327 {strides = array<i32>} : memref<16x32xf32, #tpu.memory_space<vmem>>, vector<16x32xf32>,
    %c1_i32 = arith.constant 1 : i32
    %329 = arith.cmpi eq, %arg0, %c1_i32 : i32
    %330 = arith.extui %329 : i1 to i32
    %c0_i32_133 = arith.constant 0 : i32
    %331 = arith.cmpi ne, %330, %c0_i32_133 : i32
    scf.if %331 {
      %c0_134 = arith.constant 0 : index
      %c0_135 = arith.constant 0 : index
      %332 = vector.load %arg24[%c0_134, %c0_135] : memref<1x32xf32, #tpu.memory_space<vmem>>, vector<1x32xf32>
      %c0_136 = arith.constant 0 : index
      %c0_137 = arith.constant 0 : index
      %333 = vector.load %arg25[%c0_136, %c0_137] : memref<1x32xf32, #tpu.memory_space<vmem>>, vector<1x32xf32>
      %cst_138 = arith.constant dense<0.000000e+00> : vector<16xf32>
      %334 = vector.multi_reduction <add>, %327, %cst_138 [1] : vector<16x32xf32> to vector<16xf32>
      %335 = vector.shape_cast %334 : vector<16xf32> to vector<16x1xf32>
      %cst_139 = arith.constant 3.200000e+01 : f32
      %336 = vector.broadcast %cst_139 : f32 to vector<16x1xf32>
      %337 = arith.divf %335, %336 : vector<16x1xf32>
      %338 = vector.broadcast %337 : vector<16x1xf32> to vector<16x32xf32>
      %339 = arith.subf %327, %338 : vector<16x32xf32>
      %340 = arith.mulf %339, %339 : vector<16x32xf32>
      %cst_140 = arith.constant dense<0.000000e+00> : vector<16xf32>
      %341 = vector.multi_reduction <add>, %340, %cst_140 [1] : vector<16x32xf32> to vector<16xf32>
      %342 = vector.shape_cast %341 : vector<16xf32> to vector<16x1xf32>
      %cst_141 = arith.constant 3.200000e+01 : f32
      %343 = vector.broadcast %cst_141 : f32 to vector<16x1xf32>
      %344 = arith.divf %342, %343 : vector<16x1xf32>
      %cst_142 = arith.constant 9.99999974E-6 : f32
      %345 = vector.broadcast %cst_142 : f32 to vector<16x1xf32>
      %346 = arith.addf %344, %345 : vector<16x1xf32>
      %347 = math.rsqrt %346 : vector<16x1xf32>
      %348 = vector.broadcast %347 : vector<16x1xf32> to vector<16x32xf32>
      %349 = arith.mulf %339, %348 : vector<16x32xf32>
      %350 = vector.broadcast %332 : vector<1x32xf32> to vector<16x32xf32>
      %351 = arith.mulf %349, %350 : vector<16x32xf32>
      %352 = vector.broadcast %333 : vector<1x32xf32> to vector<16x32xf32>
      %353 = arith.addf %351, %352 : vector<16x32xf32>
      %c0_143 = arith.constant 0 : index
      %c0_144 = arith.constant 0 : index
      %354 = vector.load %arg26[%c0_143, %c0_144] : memref<32x32xf32, #tpu.memory_space<vmem>>, vector<32x32xf32>
      %cst_145 = arith.constant dense<0.000000e+00> : vector<16x32xf32>
      %355 = tpu.matmul %353, %354, %cst_145 {dimension_numbers = #tpu.dot_dimension_numbers<[1], [0], [0], [1], [0, 0, 1, 1], [], []>} : vector<16x32xf32>, vector<32x32xf32>, vector<16x32xf32> -> vector<16x32xf32>
      %c0_146 = arith.constant 0 : index
      %c0_147 = arith.constant 0 : index
      %356 = vector.load %arg27[%c0_146, %c0_147] : memref<1x32xf32, #tpu.memory_space<vmem>>, vector<1x32xf32>
      %357 = vector.broadcast %356 : vector<1x32xf32> to vector<16x32xf32>
      %358 = arith.addf %355, %357 : vector<16x32xf32>
      %359 = vector.shape_cast %358 : vector<16x32xf32> to vector<2x8x32xf32>
      %c0_148 = arith.constant 0 : index
      %c0_149 = arith.constant 0 : index
      %c0_150 = arith.constant 0 : index
      %360 = vector.load %arg28[%c0_148, %c0_149, %c0_150] : memref<2x8x32xf32, #tpu.memory_space<vmem>>, vector<2x8x32xf32>
      tpu.vector_store %arg28[%c0_148, %c0_149, %c0_150], %359 {strides = array<i32>} : memref<2x8x32xf32, #tpu.memory_space<vmem>>, vector<2x8x32xf32>,
    } else {
    }
    return
  }
  func.func @transform_0(%arg0: i32) -> (i32, i32) {
    %c0_i32 = arith.constant 0 : i32
    %c0_i32_0 = arith.constant 0 : i32
    %c0_i32_1 = arith.constant 0 : i32
    return %c0_i32, %c0_i32_0 : i32, i32
  }
  func.func @transform_1(%arg0: i32) -> (i32, i32) {
    %c0_i32 = arith.constant 0 : i32
    %c0_i32_0 = arith.constant 0 : i32
    %c0_i32_1 = arith.constant 0 : i32
    return %c0_i32, %c0_i32_0 : i32, i32
  }
  func.func @transform_2(%arg0: i32) -> (i32, i32, i32) {
    %c0_i32 = arith.constant 0 : i32
    %c0_i32_0 = arith.constant 0 : i32
    %c0_i32_1 = arith.constant 0 : i32
    %c0_i32_2 = arith.constant 0 : i32
    return %c0_i32, %c0_i32_0, %c0_i32_1 : i32, i32, i32
  }
  func.func @transform_3(%arg0: i32) -> (i32, i32, i32) {
    %c0_i32 = arith.constant 0 : i32
    %c0_i32_0 = arith.constant 0 : i32
    %c0_i32_1 = arith.constant 0 : i32
    return %arg0, %c0_i32, %c0_i32_0 : i32, i32, i32
  }
  func.func @transform_4(%arg0: i32) -> (i32, i32, i32) {
    %c0_i32 = arith.constant 0 : i32
    %c0_i32_0 = arith.constant 0 : i32
    %c0_i32_1 = arith.constant 0 : i32
    return %arg0, %c0_i32, %c0_i32_0 : i32, i32, i32
  }
  func.func @transform_5(%arg0: i32) -> (i32, i32, i32) {
    %c0_i32 = arith.constant 0 : i32
    %c0_i32_0 = arith.constant 0 : i32
    %c0_i32_1 = arith.constant 0 : i32
    return %arg0, %c0_i32, %c0_i32_0 : i32, i32, i32
  }
  func.func @transform_6(%arg0: i32) -> (i32, i32, i32) {
    %c0_i32 = arith.constant 0 : i32
    %c0_i32_0 = arith.constant 0 : i32
    %c0_i32_1 = arith.constant 0 : i32
    return %arg0, %c0_i32, %c0_i32_0 : i32, i32, i32
  }
  func.func @transform_7(%arg0: i32) -> (i32, i32, i32) {
    %c0_i32 = arith.constant 0 : i32
    %c0_i32_0 = arith.constant 0 : i32
    %c0_i32_1 = arith.constant 0 : i32
    return %arg0, %c0_i32, %c0_i32_0 : i32, i32, i32
  }
  func.func @transform_8(%arg0: i32) -> (i32, i32, i32) {
    %c0_i32 = arith.constant 0 : i32
    %c0_i32_0 = arith.constant 0 : i32
    %c0_i32_1 = arith.constant 0 : i32
    return %arg0, %c0_i32, %c0_i32_0 : i32, i32, i32
  }
  func.func @transform_9(%arg0: i32) -> (i32, i32, i32) {
    %c0_i32 = arith.constant 0 : i32
    %c0_i32_0 = arith.constant 0 : i32
    %c0_i32_1 = arith.constant 0 : i32
    return %arg0, %c0_i32, %c0_i32_0 : i32, i32, i32
  }
  func.func @transform_10(%arg0: i32) -> (i32, i32, i32) {
    %c0_i32 = arith.constant 0 : i32
    %c0_i32_0 = arith.constant 0 : i32
    %c0_i32_1 = arith.constant 0 : i32
    return %arg0, %c0_i32, %c0_i32_0 : i32, i32, i32
  }
  func.func @transform_11(%arg0: i32) -> (i32, i32, i32) {
    %c0_i32 = arith.constant 0 : i32
    %c0_i32_0 = arith.constant 0 : i32
    %c0_i32_1 = arith.constant 0 : i32
    return %arg0, %c0_i32, %c0_i32_0 : i32, i32, i32
  }
  func.func @transform_12(%arg0: i32) -> (i32, i32, i32) {
    %c0_i32 = arith.constant 0 : i32
    %c0_i32_0 = arith.constant 0 : i32
    %c0_i32_1 = arith.constant 0 : i32
    return %arg0, %c0_i32, %c0_i32_0 : i32, i32, i32
  }
  func.func @transform_13(%arg0: i32) -> (i32, i32, i32) {
    %c0_i32 = arith.constant 0 : i32
    %c0_i32_0 = arith.constant 0 : i32
    %c0_i32_1 = arith.constant 0 : i32
    return %arg0, %c0_i32, %c0_i32_0 : i32, i32, i32
  }
  func.func @transform_14(%arg0: i32) -> (i32, i32, i32) {
    %c0_i32 = arith.constant 0 : i32
    %c0_i32_0 = arith.constant 0 : i32
    %c0_i32_1 = arith.constant 0 : i32
    return %arg0, %c0_i32, %c0_i32_0 : i32, i32, i32
  }
  func.func @transform_15(%arg0: i32) -> (i32, i32, i32) {
    %c0_i32 = arith.constant 0 : i32
    %c0_i32_0 = arith.constant 0 : i32
    %c0_i32_1 = arith.constant 0 : i32
    return %arg0, %c0_i32, %c0_i32_0 : i32, i32, i32
  }
  func.func @transform_16(%arg0: i32) -> (i32, i32, i32) {
    %c0_i32 = arith.constant 0 : i32
    %c0_i32_0 = arith.constant 0 : i32
    %c0_i32_1 = arith.constant 0 : i32
    return %arg0, %c0_i32, %c0_i32_0 : i32, i32, i32
  }
  func.func @transform_17(%arg0: i32) -> (i32, i32, i32) {
    %c0_i32 = arith.constant 0 : i32
    %c0_i32_0 = arith.constant 0 : i32
    %c0_i32_1 = arith.constant 0 : i32
    return %arg0, %c0_i32, %c0_i32_0 : i32, i32, i32
  }
  func.func @transform_18(%arg0: i32) -> (i32, i32, i32) {
    %c0_i32 = arith.constant 0 : i32
    %c0_i32_0 = arith.constant 0 : i32
    %c0_i32_1 = arith.constant 0 : i32
    return %arg0, %c0_i32, %c0_i32_0 : i32, i32, i32
  }
  func.func @transform_19(%arg0: i32) -> (i32, i32, i32) {
    %c0_i32 = arith.constant 0 : i32
    %c0_i32_0 = arith.constant 0 : i32
    %c0_i32_1 = arith.constant 0 : i32
    return %arg0, %c0_i32, %c0_i32_0 : i32, i32, i32
  }
  func.func @transform_20(%arg0: i32) -> (i32, i32, i32) {
    %c0_i32 = arith.constant 0 : i32
    %c0_i32_0 = arith.constant 0 : i32
    %c0_i32_1 = arith.constant 0 : i32
    return %arg0, %c0_i32, %c0_i32_0 : i32, i32, i32
  }
  func.func @transform_21(%arg0: i32) -> (i32, i32, i32) {
    %c0_i32 = arith.constant 0 : i32
    %c0_i32_0 = arith.constant 0 : i32
    %c0_i32_1 = arith.constant 0 : i32
    return %arg0, %c0_i32, %c0_i32_0 : i32, i32, i32
  }
  func.func @transform_22(%arg0: i32) -> (i32, i32, i32) {
    %c0_i32 = arith.constant 0 : i32
    %c0_i32_0 = arith.constant 0 : i32
    %c0_i32_1 = arith.constant 0 : i32
    return %arg0, %c0_i32, %c0_i32_0 : i32, i32, i32
  }
  func.func @transform_23(%arg0: i32) -> (i32, i32) {
    %c0_i32 = arith.constant 0 : i32
    %c0_i32_0 = arith.constant 0 : i32
    %c0_i32_1 = arith.constant 0 : i32
    return %c0_i32, %c0_i32_0 : i32, i32
  }
  func.func @transform_24(%arg0: i32) -> (i32, i32) {
    %c0_i32 = arith.constant 0 : i32
    %c0_i32_0 = arith.constant 0 : i32
    %c0_i32_1 = arith.constant 0 : i32
    return %c0_i32, %c0_i32_0 : i32, i32
  }
  func.func @transform_25(%arg0: i32) -> (i32, i32) {
    %c0_i32 = arith.constant 0 : i32
    %c0_i32_0 = arith.constant 0 : i32
    %c0_i32_1 = arith.constant 0 : i32
    return %c0_i32, %c0_i32_0 : i32, i32
  }
  func.func @transform_26(%arg0: i32) -> (i32, i32) {
    %c0_i32 = arith.constant 0 : i32
    %c0_i32_0 = arith.constant 0 : i32
    %c0_i32_1 = arith.constant 0 : i32
    return %c0_i32, %c0_i32_0 : i32, i32
  }
  func.func @transform_27(%arg0: i32) -> (i32, i32, i32) {
    %c0_i32 = arith.constant 0 : i32
    %c0_i32_0 = arith.constant 0 : i32
    %c0_i32_1 = arith.constant 0 : i32
    %c0_i32_2 = arith.constant 0 : i32
    return %c0_i32, %c0_i32_0, %c0_i32_1 : i32, i32, i32
  }
}

</mosaic_0001>

<llo_original>
// kernel: model_forward.2
$region0: #{model_forward.2}
  #allocation0 [shape = 'u32[]', space=smem, size = 0x4, offset = 0x4, fixed_abs, tag = 'smem constant byte address 0x4 - core index']
  #allocation1 [shape = 'u32[72,128]{1,0:T(1,128)}', space=vmem, size = 0x9000, scoped, tag = 'internal scratch']
  #allocation2 [shape = 'f32[16,32]{1,0:T(8,128)}', space=vmem, size = 0x2000, scoped, tag = 'scratch operand']
  %s0 = inlined_call_operand.vmem [shape: f32[2,8,16], index: 0, kind: input, shape index: {}]
  %s1 = inlined_call_operand.hbm [shape: f32[16,32], index: 1, kind: input, shape index: {}]
  %s2 = inlined_call_operand.vmem [shape: f32[1,32], index: 2, kind: input, shape index: {}]
  %s3 = inlined_call_operand.vmem [shape: f32[2,32], index: 3, kind: input, shape index: {}]
  %s4 = inlined_call_operand.hbm [shape: f32[32,32], index: 4, kind: input, shape index: {}]
  %s5 = inlined_call_operand.hbm [shape: f32[1,32], index: 5, kind: input, shape index: {}]
  %s6 = inlined_call_operand.vmem [shape: f32[8,32], index: 6, kind: input, shape index: {}]
  %s7 = inlined_call_operand.vmem [shape: f32[2,1,32], index: 7, kind: input, shape index: {}]
  %s8 = inlined_call_operand.hbm [shape: f32[2,1,32], index: 8, kind: input, shape index: {}]
  %s9 = inlined_call_operand.vmem [shape: f32[2,32,96], index: 9, kind: input, shape index: {}]
  %s10 = inlined_call_operand.hbm [shape: f32[2,1,96], index: 10, kind: input, shape index: {}]
  %s11 = inlined_call_operand.vmem [shape: f32[2,32,32], index: 11, kind: input, shape index: {}]
  %s12 = inlined_call_operand.hbm [shape: f32[2,1,32], index: 12, kind: input, shape index: {}]
  %s13 = inlined_call_operand.hbm [shape: f32[2,1,32], index: 13, kind: input, shape index: {}]
  %s14 = inlined_call_operand.hbm [shape: f32[2,1,32], index: 14, kind: input, shape index: {}]
  %s15 = inlined_call_operand.vmem [shape: f32[2,32,128], index: 15, kind: input, shape index: {}]
  %s16 = inlined_call_operand.hbm [shape: f32[2,1,128], index: 16, kind: input, shape index: {}]
  %s17 = inlined_call_operand.vmem [shape: f32[2,128,32], index: 17, kind: input, shape index: {}]
  %s18 = inlined_call_operand.hbm [shape: f32[2,1,32], index: 18, kind: input, shape index: {}]
  %s19 = inlined_call_operand.hbm [shape: f32[1,32], index: 19, kind: input, shape index: {}]
  %s20 = inlined_call_operand.hbm [shape: f32[1,32], index: 20, kind: input, shape index: {}]
  %s21 = inlined_call_operand.vmem [shape: f32[2,8,32], index: 21, kind: output, shape index: {}]
  %s22 = sld [smem:[#allocation0]]
  $region173: #{model_forward.2} parent=0
    _
  %s24 = ssub.s32 1, %s22
  %s25 = scalar_select 0, %s24, %s22
  $region1: #{model_forward.2} parent=0
    #allocation3 [shape = 'u8[8192]{0}', space=vmem, size = 0x2000, scoped, tag = 'input window, operand 1, single buffered']
    #allocation4 [shape = 's32[2]{0}', space=sflag, size = 0x8, scoped, tag = 'scoped memory for model_forward.2']
    #allocation5 [shape = 'u8[16384]{0}', space=vmem, size = 0x4000, scoped, tag = 'input window, operand 4, single buffered']
    #allocation6 [shape = 's32[1]{0}', space=sflag, size = 0x4, scoped, tag = 'scoped memory for model_forward.2']
    #allocation7 [shape = 'u8[512]{0}', space=vmem, size = 0x400, scoped, tag = 'input window, operand 5, single buffered']
    #allocation8 [shape = 'u8[1024]{0}', space=vmem, size = 0x400, scoped, tag = 'input window, operand 8']
    #allocation9 [shape = 's32[2]{0}', space=sflag, size = 0x8, scoped, tag = 'scoped memory for model_forward.2']
    #allocation10 [shape = 'u8[1024]{0}', space=vmem, size = 0x400, scoped, tag = 'input window, operand 10']
    #allocation11 [shape = 'u8[1024]{0}', space=vmem, size = 0x400, scoped, tag = 'input window, operand 12']
    #allocation12 [shape = 's32[2]{0}', space=sflag, size = 0x8, scoped, tag = 'scoped memory for model_forward.2']
    #allocation13 [shape = 'u8[1024]{0}', space=vmem, size = 0x400, scoped, tag = 'input window, operand 13']
    #allocation14 [shape = 'u8[1024]{0}', space=vmem, size = 0x400, scoped, tag = 'input window, operand 14']
    #allocation15 [shape = 's32[2]{0}', space=sflag, size = 0x8, scoped, tag = 'scoped memory for model_forward.2']
    #allocation16 [shape = 'u8[1024]{0}', space=vmem, size = 0x400, scoped, tag = 'input window, operand 16']
    #allocation17 [shape = 'u8[1024]{0}', space=vmem, size = 0x400, scoped, tag = 'input window, operand 18']
    #allocation18 [shape = 's32[2]{0}', space=sflag, size = 0x8, scoped, tag = 'scoped memory for model_forward.2']
    #allocation19 [shape = 'u8[512]{0}', space=vmem, size = 0x400, scoped, tag = 'input window, operand 19, single buffered']
    #allocation20 [shape = 'u8[512]{0}', space=vmem, size = 0x400, scoped, tag = 'input window, operand 20, single buffered']
    #allocation21 [shape = 's32[1]{0}', space=sflag, size = 0x4, scoped, tag = 'scoped memory for model_forward.2']
    %26 = vsyncpa [#allocation4], 0
    %27 = vsyncpa [#allocation6], 0
    %28 = vsyncpa [#allocation9], 0
    %s29 = scalar_lea.sflag [#allocation9], 1
    %30 = vsyncpa %s29, 0
    %31 = vsyncpa [#allocation12], 0
    %s32 = scalar_lea.sflag [#allocation12], 1
    %33 = vsyncpa %s32, 0
    %34 = vsyncpa [#allocation15], 0
    %s35 = scalar_lea.sflag [#allocation15], 1
    %36 = vsyncpa %s35, 0
    %37 = vsyncpa [#allocation18], 0
    %s38 = scalar_lea.sflag [#allocation18], 1
    %39 = vsyncpa %s38, 0
    %40 = vsyncpa [#allocation21], 0
    loop: start=0, step=1, limit=4
    $region2: #{model_forward.2} parent=1 // loop_pre_header
      _
    $region3: #{model_forward.2} parent=1 // loop_header
      %s42 = sphi 0, %s46
      %p43 = scmp.ge.s32.totalorder %s42, 4
      %s50 = sphi 0, %s50
      %s52 = sphi 0, %s50
      %s53 = sphi 0, %s52
      %s67 = sphi 0, %s53
      %s71 = sphi 0, %s71
      %s73 = sphi 0, %s71
      %s74 = sphi 0, %s73
      %s88 = sphi 0, %s74
      %s92 = sphi 0, %s92
      %s94 = sphi 0, %s92
      %s95 = sphi 0, %s94
      %s109 = sphi 0, %s95
      %s113 = sphi 0, %s113
      %s115 = sphi 0, %s113
      %s116 = sphi 0, %s115
      %s130 = sphi 0, %s116
      %s134 = sphi 0, %s134
      %s136 = sphi 0, %s134
      %s137 = sphi 0, %s136
      %s151 = sphi 0, %s137
      %s155 = sphi 0, %s155
      %s157 = sphi 0, %s155
      %s158 = sphi 0, %s157
      %s172 = sphi 0, %s158
      %s176 = sphi 0, %s176
      %s178 = sphi 0, %s176
      %s179 = sphi 0, %s178
      %s193 = sphi 0, %s179
      %s199 = sphi 0, %s201
      %s202 = sphi 0, %s199
      %s203 = sphi 0, %s202
      %s219 = sphi 0, %s203
      %s225 = sphi 0, %s227
      %s228 = sphi 0, %s225
      %s229 = sphi 0, %s228
      %s245 = sphi 0, %s229
      %s251 = sphi 0, %s253
      %s254 = sphi 0, %s251
      %s255 = sphi 0, %s254
      %s271 = sphi 0, %s255
      %s277 = sphi 0, %s279
      %s280 = sphi 0, %s277
      %s281 = sphi 0, %s280
      %s297 = sphi 0, %s281
      %s303 = sphi 0, %s305
      %s306 = sphi 0, %s303
      %s307 = sphi 0, %s306
      %s323 = sphi 0, %s307
      %s329 = sphi 0, %s331
      %s332 = sphi 0, %s329
      %s333 = sphi 0, %s332
      %s349 = sphi 0, %s333
      %s355 = sphi 0, %s357
      %s358 = sphi 0, %s355
      %s359 = sphi 0, %s358
      %s375 = sphi 0, %s359
      %s381 = sphi 0, %s383
      %s384 = sphi 0, %s381
      %s385 = sphi 0, %s384
      %s401 = sphi 0, %s385
      %s407 = sphi 0, %s409
      %s410 = sphi 0, %s407
      %s411 = sphi 0, %s410
      %s427 = sphi 0, %s411
      %s433 = sphi 0, %s435
      %s436 = sphi 0, %s433
      %s437 = sphi 0, %s436
      %s453 = sphi 0, %s437
      %s459 = sphi 0, %s461
      %s462 = sphi 0, %s459
      %s463 = sphi 0, %s462
      %s479 = sphi 0, %s463
      %s485 = sphi 0, %s487
      %s488 = sphi 0, %s485
      %s489 = sphi 0, %s488
      %s505 = sphi 0, %s489
      %s509 = sphi 0, %s509
      %s511 = sphi 0, %s509
      %s512 = sphi 0, %s511
      %s526 = sphi 0, %s512
      %s530 = sphi 0, %s530
      %s532 = sphi 0, %s530
      %s533 = sphi 0, %s532
      %s547 = sphi 0, %s533
      %s551 = sphi 0, %s551
      %s553 = sphi 0, %s551
      %s554 = sphi 0, %s553
      %s568 = sphi 0, %s554
    $region4: #{model_forward.2} parent=1 // loop_header_branch
      %45 = sbr.rel (%p43) target = $region8
    $region5: #{model_forward.2} parent=1 // loop_body
      %s47 = ssub.s32 %s42, 1
      %s48 = ssub.s32 %s42, 2
      %s49 = sadd.s32 %s42, 1
      %s51 = sadd.s32 %s50, 1
      %p54 = scmp.eq.s32.totalorder %s42, 1
      %p55 = scmp.ne.s32.totalorder %s50, %s52
      %p56 = scmp.eq.s32.totalorder %s42, 0
      %p57 = por %p55, %p56
      %p58 = scmp.ne.s32.totalorder %s50, %s52
      %p59 = scmp.eq.s32.totalorder %s47, 1
      %p60 = por %p58, %p59
      %p61 = scmp.ne.s32.totalorder %s52, %s53
      %p62 = scmp.eq.s32.totalorder %s47, 0
      %p63 = por %p61, %p62
      %p64 = scmp.ne.s32.totalorder %s52, %s53
      %p65 = scmp.eq.s32.totalorder %s48, 1
      %p66 = por %p64, %p65
      %p68 = scmp.ne.s32.totalorder %s53, %s67
      %p69 = scmp.eq.s32.totalorder %s48, 0
      %p70 = por %p68, %p69
      %s72 = sadd.s32 %s71, 1
      %p75 = scmp.eq.s32.totalorder %s42, 1
      %p76 = scmp.ne.s32.totalorder %s71, %s73
      %p77 = scmp.eq.s32.totalorder %s42, 0
      %p78 = por %p76, %p77
      %p79 = scmp.ne.s32.totalorder %s71, %s73
      %p80 = scmp.eq.s32.totalorder %s47, 1
      %p81 = por %p79, %p80
      %p82 = scmp.ne.s32.totalorder %s73, %s74
      %p83 = scmp.eq.s32.totalorder %s47, 0
      %p84 = por %p82, %p83
      %p85 = scmp.ne.s32.totalorder %s73, %s74
      %p86 = scmp.eq.s32.totalorder %s48, 1
      %p87 = por %p85, %p86
      %p89 = scmp.ne.s32.totalorder %s74, %s88
      %p90 = scmp.eq.s32.totalorder %s48, 0
      %p91 = por %p89, %p90
      %s93 = sadd.s32 %s92, 1
      %p96 = scmp.eq.s32.totalorder %s42, 1
      %p97 = scmp.ne.s32.totalorder %s92, %s94
      %p98 = scmp.eq.s32.totalorder %s42, 0
      %p99 = por %p97, %p98
      %p100 = scmp.ne.s32.totalorder %s92, %s94
      %p101 = scmp.eq.s32.totalorder %s47, 1
      %p102 = por %p100, %p101
      %p103 = scmp.ne.s32.totalorder %s94, %s95
      %p104 = scmp.eq.s32.totalorder %s47, 0
      %p105 = por %p103, %p104
      %p106 = scmp.ne.s32.totalorder %s94, %s95
      %p107 = scmp.eq.s32.totalorder %s48, 1
      %p108 = por %p106, %p107
      %p110 = scmp.ne.s32.totalorder %s95, %s109
      %p111 = scmp.eq.s32.totalorder %s48, 0
      %p112 = por %p110, %p111
      %s114 = sadd.s32 %s113, 1
      %p117 = scmp.eq.s32.totalorder %s42, 1
      %p118 = scmp.ne.s32.totalorder %s113, %s115
      %p119 = scmp.eq.s32.totalorder %s42, 0
      %p120 = por %p118, %p119
      %p121 = scmp.ne.s32.totalorder %s113, %s115
      %p122 = scmp.eq.s32.totalorder %s47, 1
      %p123 = por %p121, %p122
      %p124 = scmp.ne.s32.totalorder %s115, %s116
      %p125 = scmp.eq.s32.totalorder %s47, 0
      %p126 = por %p124, %p125
      %p127 = scmp.ne.s32.totalorder %s115, %s116
      %p128 = scmp.eq.s32.totalorder %s48, 1
      %p129 = por %p127, %p128
      %p131 = scmp.ne.s32.totalorder %s116, %s130
      %p132 = scmp.eq.s32.totalorder %s48, 0
      %p133 = por %p131, %p132
      %s135 = sadd.s32 %s134, 1
      %p138 = scmp.eq.s32.totalorder %s42, 1
      %p139 = scmp.ne.s32.totalorder %s134, %s136
      %p140 = scmp.eq.s32.totalorder %s42, 0
      %p141 = por %p139, %p140
      %p142 = scmp.ne.s32.totalorder %s134, %s136
      %p143 = scmp.eq.s32.totalorder %s47, 1
      %p144 = por %p142, %p143
      %p145 = scmp.ne.s32.totalorder %s136, %s137
      %p146 = scmp.eq.s32.totalorder %s47, 0
      %p147 = por %p145, %p146
      %p148 = scmp.ne.s32.totalorder %s136, %s137
      %p149 = scmp.eq.s32.totalorder %s48, 1
      %p150 = por %p148, %p149
      %p152 = scmp.ne.s32.totalorder %s137, %s151
      %p153 = scmp.eq.s32.totalorder %s48, 0
      %p154 = por %p152, %p153
      %s156 = sadd.s32 %s155, 1
      %p159 = scmp.eq.s32.totalorder %s42, 1
      %p160 = scmp.ne.s32.totalorder %s155, %s157
      %p161 = scmp.eq.s32.totalorder %s42, 0
      %p162 = por %p160, %p161
      %p163 = scmp.ne.s32.totalorder %s155, %s157
      %p164 = scmp.eq.s32.totalorder %s47, 1
      %p165 = por %p163, %p164
      %p166 = scmp.ne.s32.totalorder %s157, %s158
      %p167 = scmp.eq.s32.totalorder %s47, 0
      %p168 = por %p166, %p167
      %p169 = scmp.ne.s32.totalorder %s157, %s158
      %p170 = scmp.eq.s32.totalorder %s48, 1
      %p171 = por %p169, %p170
      %p173 = scmp.ne.s32.totalorder %s158, %s172
      %p174 = scmp.eq.s32.totalorder %s48, 0
      %p175 = por %p173, %p174
      %s177 = sadd.s32 %s176, 1
      %p180 = scmp.eq.s32.totalorder %s42, 1
      %p181 = scmp.ne.s32.totalorder %s176, %s178
      %p182 = scmp.eq.s32.totalorder %s42, 0
      %p183 = por %p181, %p182
      %p184 = scmp.ne.s32.totalorder %s176, %s178
      %p185 = scmp.eq.s32.totalorder %s47, 1
      %p186 = por %p184, %p185
      %p187 = scmp.ne.s32.totalorder %s178, %s179
      %p188 = scmp.eq.s32.totalorder %s47, 0
      %p189 = por %p187, %p188
      %p190 = scmp.ne.s32.totalorder %s178, %s179
      %p191 = scmp.eq.s32.totalorder %s48, 1
      %p192 = por %p190, %p191
      %p194 = scmp.ne.s32.totalorder %s179, %s193
      %p195 = scmp.eq.s32.totalorder %s48, 0
      %p196 = por %p194, %p195
      %s197 = ssub.s32 %s42, %s49
      %p198 = scmp.eq.s32.totalorder %s197, 0
      %s200 = sadd.s32 %s199, 1
      %s201 = scalar_select %p198, %s199, %s200
      %p204 = pneg %p198
      %p205 = scmp.eq.s32.totalorder %s42, 1
      %p206 = por %p204, %p205
      %p207 = scmp.ne.s32.totalorder %s199, %s202
      %p208 = scmp.eq.s32.totalorder %s42, 0
      %p209 = por %p207, %p208
      %p210 = scmp.ne.s32.totalorder %s199, %s202
      %p211 = scmp.eq.s32.totalorder %s47, 1
      %p212 = por %p210, %p211
      %p213 = scmp.ne.s32.totalorder %s202, %s203
      %p214 = scmp.eq.s32.totalorder %s47, 0
      %p215 = por %p213, %p214
      %p216 = scmp.ne.s32.totalorder %s202, %s203
      %p217 = scmp.eq.s32.totalorder %s48, 1
      %p218 = por %p216, %p217
      %p220 = scmp.ne.s32.totalorder %s203, %s219
      %p221 = scmp.eq.s32.totalorder %s48, 0
      %p222 = por %p220, %p221
      %s223 = ssub.s32 %s42, %s49
      %p224 = scmp.eq.s32.totalorder %s223, 0
      %s226 = sadd.s32 %s225, 1
      %s227 = scalar_select %p224, %s225, %s226
      %p230 = pneg %p224
      %p231 = scmp.eq.s32.totalorder %s42, 1
      %p232 = por %p230, %p231
      %p233 = scmp.ne.s32.totalorder %s225, %s228
      %p234 = scmp.eq.s32.totalorder %s42, 0
      %p235 = por %p233, %p234
      %p236 = scmp.ne.s32.totalorder %s225, %s228
      %p237 = scmp.eq.s32.totalorder %s47, 1
      %p238 = por %p236, %p237
      %p239 = scmp.ne.s32.totalorder %s228, %s229
      %p240 = scmp.eq.s32.totalorder %s47, 0
      %p241 = por %p239, %p240
      %p242 = scmp.ne.s32.totalorder %s228, %s229
      %p243 = scmp.eq.s32.totalorder %s48, 1
      %p244 = por %p242, %p243
      %p246 = scmp.ne.s32.totalorder %s229, %s245
      %p247 = scmp.eq.s32.totalorder %s48, 0
      %p248 = por %p246, %p247
      %s249 = ssub.s32 %s42, %s49
      %p250 = scmp.eq.s32.totalorder %s249, 0
      %s252 = sadd.s32 %s251, 1
      %s253 = scalar_select %p250, %s251, %s252
      %p256 = pneg %p250
      %p257 = scmp.eq.s32.totalorder %s42, 1
      %p258 = por %p256, %p257
      %p259 = scmp.ne.s32.totalorder %s251, %s254
      %p260 = scmp.eq.s32.totalorder %s42, 0
      %p261 = por %p259, %p260
      %p262 = scmp.ne.s32.totalorder %s251, %s254
      %p263 = scmp.eq.s32.totalorder %s47, 1
      %p264 = por %p262, %p263
      %p265 = scmp.ne.s32.totalorder %s254, %s255
      %p266 = scmp.eq.s32.totalorder %s47, 0
      %p267 = por %p265, %p266
      %p268 = scmp.ne.s32.totalorder %s254, %s255
      %p269 = scmp.eq.s32.totalorder %s48, 1
      %p270 = por %p268, %p269
      %p272 = scmp.ne.s32.totalorder %s255, %s271
      %p273 = scmp.eq.s32.totalorder %s48, 0
      %p274 = por %p272, %p273
      %s275 = ssub.s32 %s42, %s49
      %p276 = scmp.eq.s32.totalorder %s275, 0
      %s278 = sadd.s32 %s277, 1
      %s279 = scalar_select %p276, %s277, %s278
      %p282 = pneg %p276
      %p283 = scmp.eq.s32.totalorder %s42, 1
      %p284 = por %p282, %p283
      %p285 = scmp.ne.s32.totalorder %s277, %s280
      %p286 = scmp.eq.s32.totalorder %s42, 0
      %p287 = por %p285, %p286
      %p288 = scmp.ne.s32.totalorder %s277, %s280
      %p289 = scmp.eq.s32.totalorder %s47, 1
      %p290 = por %p288, %p289
      %p291 = scmp.ne.s32.totalorder %s280, %s281
      %p292 = scmp.eq.s32.totalorder %s47, 0
      %p293 = por %p291, %p292
      %p294 = scmp.ne.s32.totalorder %s280, %s281
      %p295 = scmp.eq.s32.totalorder %s48, 1
      %p296 = por %p294, %p295
      %p298 = scmp.ne.s32.totalorder %s281, %s297
      %p299 = scmp.eq.s32.totalorder %s48, 0
      %p300 = por %p298, %p299
      %s301 = ssub.s32 %s42, %s49
      %p302 = scmp.eq.s32.totalorder %s301, 0
      %s304 = sadd.s32 %s303, 1
      %s305 = scalar_select %p302, %s303, %s304
      %p308 = pneg %p302
      %p309 = scmp.eq.s32.totalorder %s42, 1
      %p310 = por %p308, %p309
      %p311 = scmp.ne.s32.totalorder %s303, %s306
      %p312 = scmp.eq.s32.totalorder %s42, 0
      %p313 = por %p311, %p312
      %p314 = scmp.ne.s32.totalorder %s303, %s306
      %p315 = scmp.eq.s32.totalorder %s47, 1
      %p316 = por %p314, %p315
      %p317 = scmp.ne.s32.totalorder %s306, %s307
      %p318 = scmp.eq.s32.totalorder %s47, 0
      %p319 = por %p317, %p318
      %p320 = scmp.ne.s32.totalorder %s306, %s307
      %p321 = scmp.eq.s32.totalorder %s48, 1
      %p322 = por %p320, %p321
      %p324 = scmp.ne.s32.totalorder %s307, %s323
      %p325 = scmp.eq.s32.totalorder %s48, 0
      %p326 = por %p324, %p325
      %s327 = ssub.s32 %s42, %s49
      %p328 = scmp.eq.s32.totalorder %s327, 0
      %s330 = sadd.s32 %s329, 1
      %s331 = scalar_select %p328, %s329, %s330
      %p334 = pneg %p328
      %p335 = scmp.eq.s32.totalorder %s42, 1
      %p336 = por %p334, %p335
      %p337 = scmp.ne.s32.totalorder %s329, %s332
      %p338 = scmp.eq.s32.totalorder %s42, 0
      %p339 = por %p337, %p338
      %p340 = scmp.ne.s32.totalorder %s329, %s332
      %p341 = scmp.eq.s32.totalorder %s47, 1
      %p342 = por %p340, %p341
      %p343 = scmp.ne.s32.totalorder %s332, %s333
      %p344 = scmp.eq.s32.totalorder %s47, 0
      %p345 = por %p343, %p344
      %p346 = scmp.ne.s32.totalorder %s332, %s333
      %p347 = scmp.eq.s32.totalorder %s48, 1
      %p348 = por %p346, %p347
      %p350 = scmp.ne.s32.totalorder %s333, %s349
      %p351 = scmp.eq.s32.totalorder %s48, 0
      %p352 = por %p350, %p351
      %s353 = ssub.s32 %s42, %s49
      %p354 = scmp.eq.s32.totalorder %s353, 0
      %s356 = sadd.s32 %s355, 1
      %s357 = scalar_select %p354, %s355, %s356
      %p360 = pneg %p354
      %p361 = scmp.eq.s32.totalorder %s42, 1
      %p362 = por %p360, %p361
      %p363 = scmp.ne.s32.totalorder %s355, %s358
      %p364 = scmp.eq.s32.totalorder %s42, 0
      %p365 = por %p363, %p364
      %p366 = scmp.ne.s32.totalorder %s355, %s358
      %p367 = scmp.eq.s32.totalorder %s47, 1
      %p368 = por %p366, %p367
      %p369 = scmp.ne.s32.totalorder %s358, %s359
      %p370 = scmp.eq.s32.totalorder %s47, 0
      %p371 = por %p369, %p370
      %p372 = scmp.ne.s32.totalorder %s358, %s359
      %p373 = scmp.eq.s32.totalorder %s48, 1
      %p374 = por %p372, %p373
      %p376 = scmp.ne.s32.totalorder %s359, %s375
      %p377 = scmp.eq.s32.totalorder %s48, 0
      %p378 = por %p376, %p377
      %s379 = ssub.s32 %s42, %s49
      %p380 = scmp.eq.s32.totalorder %s379, 0
      %s382 = sadd.s32 %s381, 1
      %s383 = scalar_select %p380, %s381, %s382
      %p386 = pneg %p380
      %p387 = scmp.eq.s32.totalorder %s42, 1
      %p388 = por %p386, %p387
      %p389 = scmp.ne.s32.totalorder %s381, %s384
      %p390 = scmp.eq.s32.totalorder %s42, 0
      %p391 = por %p389, %p390
      %p392 = scmp.ne.s32.totalorder %s381, %s384
      %p393 = scmp.eq.s32.totalorder %s47, 1
      %p394 = por %p392, %p393
      %p395 = scmp.ne.s32.totalorder %s384, %s385
      %p396 = scmp.eq.s32.totalorder %s47, 0
      %p397 = por %p395, %p396
      %p398 = scmp.ne.s32.totalorder %s384, %s385
      %p399 = scmp.eq.s32.totalorder %s48, 1
      %p400 = por %p398, %p399
      %p402 = scmp.ne.s32.totalorder %s385, %s401
      %p403 = scmp.eq.s32.totalorder %s48, 0
      %p404 = por %p402, %p403
      %s405 = ssub.s32 %s42, %s49
      %p406 = scmp.eq.s32.totalorder %s405, 0
      %s408 = sadd.s32 %s407, 1
      %s409 = scalar_select %p406, %s407, %s408
      %p412 = pneg %p406
      %p413 = scmp.eq.s32.totalorder %s42, 1
      %p414 = por %p412, %p413
      %p415 = scmp.ne.s32.totalorder %s407, %s410
      %p416 = scmp.eq.s32.totalorder %s42, 0
      %p417 = por %p415, %p416
      %p418 = scmp.ne.s32.totalorder %s407, %s410
      %p419 = scmp.eq.s32.totalorder %s47, 1
      %p420 = por %p418, %p419
      %p421 = scmp.ne.s32.totalorder %s410, %s411
      %p422 = scmp.eq.s32.totalorder %s47, 0
      %p423 = por %p421, %p422
      %p424 = scmp.ne.s32.totalorder %s410, %s411
      %p425 = scmp.eq.s32.totalorder %s48, 1
      %p426 = por %p424, %p425
      %p428 = scmp.ne.s32.totalorder %s411, %s427
      %p429 = scmp.eq.s32.totalorder %s48, 0
      %p430 = por %p428, %p429
      %s431 = ssub.s32 %s42, %s49
      %p432 = scmp.eq.s32.totalorder %s431, 0
      %s434 = sadd.s32 %s433, 1
      %s435 = scalar_select %p432, %s433, %s434
      %p438 = pneg %p432
      %p439 = scmp.eq.s32.totalorder %s42, 1
      %p440 = por %p438, %p439
      %p441 = scmp.ne.s32.totalorder %s433, %s436
      %p442 = scmp.eq.s32.totalorder %s42, 0
      %p443 = por %p441, %p442
      %p444 = scmp.ne.s32.totalorder %s433, %s436
      %p445 = scmp.eq.s32.totalorder %s47, 1
      %p446 = por %p444, %p445
      %p447 = scmp.ne.s32.totalorder %s436, %s437
      %p448 = scmp.eq.s32.totalorder %s47, 0
      %p449 = por %p447, %p448
      %p450 = scmp.ne.s32.totalorder %s436, %s437
      %p451 = scmp.eq.s32.totalorder %s48, 1
      %p452 = por %p450, %p451
      %p454 = scmp.ne.s32.totalorder %s437, %s453
      %p455 = scmp.eq.s32.totalorder %s48, 0
      %p456 = por %p454, %p455
      %s457 = ssub.s32 %s42, %s49
      %p458 = scmp.eq.s32.totalorder %s457, 0
      %s460 = sadd.s32 %s459, 1
      %s461 = scalar_select %p458, %s459, %s460
      %p464 = pneg %p458
      %p465 = scmp.eq.s32.totalorder %s42, 1
      %p466 = por %p464, %p465
      %p467 = scmp.ne.s32.totalorder %s459, %s462
      %p468 = scmp.eq.s32.totalorder %s42, 0
      %p469 = por %p467, %p468
      %p470 = scmp.ne.s32.totalorder %s459, %s462
      %p471 = scmp.eq.s32.totalorder %s47, 1
      %p472 = por %p470, %p471
      %p473 = scmp.ne.s32.totalorder %s462, %s463
      %p474 = scmp.eq.s32.totalorder %s47, 0
      %p475 = por %p473, %p474
      %p476 = scmp.ne.s32.totalorder %s462, %s463
      %p477 = scmp.eq.s32.totalorder %s48, 1
      %p478 = por %p476, %p477
      %p480 = scmp.ne.s32.totalorder %s463, %s479
      %p481 = scmp.eq.s32.totalorder %s48, 0
      %p482 = por %p480, %p481
      %s483 = ssub.s32 %s42, %s49
      %p484 = scmp.eq.s32.totalorder %s483, 0
      %s486 = sadd.s32 %s485, 1
      %s487 = scalar_select %p484, %s485, %s486
      %p490 = pneg %p484
      %p491 = scmp.eq.s32.totalorder %s42, 1
      %p492 = por %p490, %p491
      %p493 = scmp.ne.s32.totalorder %s485, %s488
      %p494 = scmp.eq.s32.totalorder %s42, 0
      %p495 = por %p493, %p494
      %p496 = scmp.ne.s32.totalorder %s485, %s488
      %p497 = scmp.eq.s32.totalorder %s47, 1
      %p498 = por %p496, %p497
      %p499 = scmp.ne.s32.totalorder %s488, %s489
      %p500 = scmp.eq.s32.totalorder %s47, 0
      %p501 = por %p499, %p500
      %p502 = scmp.ne.s32.totalorder %s488, %s489
      %p503 = scmp.eq.s32.totalorder %s48, 1
      %p504 = por %p502, %p503
      %p506 = scmp.ne.s32.totalorder %s489, %s505
      %p507 = scmp.eq.s32.totalorder %s48, 0
      %p508 = por %p506, %p507
      %s510 = sadd.s32 %s509, 1
      %p513 = scmp.eq.s32.totalorder %s42, 1
      %p514 = scmp.ne.s32.totalorder %s509, %s511
      %p515 = scmp.eq.s32.totalorder %s42, 0
      %p516 = por %p514, %p515
      %p517 = scmp.ne.s32.totalorder %s509, %s511
      %p518 = scmp.eq.s32.totalorder %s47, 1
      %p519 = por %p517, %p518
      %p520 = scmp.ne.s32.totalorder %s511, %s512
      %p521 = scmp.eq.s32.totalorder %s47, 0
      %p522 = por %p520, %p521
      %p523 = scmp.ne.s32.totalorder %s511, %s512
      %p524 = scmp.eq.s32.totalorder %s48, 1
      %p525 = por %p523, %p524
      %p527 = scmp.ne.s32.totalorder %s512, %s526
      %p528 = scmp.eq.s32.totalorder %s48, 0
      %p529 = por %p527, %p528
      %s531 = sadd.s32 %s530, 1
      %p534 = scmp.eq.s32.totalorder %s42, 1
      %p535 = scmp.ne.s32.totalorder %s530, %s532
      %p536 = scmp.eq.s32.totalorder %s42, 0
      %p537 = por %p535, %p536
      %p538 = scmp.ne.s32.totalorder %s530, %s532
      %p539 = scmp.eq.s32.totalorder %s47, 1
      %p540 = por %p538, %p539
      %p541 = scmp.ne.s32.totalorder %s532, %s533
      %p542 = scmp.eq.s32.totalorder %s47, 0
      %p543 = por %p541, %p542
      %p544 = scmp.ne.s32.totalorder %s532, %s533
      %p545 = scmp.eq.s32.totalorder %s48, 1
      %p546 = por %p544, %p545
      %p548 = scmp.ne.s32.totalorder %s533, %s547
      %p549 = scmp.eq.s32.totalorder %s48, 0
      %p550 = por %p548, %p549
      %s552 = sadd.s32 %s551, 1
      %p555 = scmp.eq.s32.totalorder %s42, 1
      %p556 = scmp.ne.s32.totalorder %s551, %s553
      %p557 = scmp.eq.s32.totalorder %s42, 0
      %p558 = por %p556, %p557
      %p559 = scmp.ne.s32.totalorder %s551, %s553
      %p560 = scmp.eq.s32.totalorder %s47, 1
      %p561 = por %p559, %p560
      %p562 = scmp.ne.s32.totalorder %s553, %s554
      %p563 = scmp.eq.s32.totalorder %s47, 0
      %p564 = por %p562, %p563
      %p565 = scmp.ne.s32.totalorder %s553, %s554
      %p566 = scmp.eq.s32.totalorder %s48, 1
      %p567 = por %p565, %p566
      %p569 = scmp.ne.s32.totalorder %s554, %s568
      %p570 = scmp.eq.s32.totalorder %s48, 0
      %p571 = por %p569, %p570
      %p572 = scmp.le.s32.totalorder 1, %s42
      %p573 = scmp.lt.s32.totalorder %s42, 3
      %p574 = pnand %p572, %p573
      %p575 = pneg %p574
      // Predicated region
      $region9: #{model_forward.2} parent=5 // pred_check
        _
      $region10: #{model_forward.2} parent=5 // pred_check_branch
        %577 = sbr.rel (%p574) target = $region12
      $region11: #{model_forward.2} parent=5 // pred_region
        %s578 = ssub.s32 %s42, 1
        // Predicated region
        $region13: #{model_forward.2} parent=11 // pred_check
          %p579 = pneg %p63
        $region14: #{model_forward.2} parent=11 // pred_check_branch
          %581 = sbr.rel (%p579) target = $region16
        $region15: #{model_forward.2} parent=11 // pred_region
          _
        $region16: #{model_forward.2} parent=11 // pred_fallthru
          _
        // Predicated region
        $region17: #{model_forward.2} parent=11 // pred_check
          %p582 = pneg %p84
        $region18: #{model_forward.2} parent=11 // pred_check_branch
          %584 = sbr.rel (%p582) target = $region20
        $region19: #{model_forward.2} parent=11 // pred_region
          %586 = vsyncadd [#allocation4], 0
          %s587 = sshll.u32 %s1, 4
          %s588 = int_to_ptr.hbm [resolvable:$true] %s587
          %s589 = sshll.u32 [#allocation3], 4
          %s590 = int_to_ptr.vmem [resolvable:$true] %s589
          %595 = dma.hbm_to_vmem [thread:$0]  %s588, 256, %s590, [#allocation4], 128, 128, 8
        $region20: #{model_forward.2} parent=11 // pred_fallthru
          _
        // Predicated region
        $region21: #{model_forward.2} parent=11 // pred_check
          %p596 = pneg %p105
        $region22: #{model_forward.2} parent=11 // pred_check_branch
          %598 = sbr.rel (%p596) target = $region24
        $region23: #{model_forward.2} parent=11 // pred_region
          _
        $region24: #{model_forward.2} parent=11 // pred_fallthru
          _
        // Predicated region
        $region25: #{model_forward.2} parent=11 // pred_check
          %p599 = pneg %p126
        $region26: #{model_forward.2} parent=11 // pred_check_branch
          %601 = sbr.rel (%p599) target = $region28
        $region27: #{model_forward.2} parent=11 // pred_region
          _
        $region28: #{model_forward.2} parent=11 // pred_fallthru
          _
        // Predicated region
        $region29: #{model_forward.2} parent=11 // pred_check
          %p602 = pneg %p147
        $region30: #{model_forward.2} parent=11 // pred_check_branch
          %604 = sbr.rel (%p602) target = $region32
        $region31: #{model_forward.2} parent=11 // pred_region
          %606 = vsyncadd [#allocation6], 0
          %s607 = sshll.u32 %s4, 4
          %s608 = int_to_ptr.hbm [resolvable:$true] %s607
          %s609 = sshll.u32 [#allocation5], 4
          %s610 = int_to_ptr.vmem [resolvable:$true] %s609
          %615 = dma.hbm_to_vmem [thread:$0]  %s608, 512, %s610, [#allocation6], 128, 128, 8
        $region32: #{model_forward.2} parent=11 // pred_fallthru
          _
        // Predicated region
        $region33: #{model_forward.2} parent=11 // pred_check
          %p616 = pneg %p168
        $region34: #{model_forward.2} parent=11 // pred_check_branch
          %618 = sbr.rel (%p616) target = $region36
        $region35: #{model_forward.2} parent=11 // pred_region
          %620 = vsyncadd [#allocation6], 0
          %s622 = sshll.u32 %s5, 4
          %s623 = int_to_ptr.hbm [resolvable:$true] %s622
          %s624 = sshll.u32 [#allocation7], 4
          %s625 = int_to_ptr.vmem [resolvable:$true] %s624
          %627 = dma.hbm_to_vmem [thread:$0]  %s623, 16, %s625, [#allocation6]
        $region36: #{model_forward.2} parent=11 // pred_fallthru
          _
        // Predicated region
        $region37: #{model_forward.2} parent=11 // pred_check
          %p628 = pneg %p189
        $region38: #{model_forward.2} parent=11 // pred_check_branch
          %630 = sbr.rel (%p628) target = $region40
        $region39: #{model_forward.2} parent=11 // pred_region
          _
        $region40: #{model_forward.2} parent=11 // pred_fallthru
          _
        // Predicated region
        $region41: #{model_forward.2} parent=11 // pred_check
          %p631 = pneg %p522
        $region42: #{model_forward.2} parent=11 // pred_check_branch
          %633 = sbr.rel (%p631) target = $region44
        $region43: #{model_forward.2} parent=11 // pred_region
          %635 = vsyncadd [#allocation18], 0
          %s637 = sshll.u32 %s19, 4
          %s638 = int_to_ptr.hbm [resolvable:$true] %s637
          %s639 = sshll.u32 [#allocation19], 4
          %s640 = int_to_ptr.vmem [resolvable:$true] %s639
          %642 = dma.hbm_to_vmem [thread:$0]  %s638, 16, %s640, [#allocation18]
        $region44: #{model_forward.2} parent=11 // pred_fallthru
          _
        // Predicated region
        $region45: #{model_forward.2} parent=11 // pred_check
          %p643 = pneg %p543
        $region46: #{model_forward.2} parent=11 // pred_check_branch
          %645 = sbr.rel (%p643) target = $region48
        $region47: #{model_forward.2} parent=11 // pred_region
          %647 = vsyncadd [#allocation21], 0
          %s649 = sshll.u32 %s20, 4
          %s650 = int_to_ptr.hbm [resolvable:$true] %s649
          %s651 = sshll.u32 [#allocation20], 4
          %s652 = int_to_ptr.vmem [resolvable:$true] %s651
          %654 = dma.hbm_to_vmem [thread:$0]  %s650, 16, %s652, [#allocation21]
        $region48: #{model_forward.2} parent=11 // pred_fallthru
          _
      $region12: #{model_forward.2} parent=5 // pred_fallthru
        _
      %p655 = scmp.lt.s32.totalorder %s42, 2
      // Predicated region
      $region49: #{model_forward.2} parent=5 // pred_check
        %p656 = pneg %p655
      $region50: #{model_forward.2} parent=5 // pred_check_branch
        %658 = sbr.rel (%p656) target = $region52
      $region51: #{model_forward.2} parent=5 // pred_region
        // Predicated region
        $region53: #{model_forward.2} parent=51 // pred_check
          %p659 = pneg %p209
        $region54: #{model_forward.2} parent=51 // pred_check_branch
          %661 = sbr.rel (%p659) target = $region56
        $region55: #{model_forward.2} parent=51 // pred_region
          %p662 = scmp.lt.s32.totalorder %s42, 1
          %s663 = scalar_select %p662, %s42, 1
          %s664 = scalar_lea.vmem %s7, %s663
        $region56: #{model_forward.2} parent=51 // pred_fallthru
          _
        // Predicated region
        $region57: #{model_forward.2} parent=51 // pred_check
          %p665 = pneg %p235
        $region58: #{model_forward.2} parent=51 // pred_check_branch
          %667 = sbr.rel (%p665) target = $region60
        $region59: #{model_forward.2} parent=51 // pred_region
          %s668 = sand.u32 %s42, 1
          %s669 = scalar_lea.sflag [#allocation9], %s668
          %s670 = sand.u32 %s225, 1
          %s671 = scalar_lea.vmem [#allocation8], %s670
          %673 = vsyncadd %s669, 0
          %s674 = scalar_lea.hbm %s8, %s42
          %s676 = sshll.u32 %s674, 4
          %s677 = int_to_ptr.hbm [resolvable:$true] %s676
          %s678 = sshll.u32 %s671, 4
          %s679 = int_to_ptr.vmem [resolvable:$true] %s678
          %681 = dma.hbm_to_vmem [thread:$0]  %s677, 16, %s679, %s669
        $region60: #{model_forward.2} parent=51 // pred_fallthru
          _
        // Predicated region
        $region61: #{model_forward.2} parent=51 // pred_check
          %p682 = pneg %p261
        $region62: #{model_forward.2} parent=51 // pred_check_branch
          %684 = sbr.rel (%p682) target = $region64
        $region63: #{model_forward.2} parent=51 // pred_region
          %p685 = scmp.lt.s32.totalorder %s42, 1
          %s686 = scalar_select %p685, %s42, 1
          %s687 = smul.addr %s686, 4
          %s688 = smul.addr %s687, 8
          %s689 = scalar_lea.vmem %s9, %s688
        $region64: #{model_forward.2} parent=51 // pred_fallthru
          _
        // Predicated region
        $region65: #{model_forward.2} parent=51 // pred_check
          %p690 = pneg %p287
        $region66: #{model_forward.2} parent=51 // pred_check_branch
          %692 = sbr.rel (%p690) target = $region68
        $region67: #{model_forward.2} parent=51 // pred_region
          %s693 = sand.u32 %s42, 1
          %s694 = scalar_lea.sflag [#allocation9], %s693
          %s695 = sand.u32 %s277, 1
          %s696 = scalar_lea.vmem [#allocation10], %s695
          %698 = vsyncadd %s694, 0
          %s699 = scalar_lea.hbm %s10, %s42
          %s701 = sshll.u32 %s699, 4
          %s702 = int_to_ptr.hbm [resolvable:$true] %s701
          %s703 = sshll.u32 %s696, 4
          %s704 = int_to_ptr.vmem [resolvable:$true] %s703
          %706 = dma.hbm_to_vmem [thread:$0]  %s702, 16, %s704, %s694
        $region68: #{model_forward.2} parent=51 // pred_fallthru
          _
        // Predicated region
        $region69: #{model_forward.2} parent=51 // pred_check
          %p707 = pneg %p313
        $region70: #{model_forward.2} parent=51 // pred_check_branch
          %709 = sbr.rel (%p707) target = $region72
        $region71: #{model_forward.2} parent=51 // pred_region
          %p710 = scmp.lt.s32.totalorder %s42, 1
          %s711 = scalar_select %p710, %s42, 1
          %s712 = smul.addr %s711, 4
          %s713 = smul.addr %s712, 8
          %s714 = scalar_lea.vmem %s11, %s713
        $region72: #{model_forward.2} parent=51 // pred_fallthru
          _
        // Predicated region
        $region73: #{model_forward.2} parent=51 // pred_check
          %p715 = pneg %p339
        $region74: #{model_forward.2} parent=51 // pred_check_branch
          %717 = sbr.rel (%p715) target = $region76
        $region75: #{model_forward.2} parent=51 // pred_region
          %s718 = sand.u32 %s42, 1
          %s719 = scalar_lea.sflag [#allocation12], %s718
          %s720 = sand.u32 %s329, 1
          %s721 = scalar_lea.vmem [#allocation11], %s720
          %723 = vsyncadd %s719, 0
          %s724 = scalar_lea.hbm %s12, %s42
          %s726 = sshll.u32 %s724, 4
          %s727 = int_to_ptr.hbm [resolvable:$true] %s726
          %s728 = sshll.u32 %s721, 4
          %s729 = int_to_ptr.vmem [resolvable:$true] %s728
          %731 = dma.hbm_to_vmem [thread:$0]  %s727, 16, %s729, %s719
        $region76: #{model_forward.2} parent=51 // pred_fallthru
          _
        // Predicated region
        $region77: #{model_forward.2} parent=51 // pred_check
          %p732 = pneg %p365
        $region78: #{model_forward.2} parent=51 // pred_check_branch
          %734 = sbr.rel (%p732) target = $region80
        $region79: #{model_forward.2} parent=51 // pred_region
          %s735 = sand.u32 %s42, 1
          %s736 = scalar_lea.sflag [#allocation12], %s735
          %s737 = sand.u32 %s355, 1
          %s738 = scalar_lea.vmem [#allocation13], %s737
          %740 = vsyncadd %s736, 0
          %s741 = scalar_lea.hbm %s13, %s42
          %s743 = sshll.u32 %s741, 4
          %s744 = int_to_ptr.hbm [resolvable:$true] %s743
          %s745 = sshll.u32 %s738, 4
          %s746 = int_to_ptr.vmem [resolvable:$true] %s745
          %748 = dma.hbm_to_vmem [thread:$0]  %s744, 16, %s746, %s736
        $region80: #{model_forward.2} parent=51 // pred_fallthru
          _
        // Predicated region
        $region81: #{model_forward.2} parent=51 // pred_check
          %p749 = pneg %p391
        $region82: #{model_forward.2} parent=51 // pred_check_branch
          %751 = sbr.rel (%p749) target = $region84
        $region83: #{model_forward.2} parent=51 // pred_region
          %s752 = sand.u32 %s42, 1
          %s753 = scalar_lea.sflag [#allocation15], %s752
          %s754 = sand.u32 %s381, 1
          %s755 = scalar_lea.vmem [#allocation14], %s754
          %757 = vsyncadd %s753, 0
          %s758 = scalar_lea.hbm %s14, %s42
          %s760 = sshll.u32 %s758, 4
          %s761 = int_to_ptr.hbm [resolvable:$true] %s760
          %s762 = sshll.u32 %s755, 4
          %s763 = int_to_ptr.vmem [resolvable:$true] %s762
          %765 = dma.hbm_to_vmem [thread:$0]  %s761, 16, %s763, %s753
        $region84: #{model_forward.2} parent=51 // pred_fallthru
          _
        // Predicated region
        $region85: #{model_forward.2} parent=51 // pred_check
          %p766 = pneg %p417
        $region86: #{model_forward.2} parent=51 // pred_check_branch
          %768 = sbr.rel (%p766) target = $region88
        $region87: #{model_forward.2} parent=51 // pred_region
          %p769 = scmp.lt.s32.totalorder %s42, 1
          %s770 = scalar_select %p769, %s42, 1
          %s771 = smul.addr %s770, 4
          %s772 = smul.addr %s771, 8
          %s773 = scalar_lea.vmem %s15, %s772
        $region88: #{model_forward.2} parent=51 // pred_fallthru
          _
        // Predicated region
        $region89: #{model_forward.2} parent=51 // pred_check
          %p774 = pneg %p443
        $region90: #{model_forward.2} parent=51 // pred_check_branch
          %776 = sbr.rel (%p774) target = $region92
        $region91: #{model_forward.2} parent=51 // pred_region
          %s777 = sand.u32 %s42, 1
          %s778 = scalar_lea.sflag [#allocation15], %s777
          %s779 = sand.u32 %s433, 1
          %s780 = scalar_lea.vmem [#allocation16], %s779
          %782 = vsyncadd %s778, 0
          %s783 = scalar_lea.hbm %s16, %s42
          %s785 = sshll.u32 %s783, 4
          %s786 = int_to_ptr.hbm [resolvable:$true] %s785
          %s787 = sshll.u32 %s780, 4
          %s788 = int_to_ptr.vmem [resolvable:$true] %s787
          %790 = dma.hbm_to_vmem [thread:$0]  %s786, 16, %s788, %s778
        $region92: #{model_forward.2} parent=51 // pred_fallthru
          _
        // Predicated region
        $region93: #{model_forward.2} parent=51 // pred_check
          %p791 = pneg %p469
        $region94: #{model_forward.2} parent=51 // pred_check_branch
          %793 = sbr.rel (%p791) target = $region96
        $region95: #{model_forward.2} parent=51 // pred_region
          %p794 = scmp.lt.s32.totalorder %s42, 1
          %s795 = scalar_select %p794, %s42, 1
          %s796 = smul.addr %s795, 16
          %s797 = smul.addr %s796, 8
          %s798 = scalar_lea.vmem %s17, %s797
        $region96: #{model_forward.2} parent=51 // pred_fallthru
          _
        // Predicated region
        $region97: #{model_forward.2} parent=51 // pred_check
          %p799 = pneg %p495
        $region98: #{model_forward.2} parent=51 // pred_check_branch
          %801 = sbr.rel (%p799) target = $region100
        $region99: #{model_forward.2} parent=51 // pred_region
          %s802 = sand.u32 %s42, 1
          %s803 = scalar_lea.sflag [#allocation18], %s802
          %s804 = sand.u32 %s485, 1
          %s805 = scalar_lea.vmem [#allocation17], %s804
          %807 = vsyncadd %s803, 0
          %s808 = scalar_lea.hbm %s18, %s42
          %s810 = sshll.u32 %s808, 4
          %s811 = int_to_ptr.hbm [resolvable:$true] %s810
          %s812 = sshll.u32 %s805, 4
          %s813 = int_to_ptr.vmem [resolvable:$true] %s812
          %815 = dma.hbm_to_vmem [thread:$0]  %s811, 16, %s813, %s803
        $region100: #{model_forward.2} parent=51 // pred_fallthru
          _
      $region52: #{model_forward.2} parent=5 // pred_fallthru
        _
      %p816 = scmp.le.s32.totalorder 1, %s42
      %p817 = scmp.lt.s32.totalorder %s42, 3
      %p818 = pnand %p816, %p817
      %p819 = pneg %p818
      // Predicated region
      $region101: #{model_forward.2} parent=5 // pred_check
        _
      $region102: #{model_forward.2} parent=5 // pred_check_branch
        %821 = sbr.rel (%p818) target = $region104
      $region103: #{model_forward.2} parent=5 // pred_region
        %s822 = ssub.s32 %s42, 1
        // Predicated region
        $region105: #{model_forward.2} parent=103 // pred_check
          %p823 = pneg %p84
        $region106: #{model_forward.2} parent=103 // pred_check_branch
          %825 = sbr.rel (%p823) target = $region108
        $region107: #{model_forward.2} parent=103 // pred_region
          %827 = dma.done [#allocation4], 256
        $region108: #{model_forward.2} parent=103 // pred_fallthru
          _
        // Predicated region
        $region109: #{model_forward.2} parent=103 // pred_check
          %p828 = pneg %p147
        $region110: #{model_forward.2} parent=103 // pred_check_branch
          %830 = sbr.rel (%p828) target = $region112
        $region111: #{model_forward.2} parent=103 // pred_region
          %832 = dma.done [#allocation6], 512
        $region112: #{model_forward.2} parent=103 // pred_fallthru
          _
        // Predicated region
        $region113: #{model_forward.2} parent=103 // pred_check
          %p833 = pneg %p168
        $region114: #{model_forward.2} parent=103 // pred_check_branch
          %835 = sbr.rel (%p833) target = $region116
        $region115: #{model_forward.2} parent=103 // pred_region
          %837 = dma.done [#allocation6], 16
        $region116: #{model_forward.2} parent=103 // pred_fallthru
          _
        %s838 = sand.u32 %s47, 1
        %s839 = scalar_lea.sflag [#allocation9], %s838
        %s840 = sand.u32 %s228, 1
        %s841 = scalar_lea.vmem [#allocation8], %s840
        // Predicated region
        $region117: #{model_forward.2} parent=103 // pred_check
          %p842 = pneg %p241
        $region118: #{model_forward.2} parent=103 // pred_check_branch
          %844 = sbr.rel (%p842) target = $region120
        $region119: #{model_forward.2} parent=103 // pred_region
          %846 = dma.done %s839, 16
        $region120: #{model_forward.2} parent=103 // pred_fallthru
          _
        %s847 = sand.u32 %s47, 1
        %s848 = scalar_lea.sflag [#allocation9], %s847
        %s849 = sand.u32 %s280, 1
        %s850 = scalar_lea.vmem [#allocation10], %s849
        // Predicated region
        $region121: #{model_forward.2} parent=103 // pred_check
          %p851 = pneg %p293
        $region122: #{model_forward.2} parent=103 // pred_check_branch
          %853 = sbr.rel (%p851) target = $region124
        $region123: #{model_forward.2} parent=103 // pred_region
          %855 = dma.done %s848, 16
        $region124: #{model_forward.2} parent=103 // pred_fallthru
          _
        %s856 = sand.u32 %s47, 1
        %s857 = scalar_lea.sflag [#allocation12], %s856
        %s858 = sand.u32 %s332, 1
        %s859 = scalar_lea.vmem [#allocation11], %s858
        // Predicated region
        $region125: #{model_forward.2} parent=103 // pred_check
          %p860 = pneg %p345
        $region126: #{model_forward.2} parent=103 // pred_check_branch
          %862 = sbr.rel (%p860) target = $region128
        $region127: #{model_forward.2} parent=103 // pred_region
          %864 = dma.done %s857, 16
        $region128: #{model_forward.2} parent=103 // pred_fallthru
          _
        %s865 = sand.u32 %s47, 1
        %s866 = scalar_lea.sflag [#allocation12], %s865
        %s867 = sand.u32 %s358, 1
        %s868 = scalar_lea.vmem [#allocation13], %s867
        // Predicated region
        $region129: #{model_forward.2} parent=103 // pred_check
          %p869 = pneg %p371
        $region130: #{model_forward.2} parent=103 // pred_check_branch
          %871 = sbr.rel (%p869) target = $region132
        $region131: #{model_forward.2} parent=103 // pred_region
          %873 = dma.done %s866, 16
        $region132: #{model_forward.2} parent=103 // pred_fallthru
          _
        %s874 = sand.u32 %s47, 1
        %s875 = scalar_lea.sflag [#allocation15], %s874
        %s876 = sand.u32 %s384, 1
        %s877 = scalar_lea.vmem [#allocation14], %s876
        // Predicated region
        $region133: #{model_forward.2} parent=103 // pred_check
          %p878 = pneg %p397
        $region134: #{model_forward.2} parent=103 // pred_check_branch
          %880 = sbr.rel (%p878) target = $region136
        $region135: #{model_forward.2} parent=103 // pred_region
          %882 = dma.done %s875, 16
        $region136: #{model_forward.2} parent=103 // pred_fallthru
          _
        %s883 = sand.u32 %s47, 1
        %s884 = scalar_lea.sflag [#allocation15], %s883
        %s885 = sand.u32 %s436, 1
        %s886 = scalar_lea.vmem [#allocation16], %s885
        // Predicated region
        $region137: #{model_forward.2} parent=103 // pred_check
          %p887 = pneg %p449
        $region138: #{model_forward.2} parent=103 // pred_check_branch
          %889 = sbr.rel (%p887) target = $region140
        $region139: #{model_forward.2} parent=103 // pred_region
          %891 = dma.done %s884, 16
        $region140: #{model_forward.2} parent=103 // pred_fallthru
          _
        %s892 = sand.u32 %s47, 1
        %s893 = scalar_lea.sflag [#allocation18], %s892
        %s894 = sand.u32 %s488, 1
        %s895 = scalar_lea.vmem [#allocation17], %s894
        // Predicated region
        $region141: #{model_forward.2} parent=103 // pred_check
          %p896 = pneg %p501
        $region142: #{model_forward.2} parent=103 // pred_check_branch
          %898 = sbr.rel (%p896) target = $region144
        $region143: #{model_forward.2} parent=103 // pred_region
          %900 = dma.done %s893, 16
        $region144: #{model_forward.2} parent=103 // pred_fallthru
          _
        // Predicated region
        $region145: #{model_forward.2} parent=103 // pred_check
          %p901 = pneg %p522
        $region146: #{model_forward.2} parent=103 // pred_check_branch
          %903 = sbr.rel (%p901) target = $region148
        $region147: #{model_forward.2} parent=103 // pred_region
          %905 = dma.done [#allocation18], 16
        $region148: #{model_forward.2} parent=103 // pred_fallthru
          _
        // Predicated region
        $region149: #{model_forward.2} parent=103 // pred_check
          %p906 = pneg %p543
        $region150: #{model_forward.2} parent=103 // pred_check_branch
          %908 = sbr.rel (%p906) target = $region152
        $region151: #{model_forward.2} parent=103 // pred_region
          %910 = dma.done [#allocation21], 16
        $region152: #{model_forward.2} parent=103 // pred_fallthru
          _
        %p911 = pneg %p63
        %p912 = pneg %p60
        %p913 = pneg %p84
        %p914 = pneg %p81
        %p915 = pneg %p105
        %p916 = pneg %p102
        %p917 = pneg %p126
        %p918 = pneg %p123
        %p919 = pneg %p147
        %p920 = pneg %p144
        %p921 = pneg %p168
        %p922 = pneg %p165
        %p923 = pneg %p189
        %p924 = pneg %p186
        %p925 = scmp.lt.s32.totalorder %s47, 1
        %s926 = scalar_select %p925, %s47, 1
        %s927 = scalar_lea.vmem %s7, %s926
        %p928 = pneg %p215
        %p929 = pneg %p212
        %s930 = sand.u32 %s47, 1
        %s931 = scalar_lea.sflag [#allocation9], %s930
        %s932 = sand.u32 %s228, 1
        %s933 = scalar_lea.vmem [#allocation8], %s932
        %p934 = pneg %p241
        %p935 = pneg %p238
        %p936 = scmp.lt.s32.totalorder %s47, 1
        %s937 = scalar_select %p936, %s47, 1
        %s938 = smul.addr %s937, 4
        %s939 = smul.addr %s938, 8
        %s940 = scalar_lea.vmem %s9, %s939
        %p941 = pneg %p267
        %p942 = pneg %p264
        %s943 = sand.u32 %s47, 1
        %s944 = scalar_lea.sflag [#allocation9], %s943
        %s945 = sand.u32 %s280, 1
        %s946 = scalar_lea.vmem [#allocation10], %s945
        %p947 = pneg %p293
        %p948 = pneg %p290
        %p949 = scmp.lt.s32.totalorder %s47, 1
        %s950 = scalar_select %p949, %s47, 1
        %s951 = smul.addr %s950, 4
        %s952 = smul.addr %s951, 8
        %s953 = scalar_lea.vmem %s11, %s952
        %p954 = pneg %p319
        %p955 = pneg %p316
        %s956 = sand.u32 %s47, 1
        %s957 = scalar_lea.sflag [#allocation12], %s956
        %s958 = sand.u32 %s332, 1
        %s959 = scalar_lea.vmem [#allocation11], %s958
        %p960 = pneg %p345
        %p961 = pneg %p342
        %s962 = sand.u32 %s47, 1
        %s963 = scalar_lea.sflag [#allocation12], %s962
        %s964 = sand.u32 %s358, 1
        %s965 = scalar_lea.vmem [#allocation13], %s964
        %p966 = pneg %p371
        %p967 = pneg %p368
        %s968 = sand.u32 %s47, 1
        %s969 = scalar_lea.sflag [#allocation15], %s968
        %s970 = sand.u32 %s384, 1
        %s971 = scalar_lea.vmem [#allocation14], %s970
        %p972 = pneg %p397
        %p973 = pneg %p394
        %p974 = scmp.lt.s32.totalorder %s47, 1
        %s975 = scalar_select %p974, %s47, 1
        %s976 = smul.addr %s975, 4
        %s977 = smul.addr %s976, 8
        %s978 = scalar_lea.vmem %s15, %s977
        %p979 = pneg %p423
        %p980 = pneg %p420
        %s981 = sand.u32 %s47, 1
        %s982 = scalar_lea.sflag [#allocation15], %s981
        %s983 = sand.u32 %s436, 1
        %s984 = scalar_lea.vmem [#allocation16], %s983
        %p985 = pneg %p449
        %p986 = pneg %p446
        %p987 = scmp.lt.s32.totalorder %s47, 1
        %s988 = scalar_select %p987, %s47, 1
        %s989 = smul.addr %s988, 16
        %s990 = smul.addr %s989, 8
        %s991 = scalar_lea.vmem %s17, %s990
        %p992 = pneg %p475
        %p993 = pneg %p472
        %s994 = sand.u32 %s47, 1
        %s995 = scalar_lea.sflag [#allocation18], %s994
        %s996 = sand.u32 %s488, 1
        %s997 = scalar_lea.vmem [#allocation17], %s996
        %p998 = pneg %p501
        %p999 = pneg %p498
        %p1000 = pneg %p522
        %p1001 = pneg %p519
        %p1002 = pneg %p543
        %p1003 = pneg %p540
        %p1004 = pneg %p564
        %p1005 = pneg %p561
        %p1006 = scmp.lt.s32.totalorder %s47, 1
        %s1007 = scalar_select %p1006, %s47, 1
        %s1008 = scalar_lea.vmem %s7, %s1007
        %p1009 = scmp.lt.s32.totalorder %s47, 1
        %s1010 = scalar_select %p1009, %s47, 1
        %s1011 = smul.addr %s1010, 4
        %s1012 = smul.addr %s1011, 8
        %s1013 = scalar_lea.vmem %s9, %s1012
        %p1014 = scmp.lt.s32.totalorder %s47, 1
        %s1015 = scalar_select %p1014, %s47, 1
        %s1016 = smul.addr %s1015, 4
        %s1017 = smul.addr %s1016, 8
        %s1018 = scalar_lea.vmem %s11, %s1017
        %p1019 = scmp.lt.s32.totalorder %s47, 1
        %s1020 = scalar_select %p1019, %s47, 1
        %s1021 = smul.addr %s1020, 4
        %s1022 = smul.addr %s1021, 8
        %s1023 = scalar_lea.vmem %s15, %s1022
        %p1024 = scmp.lt.s32.totalorder %s47, 1
        %s1025 = scalar_select %p1024, %s47, 1
        %s1026 = smul.addr %s1025, 16
        %s1027 = smul.addr %s1026, 8
        %s1028 = scalar_lea.vmem %s17, %s1027
        %p1029 = scmp.eq.s32.totalorder %s47, 0
        // Predicated region
        $region153: #{model_forward.2} parent=103 // pred_check
          %p1030 = pneg %p1029
        $region154: #{model_forward.2} parent=103 // pred_check_branch
          %1032 = sbr.rel (%p1030) target = $region156
        $region155: #{model_forward.2} parent=103 // pred_region
          %v1033 = vld [vmem:[%s0] sm:$0xff]
          %v1034 = vld [vmem:[%s0 + $0x8] sm:$0xff]
          %v1035 = vld [vmem:[#allocation3] sm:$0xff]
          %v1036 = vld [vmem:[#allocation3 + $0x8] sm:$0xff]
          %v1037 = vld [vmem:[%s2] sm:$0x1]
          %v1039 = vperm.slane %v1037, 0
          %vm1041 = vcmask 130048
          %v1043 = vsel %vm1041, %v1033, 0
          %v1046 = vsel %vm1041, %v1034, 0
          %1048 = vmatpush.msra.mxu0 0.0
          %1049 = vmatpush.msra.mxu0 0.0
          %1050 = vmatpush.msra.mxu0 0.0
          %1051 = vmatpush.msra.mxu0 0.0
          %1052 = vmatpush.msra.mxu0 0.0
          %1053 = vmatpush.msra.mxu0 0.0
          %1054 = vmatpush.msra.mxu0 0.0
          %1055 = vmatpush.msra.mxu0 0.0
          %1056 = vmatpush.msra.mxu0 0.0
          %1057 = vmatpush.msra.mxu0 0.0
          %1058 = vmatpush.msra.mxu0 0.0
          %1059 = vmatpush.msra.mxu0 0.0
          %1060 = vmatpush.msra.mxu0 0.0
          %1061 = vmatpush.msra.mxu0 0.0
          %1062 = vmatpush.msra.mxu0 %v1036
          %1063 = vmatpush.msra.mxu0 %v1035
          %1064 = vmatmul.f32.gmra.mxu0 %v1043
          %v1065 = vpop.f32.mrf.mxu0
          %v1066 = vadd.f32 %v1039, %v1065
          %1067 = vmatmul.f32.gmra.mxu0 %v1046
          %v1068 = vpop.f32.mrf.mxu0
          %v1069 = vadd.f32 %v1039, %v1068
          %1070 = vdwg.mxu0
          %v1071 = vld [vmem:[%s3] sm:$0x3]
          %v1072 = vld [vmem:[#allocation5] sm:$0xff]
          %v1073 = vld [vmem:[#allocation5 + $0x8] sm:$0xff]
          %v1074 = vld [vmem:[#allocation5 + $0x10] sm:$0xff]
          %v1075 = vld [vmem:[#allocation5 + $0x18] sm:$0xff]
          %v1076 = vld [vmem:[#allocation7] sm:$0x1]
          %v1078 = vperm.slane %v1076, 0
          %vm1080 = vcmask 261120
          %v1082 = vsel %vm1080, %v1071, 0
          %1084 = vmatpush.msra.mxu0 0.0
          %1085 = vmatpush.msra.mxu0 0.0
          %1086 = vmatpush.msra.mxu0 0.0
          %1087 = vmatpush.msra.mxu0 0.0
          %1088 = vmatpush.msra.mxu0 0.0
          %1089 = vmatpush.msra.mxu0 0.0
          %1090 = vmatpush.msra.mxu0 0.0
          %1091 = vmatpush.msra.mxu0 0.0
          %1092 = vmatpush.msra.mxu0 0.0
          %1093 = vmatpush.msra.mxu0 0.0
          %1094 = vmatpush.msra.mxu0 0.0
          %1095 = vmatpush.msra.mxu0 0.0
          %1096 = vmatpush.msra.mxu0 %v1075
          %1097 = vmatpush.msra.mxu0 %v1074
          %1098 = vmatpush.msra.mxu0 %v1073
          %1099 = vmatpush.msra.mxu0 %v1072
          %1100 = vmatmul.f32.gmra.mxu0 %v1082
          %v1101 = vpop.f32.mrf.mxu0
          %v1102 = vadd.f32 %v1078, %v1101
          %1103 = vdwg.mxu0
          %v1105 = vrot.slane %v1102, 1
          %v1106 = vperm.slane %v1102, 0
          %v1107 = vperm.slane %v1105, 0
          %v1110 = vadd.f32 %v1066, %v1106
          %v1111 = vadd.f32 %v1069, %v1107
          %v1112 = vld [vmem:[%s6] sm:$0xff]
          %v1113 = vadd.f32 %v1110, %v1112
          %v1114 = vadd.f32 %v1111, %v1112
          %1115 = vst.msk [vmem:[#allocation2] sm:$0xff] %vm1080, %v1113
          %1116 = vst.msk [vmem:[#allocation2 + $0x8] sm:$0xff] %vm1080, %v1114
        $region156: #{model_forward.2} parent=103 // pred_fallthru
          _
        %v1117 = vld [vmem:[#allocation2] sm:$0xff]
        %v1118 = vld [vmem:[#allocation2 + $0x8] sm:$0xff]
        %v1119 = vld [vmem:[%s1008] sm:$0x1]
        %v1120 = vld [vmem:[%s841] sm:$0x1]
        %vm1121 = vcmask 261120
        %v1122 = vsel %vm1121, %v1117, 0.0
        %1123 = vadd.xlane.f32.xlu0 %v1122
        %v1124 = vpop.xlane.xlu0 %1123
        %v1125 = vsel %vm1121, %v1118, 0.0
        %1126 = vadd.xlane.f32.xlu0 %v1125
        %v1127 = vpop.xlane.xlu0 %1126
        %v1128 = vrcp.pop 32.0
        %v1129 = vmul.f32 32.0, %v1128
        %v1130 = vsub.f32 1.0, %v1129
        %v1131 = vmul.f32 %v1128, %v1130
        %v1132 = vadd.f32 %v1128, %v1131
        %vm1133 = vweird.f32 %v1128
        %v1134 = vsel %vm1133, %v1128, %v1132
        %v1135 = vmul.f32 %v1124, %v1134
        %v1136 = vmul.f32 %v1127, %v1134
        %v1137 = vsub.f32 %v1117, %v1135
        %v1138 = vsub.f32 %v1118, %v1136
        %v1139 = vmul.f32 %v1137, %v1137
        %v1140 = vmul.f32 %v1138, %v1138
        %v1141 = vsel %vm1121, %v1139, 0.0
        %1142 = vadd.xlane.f32.xlu0 %v1141
        %v1143 = vpop.xlane.xlu0 %1142
        %v1144 = vsel %vm1121, %v1140, 0.0
        %1145 = vadd.xlane.f32.xlu0 %v1144
        %v1146 = vpop.xlane.xlu0 %1145
        %v1147 = vmul.f32 %v1143, %v1134
        %v1148 = vmul.f32 %v1146, %v1134
        %v1149 = vadd.f32 %v1147, 1e-05
        %v1150 = vadd.f32 %v1148, 1e-05
        %v1151 = vrsqrt.pop %v1149
        %v1152 = vmul.f32 %v1151, %v1149
        %v1153 = vmul.f32 %v1152, %v1151
        %v1154 = vmul.f32 0.5, %v1153
        %v1155 = vsub.f32 1.5, %v1154
        %v1156 = vmul.f32 %v1151, %v1155
        %vm1157 = vweird.f32 %v1149
        %vm1158 = vweird.f32 %v1151
        %vm1159 = vmor %vm1157, %vm1158
        %v1160 = vsel %vm1159, %v1151, %v1156
        %v1161 = vrsqrt.pop %v1150
        %v1162 = vmul.f32 %v1161, %v1150
        %v1163 = vmul.f32 %v1162, %v1161
        %v1164 = vmul.f32 0.5, %v1163
        %v1165 = vsub.f32 1.5, %v1164
        %v1166 = vmul.f32 %v1161, %v1165
        %vm1167 = vweird.f32 %v1150
        %vm1168 = vweird.f32 %v1161
        %vm1169 = vmor %vm1167, %vm1168
        %v1170 = vsel %vm1169, %v1161, %v1166
        %v1171 = vmul.f32 %v1137, %v1160
        %v1172 = vmul.f32 %v1138, %v1170
        %v1174 = vperm.slane %v1119, 0
        %v1176 = vmul.f32 %v1171, %v1174
        %v1177 = vmul.f32 %v1172, %v1174
        %v1179 = vperm.slane %v1120, 0
        %v1181 = vadd.f32 %v1176, %v1179
        %v1182 = vadd.f32 %v1177, %v1179
        %v1183 = vld [vmem:[%s1013] sm:$0xff]
        %v1184 = vld [vmem:[%s1013 + $0x8] sm:$0xff]
        %v1185 = vld [vmem:[%s1013 + $0x10] sm:$0xff]
        %v1186 = vld [vmem:[%s1013 + $0x18] sm:$0xff]
        %v1187 = vld [vmem:[%s850] sm:$0x1]
        %v1189 = vperm.slane %v1187, 0
        %v1192 = vsel %vm1121, %v1181, 0
        %v1195 = vsel %vm1121, %v1182, 0
        %1197 = vmatpush.msra.mxu0 0.0
        %1198 = vmatpush.msra.mxu0 0.0
        %1199 = vmatpush.msra.mxu0 0.0
        %1200 = vmatpush.msra.mxu0 0.0
        %1201 = vmatpush.msra.mxu0 0.0
        %1202 = vmatpush.msra.mxu0 0.0
        %1203 = vmatpush.msra.mxu0 0.0
        %1204 = vmatpush.msra.mxu0 0.0
        %1205 = vmatpush.msra.mxu0 0.0
        %1206 = vmatpush.msra.mxu0 0.0
        %1207 = vmatpush.msra.mxu0 0.0
        %1208 = vmatpush.msra.mxu0 0.0
        %1209 = vmatpush.msra.mxu0 %v1186
        %1210 = vmatpush.msra.mxu0 %v1185
        %1211 = vmatpush.msra.mxu0 %v1184
        %1212 = vmatpush.msra.mxu0 %v1183
        %1213 = vmatmul.f32.gmra.mxu0 %v1192
        %v1214 = vpop.f32.mrf.mxu0
        %v1215 = vadd.f32 %v1189, %v1214
        %1216 = vmatmul.f32.gmra.mxu0 %v1195
        %v1217 = vpop.f32.mrf.mxu0
        %v1218 = vadd.f32 %v1189, %v1217
        %1219 = vdwg.mxu0
        %1221 = vrot.lane.b32.xlu0 %v1215, 96
        %v1222 = vpop.permute.xlu0 %1221
        %vm1223 = vcmask 64512
        %v1224 = vsel %vm1223, %v1215, 0
        %v1226 = vsel %vm1223, %v1222, 0
        %1228 = vmatpush.xpose.msra.mxu0 0.0
        %1229 = vmatpush.xpose.msra.mxu0 0.0
        %1230 = vmatpush.xpose.msra.mxu0 0.0
        %1231 = vmatpush.xpose.msra.mxu0 0.0
        %1232 = vmatpush.xpose.msra.mxu0 0.0
        %1233 = vmatpush.xpose.msra.mxu0 0.0
        %1234 = vmatpush.xpose.msra.mxu0 0.0
        %1235 = vmatpush.xpose.msra.mxu0 0.0
        %1236 = vmatpush.xpose.msra.mxu0 0.0
        %1237 = vmatpush.xpose.msra.mxu0 0.0
        %1238 = vmatpush.xpose.msra.mxu0 0.0
        %1239 = vmatpush.xpose.msra.mxu0 0.0
        %1240 = vmatpush.xpose.msra.mxu0 0.0
        %1241 = vmatpush.xpose.msra.mxu0 0.0
        %1242 = vmatpush.xpose.msra.mxu0 0.0
        %1243 = vmatpush.xpose.msra.mxu0 %v1226
        %1244 = vmatmul.f32.gmra.mxu0 %v1224
        %v1245 = vpop.f32.mrf.mxu0
        %v1246 = vadd.f32 0.0, %v1245
        %1247 = vdwg.mxu0
        %1249 = vrot.lane.b32.xlu0 %v1218, 96
        %v1250 = vpop.permute.xlu0 %1249
        %v1251 = vsel %vm1223, %v1218, 0
        %v1253 = vsel %vm1223, %v1250, 0
        %1255 = vmatpush.xpose.msra.mxu0 0.0
        %1256 = vmatpush.xpose.msra.mxu0 0.0
        %1257 = vmatpush.xpose.msra.mxu0 0.0
        %1258 = vmatpush.xpose.msra.mxu0 0.0
        %1259 = vmatpush.xpose.msra.mxu0 0.0
        %1260 = vmatpush.xpose.msra.mxu0 0.0
        %1261 = vmatpush.xpose.msra.mxu0 0.0
        %1262 = vmatpush.xpose.msra.mxu0 0.0
        %1263 = vmatpush.xpose.msra.mxu0 0.0
        %1264 = vmatpush.xpose.msra.mxu0 0.0
        %1265 = vmatpush.xpose.msra.mxu0 0.0
        %1266 = vmatpush.xpose.msra.mxu0 0.0
        %1267 = vmatpush.xpose.msra.mxu0 0.0
        %1268 = vmatpush.xpose.msra.mxu0 0.0
        %1269 = vmatpush.xpose.msra.mxu0 0.0
        %1270 = vmatpush.xpose.msra.mxu0 %v1253
        %1271 = vmatmul.f32.gmra.mxu0 %v1251
        %v1272 = vpop.f32.mrf.mxu0
        %v1273 = vadd.f32 0.0, %v1272
        %1274 = vdwg.mxu0
        %v1275 = vmul.f32 %v1246, 0.35355338
        %v1276 = vmul.f32 %v1273, 0.35355338
        %v1277 = vsel %vm1223, %v1275, -inf
        %1278 = vmax.xlane.f32.xlu0 %v1277
        %v1279 = vpop.xlane.xlu0 %1278
        %v1280 = vsel %vm1223, %v1276, -inf
        %1281 = vmax.xlane.f32.xlu0 %v1280
        %v1282 = vpop.xlane.xlu0 %1281
        %v1283 = vsub.f32 %v1275, %v1279
        %v1284 = vsub.f32 %v1276, %v1282
        %v1285 = vmul.f32 %v1283, 1.442695
        %v1286 = vpow.pop %v1285
        %v1287 = vmul.f32 %v1284, 1.442695
        %v1288 = vpow.pop %v1287
        %v1289 = vsel %vm1223, %v1286, 0.0
        %1290 = vadd.xlane.f32.xlu0 %v1289
        %v1291 = vpop.xlane.xlu0 %1290
        %v1292 = vsel %vm1223, %v1288, 0.0
        %1293 = vadd.xlane.f32.xlu0 %v1292
        %v1294 = vpop.xlane.xlu0 %1293
        %v1295 = vrcp.pop %v1291
        %v1296 = vrcp.pop %v1294
        %v1297 = vmul.f32 %v1286, %v1295
        %v1298 = vmul.f32 %v1288, %v1296
        %1299 = vrot.lane.b32.xlu0 %v1215, 64
        %v1300 = vpop.permute.xlu0 %1299
        %v1303 = vsel %vm1223, %v1297, 0
        %1305 = vmatpush.msra.mxu0 0.0
        %1306 = vmatpush.msra.mxu0 0.0
        %1307 = vmatpush.msra.mxu0 0.0
        %1308 = vmatpush.msra.mxu0 0.0
        %1309 = vmatpush.msra.mxu0 0.0
        %1310 = vmatpush.msra.mxu0 0.0
        %1311 = vmatpush.msra.mxu0 0.0
        %1312 = vmatpush.msra.mxu0 0.0
        %1313 = vmatpush.msra.mxu0 0.0
        %1314 = vmatpush.msra.mxu0 0.0
        %1315 = vmatpush.msra.mxu0 0.0
        %1316 = vmatpush.msra.mxu0 0.0
        %1317 = vmatpush.msra.mxu0 0.0
        %1318 = vmatpush.msra.mxu0 0.0
        %1319 = vmatpush.msra.mxu0 0.0
        %1320 = vmatpush.msra.mxu0 %v1300
        %1321 = vmatmul.f32.gmra.mxu0 %v1303
        %v1322 = vpop.f32.mrf.mxu0
        %v1323 = vadd.f32 0.0, %v1322
        %1324 = vdwg.mxu0
        %1325 = vrot.lane.b32.xlu0 %v1218, 64
        %v1326 = vpop.permute.xlu0 %1325
        %v1329 = vsel %vm1223, %v1298, 0
        %1331 = vmatpush.msra.mxu0 0.0
        %1332 = vmatpush.msra.mxu0 0.0
        %1333 = vmatpush.msra.mxu0 0.0
        %1334 = vmatpush.msra.mxu0 0.0
        %1335 = vmatpush.msra.mxu0 0.0
        %1336 = vmatpush.msra.mxu0 0.0
        %1337 = vmatpush.msra.mxu0 0.0
        %1338 = vmatpush.msra.mxu0 0.0
        %1339 = vmatpush.msra.mxu0 0.0
        %1340 = vmatpush.msra.mxu0 0.0
        %1341 = vmatpush.msra.mxu0 0.0
        %1342 = vmatpush.msra.mxu0 0.0
        %1343 = vmatpush.msra.mxu0 0.0
        %1344 = vmatpush.msra.mxu0 0.0
        %1345 = vmatpush.msra.mxu0 0.0
        %1346 = vmatpush.msra.mxu0 %v1326
        %1347 = vmatmul.f32.gmra.mxu0 %v1329
        %v1348 = vpop.f32.mrf.mxu0
        %v1349 = vadd.f32 0.0, %v1348
        %1350 = vdwg.mxu0
        %1351 = vrot.lane.b32.xlu0 %v1215, 120
        %v1352 = vpop.permute.xlu0 %1351
        %1353 = vrot.lane.b32.xlu0 %v1215, 88
        %v1354 = vpop.permute.xlu0 %1353
        %v1355 = vsel %vm1223, %v1352, 0
        %v1357 = vsel %vm1223, %v1354, 0
        %1359 = vmatpush.xpose.msra.mxu0 0.0
        %1360 = vmatpush.xpose.msra.mxu0 0.0
        %1361 = vmatpush.xpose.msra.mxu0 0.0
        %1362 = vmatpush.xpose.msra.mxu0 0.0
        %1363 = vmatpush.xpose.msra.mxu0 0.0
        %1364 = vmatpush.xpose.msra.mxu0 0.0
        %1365 = vmatpush.xpose.msra.mxu0 0.0
        %1366 = vmatpush.xpose.msra.mxu0 0.0
        %1367 = vmatpush.xpose.msra.mxu0 0.0
        %1368 = vmatpush.xpose.msra.mxu0 0.0
        %1369 = vmatpush.xpose.msra.mxu0 0.0
        %1370 = vmatpush.xpose.msra.mxu0 0.0
        %1371 = vmatpush.xpose.msra.mxu0 0.0
        %1372 = vmatpush.xpose.msra.mxu0 0.0
        %1373 = vmatpush.xpose.msra.mxu0 0.0
        %1374 = vmatpush.xpose.msra.mxu0 %v1357
        %1375 = vmatmul.f32.gmra.mxu0 %v1355
        %v1376 = vpop.f32.mrf.mxu0
        %v1377 = vadd.f32 0.0, %v1376
        %1378 = vdwg.mxu0
        %1379 = vrot.lane.b32.xlu0 %v1218, 120
        %v1380 = vpop.permute.xlu0 %1379
        %1381 = vrot.lane.b32.xlu0 %v1218, 88
        %v1382 = vpop.permute.xlu0 %1381
        %v1383 = vsel %vm1223, %v1380, 0
        %v1385 = vsel %vm1223, %v1382, 0
        %1387 = vmatpush.xpose.msra.mxu0 0.0
        %1388 = vmatpush.xpose.msra.mxu0 0.0
        %1389 = vmatpush.xpose.msra.mxu0 0.0
        %1390 = vmatpush.xpose.msra.mxu0 0.0
        %1391 = vmatpush.xpose.msra.mxu0 0.0
        %1392 = vmatpush.xpose.msra.mxu0 0.0
        %1393 = vmatpush.xpose.msra.mxu0 0.0
        %1394 = vmatpush.xpose.msra.mxu0 0.0
        %1395 = vmatpush.xpose.msra.mxu0 0.0
        %1396 = vmatpush.xpose.msra.mxu0 0.0
        %1397 = vmatpush.xpose.msra.mxu0 0.0
        %1398 = vmatpush.xpose.msra.mxu0 0.0
        %1399 = vmatpush.xpose.msra.mxu0 0.0
        %1400 = vmatpush.xpose.msra.mxu0 0.0
        %1401 = vmatpush.xpose.msra.mxu0 0.0
        %1402 = vmatpush.xpose.msra.mxu0 %v1385
        %1403 = vmatmul.f32.gmra.mxu0 %v1383
        %v1404 = vpop.f32.mrf.mxu0
        %v1405 = vadd.f32 0.0, %v1404
        %1406 = vdwg.mxu0
        %v1407 = vmul.f32 %v1377, 0.35355338
        %v1408 = vmul.f32 %v1405, 0.35355338
        %v1409 = vsel %vm1223, %v1407, -inf
        %1410 = vmax.xlane.f32.xlu0 %v1409
        %v1411 = vpop.xlane.xlu0 %1410
        %v1412 = vsel %vm1223, %v1408, -inf
        %1413 = vmax.xlane.f32.xlu0 %v1412
        %v1414 = vpop.xlane.xlu0 %1413
        %v1415 = vsub.f32 %v1407, %v1411
        %v1416 = vsub.f32 %v1408, %v1414
        %v1417 = vmul.f32 %v1415, 1.442695
        %v1418 = vpow.pop %v1417
        %v1419 = vmul.f32 %v1416, 1.442695
        %v1420 = vpow.pop %v1419
        %v1421 = vsel %vm1223, %v1418, 0.0
        %1422 = vadd.xlane.f32.xlu0 %v1421
        %v1423 = vpop.xlane.xlu0 %1422
        %v1424 = vsel %vm1223, %v1420, 0.0
        %1425 = vadd.xlane.f32.xlu0 %v1424
        %v1426 = vpop.xlane.xlu0 %1425
        %v1427 = vrcp.pop %v1423
        %v1428 = vrcp.pop %v1426
        %v1429 = vmul.f32 %v1418, %v1427
        %v1430 = vmul.f32 %v1420, %v1428
        %1431 = vrot.lane.b32.xlu0 %v1215, 56
        %v1432 = vpop.permute.xlu0 %1431
        %v1435 = vsel %vm1223, %v1429, 0
        %1437 = vmatpush.msra.mxu0 0.0
        %1438 = vmatpush.msra.mxu0 0.0
        %1439 = vmatpush.msra.mxu0 0.0
        %1440 = vmatpush.msra.mxu0 0.0
        %1441 = vmatpush.msra.mxu0 0.0
        %1442 = vmatpush.msra.mxu0 0.0
        %1443 = vmatpush.msra.mxu0 0.0
        %1444 = vmatpush.msra.mxu0 0.0
        %1445 = vmatpush.msra.mxu0 0.0
        %1446 = vmatpush.msra.mxu0 0.0
        %1447 = vmatpush.msra.mxu0 0.0
        %1448 = vmatpush.msra.mxu0 0.0
        %1449 = vmatpush.msra.mxu0 0.0
        %1450 = vmatpush.msra.mxu0 0.0
        %1451 = vmatpush.msra.mxu0 0.0
        %1452 = vmatpush.msra.mxu0 %v1432
        %1453 = vmatmul.f32.gmra.mxu0 %v1435
        %v1454 = vpop.f32.mrf.mxu0
        %v1455 = vadd.f32 0.0, %v1454
        %1456 = vdwg.mxu0
        %1457 = vrot.lane.b32.xlu0 %v1218, 56
        %v1458 = vpop.permute.xlu0 %1457
        %v1461 = vsel %vm1223, %v1430, 0
        %1463 = vmatpush.msra.mxu0 0.0
        %1464 = vmatpush.msra.mxu0 0.0
        %1465 = vmatpush.msra.mxu0 0.0
        %1466 = vmatpush.msra.mxu0 0.0
        %1467 = vmatpush.msra.mxu0 0.0
        %1468 = vmatpush.msra.mxu0 0.0
        %1469 = vmatpush.msra.mxu0 0.0
        %1470 = vmatpush.msra.mxu0 0.0
        %1471 = vmatpush.msra.mxu0 0.0
        %1472 = vmatpush.msra.mxu0 0.0
        %1473 = vmatpush.msra.mxu0 0.0
        %1474 = vmatpush.msra.mxu0 0.0
        %1475 = vmatpush.msra.mxu0 0.0
        %1476 = vmatpush.msra.mxu0 0.0
        %1477 = vmatpush.msra.mxu0 0.0
        %1478 = vmatpush.msra.mxu0 %v1458
        %1479 = vmatmul.f32.gmra.mxu0 %v1461
        %v1480 = vpop.f32.mrf.mxu0
        %v1481 = vadd.f32 0.0, %v1480
        %1482 = vdwg.mxu0
        %1483 = vrot.lane.b32.xlu0 %v1215, 112
        %v1484 = vpop.permute.xlu0 %1483
        %1485 = vrot.lane.b32.xlu0 %v1215, 80
        %v1486 = vpop.permute.xlu0 %1485
        %v1487 = vsel %vm1223, %v1484, 0
        %v1489 = vsel %vm1223, %v1486, 0
        %1491 = vmatpush.xpose.msra.mxu0 0.0
        %1492 = vmatpush.xpose.msra.mxu0 0.0
        %1493 = vmatpush.xpose.msra.mxu0 0.0
        %1494 = vmatpush.xpose.msra.mxu0 0.0
        %1495 = vmatpush.xpose.msra.mxu0 0.0
        %1496 = vmatpush.xpose.msra.mxu0 0.0
        %1497 = vmatpush.xpose.msra.mxu0 0.0
        %1498 = vmatpush.xpose.msra.mxu0 0.0
        %1499 = vmatpush.xpose.msra.mxu0 0.0
        %1500 = vmatpush.xpose.msra.mxu0 0.0
        %1501 = vmatpush.xpose.msra.mxu0 0.0
        %1502 = vmatpush.xpose.msra.mxu0 0.0
        %1503 = vmatpush.xpose.msra.mxu0 0.0
        %1504 = vmatpush.xpose.msra.mxu0 0.0
        %1505 = vmatpush.xpose.msra.mxu0 0.0
        %1506 = vmatpush.xpose.msra.mxu0 %v1489
        %1507 = vmatmul.f32.gmra.mxu0 %v1487
        %v1508 = vpop.f32.mrf.mxu0
        %v1509 = vadd.f32 0.0, %v1508
        %1510 = vdwg.mxu0
        %1511 = vrot.lane.b32.xlu0 %v1218, 112
        %v1512 = vpop.permute.xlu0 %1511
        %1513 = vrot.lane.b32.xlu0 %v1218, 80
        %v1514 = vpop.permute.xlu0 %1513
        %v1515 = vsel %vm1223, %v1512, 0
        %v1517 = vsel %vm1223, %v1514, 0
        %1519 = vmatpush.xpose.msra.mxu0 0.0
        %1520 = vmatpush.xpose.msra.mxu0 0.0
        %1521 = vmatpush.xpose.msra.mxu0 0.0
        %1522 = vmatpush.xpose.msra.mxu0 0.0
        %1523 = vmatpush.xpose.msra.mxu0 0.0
        %1524 = vmatpush.xpose.msra.mxu0 0.0
        %1525 = vmatpush.xpose.msra.mxu0 0.0
        %1526 = vmatpush.xpose.msra.mxu0 0.0
        %1527 = vmatpush.xpose.msra.mxu0 0.0
        %1528 = vmatpush.xpose.msra.mxu0 0.0
        %1529 = vmatpush.xpose.msra.mxu0 0.0
        %1530 = vmatpush.xpose.msra.mxu0 0.0
        %1531 = vmatpush.xpose.msra.mxu0 0.0
        %1532 = vmatpush.xpose.msra.mxu0 0.0
        %1533 = vmatpush.xpose.msra.mxu0 0.0
        %1534 = vmatpush.xpose.msra.mxu0 %v1517
        %1535 = vmatmul.f32.gmra.mxu0 %v1515
        %v1536 = vpop.f32.mrf.mxu0
        %v1537 = vadd.f32 0.0, %v1536
        %1538 = vdwg.mxu0
        %v1539 = vmul.f32 %v1509, 0.35355338
        %v1540 = vmul.f32 %v1537, 0.35355338
        %v1541 = vsel %vm1223, %v1539, -inf
        %1542 = vmax.xlane.f32.xlu0 %v1541
        %v1543 = vpop.xlane.xlu0 %1542
        %v1544 = vsel %vm1223, %v1540, -inf
        %1545 = vmax.xlane.f32.xlu0 %v1544
        %v1546 = vpop.xlane.xlu0 %1545
        %v1547 = vsub.f32 %v1539, %v1543
        %v1548 = vsub.f32 %v1540, %v1546
        %v1549 = vmul.f32 %v1547, 1.442695
        %v1550 = vpow.pop %v1549
        %v1551 = vmul.f32 %v1548, 1.442695
        %v1552 = vpow.pop %v1551
        %v1553 = vsel %vm1223, %v1550, 0.0
        %1554 = vadd.xlane.f32.xlu0 %v1553
        %v1555 = vpop.xlane.xlu0 %1554
        %v1556 = vsel %vm1223, %v1552, 0.0
        %1557 = vadd.xlane.f32.xlu0 %v1556
        %v1558 = vpop.xlane.xlu0 %1557
        %v1559 = vrcp.pop %v1555
        %v1560 = vrcp.pop %v1558
        %v1561 = vmul.f32 %v1550, %v1559
        %v1562 = vmul.f32 %v1552, %v1560
        %1563 = vrot.lane.b32.xlu0 %v1215, 48
        %v1564 = vpop.permute.xlu0 %1563
        %v1567 = vsel %vm1223, %v1561, 0
        %1569 = vmatpush.msra.mxu0 0.0
        %1570 = vmatpush.msra.mxu0 0.0
        %1571 = vmatpush.msra.mxu0 0.0
        %1572 = vmatpush.msra.mxu0 0.0
        %1573 = vmatpush.msra.mxu0 0.0
        %1574 = vmatpush.msra.mxu0 0.0
        %1575 = vmatpush.msra.mxu0 0.0
        %1576 = vmatpush.msra.mxu0 0.0
        %1577 = vmatpush.msra.mxu0 0.0
        %1578 = vmatpush.msra.mxu0 0.0
        %1579 = vmatpush.msra.mxu0 0.0
        %1580 = vmatpush.msra.mxu0 0.0
        %1581 = vmatpush.msra.mxu0 0.0
        %1582 = vmatpush.msra.mxu0 0.0
        %1583 = vmatpush.msra.mxu0 0.0
        %1584 = vmatpush.msra.mxu0 %v1564
        %1585 = vmatmul.f32.gmra.mxu0 %v1567
        %v1586 = vpop.f32.mrf.mxu0
        %v1587 = vadd.f32 0.0, %v1586
        %1588 = vdwg.mxu0
        %1589 = vrot.lane.b32.xlu0 %v1218, 48
        %v1590 = vpop.permute.xlu0 %1589
        %v1593 = vsel %vm1223, %v1562, 0
        %1595 = vmatpush.msra.mxu0 0.0
        %1596 = vmatpush.msra.mxu0 0.0
        %1597 = vmatpush.msra.mxu0 0.0
        %1598 = vmatpush.msra.mxu0 0.0
        %1599 = vmatpush.msra.mxu0 0.0
        %1600 = vmatpush.msra.mxu0 0.0
        %1601 = vmatpush.msra.mxu0 0.0
        %1602 = vmatpush.msra.mxu0 0.0
        %1603 = vmatpush.msra.mxu0 0.0
        %1604 = vmatpush.msra.mxu0 0.0
        %1605 = vmatpush.msra.mxu0 0.0
        %1606 = vmatpush.msra.mxu0 0.0
        %1607 = vmatpush.msra.mxu0 0.0
        %1608 = vmatpush.msra.mxu0 0.0
        %1609 = vmatpush.msra.mxu0 0.0
        %1610 = vmatpush.msra.mxu0 %v1590
        %1611 = vmatmul.f32.gmra.mxu0 %v1593
        %v1612 = vpop.f32.mrf.mxu0
        %v1613 = vadd.f32 0.0, %v1612
        %1614 = vdwg.mxu0
        %1615 = vrot.lane.b32.xlu0 %v1215, 104
        %v1616 = vpop.permute.xlu0 %1615
        %1617 = vrot.lane.b32.xlu0 %v1215, 72
        %v1618 = vpop.permute.xlu0 %1617
        %v1619 = vsel %vm1223, %v1616, 0
        %v1621 = vsel %vm1223, %v1618, 0
        %1623 = vmatpush.xpose.msra.mxu0 0.0
        %1624 = vmatpush.xpose.msra.mxu0 0.0
        %1625 = vmatpush.xpose.msra.mxu0 0.0
        %1626 = vmatpush.xpose.msra.mxu0 0.0
        %1627 = vmatpush.xpose.msra.mxu0 0.0
        %1628 = vmatpush.xpose.msra.mxu0 0.0
        %1629 = vmatpush.xpose.msra.mxu0 0.0
        %1630 = vmatpush.xpose.msra.mxu0 0.0
        %1631 = vmatpush.xpose.msra.mxu0 0.0
        %1632 = vmatpush.xpose.msra.mxu0 0.0
        %1633 = vmatpush.xpose.msra.mxu0 0.0
        %1634 = vmatpush.xpose.msra.mxu0 0.0
        %1635 = vmatpush.xpose.msra.mxu0 0.0
        %1636 = vmatpush.xpose.msra.mxu0 0.0
        %1637 = vmatpush.xpose.msra.mxu0 0.0
        %1638 = vmatpush.xpose.msra.mxu0 %v1621
        %1639 = vmatmul.f32.gmra.mxu0 %v1619
        %v1640 = vpop.f32.mrf.mxu0
        %v1641 = vadd.f32 0.0, %v1640
        %1642 = vdwg.mxu0
        %1643 = vrot.lane.b32.xlu0 %v1218, 104
        %v1644 = vpop.permute.xlu0 %1643
        %1645 = vrot.lane.b32.xlu0 %v1218, 72
        %v1646 = vpop.permute.xlu0 %1645
        %v1647 = vsel %vm1223, %v1644, 0
        %v1649 = vsel %vm1223, %v1646, 0
        %1651 = vmatpush.xpose.msra.mxu0 0.0
        %1652 = vmatpush.xpose.msra.mxu0 0.0
        %1653 = vmatpush.xpose.msra.mxu0 0.0
        %1654 = vmatpush.xpose.msra.mxu0 0.0
        %1655 = vmatpush.xpose.msra.mxu0 0.0
        %1656 = vmatpush.xpose.msra.mxu0 0.0
        %1657 = vmatpush.xpose.msra.mxu0 0.0
        %1658 = vmatpush.xpose.msra.mxu0 0.0
        %1659 = vmatpush.xpose.msra.mxu0 0.0
        %1660 = vmatpush.xpose.msra.mxu0 0.0
        %1661 = vmatpush.xpose.msra.mxu0 0.0
        %1662 = vmatpush.xpose.msra.mxu0 0.0
        %1663 = vmatpush.xpose.msra.mxu0 0.0
        %1664 = vmatpush.xpose.msra.mxu0 0.0
        %1665 = vmatpush.xpose.msra.mxu0 0.0
        %1666 = vmatpush.xpose.msra.mxu0 %v1649
        %1667 = vmatmul.f32.gmra.mxu0 %v1647
        %v1668 = vpop.f32.mrf.mxu0
        %v1669 = vadd.f32 0.0, %v1668
        %1670 = vdwg.mxu0
        %v1671 = vmul.f32 %v1641, 0.35355338
        %v1672 = vmul.f32 %v1669, 0.35355338
        %v1673 = vsel %vm1223, %v1671, -inf
        %1674 = vmax.xlane.f32.xlu0 %v1673
        %v1675 = vpop.xlane.xlu0 %1674
        %v1676 = vsel %vm1223, %v1672, -inf
        %1677 = vmax.xlane.f32.xlu0 %v1676
        %v1678 = vpop.xlane.xlu0 %1677
        %v1679 = vsub.f32 %v1671, %v1675
        %v1680 = vsub.f32 %v1672, %v1678
        %v1681 = vmul.f32 %v1679, 1.442695
        %v1682 = vpow.pop %v1681
        %v1683 = vmul.f32 %v1680, 1.442695
        %v1684 = vpow.pop %v1683
        %v1685 = vsel %vm1223, %v1682, 0.0
        %1686 = vadd.xlane.f32.xlu0 %v1685
        %v1687 = vpop.xlane.xlu0 %1686
        %v1688 = vsel %vm1223, %v1684, 0.0
        %1689 = vadd.xlane.f32.xlu0 %v1688
        %v1690 = vpop.xlane.xlu0 %1689
        %v1691 = vrcp.pop %v1687
        %v1692 = vrcp.pop %v1690
        %v1693 = vmul.f32 %v1682, %v1691
        %v1694 = vmul.f32 %v1684, %v1692
        %1695 = vrot.lane.b32.xlu0 %v1215, 40
        %v1696 = vpop.permute.xlu0 %1695
        %v1699 = vsel %vm1223, %v1693, 0
        %1701 = vmatpush.msra.mxu0 0.0
        %1702 = vmatpush.msra.mxu0 0.0
        %1703 = vmatpush.msra.mxu0 0.0
        %1704 = vmatpush.msra.mxu0 0.0
        %1705 = vmatpush.msra.mxu0 0.0
        %1706 = vmatpush.msra.mxu0 0.0
        %1707 = vmatpush.msra.mxu0 0.0
        %1708 = vmatpush.msra.mxu0 0.0
        %1709 = vmatpush.msra.mxu0 0.0
        %1710 = vmatpush.msra.mxu0 0.0
        %1711 = vmatpush.msra.mxu0 0.0
        %1712 = vmatpush.msra.mxu0 0.0
        %1713 = vmatpush.msra.mxu0 0.0
        %1714 = vmatpush.msra.mxu0 0.0
        %1715 = vmatpush.msra.mxu0 0.0
        %1716 = vmatpush.msra.mxu0 %v1696
        %1717 = vmatmul.f32.gmra.mxu0 %v1699
        %v1718 = vpop.f32.mrf.mxu0
        %v1719 = vadd.f32 0.0, %v1718
        %1720 = vdwg.mxu0
        %1721 = vrot.lane.b32.xlu0 %v1218, 40
        %v1722 = vpop.permute.xlu0 %1721
        %v1725 = vsel %vm1223, %v1694, 0
        %1727 = vmatpush.msra.mxu0 0.0
        %1728 = vmatpush.msra.mxu0 0.0
        %1729 = vmatpush.msra.mxu0 0.0
        %1730 = vmatpush.msra.mxu0 0.0
        %1731 = vmatpush.msra.mxu0 0.0
        %1732 = vmatpush.msra.mxu0 0.0
        %1733 = vmatpush.msra.mxu0 0.0
        %1734 = vmatpush.msra.mxu0 0.0
        %1735 = vmatpush.msra.mxu0 0.0
        %1736 = vmatpush.msra.mxu0 0.0
        %1737 = vmatpush.msra.mxu0 0.0
        %1738 = vmatpush.msra.mxu0 0.0
        %1739 = vmatpush.msra.mxu0 0.0
        %1740 = vmatpush.msra.mxu0 0.0
        %1741 = vmatpush.msra.mxu0 0.0
        %1742 = vmatpush.msra.mxu0 %v1722
        %1743 = vmatmul.f32.gmra.mxu0 %v1725
        %v1744 = vpop.f32.mrf.mxu0
        %v1745 = vadd.f32 0.0, %v1744
        %1746 = vdwg.mxu0
        %1749 = vrot.lane.b32.xlu0 %v1455, 8
        %v1750 = vpop.permute.xlu0 %1749
        %1751 = vrot.lane.b32.xlu0 %v1481, 8
        %v1752 = vpop.permute.xlu0 %1751
        %1757 = vrot.lane.b32.xlu0 %v1587, 16
        %v1758 = vpop.permute.xlu0 %1757
        %1759 = vrot.lane.b32.xlu0 %v1613, 16
        %v1760 = vpop.permute.xlu0 %1759
        %1765 = vrot.lane.b32.xlu0 %v1719, 24
        %v1766 = vpop.permute.xlu0 %1765
        %1767 = vrot.lane.b32.xlu0 %v1745, 24
        %v1768 = vpop.permute.xlu0 %1767
        %v1771 = vsel %vm1223, %v1323, %v1750
        %v1772 = vsel %vm1223, %v1349, %v1752
        %vm1773 = vcmask 130048
        %v1774 = vsel %vm1773, %v1771, %v1758
        %v1775 = vsel %vm1773, %v1772, %v1760
        %vm1776 = vcmask 195584
        %v1777 = vsel %vm1776, %v1774, %v1766
        %v1778 = vsel %vm1776, %v1775, %v1768
        %v1779 = vld [vmem:[%s1018] sm:$0xff]
        %v1780 = vld [vmem:[%s1018 + $0x8] sm:$0xff]
        %v1781 = vld [vmem:[%s1018 + $0x10] sm:$0xff]
        %v1782 = vld [vmem:[%s1018 + $0x18] sm:$0xff]
        %v1783 = vld [vmem:[%s859] sm:$0x1]
        %v1785 = vperm.slane %v1783, 0
        %v1788 = vsel %vm1121, %v1777, 0
        %v1791 = vsel %vm1121, %v1778, 0
        %1793 = vmatpush.msra.mxu0 0.0
        %1794 = vmatpush.msra.mxu0 0.0
        %1795 = vmatpush.msra.mxu0 0.0
        %1796 = vmatpush.msra.mxu0 0.0
        %1797 = vmatpush.msra.mxu0 0.0
        %1798 = vmatpush.msra.mxu0 0.0
        %1799 = vmatpush.msra.mxu0 0.0
        %1800 = vmatpush.msra.mxu0 0.0
        %1801 = vmatpush.msra.mxu0 0.0
        %1802 = vmatpush.msra.mxu0 0.0
        %1803 = vmatpush.msra.mxu0 0.0
        %1804 = vmatpush.msra.mxu0 0.0
        %1805 = vmatpush.msra.mxu0 %v1782
        %1806 = vmatpush.msra.mxu0 %v1781
        %1807 = vmatpush.msra.mxu0 %v1780
        %1808 = vmatpush.msra.mxu0 %v1779
        %1809 = vmatmul.f32.gmra.mxu0 %v1788
        %v1810 = vpop.f32.mrf.mxu0
        %v1811 = vadd.f32 %v1785, %v1810
        %1812 = vmatmul.f32.gmra.mxu0 %v1791
        %v1813 = vpop.f32.mrf.mxu0
        %v1814 = vadd.f32 %v1785, %v1813
        %1815 = vdwg.mxu0
        %v1816 = vadd.f32 %v1117, %v1811
        %v1817 = vadd.f32 %v1118, %v1814
        %v1818 = vld [vmem:[%s868] sm:$0x1]
        %v1819 = vld [vmem:[%s877] sm:$0x1]
        %v1820 = vsel %vm1121, %v1816, 0.0
        %1821 = vadd.xlane.f32.xlu0 %v1820
        %v1822 = vpop.xlane.xlu0 %1821
        %v1823 = vsel %vm1121, %v1817, 0.0
        %1824 = vadd.xlane.f32.xlu0 %v1823
        %v1825 = vpop.xlane.xlu0 %1824
        %v1826 = vmul.f32 %v1822, %v1134
        %v1827 = vmul.f32 %v1825, %v1134
        %v1828 = vsub.f32 %v1816, %v1826
        %v1829 = vsub.f32 %v1817, %v1827
        %v1830 = vmul.f32 %v1828, %v1828
        %v1831 = vmul.f32 %v1829, %v1829
        %v1832 = vsel %vm1121, %v1830, 0.0
        %1833 = vadd.xlane.f32.xlu0 %v1832
        %v1834 = vpop.xlane.xlu0 %1833
        %v1835 = vsel %vm1121, %v1831, 0.0
        %1836 = vadd.xlane.f32.xlu0 %v1835
        %v1837 = vpop.xlane.xlu0 %1836
        %v1838 = vmul.f32 %v1834, %v1134
        %v1839 = vmul.f32 %v1837, %v1134
        %v1840 = vadd.f32 %v1838, 1e-05
        %v1841 = vadd.f32 %v1839, 1e-05
        %v1842 = vrsqrt.pop %v1840
        %v1843 = vmul.f32 %v1842, %v1840
        %v1844 = vmul.f32 %v1843, %v1842
        %v1845 = vmul.f32 0.5, %v1844
        %v1846 = vsub.f32 1.5, %v1845
        %v1847 = vmul.f32 %v1842, %v1846
        %vm1848 = vweird.f32 %v1840
        %vm1849 = vweird.f32 %v1842
        %vm1850 = vmor %vm1848, %vm1849
        %v1851 = vsel %vm1850, %v1842, %v1847
        %v1852 = vrsqrt.pop %v1841
        %v1853 = vmul.f32 %v1852, %v1841
        %v1854 = vmul.f32 %v1853, %v1852
        %v1855 = vmul.f32 0.5, %v1854
        %v1856 = vsub.f32 1.5, %v1855
        %v1857 = vmul.f32 %v1852, %v1856
        %vm1858 = vweird.f32 %v1841
        %vm1859 = vweird.f32 %v1852
        %vm1860 = vmor %vm1858, %vm1859
        %v1861 = vsel %vm1860, %v1852, %v1857
        %v1862 = vmul.f32 %v1828, %v1851
        %v1863 = vmul.f32 %v1829, %v1861
        %v1865 = vperm.slane %v1818, 0
        %v1867 = vmul.f32 %v1862, %v1865
        %v1868 = vmul.f32 %v1863, %v1865
        %v1870 = vperm.slane %v1819, 0
        %v1872 = vadd.f32 %v1867, %v1870
        %v1873 = vadd.f32 %v1868, %v1870
        %v1874 = vld [vmem:[%s1023] sm:$0xff]
        %v1875 = vld [vmem:[%s1023 + $0x8] sm:$0xff]
        %v1876 = vld [vmem:[%s1023 + $0x10] sm:$0xff]
        %v1877 = vld [vmem:[%s1023 + $0x18] sm:$0xff]
        %v1878 = vld [vmem:[%s886] sm:$0x1]
        %v1880 = vperm.slane %v1878, 0
        %v1883 = vsel %vm1121, %v1872, 0
        %v1886 = vsel %vm1121, %v1873, 0
        %1888 = vmatpush.msra.mxu0 0.0
        %1889 = vmatpush.msra.mxu0 0.0
        %1890 = vmatpush.msra.mxu0 0.0
        %1891 = vmatpush.msra.mxu0 0.0
        %1892 = vmatpush.msra.mxu0 0.0
        %1893 = vmatpush.msra.mxu0 0.0
        %1894 = vmatpush.msra.mxu0 0.0
        %1895 = vmatpush.msra.mxu0 0.0
        %1896 = vmatpush.msra.mxu0 0.0
        %1897 = vmatpush.msra.mxu0 0.0
        %1898 = vmatpush.msra.mxu0 0.0
        %1899 = vmatpush.msra.mxu0 0.0
        %1900 = vmatpush.msra.mxu0 %v1877
        %1901 = vmatpush.msra.mxu0 %v1876
        %1902 = vmatpush.msra.mxu0 %v1875
        %1903 = vmatpush.msra.mxu0 %v1874
        %1904 = vmatmul.f32.gmra.mxu0 %v1883
        %v1905 = vpop.f32.mrf.mxu0
        %v1906 = vadd.f32 %v1880, %v1905
        %1907 = vmatmul.f32.gmra.mxu0 %v1886
        %v1908 = vpop.f32.mrf.mxu0
        %v1909 = vadd.f32 %v1880, %v1908
        %1910 = vdwg.mxu0
        %v1911 = vmul.f32 %v1906, 0.5
        %v1912 = vmul.f32 %v1909, 0.5
        %v1913 = vmul.f32 %v1906, 0.70710677
        %v1914 = vmul.f32 %v1909, 0.70710677
        %v1915 = vmul.f32 %v1913, %v1913
        %v1916 = vmin.f32 16.0, %v1915
        %v1917 = vmul.f32 %v1916, 2.1237322e-06
        %v1918 = vadd.f32 %v1917, 0.00028619796
        %v1919 = vmul.f32 %v1916, %v1918
        %v1920 = vadd.f32 %v1919, 0.0036580483
        %v1921 = vmul.f32 %v1916, %v1920
        %v1922 = vadd.f32 %v1921, 0.05243302
        %v1923 = vmul.f32 %v1916, %v1922
        %v1924 = vadd.f32 %v1923, 0.18741608
        %v1925 = vmul.f32 %v1916, %v1924
        %v1926 = vadd.f32 %v1925, 1.1283791
        %v1927 = vmul.f32 %v1913, %v1926
        %v1928 = vmul.f32 %v1916, 3.8918573e-05
        %v1929 = vadd.f32 %v1928, 0.001143296
        %v1930 = vmul.f32 %v1916, %v1929
        %v1931 = vadd.f32 %v1930, 0.014752088
        %v1932 = vmul.f32 %v1916, %v1931
        %v1933 = vadd.f32 %v1932, 0.112945676
        %v1934 = vmul.f32 %v1916, %v1933
        %v1935 = vadd.f32 %v1934, 0.4994258
        %v1936 = vmul.f32 %v1916, %v1935
        %v1937 = vadd.f32 %v1936, 1.0
        %v1938 = vrcp.pop %v1937
        %v1939 = vmul.f32 %v1937, %v1938
        %v1940 = vsub.f32 1.0, %v1939
        %v1941 = vmul.f32 %v1938, %v1940
        %v1942 = vadd.f32 %v1938, %v1941
        %vm1943 = vweird.f32 %v1937
        %vm1944 = vweird.f32 %v1938
        %vm1945 = vmor %vm1943, %vm1944
        %v1946 = vsel %vm1945, %v1938, %v1942
        %v1947 = vand.u32 2147483647, %v1937
        %vm1948 = vcmp.eq.f32.partialorder %v1947, 8.507059e+37
        %v1949 = vand.u32 %v1937, 2147483648
        %v1950 = vor.u32 1.1754944e-38, %v1949
        %v1951 = vsel %vm1948, %v1950, %v1946
        %v1952 = vmul.f32 %v1927, %v1951
        %v1953 = vmin.f32 %v1952, 1.0
        %v1954 = vmax.f32 %v1953, -1.0
        %v1955 = vmul.f32 %v1914, %v1914
        %v1956 = vmin.f32 16.0, %v1955
        %v1957 = vmul.f32 %v1956, 2.1237322e-06
        %v1958 = vadd.f32 %v1957, 0.00028619796
        %v1959 = vmul.f32 %v1956, %v1958
        %v1960 = vadd.f32 %v1959, 0.0036580483
        %v1961 = vmul.f32 %v1956, %v1960
        %v1962 = vadd.f32 %v1961, 0.05243302
        %v1963 = vmul.f32 %v1956, %v1962
        %v1964 = vadd.f32 %v1963, 0.18741608
        %v1965 = vmul.f32 %v1956, %v1964
        %v1966 = vadd.f32 %v1965, 1.1283791
        %v1967 = vmul.f32 %v1914, %v1966
        %v1968 = vmul.f32 %v1956, 3.8918573e-05
        %v1969 = vadd.f32 %v1968, 0.001143296
        %v1970 = vmul.f32 %v1956, %v1969
        %v1971 = vadd.f32 %v1970, 0.014752088
        %v1972 = vmul.f32 %v1956, %v1971
        %v1973 = vadd.f32 %v1972, 0.112945676
        %v1974 = vmul.f32 %v1956, %v1973
        %v1975 = vadd.f32 %v1974, 0.4994258
        %v1976 = vmul.f32 %v1956, %v1975
        %v1977 = vadd.f32 %v1976, 1.0
        %v1978 = vrcp.pop %v1977
        %v1979 = vmul.f32 %v1977, %v1978
        %v1980 = vsub.f32 1.0, %v1979
        %v1981 = vmul.f32 %v1978, %v1980
        %v1982 = vadd.f32 %v1978, %v1981
        %vm1983 = vweird.f32 %v1977
        %vm1984 = vweird.f32 %v1978
        %vm1985 = vmor %vm1983, %vm1984
        %v1986 = vsel %vm1985, %v1978, %v1982
        %v1987 = vand.u32 2147483647, %v1977
        %vm1988 = vcmp.eq.f32.partialorder %v1987, 8.507059e+37
        %v1989 = vand.u32 %v1977, 2147483648
        %v1990 = vor.u32 1.1754944e-38, %v1989
        %v1991 = vsel %vm1988, %v1990, %v1986
        %v1992 = vmul.f32 %v1967, %v1991
        %v1993 = vmin.f32 %v1992, 1.0
        %v1994 = vmax.f32 %v1993, -1.0
        %v1995 = vadd.f32 %v1954, 1.0
        %v1996 = vadd.f32 %v1994, 1.0
        %v1997 = vmul.f32 %v1911, %v1995
        %v1998 = vmul.f32 %v1912, %v1996
        %v1999 = vld [vmem:[%s1028] sm:$0xff]
        %v2000 = vld [vmem:[%s1028 + $0x8] sm:$0xff]
        %v2001 = vld [vmem:[%s1028 + $0x10] sm:$0xff]
        %v2002 = vld [vmem:[%s1028 + $0x18] sm:$0xff]
        %v2003 = vld [vmem:[%s1028 + $0x20] sm:$0xff]
        %v2004 = vld [vmem:[%s1028 + $0x28] sm:$0xff]
        %v2005 = vld [vmem:[%s1028 + $0x30] sm:$0xff]
        %v2006 = vld [vmem:[%s1028 + $0x38] sm:$0xff]
        %v2007 = vld [vmem:[%s1028 + $0x40] sm:$0xff]
        %v2008 = vld [vmem:[%s1028 + $0x48] sm:$0xff]
        %v2009 = vld [vmem:[%s1028 + $0x50] sm:$0xff]
        %v2010 = vld [vmem:[%s1028 + $0x58] sm:$0xff]
        %v2011 = vld [vmem:[%s1028 + $0x60] sm:$0xff]
        %v2012 = vld [vmem:[%s1028 + $0x68] sm:$0xff]
        %v2013 = vld [vmem:[%s1028 + $0x70] sm:$0xff]
        %v2014 = vld [vmem:[%s1028 + $0x78] sm:$0xff]
        %v2015 = vld [vmem:[%s895] sm:$0x1]
        %v2017 = vperm.slane %v2015, 0
        %2019 = vmatpush.msra.mxu0 %v2014
        %2020 = vmatpush.msra.mxu0 %v2013
        %2021 = vmatpush.msra.mxu0 %v2012
        %2022 = vmatpush.msra.mxu0 %v2011
        %2023 = vmatpush.msra.mxu0 %v2010
        %2024 = vmatpush.msra.mxu0 %v2009
        %2025 = vmatpush.msra.mxu0 %v2008
        %2026 = vmatpush.msra.mxu0 %v2007
        %2027 = vmatpush.msra.mxu0 %v2006
        %2028 = vmatpush.msra.mxu0 %v2005
        %2029 = vmatpush.msra.mxu0 %v2004
        %2030 = vmatpush.msra.mxu0 %v2003
        %2031 = vmatpush.msra.mxu0 %v2002
        %2032 = vmatpush.msra.mxu0 %v2001
        %2033 = vmatpush.msra.mxu0 %v2000
        %2034 = vmatpush.msra.mxu0 %v1999
        %2035 = vmatmul.f32.gmra.mxu0 %v1997
        %v2036 = vpop.f32.mrf.mxu0
        %v2037 = vadd.f32 %v2017, %v2036
        %2038 = vmatmul.f32.gmra.mxu0 %v1998
        %v2039 = vpop.f32.mrf.mxu0
        %v2040 = vadd.f32 %v2017, %v2039
        %2041 = vdwg.mxu0
        %v2042 = vadd.f32 %v1816, %v2037
        %v2043 = vadd.f32 %v1817, %v2040
        %2044 = vst.msk [vmem:[#allocation2] sm:$0xff] %vm1121, %v2042
        %2045 = vst.msk [vmem:[#allocation2 + $0x8] sm:$0xff] %vm1121, %v2043
        %p2046 = scmp.eq.s32.totalorder %s47, 1
        // Predicated region
        $region157: #{model_forward.2} parent=103 // pred_check
          %p2047 = pneg %p2046
        $region158: #{model_forward.2} parent=103 // pred_check_branch
          %2049 = sbr.rel (%p2047) target = $region160
        $region159: #{model_forward.2} parent=103 // pred_region
          %v2050 = vld [vmem:[#allocation19] sm:$0x1]
          %v2051 = vld [vmem:[#allocation20] sm:$0x1]
          %v2052 = vsel %vm1121, %v2042, 0.0
          %2053 = vadd.xlane.f32.xlu0 %v2052
          %v2054 = vpop.xlane.xlu0 %2053
          %v2055 = vsel %vm1121, %v2043, 0.0
          %2056 = vadd.xlane.f32.xlu0 %v2055
          %v2057 = vpop.xlane.xlu0 %2056
          %v2058 = vmul.f32 %v2054, %v1134
          %v2059 = vmul.f32 %v2057, %v1134
          %v2060 = vsub.f32 %v2042, %v2058
          %v2061 = vsub.f32 %v2043, %v2059
          %v2062 = vmul.f32 %v2060, %v2060
          %v2063 = vmul.f32 %v2061, %v2061
          %v2064 = vsel %vm1121, %v2062, 0.0
          %2065 = vadd.xlane.f32.xlu0 %v2064
          %v2066 = vpop.xlane.xlu0 %2065
          %v2067 = vsel %vm1121, %v2063, 0.0
          %2068 = vadd.xlane.f32.xlu0 %v2067
          %v2069 = vpop.xlane.xlu0 %2068
          %v2070 = vmul.f32 %v2066, %v1134
          %v2071 = vmul.f32 %v2069, %v1134
          %v2072 = vadd.f32 %v2070, 1e-05
          %v2073 = vadd.f32 %v2071, 1e-05
          %v2074 = vrsqrt.pop %v2072
          %v2075 = vmul.f32 %v2074, %v2072
          %v2076 = vmul.f32 %v2075, %v2074
          %v2077 = vmul.f32 0.5, %v2076
          %v2078 = vsub.f32 1.5, %v2077
          %v2079 = vmul.f32 %v2074, %v2078
          %vm2080 = vweird.f32 %v2072
          %vm2081 = vweird.f32 %v2074
          %vm2082 = vmor %vm2080, %vm2081
          %v2083 = vsel %vm2082, %v2074, %v2079
          %v2084 = vrsqrt.pop %v2073
          %v2085 = vmul.f32 %v2084, %v2073
          %v2086 = vmul.f32 %v2085, %v2084
          %v2087 = vmul.f32 0.5, %v2086
          %v2088 = vsub.f32 1.5, %v2087
          %v2089 = vmul.f32 %v2084, %v2088
          %vm2090 = vweird.f32 %v2073
          %vm2091 = vweird.f32 %v2084
          %vm2092 = vmor %vm2090, %vm2091
          %v2093 = vsel %vm2092, %v2084, %v2089
          %v2094 = vmul.f32 %v2060, %v2083
          %v2095 = vmul.f32 %v2061, %v2093
          %v2097 = vperm.slane %v2050, 0
          %v2099 = vmul.f32 %v2094, %v2097
          %v2100 = vmul.f32 %v2095, %v2097
          %v2102 = vperm.slane %v2051, 0
          %v2104 = vadd.f32 %v2099, %v2102
          %v2105 = vadd.f32 %v2100, %v2102
          %2106 = vst.msk [vmem:[%s21] sm:$0xff] %vm1121, %v2104
          %2107 = vst.msk [vmem:[%s21 + $0x8] sm:$0xff] %vm1121, %v2105
        $region160: #{model_forward.2} parent=103 // pred_fallthru
          _
        // Predicated region
        $region161: #{model_forward.2} parent=103 // pred_check
          %p2108 = pneg %p561
        $region162: #{model_forward.2} parent=103 // pred_check_branch
          %2110 = sbr.rel (%p2108) target = $region164
        $region163: #{model_forward.2} parent=103 // pred_region
          _
        $region164: #{model_forward.2} parent=103 // pred_fallthru
          _
        // Predicated region
        $region165: #{model_forward.2} parent=103 // pred_check
          %p2111 = pneg %p561
        $region166: #{model_forward.2} parent=103 // pred_check_branch
          %2113 = sbr.rel (%p2111) target = $region168
        $region167: #{model_forward.2} parent=103 // pred_region
          _
        $region168: #{model_forward.2} parent=103 // pred_fallthru
          _
      $region104: #{model_forward.2} parent=5 // pred_fallthru
        _
      %p2114 = scmp.le.s32.totalorder 2, %s42
      // Predicated region
      $region169: #{model_forward.2} parent=5 // pred_check
        %p2115 = pneg %p2114
      $region170: #{model_forward.2} parent=5 // pred_check_branch
        %2117 = sbr.rel (%p2115) target = $region172
      $region171: #{model_forward.2} parent=5 // pred_region
        %s2118 = ssub.s32 %s42, 2
      $region172: #{model_forward.2} parent=5 // pred_fallthru
        _
    $region6: #{model_forward.2} parent=1 // loop_footer
      %s46 = sadd.s32 1, %s42
    $region7: #{model_forward.2} parent=1 // loop_footer_branch
      %41 = sbr.rel target = $region3
    $region8: #{model_forward.2} parent=1 // loop_exit
      _
    %2119 = vsyncpa [#allocation4], 1
    %s2120 = scalar_lea.sflag [#allocation4], 1
    %2121 = vsyncpa %s2120, 1
    %2122 = vsyncpa [#allocation6], 1
    %2123 = vsyncpa [#allocation9], 1
    %s2124 = scalar_lea.sflag [#allocation9], 1
    %2125 = vsyncpa %s2124, 1
    %2126 = vsyncpa [#allocation12], 1
    %s2127 = scalar_lea.sflag [#allocation12], 1
    %2128 = vsyncpa %s2127, 1
    %2129 = vsyncpa [#allocation15], 1
    %s2130 = scalar_lea.sflag [#allocation15], 1
    %2131 = vsyncpa %s2130, 1
    %2132 = vsyncpa [#allocation18], 1
    %s2133 = scalar_lea.sflag [#allocation18], 1
    %2134 = vsyncpa %s2133, 1
    %2135 = vsyncpa [#allocation21], 1

// kernel: model_forward.3
$region0: #{model_forward.3}
  #allocation0 [shape = 'u32[]', space=smem, size = 0x4, offset = 0x4, fixed_abs, tag = 'smem constant byte address 0x4 - core index']
  #allocation1 [shape = 'u32[72,128]{1,0:T(1,128)}', space=vmem, size = 0x9000, scoped, tag = 'internal scratch']
  #allocation2 [shape = 'f32[16,32]{1,0:T(8,128)}', space=vmem, size = 0x2000, scoped, tag = 'scratch operand']
  %s0 = inlined_call_operand.hbm [shape: f32[1,32], index: 0, kind: input, shape index: {}]
  %s1 = inlined_call_operand.vmem [shape: f32[8,32], index: 1, kind: input, shape index: {}]
  %s2 = inlined_call_operand.vmem [shape: f32[2,8,32], index: 2, kind: input, shape index: {}]
  %s3 = inlined_call_operand.hbm [shape: f32[2,1,32], index: 3, kind: input, shape index: {}]
  %s4 = inlined_call_operand.hbm [shape: f32[2,1,32], index: 4, kind: input, shape index: {}]
  %s5 = inlined_call_operand.vmem [shape: f32[2,32,96], index: 5, kind: input, shape index: {}]
  %s6 = inlined_call_operand.hbm [shape: f32[2,1,96], index: 6, kind: input, shape index: {}]
  %s7 = inlined_call_operand.vmem [shape: f32[2,32,32], index: 7, kind: input, shape index: {}]
  %s8 = inlined_call_operand.hbm [shape: f32[2,1,32], index: 8, kind: input, shape index: {}]
  %s9 = inlined_call_operand.hbm [shape: f32[2,1,32], index: 9, kind: input, shape index: {}]
  %s10 = inlined_call_operand.hbm [shape: f32[2,1,32], index: 10, kind: input, shape index: {}]
  %s11 = inlined_call_operand.vmem [shape: f32[2,32,32], index: 11, kind: input, shape index: {}]
  %s12 = inlined_call_operand.hbm [shape: f32[2,1,32], index: 12, kind: input, shape index: {}]
  %s13 = inlined_call_operand.vmem [shape: f32[2,32,64], index: 13, kind: input, shape index: {}]
  %s14 = inlined_call_operand.hbm [shape: f32[2,1,64], index: 14, kind: input, shape index: {}]
  %s15 = inlined_call_operand.vmem [shape: f32[2,32,32], index: 15, kind: input, shape index: {}]
  %s16 = inlined_call_operand.hbm [shape: f32[2,1,32], index: 16, kind: input, shape index: {}]
  %s17 = inlined_call_operand.hbm [shape: f32[2,1,32], index: 17, kind: input, shape index: {}]
  %s18 = inlined_call_operand.hbm [shape: f32[2,1,32], index: 18, kind: input, shape index: {}]
  %s19 = inlined_call_operand.vmem [shape: f32[2,32,128], index: 19, kind: input, shape index: {}]
  %s20 = inlined_call_operand.hbm [shape: f32[2,1,128], index: 20, kind: input, shape index: {}]
  %s21 = inlined_call_operand.vmem [shape: f32[2,128,32], index: 21, kind: input, shape index: {}]
  %s22 = inlined_call_operand.hbm [shape: f32[2,1,32], index: 22, kind: input, shape index: {}]
  %s23 = inlined_call_operand.hbm [shape: f32[1,32], index: 23, kind: input, shape index: {}]
  %s24 = inlined_call_operand.hbm [shape: f32[1,32], index: 24, kind: input, shape index: {}]
  %s25 = inlined_call_operand.hbm [shape: f32[32,32], index: 25, kind: input, shape index: {}]
  %s26 = inlined_call_operand.hbm [shape: f32[1,32], index: 26, kind: input, shape index: {}]
  %s27 = inlined_call_operand.hbm [shape: f32[2,8,32], index: 27, kind: output, shape index: {}]
  %s28 = sld [smem:[#allocation0]]
  $region221: #{model_forward.3} parent=0
    _
  %s30 = ssub.s32 1, %s28
  %s31 = scalar_select 0, %s30, %s28
  $region1: #{model_forward.3} parent=0
    #allocation3 [shape = 'u8[512]{0}', space=vmem, size = 0x400, scoped, tag = 'input window, operand 0, single buffered']
    #allocation4 [shape = 's32[2]{0}', space=sflag, size = 0x8, scoped, tag = 'scoped memory for model_forward.3']
    #allocation5 [shape = 's32[2]{0}', space=sflag, size = 0x8, scoped, tag = 'scoped memory for model_forward.3']
    #allocation6 [shape = 'u8[1024]{0}', space=vmem, size = 0x400, scoped, tag = 'input window, operand 3']
    #allocation7 [shape = 's32[2]{0}', space=sflag, size = 0x8, scoped, tag = 'scoped memory for model_forward.3']
    #allocation8 [shape = 'u8[1024]{0}', space=vmem, size = 0x400, scoped, tag = 'input window, operand 4']
    #allocation9 [shape = 'u8[1024]{0}', space=vmem, size = 0x400, scoped, tag = 'input window, operand 6']
    #allocation10 [shape = 's32[2]{0}', space=sflag, size = 0x8, scoped, tag = 'scoped memory for model_forward.3']
    #allocation11 [shape = 'u8[1024]{0}', space=vmem, size = 0x400, scoped, tag = 'input window, operand 8']
    #allocation12 [shape = 'u8[1024]{0}', space=vmem, size = 0x400, scoped, tag = 'input window, operand 9']
    #allocation13 [shape = 's32[2]{0}', space=sflag, size = 0x8, scoped, tag = 'scoped memory for model_forward.3']
    #allocation14 [shape = 'u8[1024]{0}', space=vmem, size = 0x400, scoped, tag = 'input window, operand 10']
    #allocation15 [shape = 'u8[1024]{0}', space=vmem, size = 0x400, scoped, tag = 'input window, operand 12']
    #allocation16 [shape = 's32[2]{0}', space=sflag, size = 0x8, scoped, tag = 'scoped memory for model_forward.3']
    #allocation17 [shape = 'u8[1024]{0}', space=vmem, size = 0x400, scoped, tag = 'input window, operand 14']
    #allocation18 [shape = 'u8[1024]{0}', space=vmem, size = 0x400, scoped, tag = 'input window, operand 16']
    #allocation19 [shape = 's32[2]{0}', space=sflag, size = 0x8, scoped, tag = 'scoped memory for model_forward.3']
    #allocation20 [shape = 'u8[1024]{0}', space=vmem, size = 0x400, scoped, tag = 'input window, operand 17']
    #allocation21 [shape = 'u8[1024]{0}', space=vmem, size = 0x400, scoped, tag = 'input window, operand 18']
    #allocation22 [shape = 's32[2]{0}', space=sflag, size = 0x8, scoped, tag = 'scoped memory for model_forward.3']
    #allocation23 [shape = 'u8[1024]{0}', space=vmem, size = 0x400, scoped, tag = 'input window, operand 20']
    #allocation24 [shape = 'u8[1024]{0}', space=vmem, size = 0x400, scoped, tag = 'input window, operand 22']
    #allocation25 [shape = 's32[2]{0}', space=sflag, size = 0x8, scoped, tag = 'scoped memory for model_forward.3']
    #allocation26 [shape = 'u8[512]{0}', space=vmem, size = 0x400, scoped, tag = 'input window, operand 23, single buffered']
    #allocation27 [shape = 'u8[512]{0}', space=vmem, size = 0x400, scoped, tag = 'input window, operand 24, single buffered']
    #allocation28 [shape = 's32[1]{0}', space=sflag, size = 0x4, scoped, tag = 'scoped memory for model_forward.3']
    #allocation29 [shape = 'u8[16384]{0}', space=vmem, size = 0x4000, scoped, tag = 'input window, operand 25, single buffered']
    #allocation30 [shape = 'u8[512]{0}', space=vmem, size = 0x400, scoped, tag = 'input window, operand 26, single buffered']
    #allocation31 [shape = 's32[1]{0}', space=sflag, size = 0x4, scoped, tag = 'scoped memory for model_forward.3']
    #allocation32 [shape = 'u8[8192]{0}', space=vmem, size = 0x2000, scoped, tag = 'output window, operand 0, single buffered']
    %32 = vsyncpa [#allocation4], 0
    %33 = vsyncpa [#allocation7], 0
    %s34 = scalar_lea.sflag [#allocation7], 1
    %35 = vsyncpa %s34, 0
    %36 = vsyncpa [#allocation10], 0
    %s37 = scalar_lea.sflag [#allocation10], 1
    %38 = vsyncpa %s37, 0
    %39 = vsyncpa [#allocation13], 0
    %s40 = scalar_lea.sflag [#allocation13], 1
    %41 = vsyncpa %s40, 0
    %42 = vsyncpa [#allocation16], 0
    %s43 = scalar_lea.sflag [#allocation16], 1
    %44 = vsyncpa %s43, 0
    %45 = vsyncpa [#allocation19], 0
    %s46 = scalar_lea.sflag [#allocation19], 1
    %47 = vsyncpa %s46, 0
    %48 = vsyncpa [#allocation22], 0
    %s49 = scalar_lea.sflag [#allocation22], 1
    %50 = vsyncpa %s49, 0
    %51 = vsyncpa [#allocation25], 0
    %s52 = scalar_lea.sflag [#allocation25], 1
    %53 = vsyncpa %s52, 0
    %54 = vsyncpa [#allocation28], 0
    %55 = vsyncpa [#allocation31], 0
    %56 = vsyncpa [#allocation5], 0
    loop: start=0, step=1, limit=4
    $region2: #{model_forward.3} parent=1 // loop_pre_header
      _
    $region3: #{model_forward.3} parent=1 // loop_header
      %s58 = sphi 0, %s62
      %p59 = scmp.ge.s32.totalorder %s58, 4
      %s66 = sphi 0, %s66
      %s68 = sphi 0, %s66
      %s69 = sphi 0, %s68
      %s83 = sphi 0, %s69
      %s87 = sphi 0, %s87
      %s89 = sphi 0, %s87
      %s90 = sphi 0, %s89
      %s104 = sphi 0, %s90
      %s108 = sphi 0, %s108
      %s110 = sphi 0, %s108
      %s111 = sphi 0, %s110
      %s125 = sphi 0, %s111
      %s131 = sphi 0, %s133
      %s134 = sphi 0, %s131
      %s135 = sphi 0, %s134
      %s151 = sphi 0, %s135
      %s157 = sphi 0, %s159
      %s160 = sphi 0, %s157
      %s161 = sphi 0, %s160
      %s177 = sphi 0, %s161
      %s183 = sphi 0, %s185
      %s186 = sphi 0, %s183
      %s187 = sphi 0, %s186
      %s203 = sphi 0, %s187
      %s209 = sphi 0, %s211
      %s212 = sphi 0, %s209
      %s213 = sphi 0, %s212
      %s229 = sphi 0, %s213
      %s235 = sphi 0, %s237
      %s238 = sphi 0, %s235
      %s239 = sphi 0, %s238
      %s255 = sphi 0, %s239
      %s261 = sphi 0, %s263
      %s264 = sphi 0, %s261
      %s265 = sphi 0, %s264
      %s281 = sphi 0, %s265
      %s287 = sphi 0, %s289
      %s290 = sphi 0, %s287
      %s291 = sphi 0, %s290
      %s307 = sphi 0, %s291
      %s313 = sphi 0, %s315
      %s316 = sphi 0, %s313
      %s317 = sphi 0, %s316
      %s333 = sphi 0, %s317
      %s339 = sphi 0, %s341
      %s342 = sphi 0, %s339
      %s343 = sphi 0, %s342
      %s359 = sphi 0, %s343
      %s365 = sphi 0, %s367
      %s368 = sphi 0, %s365
      %s369 = sphi 0, %s368
      %s385 = sphi 0, %s369
      %s391 = sphi 0, %s393
      %s394 = sphi 0, %s391
      %s395 = sphi 0, %s394
      %s411 = sphi 0, %s395
      %s417 = sphi 0, %s419
      %s420 = sphi 0, %s417
      %s421 = sphi 0, %s420
      %s437 = sphi 0, %s421
      %s443 = sphi 0, %s445
      %s446 = sphi 0, %s443
      %s447 = sphi 0, %s446
      %s463 = sphi 0, %s447
      %s469 = sphi 0, %s471
      %s472 = sphi 0, %s469
      %s473 = sphi 0, %s472
      %s489 = sphi 0, %s473
      %s495 = sphi 0, %s497
      %s498 = sphi 0, %s495
      %s499 = sphi 0, %s498
      %s515 = sphi 0, %s499
      %s521 = sphi 0, %s523
      %s524 = sphi 0, %s521
      %s525 = sphi 0, %s524
      %s541 = sphi 0, %s525
      %s547 = sphi 0, %s549
      %s550 = sphi 0, %s547
      %s551 = sphi 0, %s550
      %s567 = sphi 0, %s551
      %s573 = sphi 0, %s575
      %s576 = sphi 0, %s573
      %s577 = sphi 0, %s576
      %s593 = sphi 0, %s577
      %s599 = sphi 0, %s601
      %s602 = sphi 0, %s599
      %s603 = sphi 0, %s602
      %s619 = sphi 0, %s603
      %s625 = sphi 0, %s627
      %s628 = sphi 0, %s625
      %s629 = sphi 0, %s628
      %s645 = sphi 0, %s629
      %s649 = sphi 0, %s649
      %s651 = sphi 0, %s649
      %s652 = sphi 0, %s651
      %s666 = sphi 0, %s652
      %s670 = sphi 0, %s670
      %s672 = sphi 0, %s670
      %s673 = sphi 0, %s672
      %s687 = sphi 0, %s673
      %s691 = sphi 0, %s691
      %s693 = sphi 0, %s691
      %s694 = sphi 0, %s693
      %s708 = sphi 0, %s694
      %s712 = sphi 0, %s712
      %s714 = sphi 0, %s712
      %s715 = sphi 0, %s714
      %s729 = sphi 0, %s715
      %s733 = sphi 0, %s733
      %s735 = sphi 0, %s733
      %s736 = sphi 0, %s735
      %s750 = sphi 0, %s736
    $region4: #{model_forward.3} parent=1 // loop_header_branch
      %61 = sbr.rel (%p59) target = $region8
    $region5: #{model_forward.3} parent=1 // loop_body
      %s63 = ssub.s32 %s58, 1
      %s64 = ssub.s32 %s58, 2
      %s65 = sadd.s32 %s58, 1
      %s67 = sadd.s32 %s66, 1
      %p70 = scmp.eq.s32.totalorder %s58, 1
      %p71 = scmp.ne.s32.totalorder %s66, %s68
      %p72 = scmp.eq.s32.totalorder %s58, 0
      %p73 = por %p71, %p72
      %p74 = scmp.ne.s32.totalorder %s66, %s68
      %p75 = scmp.eq.s32.totalorder %s63, 1
      %p76 = por %p74, %p75
      %p77 = scmp.ne.s32.totalorder %s68, %s69
      %p78 = scmp.eq.s32.totalorder %s63, 0
      %p79 = por %p77, %p78
      %p80 = scmp.ne.s32.totalorder %s68, %s69
      %p81 = scmp.eq.s32.totalorder %s64, 1
      %p82 = por %p80, %p81
      %p84 = scmp.ne.s32.totalorder %s69, %s83
      %p85 = scmp.eq.s32.totalorder %s64, 0
      %p86 = por %p84, %p85
      %s88 = sadd.s32 %s87, 1
      %p91 = scmp.eq.s32.totalorder %s58, 1
      %p92 = scmp.ne.s32.totalorder %s87, %s89
      %p93 = scmp.eq.s32.totalorder %s58, 0
      %p94 = por %p92, %p93
      %p95 = scmp.ne.s32.totalorder %s87, %s89
      %p96 = scmp.eq.s32.totalorder %s63, 1
      %p97 = por %p95, %p96
      %p98 = scmp.ne.s32.totalorder %s89, %s90
      %p99 = scmp.eq.s32.totalorder %s63, 0
      %p100 = por %p98, %p99
      %p101 = scmp.ne.s32.totalorder %s89, %s90
      %p102 = scmp.eq.s32.totalorder %s64, 1
      %p103 = por %p101, %p102
      %p105 = scmp.ne.s32.totalorder %s90, %s104
      %p106 = scmp.eq.s32.totalorder %s64, 0
      %p107 = por %p105, %p106
      %s109 = sadd.s32 %s108, 1
      %p112 = scmp.eq.s32.totalorder %s58, 1
      %p113 = scmp.ne.s32.totalorder %s108, %s110
      %p114 = scmp.eq.s32.totalorder %s58, 0
      %p115 = por %p113, %p114
      %p116 = scmp.ne.s32.totalorder %s108, %s110
      %p117 = scmp.eq.s32.totalorder %s63, 1
      %p118 = por %p116, %p117
      %p119 = scmp.ne.s32.totalorder %s110, %s111
      %p120 = scmp.eq.s32.totalorder %s63, 0
      %p121 = por %p119, %p120
      %p122 = scmp.ne.s32.totalorder %s110, %s111
      %p123 = scmp.eq.s32.totalorder %s64, 1
      %p124 = por %p122, %p123
      %p126 = scmp.ne.s32.totalorder %s111, %s125
      %p127 = scmp.eq.s32.totalorder %s64, 0
      %p128 = por %p126, %p127
      %s129 = ssub.s32 %s58, %s65
      %p130 = scmp.eq.s32.totalorder %s129, 0
      %s132 = sadd.s32 %s131, 1
      %s133 = scalar_select %p130, %s131, %s132
      %p136 = pneg %p130
      %p137 = scmp.eq.s32.totalorder %s58, 1
      %p138 = por %p136, %p137
      %p139 = scmp.ne.s32.totalorder %s131, %s134
      %p140 = scmp.eq.s32.totalorder %s58, 0
      %p141 = por %p139, %p140
      %p142 = scmp.ne.s32.totalorder %s131, %s134
      %p143 = scmp.eq.s32.totalorder %s63, 1
      %p144 = por %p142, %p143
      %p145 = scmp.ne.s32.totalorder %s134, %s135
      %p146 = scmp.eq.s32.totalorder %s63, 0
      %p147 = por %p145, %p146
      %p148 = scmp.ne.s32.totalorder %s134, %s135
      %p149 = scmp.eq.s32.totalorder %s64, 1
      %p150 = por %p148, %p149
      %p152 = scmp.ne.s32.totalorder %s135, %s151
      %p153 = scmp.eq.s32.totalorder %s64, 0
      %p154 = por %p152, %p153
      %s155 = ssub.s32 %s58, %s65
      %p156 = scmp.eq.s32.totalorder %s155, 0
      %s158 = sadd.s32 %s157, 1
      %s159 = scalar_select %p156, %s157, %s158
      %p162 = pneg %p156
      %p163 = scmp.eq.s32.totalorder %s58, 1
      %p164 = por %p162, %p163
      %p165 = scmp.ne.s32.totalorder %s157, %s160
      %p166 = scmp.eq.s32.totalorder %s58, 0
      %p167 = por %p165, %p166
      %p168 = scmp.ne.s32.totalorder %s157, %s160
      %p169 = scmp.eq.s32.totalorder %s63, 1
      %p170 = por %p168, %p169
      %p171 = scmp.ne.s32.totalorder %s160, %s161
      %p172 = scmp.eq.s32.totalorder %s63, 0
      %p173 = por %p171, %p172
      %p174 = scmp.ne.s32.totalorder %s160, %s161
      %p175 = scmp.eq.s32.totalorder %s64, 1
      %p176 = por %p174, %p175
      %p178 = scmp.ne.s32.totalorder %s161, %s177
      %p179 = scmp.eq.s32.totalorder %s64, 0
      %p180 = por %p178, %p179
      %s181 = ssub.s32 %s58, %s65
      %p182 = scmp.eq.s32.totalorder %s181, 0
      %s184 = sadd.s32 %s183, 1
      %s185 = scalar_select %p182, %s183, %s184
      %p188 = pneg %p182
      %p189 = scmp.eq.s32.totalorder %s58, 1
      %p190 = por %p188, %p189
      %p191 = scmp.ne.s32.totalorder %s183, %s186
      %p192 = scmp.eq.s32.totalorder %s58, 0
      %p193 = por %p191, %p192
      %p194 = scmp.ne.s32.totalorder %s183, %s186
      %p195 = scmp.eq.s32.totalorder %s63, 1
      %p196 = por %p194, %p195
      %p197 = scmp.ne.s32.totalorder %s186, %s187
      %p198 = scmp.eq.s32.totalorder %s63, 0
      %p199 = por %p197, %p198
      %p200 = scmp.ne.s32.totalorder %s186, %s187
      %p201 = scmp.eq.s32.totalorder %s64, 1
      %p202 = por %p200, %p201
      %p204 = scmp.ne.s32.totalorder %s187, %s203
      %p205 = scmp.eq.s32.totalorder %s64, 0
      %p206 = por %p204, %p205
      %s207 = ssub.s32 %s58, %s65
      %p208 = scmp.eq.s32.totalorder %s207, 0
      %s210 = sadd.s32 %s209, 1
      %s211 = scalar_select %p208, %s209, %s210
      %p214 = pneg %p208
      %p215 = scmp.eq.s32.totalorder %s58, 1
      %p216 = por %p214, %p215
      %p217 = scmp.ne.s32.totalorder %s209, %s212
      %p218 = scmp.eq.s32.totalorder %s58, 0
      %p219 = por %p217, %p218
      %p220 = scmp.ne.s32.totalorder %s209, %s212
      %p221 = scmp.eq.s32.totalorder %s63, 1
      %p222 = por %p220, %p221
      %p223 = scmp.ne.s32.totalorder %s212, %s213
      %p224 = scmp.eq.s32.totalorder %s63, 0
      %p225 = por %p223, %p224
      %p226 = scmp.ne.s32.totalorder %s212, %s213
      %p227 = scmp.eq.s32.totalorder %s64, 1
      %p228 = por %p226, %p227
      %p230 = scmp.ne.s32.totalorder %s213, %s229
      %p231 = scmp.eq.s32.totalorder %s64, 0
      %p232 = por %p230, %p231
      %s233 = ssub.s32 %s58, %s65
      %p234 = scmp.eq.s32.totalorder %s233, 0
      %s236 = sadd.s32 %s235, 1
      %s237 = scalar_select %p234, %s235, %s236
      %p240 = pneg %p234
      %p241 = scmp.eq.s32.totalorder %s58, 1
      %p242 = por %p240, %p241
      %p243 = scmp.ne.s32.totalorder %s235, %s238
      %p244 = scmp.eq.s32.totalorder %s58, 0
      %p245 = por %p243, %p244
      %p246 = scmp.ne.s32.totalorder %s235, %s238
      %p247 = scmp.eq.s32.totalorder %s63, 1
      %p248 = por %p246, %p247
      %p249 = scmp.ne.s32.totalorder %s238, %s239
      %p250 = scmp.eq.s32.totalorder %s63, 0
      %p251 = por %p249, %p250
      %p252 = scmp.ne.s32.totalorder %s238, %s239
      %p253 = scmp.eq.s32.totalorder %s64, 1
      %p254 = por %p252, %p253
      %p256 = scmp.ne.s32.totalorder %s239, %s255
      %p257 = scmp.eq.s32.totalorder %s64, 0
      %p258 = por %p256, %p257
      %s259 = ssub.s32 %s58, %s65
      %p260 = scmp.eq.s32.totalorder %s259, 0
      %s262 = sadd.s32 %s261, 1
      %s263 = scalar_select %p260, %s261, %s262
      %p266 = pneg %p260
      %p267 = scmp.eq.s32.totalorder %s58, 1
      %p268 = por %p266, %p267
      %p269 = scmp.ne.s32.totalorder %s261, %s264
      %p270 = scmp.eq.s32.totalorder %s58, 0
      %p271 = por %p269, %p270
      %p272 = scmp.ne.s32.totalorder %s261, %s264
      %p273 = scmp.eq.s32.totalorder %s63, 1
      %p274 = por %p272, %p273
      %p275 = scmp.ne.s32.totalorder %s264, %s265
      %p276 = scmp.eq.s32.totalorder %s63, 0
      %p277 = por %p275, %p276
      %p278 = scmp.ne.s32.totalorder %s264, %s265
      %p279 = scmp.eq.s32.totalorder %s64, 1
      %p280 = por %p278, %p279
      %p282 = scmp.ne.s32.totalorder %s265, %s281
      %p283 = scmp.eq.s32.totalorder %s64, 0
      %p284 = por %p282, %p283
      %s285 = ssub.s32 %s58, %s65
      %p286 = scmp.eq.s32.totalorder %s285, 0
      %s288 = sadd.s32 %s287, 1
      %s289 = scalar_select %p286, %s287, %s288
      %p292 = pneg %p286
      %p293 = scmp.eq.s32.totalorder %s58, 1
      %p294 = por %p292, %p293
      %p295 = scmp.ne.s32.totalorder %s287, %s290
      %p296 = scmp.eq.s32.totalorder %s58, 0
      %p297 = por %p295, %p296
      %p298 = scmp.ne.s32.totalorder %s287, %s290
      %p299 = scmp.eq.s32.totalorder %s63, 1
      %p300 = por %p298, %p299
      %p301 = scmp.ne.s32.totalorder %s290, %s291
      %p302 = scmp.eq.s32.totalorder %s63, 0
      %p303 = por %p301, %p302
      %p304 = scmp.ne.s32.totalorder %s290, %s291
      %p305 = scmp.eq.s32.totalorder %s64, 1
      %p306 = por %p304, %p305
      %p308 = scmp.ne.s32.totalorder %s291, %s307
      %p309 = scmp.eq.s32.totalorder %s64, 0
      %p310 = por %p308, %p309
      %s311 = ssub.s32 %s58, %s65
      %p312 = scmp.eq.s32.totalorder %s311, 0
      %s314 = sadd.s32 %s313, 1
      %s315 = scalar_select %p312, %s313, %s314
      %p318 = pneg %p312
      %p319 = scmp.eq.s32.totalorder %s58, 1
      %p320 = por %p318, %p319
      %p321 = scmp.ne.s32.totalorder %s313, %s316
      %p322 = scmp.eq.s32.totalorder %s58, 0
      %p323 = por %p321, %p322
      %p324 = scmp.ne.s32.totalorder %s313, %s316
      %p325 = scmp.eq.s32.totalorder %s63, 1
      %p326 = por %p324, %p325
      %p327 = scmp.ne.s32.totalorder %s316, %s317
      %p328 = scmp.eq.s32.totalorder %s63, 0
      %p329 = por %p327, %p328
      %p330 = scmp.ne.s32.totalorder %s316, %s317
      %p331 = scmp.eq.s32.totalorder %s64, 1
      %p332 = por %p330, %p331
      %p334 = scmp.ne.s32.totalorder %s317, %s333
      %p335 = scmp.eq.s32.totalorder %s64, 0
      %p336 = por %p334, %p335
      %s337 = ssub.s32 %s58, %s65
      %p338 = scmp.eq.s32.totalorder %s337, 0
      %s340 = sadd.s32 %s339, 1
      %s341 = scalar_select %p338, %s339, %s340
      %p344 = pneg %p338
      %p345 = scmp.eq.s32.totalorder %s58, 1
      %p346 = por %p344, %p345
      %p347 = scmp.ne.s32.totalorder %s339, %s342
      %p348 = scmp.eq.s32.totalorder %s58, 0
      %p349 = por %p347, %p348
      %p350 = scmp.ne.s32.totalorder %s339, %s342
      %p351 = scmp.eq.s32.totalorder %s63, 1
      %p352 = por %p350, %p351
      %p353 = scmp.ne.s32.totalorder %s342, %s343
      %p354 = scmp.eq.s32.totalorder %s63, 0
      %p355 = por %p353, %p354
      %p356 = scmp.ne.s32.totalorder %s342, %s343
      %p357 = scmp.eq.s32.totalorder %s64, 1
      %p358 = por %p356, %p357
      %p360 = scmp.ne.s32.totalorder %s343, %s359
      %p361 = scmp.eq.s32.totalorder %s64, 0
      %p362 = por %p360, %p361
      %s363 = ssub.s32 %s58, %s65
      %p364 = scmp.eq.s32.totalorder %s363, 0
      %s366 = sadd.s32 %s365, 1
      %s367 = scalar_select %p364, %s365, %s366
      %p370 = pneg %p364
      %p371 = scmp.eq.s32.totalorder %s58, 1
      %p372 = por %p370, %p371
      %p373 = scmp.ne.s32.totalorder %s365, %s368
      %p374 = scmp.eq.s32.totalorder %s58, 0
      %p375 = por %p373, %p374
      %p376 = scmp.ne.s32.totalorder %s365, %s368
      %p377 = scmp.eq.s32.totalorder %s63, 1
      %p378 = por %p376, %p377
      %p379 = scmp.ne.s32.totalorder %s368, %s369
      %p380 = scmp.eq.s32.totalorder %s63, 0
      %p381 = por %p379, %p380
      %p382 = scmp.ne.s32.totalorder %s368, %s369
      %p383 = scmp.eq.s32.totalorder %s64, 1
      %p384 = por %p382, %p383
      %p386 = scmp.ne.s32.totalorder %s369, %s385
      %p387 = scmp.eq.s32.totalorder %s64, 0
      %p388 = por %p386, %p387
      %s389 = ssub.s32 %s58, %s65
      %p390 = scmp.eq.s32.totalorder %s389, 0
      %s392 = sadd.s32 %s391, 1
      %s393 = scalar_select %p390, %s391, %s392
      %p396 = pneg %p390
      %p397 = scmp.eq.s32.totalorder %s58, 1
      %p398 = por %p396, %p397
      %p399 = scmp.ne.s32.totalorder %s391, %s394
      %p400 = scmp.eq.s32.totalorder %s58, 0
      %p401 = por %p399, %p400
      %p402 = scmp.ne.s32.totalorder %s391, %s394
      %p403 = scmp.eq.s32.totalorder %s63, 1
      %p404 = por %p402, %p403
      %p405 = scmp.ne.s32.totalorder %s394, %s395
      %p406 = scmp.eq.s32.totalorder %s63, 0
      %p407 = por %p405, %p406
      %p408 = scmp.ne.s32.totalorder %s394, %s395
      %p409 = scmp.eq.s32.totalorder %s64, 1
      %p410 = por %p408, %p409
      %p412 = scmp.ne.s32.totalorder %s395, %s411
      %p413 = scmp.eq.s32.totalorder %s64, 0
      %p414 = por %p412, %p413
      %s415 = ssub.s32 %s58, %s65
      %p416 = scmp.eq.s32.totalorder %s415, 0
      %s418 = sadd.s32 %s417, 1
      %s419 = scalar_select %p416, %s417, %s418
      %p422 = pneg %p416
      %p423 = scmp.eq.s32.totalorder %s58, 1
      %p424 = por %p422, %p423
      %p425 = scmp.ne.s32.totalorder %s417, %s420
      %p426 = scmp.eq.s32.totalorder %s58, 0
      %p427 = por %p425, %p426
      %p428 = scmp.ne.s32.totalorder %s417, %s420
      %p429 = scmp.eq.s32.totalorder %s63, 1
      %p430 = por %p428, %p429
      %p431 = scmp.ne.s32.totalorder %s420, %s421
      %p432 = scmp.eq.s32.totalorder %s63, 0
      %p433 = por %p431, %p432
      %p434 = scmp.ne.s32.totalorder %s420, %s421
      %p435 = scmp.eq.s32.totalorder %s64, 1
      %p436 = por %p434, %p435
      %p438 = scmp.ne.s32.totalorder %s421, %s437
      %p439 = scmp.eq.s32.totalorder %s64, 0
      %p440 = por %p438, %p439
      %s441 = ssub.s32 %s58, %s65
      %p442 = scmp.eq.s32.totalorder %s441, 0
      %s444 = sadd.s32 %s443, 1
      %s445 = scalar_select %p442, %s443, %s444
      %p448 = pneg %p442
      %p449 = scmp.eq.s32.totalorder %s58, 1
      %p450 = por %p448, %p449
      %p451 = scmp.ne.s32.totalorder %s443, %s446
      %p452 = scmp.eq.s32.totalorder %s58, 0
      %p453 = por %p451, %p452
      %p454 = scmp.ne.s32.totalorder %s443, %s446
      %p455 = scmp.eq.s32.totalorder %s63, 1
      %p456 = por %p454, %p455
      %p457 = scmp.ne.s32.totalorder %s446, %s447
      %p458 = scmp.eq.s32.totalorder %s63, 0
      %p459 = por %p457, %p458
      %p460 = scmp.ne.s32.totalorder %s446, %s447
      %p461 = scmp.eq.s32.totalorder %s64, 1
      %p462 = por %p460, %p461
      %p464 = scmp.ne.s32.totalorder %s447, %s463
      %p465 = scmp.eq.s32.totalorder %s64, 0
      %p466 = por %p464, %p465
      %s467 = ssub.s32 %s58, %s65
      %p468 = scmp.eq.s32.totalorder %s467, 0
      %s470 = sadd.s32 %s469, 1
      %s471 = scalar_select %p468, %s469, %s470
      %p474 = pneg %p468
      %p475 = scmp.eq.s32.totalorder %s58, 1
      %p476 = por %p474, %p475
      %p477 = scmp.ne.s32.totalorder %s469, %s472
      %p478 = scmp.eq.s32.totalorder %s58, 0
      %p479 = por %p477, %p478
      %p480 = scmp.ne.s32.totalorder %s469, %s472
      %p481 = scmp.eq.s32.totalorder %s63, 1
      %p482 = por %p480, %p481
      %p483 = scmp.ne.s32.totalorder %s472, %s473
      %p484 = scmp.eq.s32.totalorder %s63, 0
      %p485 = por %p483, %p484
      %p486 = scmp.ne.s32.totalorder %s472, %s473
      %p487 = scmp.eq.s32.totalorder %s64, 1
      %p488 = por %p486, %p487
      %p490 = scmp.ne.s32.totalorder %s473, %s489
      %p491 = scmp.eq.s32.totalorder %s64, 0
      %p492 = por %p490, %p491
      %s493 = ssub.s32 %s58, %s65
      %p494 = scmp.eq.s32.totalorder %s493, 0
      %s496 = sadd.s32 %s495, 1
      %s497 = scalar_select %p494, %s495, %s496
      %p500 = pneg %p494
      %p501 = scmp.eq.s32.totalorder %s58, 1
      %p502 = por %p500, %p501
      %p503 = scmp.ne.s32.totalorder %s495, %s498
      %p504 = scmp.eq.s32.totalorder %s58, 0
      %p505 = por %p503, %p504
      %p506 = scmp.ne.s32.totalorder %s495, %s498
      %p507 = scmp.eq.s32.totalorder %s63, 1
      %p508 = por %p506, %p507
      %p509 = scmp.ne.s32.totalorder %s498, %s499
      %p510 = scmp.eq.s32.totalorder %s63, 0
      %p511 = por %p509, %p510
      %p512 = scmp.ne.s32.totalorder %s498, %s499
      %p513 = scmp.eq.s32.totalorder %s64, 1
      %p514 = por %p512, %p513
      %p516 = scmp.ne.s32.totalorder %s499, %s515
      %p517 = scmp.eq.s32.totalorder %s64, 0
      %p518 = por %p516, %p517
      %s519 = ssub.s32 %s58, %s65
      %p520 = scmp.eq.s32.totalorder %s519, 0
      %s522 = sadd.s32 %s521, 1
      %s523 = scalar_select %p520, %s521, %s522
      %p526 = pneg %p520
      %p527 = scmp.eq.s32.totalorder %s58, 1
      %p528 = por %p526, %p527
      %p529 = scmp.ne.s32.totalorder %s521, %s524
      %p530 = scmp.eq.s32.totalorder %s58, 0
      %p531 = por %p529, %p530
      %p532 = scmp.ne.s32.totalorder %s521, %s524
      %p533 = scmp.eq.s32.totalorder %s63, 1
      %p534 = por %p532, %p533
      %p535 = scmp.ne.s32.totalorder %s524, %s525
      %p536 = scmp.eq.s32.totalorder %s63, 0
      %p537 = por %p535, %p536
      %p538 = scmp.ne.s32.totalorder %s524, %s525
      %p539 = scmp.eq.s32.totalorder %s64, 1
      %p540 = por %p538, %p539
      %p542 = scmp.ne.s32.totalorder %s525, %s541
      %p543 = scmp.eq.s32.totalorder %s64, 0
      %p544 = por %p542, %p543
      %s545 = ssub.s32 %s58, %s65
      %p546 = scmp.eq.s32.totalorder %s545, 0
      %s548 = sadd.s32 %s547, 1
      %s549 = scalar_select %p546, %s547, %s548
      %p552 = pneg %p546
      %p553 = scmp.eq.s32.totalorder %s58, 1
      %p554 = por %p552, %p553
      %p555 = scmp.ne.s32.totalorder %s547, %s550
      %p556 = scmp.eq.s32.totalorder %s58, 0
      %p557 = por %p555, %p556
      %p558 = scmp.ne.s32.totalorder %s547, %s550
      %p559 = scmp.eq.s32.totalorder %s63, 1
      %p560 = por %p558, %p559
      %p561 = scmp.ne.s32.totalorder %s550, %s551
      %p562 = scmp.eq.s32.totalorder %s63, 0
      %p563 = por %p561, %p562
      %p564 = scmp.ne.s32.totalorder %s550, %s551
      %p565 = scmp.eq.s32.totalorder %s64, 1
      %p566 = por %p564, %p565
      %p568 = scmp.ne.s32.totalorder %s551, %s567
      %p569 = scmp.eq.s32.totalorder %s64, 0
      %p570 = por %p568, %p569
      %s571 = ssub.s32 %s58, %s65
      %p572 = scmp.eq.s32.totalorder %s571, 0
      %s574 = sadd.s32 %s573, 1
      %s575 = scalar_select %p572, %s573, %s574
      %p578 = pneg %p572
      %p579 = scmp.eq.s32.totalorder %s58, 1
      %p580 = por %p578, %p579
      %p581 = scmp.ne.s32.totalorder %s573, %s576
      %p582 = scmp.eq.s32.totalorder %s58, 0
      %p583 = por %p581, %p582
      %p584 = scmp.ne.s32.totalorder %s573, %s576
      %p585 = scmp.eq.s32.totalorder %s63, 1
      %p586 = por %p584, %p585
      %p587 = scmp.ne.s32.totalorder %s576, %s577
      %p588 = scmp.eq.s32.totalorder %s63, 0
      %p589 = por %p587, %p588
      %p590 = scmp.ne.s32.totalorder %s576, %s577
      %p591 = scmp.eq.s32.totalorder %s64, 1
      %p592 = por %p590, %p591
      %p594 = scmp.ne.s32.totalorder %s577, %s593
      %p595 = scmp.eq.s32.totalorder %s64, 0
      %p596 = por %p594, %p595
      %s597 = ssub.s32 %s58, %s65
      %p598 = scmp.eq.s32.totalorder %s597, 0
      %s600 = sadd.s32 %s599, 1
      %s601 = scalar_select %p598, %s599, %s600
      %p604 = pneg %p598
      %p605 = scmp.eq.s32.totalorder %s58, 1
      %p606 = por %p604, %p605
      %p607 = scmp.ne.s32.totalorder %s599, %s602
      %p608 = scmp.eq.s32.totalorder %s58, 0
      %p609 = por %p607, %p608
      %p610 = scmp.ne.s32.totalorder %s599, %s602
      %p611 = scmp.eq.s32.totalorder %s63, 1
      %p612 = por %p610, %p611
      %p613 = scmp.ne.s32.totalorder %s602, %s603
      %p614 = scmp.eq.s32.totalorder %s63, 0
      %p615 = por %p613, %p614
      %p616 = scmp.ne.s32.totalorder %s602, %s603
      %p617 = scmp.eq.s32.totalorder %s64, 1
      %p618 = por %p616, %p617
      %p620 = scmp.ne.s32.totalorder %s603, %s619
      %p621 = scmp.eq.s32.totalorder %s64, 0
      %p622 = por %p620, %p621
      %s623 = ssub.s32 %s58, %s65
      %p624 = scmp.eq.s32.totalorder %s623, 0
      %s626 = sadd.s32 %s625, 1
      %s627 = scalar_select %p624, %s625, %s626
      %p630 = pneg %p624
      %p631 = scmp.eq.s32.totalorder %s58, 1
      %p632 = por %p630, %p631
      %p633 = scmp.ne.s32.totalorder %s625, %s628
      %p634 = scmp.eq.s32.totalorder %s58, 0
      %p635 = por %p633, %p634
      %p636 = scmp.ne.s32.totalorder %s625, %s628
      %p637 = scmp.eq.s32.totalorder %s63, 1
      %p638 = por %p636, %p637
      %p639 = scmp.ne.s32.totalorder %s628, %s629
      %p640 = scmp.eq.s32.totalorder %s63, 0
      %p641 = por %p639, %p640
      %p642 = scmp.ne.s32.totalorder %s628, %s629
      %p643 = scmp.eq.s32.totalorder %s64, 1
      %p644 = por %p642, %p643
      %p646 = scmp.ne.s32.totalorder %s629, %s645
      %p647 = scmp.eq.s32.totalorder %s64, 0
      %p648 = por %p646, %p647
      %s650 = sadd.s32 %s649, 1
      %p653 = scmp.eq.s32.totalorder %s58, 1
      %p654 = scmp.ne.s32.totalorder %s649, %s651
      %p655 = scmp.eq.s32.totalorder %s58, 0
      %p656 = por %p654, %p655
      %p657 = scmp.ne.s32.totalorder %s649, %s651
      %p658 = scmp.eq.s32.totalorder %s63, 1
      %p659 = por %p657, %p658
      %p660 = scmp.ne.s32.totalorder %s651, %s652
      %p661 = scmp.eq.s32.totalorder %s63, 0
      %p662 = por %p660, %p661
      %p663 = scmp.ne.s32.totalorder %s651, %s652
      %p664 = scmp.eq.s32.totalorder %s64, 1
      %p665 = por %p663, %p664
      %p667 = scmp.ne.s32.totalorder %s652, %s666
      %p668 = scmp.eq.s32.totalorder %s64, 0
      %p669 = por %p667, %p668
      %s671 = sadd.s32 %s670, 1
      %p674 = scmp.eq.s32.totalorder %s58, 1
      %p675 = scmp.ne.s32.totalorder %s670, %s672
      %p676 = scmp.eq.s32.totalorder %s58, 0
      %p677 = por %p675, %p676
      %p678 = scmp.ne.s32.totalorder %s670, %s672
      %p679 = scmp.eq.s32.totalorder %s63, 1
      %p680 = por %p678, %p679
      %p681 = scmp.ne.s32.totalorder %s672, %s673
      %p682 = scmp.eq.s32.totalorder %s63, 0
      %p683 = por %p681, %p682
      %p684 = scmp.ne.s32.totalorder %s672, %s673
      %p685 = scmp.eq.s32.totalorder %s64, 1
      %p686 = por %p684, %p685
      %p688 = scmp.ne.s32.totalorder %s673, %s687
      %p689 = scmp.eq.s32.totalorder %s64, 0
      %p690 = por %p688, %p689
      %s692 = sadd.s32 %s691, 1
      %p695 = scmp.eq.s32.totalorder %s58, 1
      %p696 = scmp.ne.s32.totalorder %s691, %s693
      %p697 = scmp.eq.s32.totalorder %s58, 0
      %p698 = por %p696, %p697
      %p699 = scmp.ne.s32.totalorder %s691, %s693
      %p700 = scmp.eq.s32.totalorder %s63, 1
      %p701 = por %p699, %p700
      %p702 = scmp.ne.s32.totalorder %s693, %s694
      %p703 = scmp.eq.s32.totalorder %s63, 0
      %p704 = por %p702, %p703
      %p705 = scmp.ne.s32.totalorder %s693, %s694
      %p706 = scmp.eq.s32.totalorder %s64, 1
      %p707 = por %p705, %p706
      %p709 = scmp.ne.s32.totalorder %s694, %s708
      %p710 = scmp.eq.s32.totalorder %s64, 0
      %p711 = por %p709, %p710
      %s713 = sadd.s32 %s712, 1
      %p716 = scmp.eq.s32.totalorder %s58, 1
      %p717 = scmp.ne.s32.totalorder %s712, %s714
      %p718 = scmp.eq.s32.totalorder %s58, 0
      %p719 = por %p717, %p718
      %p720 = scmp.ne.s32.totalorder %s712, %s714
      %p721 = scmp.eq.s32.totalorder %s63, 1
      %p722 = por %p720, %p721
      %p723 = scmp.ne.s32.totalorder %s714, %s715
      %p724 = scmp.eq.s32.totalorder %s63, 0
      %p725 = por %p723, %p724
      %p726 = scmp.ne.s32.totalorder %s714, %s715
      %p727 = scmp.eq.s32.totalorder %s64, 1
      %p728 = por %p726, %p727
      %p730 = scmp.ne.s32.totalorder %s715, %s729
      %p731 = scmp.eq.s32.totalorder %s64, 0
      %p732 = por %p730, %p731
      %s734 = sadd.s32 %s733, 1
      %p737 = scmp.eq.s32.totalorder %s58, 1
      %p738 = scmp.ne.s32.totalorder %s733, %s735
      %p739 = scmp.eq.s32.totalorder %s58, 0
      %p740 = por %p738, %p739
      %p741 = scmp.ne.s32.totalorder %s733, %s735
      %p742 = scmp.eq.s32.totalorder %s63, 1
      %p743 = por %p741, %p742
      %p744 = scmp.ne.s32.totalorder %s735, %s736
      %p745 = scmp.eq.s32.totalorder %s63, 0
      %p746 = por %p744, %p745
      %p747 = scmp.ne.s32.totalorder %s735, %s736
      %p748 = scmp.eq.s32.totalorder %s64, 1
      %p749 = por %p747, %p748
      %p751 = scmp.ne.s32.totalorder %s736, %s750
      %p752 = scmp.eq.s32.totalorder %s64, 0
      %p753 = por %p751, %p752
      %p754 = scmp.le.s32.totalorder 1, %s58
      %p755 = scmp.lt.s32.totalorder %s58, 3
      %p756 = pnand %p754, %p755
      %p757 = pneg %p756
      // Predicated region
      $region9: #{model_forward.3} parent=5 // pred_check
        _
      $region10: #{model_forward.3} parent=5 // pred_check_branch
        %759 = sbr.rel (%p756) target = $region12
      $region11: #{model_forward.3} parent=5 // pred_region
        %s760 = ssub.s32 %s58, 1
        // Predicated region
        $region13: #{model_forward.3} parent=11 // pred_check
          %p761 = pneg %p79
        $region14: #{model_forward.3} parent=11 // pred_check_branch
          %763 = sbr.rel (%p761) target = $region16
        $region15: #{model_forward.3} parent=11 // pred_region
          %765 = vsyncadd [#allocation4], 0
          %s767 = sshll.u32 %s0, 4
          %s768 = int_to_ptr.hbm [resolvable:$true] %s767
          %s769 = sshll.u32 [#allocation3], 4
          %s770 = int_to_ptr.vmem [resolvable:$true] %s769
          %772 = dma.hbm_to_vmem [thread:$0]  %s768, 16, %s770, [#allocation4]
        $region16: #{model_forward.3} parent=11 // pred_fallthru
          _
        // Predicated region
        $region17: #{model_forward.3} parent=11 // pred_check
          %p773 = pneg %p100
        $region18: #{model_forward.3} parent=11 // pred_check_branch
          %775 = sbr.rel (%p773) target = $region20
        $region19: #{model_forward.3} parent=11 // pred_region
          _
        $region20: #{model_forward.3} parent=11 // pred_fallthru
          _
        // Predicated region
        $region21: #{model_forward.3} parent=11 // pred_check
          %p776 = pneg %p121
        $region22: #{model_forward.3} parent=11 // pred_check_branch
          %778 = sbr.rel (%p776) target = $region24
        $region23: #{model_forward.3} parent=11 // pred_region
          _
        $region24: #{model_forward.3} parent=11 // pred_fallthru
          _
        // Predicated region
        $region25: #{model_forward.3} parent=11 // pred_check
          %p779 = pneg %p662
        $region26: #{model_forward.3} parent=11 // pred_check_branch
          %781 = sbr.rel (%p779) target = $region28
        $region27: #{model_forward.3} parent=11 // pred_region
          %783 = vsyncadd [#allocation25], 0
          %s785 = sshll.u32 %s23, 4
          %s786 = int_to_ptr.hbm [resolvable:$true] %s785
          %s787 = sshll.u32 [#allocation26], 4
          %s788 = int_to_ptr.vmem [resolvable:$true] %s787
          %790 = dma.hbm_to_vmem [thread:$0]  %s786, 16, %s788, [#allocation25]
        $region28: #{model_forward.3} parent=11 // pred_fallthru
          _
        // Predicated region
        $region29: #{model_forward.3} parent=11 // pred_check
          %p791 = pneg %p683
        $region30: #{model_forward.3} parent=11 // pred_check_branch
          %793 = sbr.rel (%p791) target = $region32
        $region31: #{model_forward.3} parent=11 // pred_region
          %795 = vsyncadd [#allocation28], 0
          %s797 = sshll.u32 %s24, 4
          %s798 = int_to_ptr.hbm [resolvable:$true] %s797
          %s799 = sshll.u32 [#allocation27], 4
          %s800 = int_to_ptr.vmem [resolvable:$true] %s799
          %802 = dma.hbm_to_vmem [thread:$0]  %s798, 16, %s800, [#allocation28]
        $region32: #{model_forward.3} parent=11 // pred_fallthru
          _
        // Predicated region
        $region33: #{model_forward.3} parent=11 // pred_check
          %p803 = pneg %p704
        $region34: #{model_forward.3} parent=11 // pred_check_branch
          %805 = sbr.rel (%p803) target = $region36
        $region35: #{model_forward.3} parent=11 // pred_region
          %807 = vsyncadd [#allocation28], 0
          %s808 = sshll.u32 %s25, 4
          %s809 = int_to_ptr.hbm [resolvable:$true] %s808
          %s810 = sshll.u32 [#allocation29], 4
          %s811 = int_to_ptr.vmem [resolvable:$true] %s810
          %816 = dma.hbm_to_vmem [thread:$0]  %s809, 512, %s811, [#allocation28], 128, 128, 8
        $region36: #{model_forward.3} parent=11 // pred_fallthru
          _
        // Predicated region
        $region37: #{model_forward.3} parent=11 // pred_check
          %p817 = pneg %p725
        $region38: #{model_forward.3} parent=11 // pred_check_branch
          %819 = sbr.rel (%p817) target = $region40
        $region39: #{model_forward.3} parent=11 // pred_region
          %821 = vsyncadd [#allocation31], 0
          %s823 = sshll.u32 %s26, 4
          %s824 = int_to_ptr.hbm [resolvable:$true] %s823
          %s825 = sshll.u32 [#allocation30], 4
          %s826 = int_to_ptr.vmem [resolvable:$true] %s825
          %828 = dma.hbm_to_vmem [thread:$0]  %s824, 16, %s826, [#allocation31]
        $region40: #{model_forward.3} parent=11 // pred_fallthru
          _
      $region12: #{model_forward.3} parent=5 // pred_fallthru
        _
      %p829 = scmp.lt.s32.totalorder %s58, 2
      // Predicated region
      $region41: #{model_forward.3} parent=5 // pred_check
        %p830 = pneg %p829
      $region42: #{model_forward.3} parent=5 // pred_check_branch
        %832 = sbr.rel (%p830) target = $region44
      $region43: #{model_forward.3} parent=5 // pred_region
        // Predicated region
        $region45: #{model_forward.3} parent=43 // pred_check
          %p833 = pneg %p141
        $region46: #{model_forward.3} parent=43 // pred_check_branch
          %835 = sbr.rel (%p833) target = $region48
        $region47: #{model_forward.3} parent=43 // pred_region
          %s836 = sand.u32 %s58, 1
          %s837 = scalar_lea.sflag [#allocation7], %s836
          %s838 = sand.u32 %s131, 1
          %s839 = scalar_lea.vmem [#allocation6], %s838
          %841 = vsyncadd %s837, 0
          %s842 = scalar_lea.hbm %s3, %s58
          %s844 = sshll.u32 %s842, 4
          %s845 = int_to_ptr.hbm [resolvable:$true] %s844
          %s846 = sshll.u32 %s839, 4
          %s847 = int_to_ptr.vmem [resolvable:$true] %s846
          %849 = dma.hbm_to_vmem [thread:$0]  %s845, 16, %s847, %s837
        $region48: #{model_forward.3} parent=43 // pred_fallthru
          _
        // Predicated region
        $region49: #{model_forward.3} parent=43 // pred_check
          %p850 = pneg %p167
        $region50: #{model_forward.3} parent=43 // pred_check_branch
          %852 = sbr.rel (%p850) target = $region52
        $region51: #{model_forward.3} parent=43 // pred_region
          %s853 = sand.u32 %s58, 1
          %s854 = scalar_lea.sflag [#allocation7], %s853
          %s855 = sand.u32 %s157, 1
          %s856 = scalar_lea.vmem [#allocation8], %s855
          %858 = vsyncadd %s854, 0
          %s859 = scalar_lea.hbm %s4, %s58
          %s861 = sshll.u32 %s859, 4
          %s862 = int_to_ptr.hbm [resolvable:$true] %s861
          %s863 = sshll.u32 %s856, 4
          %s864 = int_to_ptr.vmem [resolvable:$true] %s863
          %866 = dma.hbm_to_vmem [thread:$0]  %s862, 16, %s864, %s854
        $region52: #{model_forward.3} parent=43 // pred_fallthru
          _
        // Predicated region
        $region53: #{model_forward.3} parent=43 // pred_check
          %p867 = pneg %p193
        $region54: #{model_forward.3} parent=43 // pred_check_branch
          %869 = sbr.rel (%p867) target = $region56
        $region55: #{model_forward.3} parent=43 // pred_region
          %p870 = scmp.lt.s32.totalorder %s58, 1
          %s871 = scalar_select %p870, %s58, 1
          %s872 = smul.addr %s871, 4
          %s873 = smul.addr %s872, 8
          %s874 = scalar_lea.vmem %s5, %s873
        $region56: #{model_forward.3} parent=43 // pred_fallthru
          _
        // Predicated region
        $region57: #{model_forward.3} parent=43 // pred_check
          %p875 = pneg %p219
        $region58: #{model_forward.3} parent=43 // pred_check_branch
          %877 = sbr.rel (%p875) target = $region60
        $region59: #{model_forward.3} parent=43 // pred_region
          %s878 = sand.u32 %s58, 1
          %s879 = scalar_lea.sflag [#allocation10], %s878
          %s880 = sand.u32 %s209, 1
          %s881 = scalar_lea.vmem [#allocation9], %s880
          %883 = vsyncadd %s879, 0
          %s884 = scalar_lea.hbm %s6, %s58
          %s886 = sshll.u32 %s884, 4
          %s887 = int_to_ptr.hbm [resolvable:$true] %s886
          %s888 = sshll.u32 %s881, 4
          %s889 = int_to_ptr.vmem [resolvable:$true] %s888
          %891 = dma.hbm_to_vmem [thread:$0]  %s887, 16, %s889, %s879
        $region60: #{model_forward.3} parent=43 // pred_fallthru
          _
        // Predicated region
        $region61: #{model_forward.3} parent=43 // pred_check
          %p892 = pneg %p245
        $region62: #{model_forward.3} parent=43 // pred_check_branch
          %894 = sbr.rel (%p892) target = $region64
        $region63: #{model_forward.3} parent=43 // pred_region
          %p895 = scmp.lt.s32.totalorder %s58, 1
          %s896 = scalar_select %p895, %s58, 1
          %s897 = smul.addr %s896, 4
          %s898 = smul.addr %s897, 8
          %s899 = scalar_lea.vmem %s7, %s898
        $region64: #{model_forward.3} parent=43 // pred_fallthru
          _
        // Predicated region
        $region65: #{model_forward.3} parent=43 // pred_check
          %p900 = pneg %p271
        $region66: #{model_forward.3} parent=43 // pred_check_branch
          %902 = sbr.rel (%p900) target = $region68
        $region67: #{model_forward.3} parent=43 // pred_region
          %s903 = sand.u32 %s58, 1
          %s904 = scalar_lea.sflag [#allocation10], %s903
          %s905 = sand.u32 %s261, 1
          %s906 = scalar_lea.vmem [#allocation11], %s905
          %908 = vsyncadd %s904, 0
          %s909 = scalar_lea.hbm %s8, %s58
          %s911 = sshll.u32 %s909, 4
          %s912 = int_to_ptr.hbm [resolvable:$true] %s911
          %s913 = sshll.u32 %s906, 4
          %s914 = int_to_ptr.vmem [resolvable:$true] %s913
          %916 = dma.hbm_to_vmem [thread:$0]  %s912, 16, %s914, %s904
        $region68: #{model_forward.3} parent=43 // pred_fallthru
          _
        // Predicated region
        $region69: #{model_forward.3} parent=43 // pred_check
          %p917 = pneg %p297
        $region70: #{model_forward.3} parent=43 // pred_check_branch
          %919 = sbr.rel (%p917) target = $region72
        $region71: #{model_forward.3} parent=43 // pred_region
          %s920 = sand.u32 %s58, 1
          %s921 = scalar_lea.sflag [#allocation13], %s920
          %s922 = sand.u32 %s287, 1
          %s923 = scalar_lea.vmem [#allocation12], %s922
          %925 = vsyncadd %s921, 0
          %s926 = scalar_lea.hbm %s9, %s58
          %s928 = sshll.u32 %s926, 4
          %s929 = int_to_ptr.hbm [resolvable:$true] %s928
          %s930 = sshll.u32 %s923, 4
          %s931 = int_to_ptr.vmem [resolvable:$true] %s930
          %933 = dma.hbm_to_vmem [thread:$0]  %s929, 16, %s931, %s921
        $region72: #{model_forward.3} parent=43 // pred_fallthru
          _
        // Predicated region
        $region73: #{model_forward.3} parent=43 // pred_check
          %p934 = pneg %p323
        $region74: #{model_forward.3} parent=43 // pred_check_branch
          %936 = sbr.rel (%p934) target = $region76
        $region75: #{model_forward.3} parent=43 // pred_region
          %s937 = sand.u32 %s58, 1
          %s938 = scalar_lea.sflag [#allocation13], %s937
          %s939 = sand.u32 %s313, 1
          %s940 = scalar_lea.vmem [#allocation14], %s939
          %942 = vsyncadd %s938, 0
          %s943 = scalar_lea.hbm %s10, %s58
          %s945 = sshll.u32 %s943, 4
          %s946 = int_to_ptr.hbm [resolvable:$true] %s945
          %s947 = sshll.u32 %s940, 4
          %s948 = int_to_ptr.vmem [resolvable:$true] %s947
          %950 = dma.hbm_to_vmem [thread:$0]  %s946, 16, %s948, %s938
        $region76: #{model_forward.3} parent=43 // pred_fallthru
          _
        // Predicated region
        $region77: #{model_forward.3} parent=43 // pred_check
          %p951 = pneg %p349
        $region78: #{model_forward.3} parent=43 // pred_check_branch
          %953 = sbr.rel (%p951) target = $region80
        $region79: #{model_forward.3} parent=43 // pred_region
          %p954 = scmp.lt.s32.totalorder %s58, 1
          %s955 = scalar_select %p954, %s58, 1
          %s956 = smul.addr %s955, 4
          %s957 = smul.addr %s956, 8
          %s958 = scalar_lea.vmem %s11, %s957
        $region80: #{model_forward.3} parent=43 // pred_fallthru
          _
        // Predicated region
        $region81: #{model_forward.3} parent=43 // pred_check
          %p959 = pneg %p375
        $region82: #{model_forward.3} parent=43 // pred_check_branch
          %961 = sbr.rel (%p959) target = $region84
        $region83: #{model_forward.3} parent=43 // pred_region
          %s962 = sand.u32 %s58, 1
          %s963 = scalar_lea.sflag [#allocation16], %s962
          %s964 = sand.u32 %s365, 1
          %s965 = scalar_lea.vmem [#allocation15], %s964
          %967 = vsyncadd %s963, 0
          %s968 = scalar_lea.hbm %s12, %s58
          %s970 = sshll.u32 %s968, 4
          %s971 = int_to_ptr.hbm [resolvable:$true] %s970
          %s972 = sshll.u32 %s965, 4
          %s973 = int_to_ptr.vmem [resolvable:$true] %s972
          %975 = dma.hbm_to_vmem [thread:$0]  %s971, 16, %s973, %s963
        $region84: #{model_forward.3} parent=43 // pred_fallthru
          _
        // Predicated region
        $region85: #{model_forward.3} parent=43 // pred_check
          %p976 = pneg %p401
        $region86: #{model_forward.3} parent=43 // pred_check_branch
          %978 = sbr.rel (%p976) target = $region88
        $region87: #{model_forward.3} parent=43 // pred_region
          %p979 = scmp.lt.s32.totalorder %s58, 1
          %s980 = scalar_select %p979, %s58, 1
          %s981 = smul.addr %s980, 4
          %s982 = smul.addr %s981, 8
          %s983 = scalar_lea.vmem %s13, %s982
        $region88: #{model_forward.3} parent=43 // pred_fallthru
          _
        // Predicated region
        $region89: #{model_forward.3} parent=43 // pred_check
          %p984 = pneg %p427
        $region90: #{model_forward.3} parent=43 // pred_check_branch
          %986 = sbr.rel (%p984) target = $region92
        $region91: #{model_forward.3} parent=43 // pred_region
          %s987 = sand.u32 %s58, 1
          %s988 = scalar_lea.sflag [#allocation16], %s987
          %s989 = sand.u32 %s417, 1
          %s990 = scalar_lea.vmem [#allocation17], %s989
          %992 = vsyncadd %s988, 0
          %s993 = scalar_lea.hbm %s14, %s58
          %s995 = sshll.u32 %s993, 4
          %s996 = int_to_ptr.hbm [resolvable:$true] %s995
          %s997 = sshll.u32 %s990, 4
          %s998 = int_to_ptr.vmem [resolvable:$true] %s997
          %1000 = dma.hbm_to_vmem [thread:$0]  %s996, 16, %s998, %s988
        $region92: #{model_forward.3} parent=43 // pred_fallthru
          _
        // Predicated region
        $region93: #{model_forward.3} parent=43 // pred_check
          %p1001 = pneg %p453
        $region94: #{model_forward.3} parent=43 // pred_check_branch
          %1003 = sbr.rel (%p1001) target = $region96
        $region95: #{model_forward.3} parent=43 // pred_region
          %p1004 = scmp.lt.s32.totalorder %s58, 1
          %s1005 = scalar_select %p1004, %s58, 1
          %s1006 = smul.addr %s1005, 4
          %s1007 = smul.addr %s1006, 8
          %s1008 = scalar_lea.vmem %s15, %s1007
        $region96: #{model_forward.3} parent=43 // pred_fallthru
          _
        // Predicated region
        $region97: #{model_forward.3} parent=43 // pred_check
          %p1009 = pneg %p479
        $region98: #{model_forward.3} parent=43 // pred_check_branch
          %1011 = sbr.rel (%p1009) target = $region100
        $region99: #{model_forward.3} parent=43 // pred_region
          %s1012 = sand.u32 %s58, 1
          %s1013 = scalar_lea.sflag [#allocation19], %s1012
          %s1014 = sand.u32 %s469, 1
          %s1015 = scalar_lea.vmem [#allocation18], %s1014
          %1017 = vsyncadd %s1013, 0
          %s1018 = scalar_lea.hbm %s16, %s58
          %s1020 = sshll.u32 %s1018, 4
          %s1021 = int_to_ptr.hbm [resolvable:$true] %s1020
          %s1022 = sshll.u32 %s1015, 4
          %s1023 = int_to_ptr.vmem [resolvable:$true] %s1022
          %1025 = dma.hbm_to_vmem [thread:$0]  %s1021, 16, %s1023, %s1013
        $region100: #{model_forward.3} parent=43 // pred_fallthru
          _
        // Predicated region
        $region101: #{model_forward.3} parent=43 // pred_check
          %p1026 = pneg %p505
        $region102: #{model_forward.3} parent=43 // pred_check_branch
          %1028 = sbr.rel (%p1026) target = $region104
        $region103: #{model_forward.3} parent=43 // pred_region
          %s1029 = sand.u32 %s58, 1
          %s1030 = scalar_lea.sflag [#allocation19], %s1029
          %s1031 = sand.u32 %s495, 1
          %s1032 = scalar_lea.vmem [#allocation20], %s1031
          %1034 = vsyncadd %s1030, 0
          %s1035 = scalar_lea.hbm %s17, %s58
          %s1037 = sshll.u32 %s1035, 4
          %s1038 = int_to_ptr.hbm [resolvable:$true] %s1037
          %s1039 = sshll.u32 %s1032, 4
          %s1040 = int_to_ptr.vmem [resolvable:$true] %s1039
          %1042 = dma.hbm_to_vmem [thread:$0]  %s1038, 16, %s1040, %s1030
        $region104: #{model_forward.3} parent=43 // pred_fallthru
          _
        // Predicated region
        $region105: #{model_forward.3} parent=43 // pred_check
          %p1043 = pneg %p531
        $region106: #{model_forward.3} parent=43 // pred_check_branch
          %1045 = sbr.rel (%p1043) target = $region108
        $region107: #{model_forward.3} parent=43 // pred_region
          %s1046 = sand.u32 %s58, 1
          %s1047 = scalar_lea.sflag [#allocation22], %s1046
          %s1048 = sand.u32 %s521, 1
          %s1049 = scalar_lea.vmem [#allocation21], %s1048
          %1051 = vsyncadd %s1047, 0
          %s1052 = scalar_lea.hbm %s18, %s58
          %s1054 = sshll.u32 %s1052, 4
          %s1055 = int_to_ptr.hbm [resolvable:$true] %s1054
          %s1056 = sshll.u32 %s1049, 4
          %s1057 = int_to_ptr.vmem [resolvable:$true] %s1056
          %1059 = dma.hbm_to_vmem [thread:$0]  %s1055, 16, %s1057, %s1047
        $region108: #{model_forward.3} parent=43 // pred_fallthru
          _
        // Predicated region
        $region109: #{model_forward.3} parent=43 // pred_check
          %p1060 = pneg %p557
        $region110: #{model_forward.3} parent=43 // pred_check_branch
          %1062 = sbr.rel (%p1060) target = $region112
        $region111: #{model_forward.3} parent=43 // pred_region
          %p1063 = scmp.lt.s32.totalorder %s58, 1
          %s1064 = scalar_select %p1063, %s58, 1
          %s1065 = smul.addr %s1064, 4
          %s1066 = smul.addr %s1065, 8
          %s1067 = scalar_lea.vmem %s19, %s1066
        $region112: #{model_forward.3} parent=43 // pred_fallthru
          _
        // Predicated region
        $region113: #{model_forward.3} parent=43 // pred_check
          %p1068 = pneg %p583
        $region114: #{model_forward.3} parent=43 // pred_check_branch
          %1070 = sbr.rel (%p1068) target = $region116
        $region115: #{model_forward.3} parent=43 // pred_region
          %s1071 = sand.u32 %s58, 1
          %s1072 = scalar_lea.sflag [#allocation22], %s1071
          %s1073 = sand.u32 %s573, 1
          %s1074 = scalar_lea.vmem [#allocation23], %s1073
          %1076 = vsyncadd %s1072, 0
          %s1077 = scalar_lea.hbm %s20, %s58
          %s1079 = sshll.u32 %s1077, 4
          %s1080 = int_to_ptr.hbm [resolvable:$true] %s1079
          %s1081 = sshll.u32 %s1074, 4
          %s1082 = int_to_ptr.vmem [resolvable:$true] %s1081
          %1084 = dma.hbm_to_vmem [thread:$0]  %s1080, 16, %s1082, %s1072
        $region116: #{model_forward.3} parent=43 // pred_fallthru
          _
        // Predicated region
        $region117: #{model_forward.3} parent=43 // pred_check
          %p1085 = pneg %p609
        $region118: #{model_forward.3} parent=43 // pred_check_branch
          %1087 = sbr.rel (%p1085) target = $region120
        $region119: #{model_forward.3} parent=43 // pred_region
          %p1088 = scmp.lt.s32.totalorder %s58, 1
          %s1089 = scalar_select %p1088, %s58, 1
          %s1090 = smul.addr %s1089, 16
          %s1091 = smul.addr %s1090, 8
          %s1092 = scalar_lea.vmem %s21, %s1091
        $region120: #{model_forward.3} parent=43 // pred_fallthru
          _
        // Predicated region
        $region121: #{model_forward.3} parent=43 // pred_check
          %p1093 = pneg %p635
        $region122: #{model_forward.3} parent=43 // pred_check_branch
          %1095 = sbr.rel (%p1093) target = $region124
        $region123: #{model_forward.3} parent=43 // pred_region
          %s1096 = sand.u32 %s58, 1
          %s1097 = scalar_lea.sflag [#allocation25], %s1096
          %s1098 = sand.u32 %s625, 1
          %s1099 = scalar_lea.vmem [#allocation24], %s1098
          %1101 = vsyncadd %s1097, 0
          %s1102 = scalar_lea.hbm %s22, %s58
          %s1104 = sshll.u32 %s1102, 4
          %s1105 = int_to_ptr.hbm [resolvable:$true] %s1104
          %s1106 = sshll.u32 %s1099, 4
          %s1107 = int_to_ptr.vmem [resolvable:$true] %s1106
          %1109 = dma.hbm_to_vmem [thread:$0]  %s1105, 16, %s1107, %s1097
        $region124: #{model_forward.3} parent=43 // pred_fallthru
          _
      $region44: #{model_forward.3} parent=5 // pred_fallthru
        _
      %p1110 = scmp.le.s32.totalorder 1, %s58
      %p1111 = scmp.lt.s32.totalorder %s58, 3
      %p1112 = pnand %p1110, %p1111
      %p1113 = pneg %p1112
      // Predicated region
      $region125: #{model_forward.3} parent=5 // pred_check
        _
      $region126: #{model_forward.3} parent=5 // pred_check_branch
        %1115 = sbr.rel (%p1112) target = $region128
      $region127: #{model_forward.3} parent=5 // pred_region
        %s1116 = ssub.s32 %s58, 1
        // Predicated region
        $region129: #{model_forward.3} parent=127 // pred_check
          %p1117 = pneg %p79
        $region130: #{model_forward.3} parent=127 // pred_check_branch
          %1119 = sbr.rel (%p1117) target = $region132
        $region131: #{model_forward.3} parent=127 // pred_region
          %1121 = dma.done [#allocation4], 16
        $region132: #{model_forward.3} parent=127 // pred_fallthru
          _
        %s1122 = sand.u32 %s63, 1
        %s1123 = scalar_lea.sflag [#allocation7], %s1122
        %s1124 = sand.u32 %s134, 1
        %s1125 = scalar_lea.vmem [#allocation6], %s1124
        // Predicated region
        $region133: #{model_forward.3} parent=127 // pred_check
          %p1126 = pneg %p147
        $region134: #{model_forward.3} parent=127 // pred_check_branch
          %1128 = sbr.rel (%p1126) target = $region136
        $region135: #{model_forward.3} parent=127 // pred_region
          %1130 = dma.done %s1123, 16
        $region136: #{model_forward.3} parent=127 // pred_fallthru
          _
        %s1131 = sand.u32 %s63, 1
        %s1132 = scalar_lea.sflag [#allocation7], %s1131
        %s1133 = sand.u32 %s160, 1
        %s1134 = scalar_lea.vmem [#allocation8], %s1133
        // Predicated region
        $region137: #{model_forward.3} parent=127 // pred_check
          %p1135 = pneg %p173
        $region138: #{model_forward.3} parent=127 // pred_check_branch
          %1137 = sbr.rel (%p1135) target = $region140
        $region139: #{model_forward.3} parent=127 // pred_region
          %1139 = dma.done %s1132, 16
        $region140: #{model_forward.3} parent=127 // pred_fallthru
          _
        %s1140 = sand.u32 %s63, 1
        %s1141 = scalar_lea.sflag [#allocation10], %s1140
        %s1142 = sand.u32 %s212, 1
        %s1143 = scalar_lea.vmem [#allocation9], %s1142
        // Predicated region
        $region141: #{model_forward.3} parent=127 // pred_check
          %p1144 = pneg %p225
        $region142: #{model_forward.3} parent=127 // pred_check_branch
          %1146 = sbr.rel (%p1144) target = $region144
        $region143: #{model_forward.3} parent=127 // pred_region
          %1148 = dma.done %s1141, 16
        $region144: #{model_forward.3} parent=127 // pred_fallthru
          _
        %s1149 = sand.u32 %s63, 1
        %s1150 = scalar_lea.sflag [#allocation10], %s1149
        %s1151 = sand.u32 %s264, 1
        %s1152 = scalar_lea.vmem [#allocation11], %s1151
        // Predicated region
        $region145: #{model_forward.3} parent=127 // pred_check
          %p1153 = pneg %p277
        $region146: #{model_forward.3} parent=127 // pred_check_branch
          %1155 = sbr.rel (%p1153) target = $region148
        $region147: #{model_forward.3} parent=127 // pred_region
          %1157 = dma.done %s1150, 16
        $region148: #{model_forward.3} parent=127 // pred_fallthru
          _
        %s1158 = sand.u32 %s63, 1
        %s1159 = scalar_lea.sflag [#allocation13], %s1158
        %s1160 = sand.u32 %s290, 1
        %s1161 = scalar_lea.vmem [#allocation12], %s1160
        // Predicated region
        $region149: #{model_forward.3} parent=127 // pred_check
          %p1162 = pneg %p303
        $region150: #{model_forward.3} parent=127 // pred_check_branch
          %1164 = sbr.rel (%p1162) target = $region152
        $region151: #{model_forward.3} parent=127 // pred_region
          %1166 = dma.done %s1159, 16
        $region152: #{model_forward.3} parent=127 // pred_fallthru
          _
        %s1167 = sand.u32 %s63, 1
        %s1168 = scalar_lea.sflag [#allocation13], %s1167
        %s1169 = sand.u32 %s316, 1
        %s1170 = scalar_lea.vmem [#allocation14], %s1169
        // Predicated region
        $region153: #{model_forward.3} parent=127 // pred_check
          %p1171 = pneg %p329
        $region154: #{model_forward.3} parent=127 // pred_check_branch
          %1173 = sbr.rel (%p1171) target = $region156
        $region155: #{model_forward.3} parent=127 // pred_region
          %1175 = dma.done %s1168, 16
        $region156: #{model_forward.3} parent=127 // pred_fallthru
          _
        %s1176 = sand.u32 %s63, 1
        %s1177 = scalar_lea.sflag [#allocation16], %s1176
        %s1178 = sand.u32 %s368, 1
        %s1179 = scalar_lea.vmem [#allocation15], %s1178
        // Predicated region
        $region157: #{model_forward.3} parent=127 // pred_check
          %p1180 = pneg %p381
        $region158: #{model_forward.3} parent=127 // pred_check_branch
          %1182 = sbr.rel (%p1180) target = $region160
        $region159: #{model_forward.3} parent=127 // pred_region
          %1184 = dma.done %s1177, 16
        $region160: #{model_forward.3} parent=127 // pred_fallthru
          _
        %s1185 = sand.u32 %s63, 1
        %s1186 = scalar_lea.sflag [#allocation16], %s1185
        %s1187 = sand.u32 %s420, 1
        %s1188 = scalar_lea.vmem [#allocation17], %s1187
        // Predicated region
        $region161: #{model_forward.3} parent=127 // pred_check
          %p1189 = pneg %p433
        $region162: #{model_forward.3} parent=127 // pred_check_branch
          %1191 = sbr.rel (%p1189) target = $region164
        $region163: #{model_forward.3} parent=127 // pred_region
          %1193 = dma.done %s1186, 16
        $region164: #{model_forward.3} parent=127 // pred_fallthru
          _
        %s1194 = sand.u32 %s63, 1
        %s1195 = scalar_lea.sflag [#allocation19], %s1194
        %s1196 = sand.u32 %s472, 1
        %s1197 = scalar_lea.vmem [#allocation18], %s1196
        // Predicated region
        $region165: #{model_forward.3} parent=127 // pred_check
          %p1198 = pneg %p485
        $region166: #{model_forward.3} parent=127 // pred_check_branch
          %1200 = sbr.rel (%p1198) target = $region168
        $region167: #{model_forward.3} parent=127 // pred_region
          %1202 = dma.done %s1195, 16
        $region168: #{model_forward.3} parent=127 // pred_fallthru
          _
        %s1203 = sand.u32 %s63, 1
        %s1204 = scalar_lea.sflag [#allocation19], %s1203
        %s1205 = sand.u32 %s498, 1
        %s1206 = scalar_lea.vmem [#allocation20], %s1205
        // Predicated region
        $region169: #{model_forward.3} parent=127 // pred_check
          %p1207 = pneg %p511
        $region170: #{model_forward.3} parent=127 // pred_check_branch
          %1209 = sbr.rel (%p1207) target = $region172
        $region171: #{model_forward.3} parent=127 // pred_region
          %1211 = dma.done %s1204, 16
        $region172: #{model_forward.3} parent=127 // pred_fallthru
          _
        %s1212 = sand.u32 %s63, 1
        %s1213 = scalar_lea.sflag [#allocation22], %s1212
        %s1214 = sand.u32 %s524, 1
        %s1215 = scalar_lea.vmem [#allocation21], %s1214
        // Predicated region
        $region173: #{model_forward.3} parent=127 // pred_check
          %p1216 = pneg %p537
        $region174: #{model_forward.3} parent=127 // pred_check_branch
          %1218 = sbr.rel (%p1216) target = $region176
        $region175: #{model_forward.3} parent=127 // pred_region
          %1220 = dma.done %s1213, 16
        $region176: #{model_forward.3} parent=127 // pred_fallthru
          _
        %s1221 = sand.u32 %s63, 1
        %s1222 = scalar_lea.sflag [#allocation22], %s1221
        %s1223 = sand.u32 %s576, 1
        %s1224 = scalar_lea.vmem [#allocation23], %s1223
        // Predicated region
        $region177: #{model_forward.3} parent=127 // pred_check
          %p1225 = pneg %p589
        $region178: #{model_forward.3} parent=127 // pred_check_branch
          %1227 = sbr.rel (%p1225) target = $region180
        $region179: #{model_forward.3} parent=127 // pred_region
          %1229 = dma.done %s1222, 16
        $region180: #{model_forward.3} parent=127 // pred_fallthru
          _
        %s1230 = sand.u32 %s63, 1
        %s1231 = scalar_lea.sflag [#allocation25], %s1230
        %s1232 = sand.u32 %s628, 1
        %s1233 = scalar_lea.vmem [#allocation24], %s1232
        // Predicated region
        $region181: #{model_forward.3} parent=127 // pred_check
          %p1234 = pneg %p641
        $region182: #{model_forward.3} parent=127 // pred_check_branch
          %1236 = sbr.rel (%p1234) target = $region184
        $region183: #{model_forward.3} parent=127 // pred_region
          %1238 = dma.done %s1231, 16
        $region184: #{model_forward.3} parent=127 // pred_fallthru
          _
        // Predicated region
        $region185: #{model_forward.3} parent=127 // pred_check
          %p1239 = pneg %p662
        $region186: #{model_forward.3} parent=127 // pred_check_branch
          %1241 = sbr.rel (%p1239) target = $region188
        $region187: #{model_forward.3} parent=127 // pred_region
          %1243 = dma.done [#allocation25], 16
        $region188: #{model_forward.3} parent=127 // pred_fallthru
          _
        // Predicated region
        $region189: #{model_forward.3} parent=127 // pred_check
          %p1244 = pneg %p683
        $region190: #{model_forward.3} parent=127 // pred_check_branch
          %1246 = sbr.rel (%p1244) target = $region192
        $region191: #{model_forward.3} parent=127 // pred_region
          %1248 = dma.done [#allocation28], 16
        $region192: #{model_forward.3} parent=127 // pred_fallthru
          _
        // Predicated region
        $region193: #{model_forward.3} parent=127 // pred_check
          %p1249 = pneg %p704
        $region194: #{model_forward.3} parent=127 // pred_check_branch
          %1251 = sbr.rel (%p1249) target = $region196
        $region195: #{model_forward.3} parent=127 // pred_region
          %1253 = dma.done [#allocation28], 512
        $region196: #{model_forward.3} parent=127 // pred_fallthru
          _
        // Predicated region
        $region197: #{model_forward.3} parent=127 // pred_check
          %p1254 = pneg %p725
        $region198: #{model_forward.3} parent=127 // pred_check_branch
          %1256 = sbr.rel (%p1254) target = $region200
        $region199: #{model_forward.3} parent=127 // pred_region
          %1258 = dma.done [#allocation31], 16
        $region200: #{model_forward.3} parent=127 // pred_fallthru
          _
        %p1259 = pneg %p79
        %p1260 = pneg %p76
        %p1261 = pneg %p100
        %p1262 = pneg %p97
        %p1263 = pneg %p121
        %p1264 = pneg %p118
        %s1265 = sand.u32 %s63, 1
        %s1266 = scalar_lea.sflag [#allocation7], %s1265
        %s1267 = sand.u32 %s134, 1
        %s1268 = scalar_lea.vmem [#allocation6], %s1267
        %p1269 = pneg %p147
        %p1270 = pneg %p144
        %s1271 = sand.u32 %s63, 1
        %s1272 = scalar_lea.sflag [#allocation7], %s1271
        %s1273 = sand.u32 %s160, 1
        %s1274 = scalar_lea.vmem [#allocation8], %s1273
        %p1275 = pneg %p173
        %p1276 = pneg %p170
        %p1277 = scmp.lt.s32.totalorder %s63, 1
        %s1278 = scalar_select %p1277, %s63, 1
        %s1279 = smul.addr %s1278, 4
        %s1280 = smul.addr %s1279, 8
        %s1281 = scalar_lea.vmem %s5, %s1280
        %p1282 = pneg %p199
        %p1283 = pneg %p196
        %s1284 = sand.u32 %s63, 1
        %s1285 = scalar_lea.sflag [#allocation10], %s1284
        %s1286 = sand.u32 %s212, 1
        %s1287 = scalar_lea.vmem [#allocation9], %s1286
        %p1288 = pneg %p225
        %p1289 = pneg %p222
        %p1290 = scmp.lt.s32.totalorder %s63, 1
        %s1291 = scalar_select %p1290, %s63, 1
        %s1292 = smul.addr %s1291, 4
        %s1293 = smul.addr %s1292, 8
        %s1294 = scalar_lea.vmem %s7, %s1293
        %p1295 = pneg %p251
        %p1296 = pneg %p248
        %s1297 = sand.u32 %s63, 1
        %s1298 = scalar_lea.sflag [#allocation10], %s1297
        %s1299 = sand.u32 %s264, 1
        %s1300 = scalar_lea.vmem [#allocation11], %s1299
        %p1301 = pneg %p277
        %p1302 = pneg %p274
        %s1303 = sand.u32 %s63, 1
        %s1304 = scalar_lea.sflag [#allocation13], %s1303
        %s1305 = sand.u32 %s290, 1
        %s1306 = scalar_lea.vmem [#allocation12], %s1305
        %p1307 = pneg %p303
        %p1308 = pneg %p300
        %s1309 = sand.u32 %s63, 1
        %s1310 = scalar_lea.sflag [#allocation13], %s1309
        %s1311 = sand.u32 %s316, 1
        %s1312 = scalar_lea.vmem [#allocation14], %s1311
        %p1313 = pneg %p329
        %p1314 = pneg %p326
        %p1315 = scmp.lt.s32.totalorder %s63, 1
        %s1316 = scalar_select %p1315, %s63, 1
        %s1317 = smul.addr %s1316, 4
        %s1318 = smul.addr %s1317, 8
        %s1319 = scalar_lea.vmem %s11, %s1318
        %p1320 = pneg %p355
        %p1321 = pneg %p352
        %s1322 = sand.u32 %s63, 1
        %s1323 = scalar_lea.sflag [#allocation16], %s1322
        %s1324 = sand.u32 %s368, 1
        %s1325 = scalar_lea.vmem [#allocation15], %s1324
        %p1326 = pneg %p381
        %p1327 = pneg %p378
        %p1328 = scmp.lt.s32.totalorder %s63, 1
        %s1329 = scalar_select %p1328, %s63, 1
        %s1330 = smul.addr %s1329, 4
        %s1331 = smul.addr %s1330, 8
        %s1332 = scalar_lea.vmem %s13, %s1331
        %p1333 = pneg %p407
        %p1334 = pneg %p404
        %s1335 = sand.u32 %s63, 1
        %s1336 = scalar_lea.sflag [#allocation16], %s1335
        %s1337 = sand.u32 %s420, 1
        %s1338 = scalar_lea.vmem [#allocation17], %s1337
        %p1339 = pneg %p433
        %p1340 = pneg %p430
        %p1341 = scmp.lt.s32.totalorder %s63, 1
        %s1342 = scalar_select %p1341, %s63, 1
        %s1343 = smul.addr %s1342, 4
        %s1344 = smul.addr %s1343, 8
        %s1345 = scalar_lea.vmem %s15, %s1344
        %p1346 = pneg %p459
        %p1347 = pneg %p456
        %s1348 = sand.u32 %s63, 1
        %s1349 = scalar_lea.sflag [#allocation19], %s1348
        %s1350 = sand.u32 %s472, 1
        %s1351 = scalar_lea.vmem [#allocation18], %s1350
        %p1352 = pneg %p485
        %p1353 = pneg %p482
        %s1354 = sand.u32 %s63, 1
        %s1355 = scalar_lea.sflag [#allocation19], %s1354
        %s1356 = sand.u32 %s498, 1
        %s1357 = scalar_lea.vmem [#allocation20], %s1356
        %p1358 = pneg %p511
        %p1359 = pneg %p508
        %s1360 = sand.u32 %s63, 1
        %s1361 = scalar_lea.sflag [#allocation22], %s1360
        %s1362 = sand.u32 %s524, 1
        %s1363 = scalar_lea.vmem [#allocation21], %s1362
        %p1364 = pneg %p537
        %p1365 = pneg %p534
        %p1366 = scmp.lt.s32.totalorder %s63, 1
        %s1367 = scalar_select %p1366, %s63, 1
        %s1368 = smul.addr %s1367, 4
        %s1369 = smul.addr %s1368, 8
        %s1370 = scalar_lea.vmem %s19, %s1369
        %p1371 = pneg %p563
        %p1372 = pneg %p560
        %s1373 = sand.u32 %s63, 1
        %s1374 = scalar_lea.sflag [#allocation22], %s1373
        %s1375 = sand.u32 %s576, 1
        %s1376 = scalar_lea.vmem [#allocation23], %s1375
        %p1377 = pneg %p589
        %p1378 = pneg %p586
        %p1379 = scmp.lt.s32.totalorder %s63, 1
        %s1380 = scalar_select %p1379, %s63, 1
        %s1381 = smul.addr %s1380, 16
        %s1382 = smul.addr %s1381, 8
        %s1383 = scalar_lea.vmem %s21, %s1382
        %p1384 = pneg %p615
        %p1385 = pneg %p612
        %s1386 = sand.u32 %s63, 1
        %s1387 = scalar_lea.sflag [#allocation25], %s1386
        %s1388 = sand.u32 %s628, 1
        %s1389 = scalar_lea.vmem [#allocation24], %s1388
        %p1390 = pneg %p641
        %p1391 = pneg %p638
        %p1392 = pneg %p662
        %p1393 = pneg %p659
        %p1394 = pneg %p683
        %p1395 = pneg %p680
        %p1396 = pneg %p704
        %p1397 = pneg %p701
        %p1398 = pneg %p725
        %p1399 = pneg %p722
        %p1400 = pneg %p746
        %p1401 = pneg %p743
        %p1402 = scmp.lt.s32.totalorder %s63, 1
        %s1403 = scalar_select %p1402, %s63, 1
        %s1404 = smul.addr %s1403, 4
        %s1405 = smul.addr %s1404, 8
        %s1406 = scalar_lea.vmem %s5, %s1405
        %p1407 = scmp.lt.s32.totalorder %s63, 1
        %s1408 = scalar_select %p1407, %s63, 1
        %s1409 = smul.addr %s1408, 4
        %s1410 = smul.addr %s1409, 8
        %s1411 = scalar_lea.vmem %s7, %s1410
        %p1412 = scmp.lt.s32.totalorder %s63, 1
        %s1413 = scalar_select %p1412, %s63, 1
        %s1414 = smul.addr %s1413, 4
        %s1415 = smul.addr %s1414, 8
        %s1416 = scalar_lea.vmem %s11, %s1415
        %p1417 = scmp.lt.s32.totalorder %s63, 1
        %s1418 = scalar_select %p1417, %s63, 1
        %s1419 = smul.addr %s1418, 4
        %s1420 = smul.addr %s1419, 8
        %s1421 = scalar_lea.vmem %s13, %s1420
        %p1422 = scmp.lt.s32.totalorder %s63, 1
        %s1423 = scalar_select %p1422, %s63, 1
        %s1424 = smul.addr %s1423, 4
        %s1425 = smul.addr %s1424, 8
        %s1426 = scalar_lea.vmem %s15, %s1425
        %p1427 = scmp.lt.s32.totalorder %s63, 1
        %s1428 = scalar_select %p1427, %s63, 1
        %s1429 = smul.addr %s1428, 4
        %s1430 = smul.addr %s1429, 8
        %s1431 = scalar_lea.vmem %s19, %s1430
        %p1432 = scmp.lt.s32.totalorder %s63, 1
        %s1433 = scalar_select %p1432, %s63, 1
        %s1434 = smul.addr %s1433, 16
        %s1435 = smul.addr %s1434, 8
        %s1436 = scalar_lea.vmem %s21, %s1435
        %p1437 = scmp.eq.s32.totalorder %s63, 0
        // Predicated region
        $region201: #{model_forward.3} parent=127 // pred_check
          %p1438 = pneg %p1437
        $region202: #{model_forward.3} parent=127 // pred_check_branch
          %1440 = sbr.rel (%p1438) target = $region204
        $region203: #{model_forward.3} parent=127 // pred_region
          %v1441 = vld [vmem:[#allocation3] sm:$0x1]
          %v1442 = vld [vmem:[%s1] sm:$0xff]
          %v1444 = vperm.slane %v1441, 0
          %v1446 = vadd.f32 %v1444, %v1442
          %vm1447 = vcmask 261120
          %1448 = vst.msk [vmem:[#allocation2] sm:$0xff] %vm1447, %v1446
          %1449 = vst.msk [vmem:[#allocation2 + $0x8] sm:$0xff] %vm1447, %v1446
        $region204: #{model_forward.3} parent=127 // pred_fallthru
          _
        %v1450 = vld [vmem:[#allocation2] sm:$0xff]
        %v1451 = vld [vmem:[#allocation2 + $0x8] sm:$0xff]
        %v1452 = vld [vmem:[%s2] sm:$0xff]
        %v1453 = vld [vmem:[%s2 + $0x8] sm:$0xff]
        %v1454 = vld [vmem:[%s1125] sm:$0x1]
        %v1455 = vld [vmem:[%s1134] sm:$0x1]
        %vm1456 = vcmask 261120
        %v1457 = vsel %vm1456, %v1450, 0.0
        %1458 = vadd.xlane.f32.xlu0 %v1457
        %v1459 = vpop.xlane.xlu0 %1458
        %v1460 = vsel %vm1456, %v1451, 0.0
        %1461 = vadd.xlane.f32.xlu0 %v1460
        %v1462 = vpop.xlane.xlu0 %1461
        %v1463 = vrcp.pop 32.0
        %v1464 = vmul.f32 32.0, %v1463
        %v1465 = vsub.f32 1.0, %v1464
        %v1466 = vmul.f32 %v1463, %v1465
        %v1467 = vadd.f32 %v1463, %v1466
        %vm1468 = vweird.f32 %v1463
        %v1469 = vsel %vm1468, %v1463, %v1467
        %v1470 = vmul.f32 %v1459, %v1469
        %v1471 = vmul.f32 %v1462, %v1469
        %v1472 = vsub.f32 %v1450, %v1470
        %v1473 = vsub.f32 %v1451, %v1471
        %v1474 = vmul.f32 %v1472, %v1472
        %v1475 = vmul.f32 %v1473, %v1473
        %v1476 = vsel %vm1456, %v1474, 0.0
        %1477 = vadd.xlane.f32.xlu0 %v1476
        %v1478 = vpop.xlane.xlu0 %1477
        %v1479 = vsel %vm1456, %v1475, 0.0
        %1480 = vadd.xlane.f32.xlu0 %v1479
        %v1481 = vpop.xlane.xlu0 %1480
        %v1482 = vmul.f32 %v1478, %v1469
        %v1483 = vmul.f32 %v1481, %v1469
        %v1484 = vadd.f32 %v1482, 1e-05
        %v1485 = vadd.f32 %v1483, 1e-05
        %v1486 = vrsqrt.pop %v1484
        %v1487 = vmul.f32 %v1486, %v1484
        %v1488 = vmul.f32 %v1487, %v1486
        %v1489 = vmul.f32 0.5, %v1488
        %v1490 = vsub.f32 1.5, %v1489
        %v1491 = vmul.f32 %v1486, %v1490
        %vm1492 = vweird.f32 %v1484
        %vm1493 = vweird.f32 %v1486
        %vm1494 = vmor %vm1492, %vm1493
        %v1495 = vsel %vm1494, %v1486, %v1491
        %v1496 = vrsqrt.pop %v1485
        %v1497 = vmul.f32 %v1496, %v1485
        %v1498 = vmul.f32 %v1497, %v1496
        %v1499 = vmul.f32 0.5, %v1498
        %v1500 = vsub.f32 1.5, %v1499
        %v1501 = vmul.f32 %v1496, %v1500
        %vm1502 = vweird.f32 %v1485
        %vm1503 = vweird.f32 %v1496
        %vm1504 = vmor %vm1502, %vm1503
        %v1505 = vsel %vm1504, %v1496, %v1501
        %v1506 = vmul.f32 %v1472, %v1495
        %v1507 = vmul.f32 %v1473, %v1505
        %v1509 = vperm.slane %v1454, 0
        %v1511 = vmul.f32 %v1506, %v1509
        %v1512 = vmul.f32 %v1507, %v1509
        %v1514 = vperm.slane %v1455, 0
        %v1516 = vadd.f32 %v1511, %v1514
        %v1517 = vadd.f32 %v1512, %v1514
        %v1518 = vld [vmem:[%s1406] sm:$0xff]
        %v1519 = vld [vmem:[%s1406 + $0x8] sm:$0xff]
        %v1520 = vld [vmem:[%s1406 + $0x10] sm:$0xff]
        %v1521 = vld [vmem:[%s1406 + $0x18] sm:$0xff]
        %v1522 = vld [vmem:[%s1143] sm:$0x1]
        %v1524 = vperm.slane %v1522, 0
        %v1527 = vsel %vm1456, %v1516, 0
        %v1530 = vsel %vm1456, %v1517, 0
        %1532 = vmatpush.msra.mxu0 0.0
        %1533 = vmatpush.msra.mxu0 0.0
        %1534 = vmatpush.msra.mxu0 0.0
        %1535 = vmatpush.msra.mxu0 0.0
        %1536 = vmatpush.msra.mxu0 0.0
        %1537 = vmatpush.msra.mxu0 0.0
        %1538 = vmatpush.msra.mxu0 0.0
        %1539 = vmatpush.msra.mxu0 0.0
        %1540 = vmatpush.msra.mxu0 0.0
        %1541 = vmatpush.msra.mxu0 0.0
        %1542 = vmatpush.msra.mxu0 0.0
        %1543 = vmatpush.msra.mxu0 0.0
        %1544 = vmatpush.msra.mxu0 %v1521
        %1545 = vmatpush.msra.mxu0 %v1520
        %1546 = vmatpush.msra.mxu0 %v1519
        %1547 = vmatpush.msra.mxu0 %v1518
        %1548 = vmatmul.f32.gmra.mxu0 %v1527
        %v1549 = vpop.f32.mrf.mxu0
        %v1550 = vadd.f32 %v1524, %v1549
        %1551 = vmatmul.f32.gmra.mxu0 %v1530
        %v1552 = vpop.f32.mrf.mxu0
        %v1553 = vadd.f32 %v1524, %v1552
        %1554 = vdwg.mxu0
        %v1555 = vlaneseq
        %v1556 = vshrl.u32 %v1555, 7
        %v1557 = vlaneseq
        %v1558 = vand.u32 %v1557, 127
        %vm1559 = vcmp.le.s32.totalorder %v1558, %v1556
        %v1560 = vsel %vm1559, 0.0, -1e+30
        %1562 = vrot.lane.b32.xlu0 %v1550, 96
        %v1563 = vpop.permute.xlu0 %1562
        %vm1564 = vcmask 64512
        %v1565 = vsel %vm1564, %v1550, 0
        %v1567 = vsel %vm1564, %v1563, 0
        %1569 = vmatpush.xpose.msra.mxu0 0.0
        %1570 = vmatpush.xpose.msra.mxu0 0.0
        %1571 = vmatpush.xpose.msra.mxu0 0.0
        %1572 = vmatpush.xpose.msra.mxu0 0.0
        %1573 = vmatpush.xpose.msra.mxu0 0.0
        %1574 = vmatpush.xpose.msra.mxu0 0.0
        %1575 = vmatpush.xpose.msra.mxu0 0.0
        %1576 = vmatpush.xpose.msra.mxu0 0.0
        %1577 = vmatpush.xpose.msra.mxu0 0.0
        %1578 = vmatpush.xpose.msra.mxu0 0.0
        %1579 = vmatpush.xpose.msra.mxu0 0.0
        %1580 = vmatpush.xpose.msra.mxu0 0.0
        %1581 = vmatpush.xpose.msra.mxu0 0.0
        %1582 = vmatpush.xpose.msra.mxu0 0.0
        %1583 = vmatpush.xpose.msra.mxu0 0.0
        %1584 = vmatpush.xpose.msra.mxu0 %v1567
        %1585 = vmatmul.f32.gmra.mxu0 %v1565
        %v1586 = vpop.f32.mrf.mxu0
        %v1587 = vadd.f32 0.0, %v1586
        %1588 = vdwg.mxu0
        %1590 = vrot.lane.b32.xlu0 %v1553, 96
        %v1591 = vpop.permute.xlu0 %1590
        %v1592 = vsel %vm1564, %v1553, 0
        %v1594 = vsel %vm1564, %v1591, 0
        %1596 = vmatpush.xpose.msra.mxu0 0.0
        %1597 = vmatpush.xpose.msra.mxu0 0.0
        %1598 = vmatpush.xpose.msra.mxu0 0.0
        %1599 = vmatpush.xpose.msra.mxu0 0.0
        %1600 = vmatpush.xpose.msra.mxu0 0.0
        %1601 = vmatpush.xpose.msra.mxu0 0.0
        %1602 = vmatpush.xpose.msra.mxu0 0.0
        %1603 = vmatpush.xpose.msra.mxu0 0.0
        %1604 = vmatpush.xpose.msra.mxu0 0.0
        %1605 = vmatpush.xpose.msra.mxu0 0.0
        %1606 = vmatpush.xpose.msra.mxu0 0.0
        %1607 = vmatpush.xpose.msra.mxu0 0.0
        %1608 = vmatpush.xpose.msra.mxu0 0.0
        %1609 = vmatpush.xpose.msra.mxu0 0.0
        %1610 = vmatpush.xpose.msra.mxu0 0.0
        %1611 = vmatpush.xpose.msra.mxu0 %v1594
        %1612 = vmatmul.f32.gmra.mxu0 %v1592
        %v1613 = vpop.f32.mrf.mxu0
        %v1614 = vadd.f32 0.0, %v1613
        %1615 = vdwg.mxu0
        %v1616 = vmul.f32 %v1587, 0.35355338
        %v1617 = vmul.f32 %v1614, 0.35355338
        %v1618 = vadd.f32 %v1616, %v1560
        %v1619 = vadd.f32 %v1617, %v1560
        %v1620 = vsel %vm1564, %v1618, -inf
        %1621 = vmax.xlane.f32.xlu0 %v1620
        %v1622 = vpop.xlane.xlu0 %1621
        %v1623 = vsel %vm1564, %v1619, -inf
        %1624 = vmax.xlane.f32.xlu0 %v1623
        %v1625 = vpop.xlane.xlu0 %1624
        %v1626 = vsub.f32 %v1618, %v1622
        %v1627 = vsub.f32 %v1619, %v1625
        %v1628 = vmul.f32 %v1626, 1.442695
        %v1629 = vpow.pop %v1628
        %v1630 = vmul.f32 %v1627, 1.442695
        %v1631 = vpow.pop %v1630
        %v1632 = vsel %vm1564, %v1629, 0.0
        %1633 = vadd.xlane.f32.xlu0 %v1632
        %v1634 = vpop.xlane.xlu0 %1633
        %v1635 = vsel %vm1564, %v1631, 0.0
        %1636 = vadd.xlane.f32.xlu0 %v1635
        %v1637 = vpop.xlane.xlu0 %1636
        %v1638 = vrcp.pop %v1634
        %v1639 = vrcp.pop %v1637
        %v1640 = vmul.f32 %v1629, %v1638
        %v1641 = vmul.f32 %v1631, %v1639
        %1642 = vrot.lane.b32.xlu0 %v1550, 64
        %v1643 = vpop.permute.xlu0 %1642
        %v1646 = vsel %vm1564, %v1640, 0
        %1648 = vmatpush.msra.mxu0 0.0
        %1649 = vmatpush.msra.mxu0 0.0
        %1650 = vmatpush.msra.mxu0 0.0
        %1651 = vmatpush.msra.mxu0 0.0
        %1652 = vmatpush.msra.mxu0 0.0
        %1653 = vmatpush.msra.mxu0 0.0
        %1654 = vmatpush.msra.mxu0 0.0
        %1655 = vmatpush.msra.mxu0 0.0
        %1656 = vmatpush.msra.mxu0 0.0
        %1657 = vmatpush.msra.mxu0 0.0
        %1658 = vmatpush.msra.mxu0 0.0
        %1659 = vmatpush.msra.mxu0 0.0
        %1660 = vmatpush.msra.mxu0 0.0
        %1661 = vmatpush.msra.mxu0 0.0
        %1662 = vmatpush.msra.mxu0 0.0
        %1663 = vmatpush.msra.mxu0 %v1643
        %1664 = vmatmul.f32.gmra.mxu0 %v1646
        %v1665 = vpop.f32.mrf.mxu0
        %v1666 = vadd.f32 0.0, %v1665
        %1667 = vdwg.mxu0
        %1668 = vrot.lane.b32.xlu0 %v1553, 64
        %v1669 = vpop.permute.xlu0 %1668
        %v1672 = vsel %vm1564, %v1641, 0
        %1674 = vmatpush.msra.mxu0 0.0
        %1675 = vmatpush.msra.mxu0 0.0
        %1676 = vmatpush.msra.mxu0 0.0
        %1677 = vmatpush.msra.mxu0 0.0
        %1678 = vmatpush.msra.mxu0 0.0
        %1679 = vmatpush.msra.mxu0 0.0
        %1680 = vmatpush.msra.mxu0 0.0
        %1681 = vmatpush.msra.mxu0 0.0
        %1682 = vmatpush.msra.mxu0 0.0
        %1683 = vmatpush.msra.mxu0 0.0
        %1684 = vmatpush.msra.mxu0 0.0
        %1685 = vmatpush.msra.mxu0 0.0
        %1686 = vmatpush.msra.mxu0 0.0
        %1687 = vmatpush.msra.mxu0 0.0
        %1688 = vmatpush.msra.mxu0 0.0
        %1689 = vmatpush.msra.mxu0 %v1669
        %1690 = vmatmul.f32.gmra.mxu0 %v1672
        %v1691 = vpop.f32.mrf.mxu0
        %v1692 = vadd.f32 0.0, %v1691
        %1693 = vdwg.mxu0
        %1694 = vrot.lane.b32.xlu0 %v1550, 120
        %v1695 = vpop.permute.xlu0 %1694
        %1696 = vrot.lane.b32.xlu0 %v1550, 88
        %v1697 = vpop.permute.xlu0 %1696
        %v1698 = vsel %vm1564, %v1695, 0
        %v1700 = vsel %vm1564, %v1697, 0
        %1702 = vmatpush.xpose.msra.mxu0 0.0
        %1703 = vmatpush.xpose.msra.mxu0 0.0
        %1704 = vmatpush.xpose.msra.mxu0 0.0
        %1705 = vmatpush.xpose.msra.mxu0 0.0
        %1706 = vmatpush.xpose.msra.mxu0 0.0
        %1707 = vmatpush.xpose.msra.mxu0 0.0
        %1708 = vmatpush.xpose.msra.mxu0 0.0
        %1709 = vmatpush.xpose.msra.mxu0 0.0
        %1710 = vmatpush.xpose.msra.mxu0 0.0
        %1711 = vmatpush.xpose.msra.mxu0 0.0
        %1712 = vmatpush.xpose.msra.mxu0 0.0
        %1713 = vmatpush.xpose.msra.mxu0 0.0
        %1714 = vmatpush.xpose.msra.mxu0 0.0
        %1715 = vmatpush.xpose.msra.mxu0 0.0
        %1716 = vmatpush.xpose.msra.mxu0 0.0
        %1717 = vmatpush.xpose.msra.mxu0 %v1700
        %1718 = vmatmul.f32.gmra.mxu0 %v1698
        %v1719 = vpop.f32.mrf.mxu0
        %v1720 = vadd.f32 0.0, %v1719
        %1721 = vdwg.mxu0
        %1722 = vrot.lane.b32.xlu0 %v1553, 120
        %v1723 = vpop.permute.xlu0 %1722
        %1724 = vrot.lane.b32.xlu0 %v1553, 88
        %v1725 = vpop.permute.xlu0 %1724
        %v1726 = vsel %vm1564, %v1723, 0
        %v1728 = vsel %vm1564, %v1725, 0
        %1730 = vmatpush.xpose.msra.mxu0 0.0
        %1731 = vmatpush.xpose.msra.mxu0 0.0
        %1732 = vmatpush.xpose.msra.mxu0 0.0
        %1733 = vmatpush.xpose.msra.mxu0 0.0
        %1734 = vmatpush.xpose.msra.mxu0 0.0
        %1735 = vmatpush.xpose.msra.mxu0 0.0
        %1736 = vmatpush.xpose.msra.mxu0 0.0
        %1737 = vmatpush.xpose.msra.mxu0 0.0
        %1738 = vmatpush.xpose.msra.mxu0 0.0
        %1739 = vmatpush.xpose.msra.mxu0 0.0
        %1740 = vmatpush.xpose.msra.mxu0 0.0
        %1741 = vmatpush.xpose.msra.mxu0 0.0
        %1742 = vmatpush.xpose.msra.mxu0 0.0
        %1743 = vmatpush.xpose.msra.mxu0 0.0
        %1744 = vmatpush.xpose.msra.mxu0 0.0
        %1745 = vmatpush.xpose.msra.mxu0 %v1728
        %1746 = vmatmul.f32.gmra.mxu0 %v1726
        %v1747 = vpop.f32.mrf.mxu0
        %v1748 = vadd.f32 0.0, %v1747
        %1749 = vdwg.mxu0
        %v1750 = vmul.f32 %v1720, 0.35355338
        %v1751 = vmul.f32 %v1748, 0.35355338
        %v1752 = vadd.f32 %v1750, %v1560
        %v1753 = vadd.f32 %v1751, %v1560
        %v1754 = vsel %vm1564, %v1752, -inf
        %1755 = vmax.xlane.f32.xlu0 %v1754
        %v1756 = vpop.xlane.xlu0 %1755
        %v1757 = vsel %vm1564, %v1753, -inf
        %1758 = vmax.xlane.f32.xlu0 %v1757
        %v1759 = vpop.xlane.xlu0 %1758
        %v1760 = vsub.f32 %v1752, %v1756
        %v1761 = vsub.f32 %v1753, %v1759
        %v1762 = vmul.f32 %v1760, 1.442695
        %v1763 = vpow.pop %v1762
        %v1764 = vmul.f32 %v1761, 1.442695
        %v1765 = vpow.pop %v1764
        %v1766 = vsel %vm1564, %v1763, 0.0
        %1767 = vadd.xlane.f32.xlu0 %v1766
        %v1768 = vpop.xlane.xlu0 %1767
        %v1769 = vsel %vm1564, %v1765, 0.0
        %1770 = vadd.xlane.f32.xlu0 %v1769
        %v1771 = vpop.xlane.xlu0 %1770
        %v1772 = vrcp.pop %v1768
        %v1773 = vrcp.pop %v1771
        %v1774 = vmul.f32 %v1763, %v1772
        %v1775 = vmul.f32 %v1765, %v1773
        %1776 = vrot.lane.b32.xlu0 %v1550, 56
        %v1777 = vpop.permute.xlu0 %1776
        %v1780 = vsel %vm1564, %v1774, 0
        %1782 = vmatpush.msra.mxu0 0.0
        %1783 = vmatpush.msra.mxu0 0.0
        %1784 = vmatpush.msra.mxu0 0.0
        %1785 = vmatpush.msra.mxu0 0.0
        %1786 = vmatpush.msra.mxu0 0.0
        %1787 = vmatpush.msra.mxu0 0.0
        %1788 = vmatpush.msra.mxu0 0.0
        %1789 = vmatpush.msra.mxu0 0.0
        %1790 = vmatpush.msra.mxu0 0.0
        %1791 = vmatpush.msra.mxu0 0.0
        %1792 = vmatpush.msra.mxu0 0.0
        %1793 = vmatpush.msra.mxu0 0.0
        %1794 = vmatpush.msra.mxu0 0.0
        %1795 = vmatpush.msra.mxu0 0.0
        %1796 = vmatpush.msra.mxu0 0.0
        %1797 = vmatpush.msra.mxu0 %v1777
        %1798 = vmatmul.f32.gmra.mxu0 %v1780
        %v1799 = vpop.f32.mrf.mxu0
        %v1800 = vadd.f32 0.0, %v1799
        %1801 = vdwg.mxu0
        %1802 = vrot.lane.b32.xlu0 %v1553, 56
        %v1803 = vpop.permute.xlu0 %1802
        %v1806 = vsel %vm1564, %v1775, 0
        %1808 = vmatpush.msra.mxu0 0.0
        %1809 = vmatpush.msra.mxu0 0.0
        %1810 = vmatpush.msra.mxu0 0.0
        %1811 = vmatpush.msra.mxu0 0.0
        %1812 = vmatpush.msra.mxu0 0.0
        %1813 = vmatpush.msra.mxu0 0.0
        %1814 = vmatpush.msra.mxu0 0.0
        %1815 = vmatpush.msra.mxu0 0.0
        %1816 = vmatpush.msra.mxu0 0.0
        %1817 = vmatpush.msra.mxu0 0.0
        %1818 = vmatpush.msra.mxu0 0.0
        %1819 = vmatpush.msra.mxu0 0.0
        %1820 = vmatpush.msra.mxu0 0.0
        %1821 = vmatpush.msra.mxu0 0.0
        %1822 = vmatpush.msra.mxu0 0.0
        %1823 = vmatpush.msra.mxu0 %v1803
        %1824 = vmatmul.f32.gmra.mxu0 %v1806
        %v1825 = vpop.f32.mrf.mxu0
        %v1826 = vadd.f32 0.0, %v1825
        %1827 = vdwg.mxu0
        %1828 = vrot.lane.b32.xlu0 %v1550, 112
        %v1829 = vpop.permute.xlu0 %1828
        %1830 = vrot.lane.b32.xlu0 %v1550, 80
        %v1831 = vpop.permute.xlu0 %1830
        %v1832 = vsel %vm1564, %v1829, 0
        %v1834 = vsel %vm1564, %v1831, 0
        %1836 = vmatpush.xpose.msra.mxu0 0.0
        %1837 = vmatpush.xpose.msra.mxu0 0.0
        %1838 = vmatpush.xpose.msra.mxu0 0.0
        %1839 = vmatpush.xpose.msra.mxu0 0.0
        %1840 = vmatpush.xpose.msra.mxu0 0.0
        %1841 = vmatpush.xpose.msra.mxu0 0.0
        %1842 = vmatpush.xpose.msra.mxu0 0.0
        %1843 = vmatpush.xpose.msra.mxu0 0.0
        %1844 = vmatpush.xpose.msra.mxu0 0.0
        %1845 = vmatpush.xpose.msra.mxu0 0.0
        %1846 = vmatpush.xpose.msra.mxu0 0.0
        %1847 = vmatpush.xpose.msra.mxu0 0.0
        %1848 = vmatpush.xpose.msra.mxu0 0.0
        %1849 = vmatpush.xpose.msra.mxu0 0.0
        %1850 = vmatpush.xpose.msra.mxu0 0.0
        %1851 = vmatpush.xpose.msra.mxu0 %v1834
        %1852 = vmatmul.f32.gmra.mxu0 %v1832
        %v1853 = vpop.f32.mrf.mxu0
        %v1854 = vadd.f32 0.0, %v1853
        %1855 = vdwg.mxu0
        %1856 = vrot.lane.b32.xlu0 %v1553, 112
        %v1857 = vpop.permute.xlu0 %1856
        %1858 = vrot.lane.b32.xlu0 %v1553, 80
        %v1859 = vpop.permute.xlu0 %1858
        %v1860 = vsel %vm1564, %v1857, 0
        %v1862 = vsel %vm1564, %v1859, 0
        %1864 = vmatpush.xpose.msra.mxu0 0.0
        %1865 = vmatpush.xpose.msra.mxu0 0.0
        %1866 = vmatpush.xpose.msra.mxu0 0.0
        %1867 = vmatpush.xpose.msra.mxu0 0.0
        %1868 = vmatpush.xpose.msra.mxu0 0.0
        %1869 = vmatpush.xpose.msra.mxu0 0.0
        %1870 = vmatpush.xpose.msra.mxu0 0.0
        %1871 = vmatpush.xpose.msra.mxu0 0.0
        %1872 = vmatpush.xpose.msra.mxu0 0.0
        %1873 = vmatpush.xpose.msra.mxu0 0.0
        %1874 = vmatpush.xpose.msra.mxu0 0.0
        %1875 = vmatpush.xpose.msra.mxu0 0.0
        %1876 = vmatpush.xpose.msra.mxu0 0.0
        %1877 = vmatpush.xpose.msra.mxu0 0.0
        %1878 = vmatpush.xpose.msra.mxu0 0.0
        %1879 = vmatpush.xpose.msra.mxu0 %v1862
        %1880 = vmatmul.f32.gmra.mxu0 %v1860
        %v1881 = vpop.f32.mrf.mxu0
        %v1882 = vadd.f32 0.0, %v1881
        %1883 = vdwg.mxu0
        %v1884 = vmul.f32 %v1854, 0.35355338
        %v1885 = vmul.f32 %v1882, 0.35355338
        %v1886 = vadd.f32 %v1884, %v1560
        %v1887 = vadd.f32 %v1885, %v1560
        %v1888 = vsel %vm1564, %v1886, -inf
        %1889 = vmax.xlane.f32.xlu0 %v1888
        %v1890 = vpop.xlane.xlu0 %1889
        %v1891 = vsel %vm1564, %v1887, -inf
        %1892 = vmax.xlane.f32.xlu0 %v1891
        %v1893 = vpop.xlane.xlu0 %1892
        %v1894 = vsub.f32 %v1886, %v1890
        %v1895 = vsub.f32 %v1887, %v1893
        %v1896 = vmul.f32 %v1894, 1.442695
        %v1897 = vpow.pop %v1896
        %v1898 = vmul.f32 %v1895, 1.442695
        %v1899 = vpow.pop %v1898
        %v1900 = vsel %vm1564, %v1897, 0.0
        %1901 = vadd.xlane.f32.xlu0 %v1900
        %v1902 = vpop.xlane.xlu0 %1901
        %v1903 = vsel %vm1564, %v1899, 0.0
        %1904 = vadd.xlane.f32.xlu0 %v1903
        %v1905 = vpop.xlane.xlu0 %1904
        %v1906 = vrcp.pop %v1902
        %v1907 = vrcp.pop %v1905
        %v1908 = vmul.f32 %v1897, %v1906
        %v1909 = vmul.f32 %v1899, %v1907
        %1910 = vrot.lane.b32.xlu0 %v1550, 48
        %v1911 = vpop.permute.xlu0 %1910
        %v1914 = vsel %vm1564, %v1908, 0
        %1916 = vmatpush.msra.mxu0 0.0
        %1917 = vmatpush.msra.mxu0 0.0
        %1918 = vmatpush.msra.mxu0 0.0
        %1919 = vmatpush.msra.mxu0 0.0
        %1920 = vmatpush.msra.mxu0 0.0
        %1921 = vmatpush.msra.mxu0 0.0
        %1922 = vmatpush.msra.mxu0 0.0
        %1923 = vmatpush.msra.mxu0 0.0
        %1924 = vmatpush.msra.mxu0 0.0
        %1925 = vmatpush.msra.mxu0 0.0
        %1926 = vmatpush.msra.mxu0 0.0
        %1927 = vmatpush.msra.mxu0 0.0
        %1928 = vmatpush.msra.mxu0 0.0
        %1929 = vmatpush.msra.mxu0 0.0
        %1930 = vmatpush.msra.mxu0 0.0
        %1931 = vmatpush.msra.mxu0 %v1911
        %1932 = vmatmul.f32.gmra.mxu0 %v1914
        %v1933 = vpop.f32.mrf.mxu0
        %v1934 = vadd.f32 0.0, %v1933
        %1935 = vdwg.mxu0
        %1936 = vrot.lane.b32.xlu0 %v1553, 48
        %v1937 = vpop.permute.xlu0 %1936
        %v1940 = vsel %vm1564, %v1909, 0
        %1942 = vmatpush.msra.mxu0 0.0
        %1943 = vmatpush.msra.mxu0 0.0
        %1944 = vmatpush.msra.mxu0 0.0
        %1945 = vmatpush.msra.mxu0 0.0
        %1946 = vmatpush.msra.mxu0 0.0
        %1947 = vmatpush.msra.mxu0 0.0
        %1948 = vmatpush.msra.mxu0 0.0
        %1949 = vmatpush.msra.mxu0 0.0
        %1950 = vmatpush.msra.mxu0 0.0
        %1951 = vmatpush.msra.mxu0 0.0
        %1952 = vmatpush.msra.mxu0 0.0
        %1953 = vmatpush.msra.mxu0 0.0
        %1954 = vmatpush.msra.mxu0 0.0
        %1955 = vmatpush.msra.mxu0 0.0
        %1956 = vmatpush.msra.mxu0 0.0
        %1957 = vmatpush.msra.mxu0 %v1937
        %1958 = vmatmul.f32.gmra.mxu0 %v1940
        %v1959 = vpop.f32.mrf.mxu0
        %v1960 = vadd.f32 0.0, %v1959
        %1961 = vdwg.mxu0
        %1962 = vrot.lane.b32.xlu0 %v1550, 104
        %v1963 = vpop.permute.xlu0 %1962
        %1964 = vrot.lane.b32.xlu0 %v1550, 72
        %v1965 = vpop.permute.xlu0 %1964
        %v1966 = vsel %vm1564, %v1963, 0
        %v1968 = vsel %vm1564, %v1965, 0
        %1970 = vmatpush.xpose.msra.mxu0 0.0
        %1971 = vmatpush.xpose.msra.mxu0 0.0
        %1972 = vmatpush.xpose.msra.mxu0 0.0
        %1973 = vmatpush.xpose.msra.mxu0 0.0
        %1974 = vmatpush.xpose.msra.mxu0 0.0
        %1975 = vmatpush.xpose.msra.mxu0 0.0
        %1976 = vmatpush.xpose.msra.mxu0 0.0
        %1977 = vmatpush.xpose.msra.mxu0 0.0
        %1978 = vmatpush.xpose.msra.mxu0 0.0
        %1979 = vmatpush.xpose.msra.mxu0 0.0
        %1980 = vmatpush.xpose.msra.mxu0 0.0
        %1981 = vmatpush.xpose.msra.mxu0 0.0
        %1982 = vmatpush.xpose.msra.mxu0 0.0
        %1983 = vmatpush.xpose.msra.mxu0 0.0
        %1984 = vmatpush.xpose.msra.mxu0 0.0
        %1985 = vmatpush.xpose.msra.mxu0 %v1968
        %1986 = vmatmul.f32.gmra.mxu0 %v1966
        %v1987 = vpop.f32.mrf.mxu0
        %v1988 = vadd.f32 0.0, %v1987
        %1989 = vdwg.mxu0
        %1990 = vrot.lane.b32.xlu0 %v1553, 104
        %v1991 = vpop.permute.xlu0 %1990
        %1992 = vrot.lane.b32.xlu0 %v1553, 72
        %v1993 = vpop.permute.xlu0 %1992
        %v1994 = vsel %vm1564, %v1991, 0
        %v1996 = vsel %vm1564, %v1993, 0
        %1998 = vmatpush.xpose.msra.mxu0 0.0
        %1999 = vmatpush.xpose.msra.mxu0 0.0
        %2000 = vmatpush.xpose.msra.mxu0 0.0
        %2001 = vmatpush.xpose.msra.mxu0 0.0
        %2002 = vmatpush.xpose.msra.mxu0 0.0
        %2003 = vmatpush.xpose.msra.mxu0 0.0
        %2004 = vmatpush.xpose.msra.mxu0 0.0
        %2005 = vmatpush.xpose.msra.mxu0 0.0
        %2006 = vmatpush.xpose.msra.mxu0 0.0
        %2007 = vmatpush.xpose.msra.mxu0 0.0
        %2008 = vmatpush.xpose.msra.mxu0 0.0
        %2009 = vmatpush.xpose.msra.mxu0 0.0
        %2010 = vmatpush.xpose.msra.mxu0 0.0
        %2011 = vmatpush.xpose.msra.mxu0 0.0
        %2012 = vmatpush.xpose.msra.mxu0 0.0
        %2013 = vmatpush.xpose.msra.mxu0 %v1996
        %2014 = vmatmul.f32.gmra.mxu0 %v1994
        %v2015 = vpop.f32.mrf.mxu0
        %v2016 = vadd.f32 0.0, %v2015
        %2017 = vdwg.mxu0
        %v2018 = vmul.f32 %v1988, 0.35355338
        %v2019 = vmul.f32 %v2016, 0.35355338
        %v2020 = vadd.f32 %v2018, %v1560
        %v2021 = vadd.f32 %v2019, %v1560
        %v2022 = vsel %vm1564, %v2020, -inf
        %2023 = vmax.xlane.f32.xlu0 %v2022
        %v2024 = vpop.xlane.xlu0 %2023
        %v2025 = vsel %vm1564, %v2021, -inf
        %2026 = vmax.xlane.f32.xlu0 %v2025
        %v2027 = vpop.xlane.xlu0 %2026
        %v2028 = vsub.f32 %v2020, %v2024
        %v2029 = vsub.f32 %v2021, %v2027
        %v2030 = vmul.f32 %v2028, 1.442695
        %v2031 = vpow.pop %v2030
        %v2032 = vmul.f32 %v2029, 1.442695
        %v2033 = vpow.pop %v2032
        %v2034 = vsel %vm1564, %v2031, 0.0
        %2035 = vadd.xlane.f32.xlu0 %v2034
        %v2036 = vpop.xlane.xlu0 %2035
        %v2037 = vsel %vm1564, %v2033, 0.0
        %2038 = vadd.xlane.f32.xlu0 %v2037
        %v2039 = vpop.xlane.xlu0 %2038
        %v2040 = vrcp.pop %v2036
        %v2041 = vrcp.pop %v2039
        %v2042 = vmul.f32 %v2031, %v2040
        %v2043 = vmul.f32 %v2033, %v2041
        %2044 = vrot.lane.b32.xlu0 %v1550, 40
        %v2045 = vpop.permute.xlu0 %2044
        %v2048 = vsel %vm1564, %v2042, 0
        %2050 = vmatpush.msra.mxu0 0.0
        %2051 = vmatpush.msra.mxu0 0.0
        %2052 = vmatpush.msra.mxu0 0.0
        %2053 = vmatpush.msra.mxu0 0.0
        %2054 = vmatpush.msra.mxu0 0.0
        %2055 = vmatpush.msra.mxu0 0.0
        %2056 = vmatpush.msra.mxu0 0.0
        %2057 = vmatpush.msra.mxu0 0.0
        %2058 = vmatpush.msra.mxu0 0.0
        %2059 = vmatpush.msra.mxu0 0.0
        %2060 = vmatpush.msra.mxu0 0.0
        %2061 = vmatpush.msra.mxu0 0.0
        %2062 = vmatpush.msra.mxu0 0.0
        %2063 = vmatpush.msra.mxu0 0.0
        %2064 = vmatpush.msra.mxu0 0.0
        %2065 = vmatpush.msra.mxu0 %v2045
        %2066 = vmatmul.f32.gmra.mxu0 %v2048
        %v2067 = vpop.f32.mrf.mxu0
        %v2068 = vadd.f32 0.0, %v2067
        %2069 = vdwg.mxu0
        %2070 = vrot.lane.b32.xlu0 %v1553, 40
        %v2071 = vpop.permute.xlu0 %2070
        %v2074 = vsel %vm1564, %v2043, 0
        %2076 = vmatpush.msra.mxu0 0.0
        %2077 = vmatpush.msra.mxu0 0.0
        %2078 = vmatpush.msra.mxu0 0.0
        %2079 = vmatpush.msra.mxu0 0.0
        %2080 = vmatpush.msra.mxu0 0.0
        %2081 = vmatpush.msra.mxu0 0.0
        %2082 = vmatpush.msra.mxu0 0.0
        %2083 = vmatpush.msra.mxu0 0.0
        %2084 = vmatpush.msra.mxu0 0.0
        %2085 = vmatpush.msra.mxu0 0.0
        %2086 = vmatpush.msra.mxu0 0.0
        %2087 = vmatpush.msra.mxu0 0.0
        %2088 = vmatpush.msra.mxu0 0.0
        %2089 = vmatpush.msra.mxu0 0.0
        %2090 = vmatpush.msra.mxu0 0.0
        %2091 = vmatpush.msra.mxu0 %v2071
        %2092 = vmatmul.f32.gmra.mxu0 %v2074
        %v2093 = vpop.f32.mrf.mxu0
        %v2094 = vadd.f32 0.0, %v2093
        %2095 = vdwg.mxu0
        %2098 = vrot.lane.b32.xlu0 %v1800, 8
        %v2099 = vpop.permute.xlu0 %2098
        %2100 = vrot.lane.b32.xlu0 %v1826, 8
        %v2101 = vpop.permute.xlu0 %2100
        %2106 = vrot.lane.b32.xlu0 %v1934, 16
        %v2107 = vpop.permute.xlu0 %2106
        %2108 = vrot.lane.b32.xlu0 %v1960, 16
        %v2109 = vpop.permute.xlu0 %2108
        %2114 = vrot.lane.b32.xlu0 %v2068, 24
        %v2115 = vpop.permute.xlu0 %2114
        %2116 = vrot.lane.b32.xlu0 %v2094, 24
        %v2117 = vpop.permute.xlu0 %2116
        %v2120 = vsel %vm1564, %v1666, %v2099
        %v2121 = vsel %vm1564, %v1692, %v2101
        %vm2122 = vcmask 130048
        %v2123 = vsel %vm2122, %v2120, %v2107
        %v2124 = vsel %vm2122, %v2121, %v2109
        %vm2125 = vcmask 195584
        %v2126 = vsel %vm2125, %v2123, %v2115
        %v2127 = vsel %vm2125, %v2124, %v2117
        %v2128 = vld [vmem:[%s1411] sm:$0xff]
        %v2129 = vld [vmem:[%s1411 + $0x8] sm:$0xff]
        %v2130 = vld [vmem:[%s1411 + $0x10] sm:$0xff]
        %v2131 = vld [vmem:[%s1411 + $0x18] sm:$0xff]
        %v2132 = vld [vmem:[%s1152] sm:$0x1]
        %v2134 = vperm.slane %v2132, 0
        %v2137 = vsel %vm1456, %v2126, 0
        %v2140 = vsel %vm1456, %v2127, 0
        %2142 = vmatpush.msra.mxu0 0.0
        %2143 = vmatpush.msra.mxu0 0.0
        %2144 = vmatpush.msra.mxu0 0.0
        %2145 = vmatpush.msra.mxu0 0.0
        %2146 = vmatpush.msra.mxu0 0.0
        %2147 = vmatpush.msra.mxu0 0.0
        %2148 = vmatpush.msra.mxu0 0.0
        %2149 = vmatpush.msra.mxu0 0.0
        %2150 = vmatpush.msra.mxu0 0.0
        %2151 = vmatpush.msra.mxu0 0.0
        %2152 = vmatpush.msra.mxu0 0.0
        %2153 = vmatpush.msra.mxu0 0.0
        %2154 = vmatpush.msra.mxu0 %v2131
        %2155 = vmatpush.msra.mxu0 %v2130
        %2156 = vmatpush.msra.mxu0 %v2129
        %2157 = vmatpush.msra.mxu0 %v2128
        %2158 = vmatmul.f32.gmra.mxu0 %v2137
        %v2159 = vpop.f32.mrf.mxu0
        %v2160 = vadd.f32 %v2134, %v2159
        %2161 = vmatmul.f32.gmra.mxu0 %v2140
        %v2162 = vpop.f32.mrf.mxu0
        %v2163 = vadd.f32 %v2134, %v2162
        %2164 = vdwg.mxu0
        %v2165 = vadd.f32 %v1450, %v2160
        %v2166 = vadd.f32 %v1451, %v2163
        %v2167 = vld [vmem:[%s1161] sm:$0x1]
        %v2168 = vld [vmem:[%s1170] sm:$0x1]
        %v2169 = vsel %vm1456, %v2165, 0.0
        %2170 = vadd.xlane.f32.xlu0 %v2169
        %v2171 = vpop.xlane.xlu0 %2170
        %v2172 = vsel %vm1456, %v2166, 0.0
        %2173 = vadd.xlane.f32.xlu0 %v2172
        %v2174 = vpop.xlane.xlu0 %2173
        %v2175 = vmul.f32 %v2171, %v1469
        %v2176 = vmul.f32 %v2174, %v1469
        %v2177 = vsub.f32 %v2165, %v2175
        %v2178 = vsub.f32 %v2166, %v2176
        %v2179 = vmul.f32 %v2177, %v2177
        %v2180 = vmul.f32 %v2178, %v2178
        %v2181 = vsel %vm1456, %v2179, 0.0
        %2182 = vadd.xlane.f32.xlu0 %v2181
        %v2183 = vpop.xlane.xlu0 %2182
        %v2184 = vsel %vm1456, %v2180, 0.0
        %2185 = vadd.xlane.f32.xlu0 %v2184
        %v2186 = vpop.xlane.xlu0 %2185
        %v2187 = vmul.f32 %v2183, %v1469
        %v2188 = vmul.f32 %v2186, %v1469
        %v2189 = vadd.f32 %v2187, 1e-05
        %v2190 = vadd.f32 %v2188, 1e-05
        %v2191 = vrsqrt.pop %v2189
        %v2192 = vmul.f32 %v2191, %v2189
        %v2193 = vmul.f32 %v2192, %v2191
        %v2194 = vmul.f32 0.5, %v2193
        %v2195 = vsub.f32 1.5, %v2194
        %v2196 = vmul.f32 %v2191, %v2195
        %vm2197 = vweird.f32 %v2189
        %vm2198 = vweird.f32 %v2191
        %vm2199 = vmor %vm2197, %vm2198
        %v2200 = vsel %vm2199, %v2191, %v2196
        %v2201 = vrsqrt.pop %v2190
        %v2202 = vmul.f32 %v2201, %v2190
        %v2203 = vmul.f32 %v2202, %v2201
        %v2204 = vmul.f32 0.5, %v2203
        %v2205 = vsub.f32 1.5, %v2204
        %v2206 = vmul.f32 %v2201, %v2205
        %vm2207 = vweird.f32 %v2190
        %vm2208 = vweird.f32 %v2201
        %vm2209 = vmor %vm2207, %vm2208
        %v2210 = vsel %vm2209, %v2201, %v2206
        %v2211 = vmul.f32 %v2177, %v2200
        %v2212 = vmul.f32 %v2178, %v2210
        %v2214 = vperm.slane %v2167, 0
        %v2216 = vmul.f32 %v2211, %v2214
        %v2217 = vmul.f32 %v2212, %v2214
        %v2219 = vperm.slane %v2168, 0
        %v2221 = vadd.f32 %v2216, %v2219
        %v2222 = vadd.f32 %v2217, %v2219
        %v2223 = vld [vmem:[%s1416] sm:$0xff]
        %v2224 = vld [vmem:[%s1416 + $0x8] sm:$0xff]
        %v2225 = vld [vmem:[%s1416 + $0x10] sm:$0xff]
        %v2226 = vld [vmem:[%s1416 + $0x18] sm:$0xff]
        %v2227 = vld [vmem:[%s1179] sm:$0x1]
        %v2229 = vperm.slane %v2227, 0
        %v2232 = vsel %vm1456, %v2221, 0
        %v2235 = vsel %vm1456, %v2222, 0
        %2237 = vmatpush.msra.mxu0 0.0
        %2238 = vmatpush.msra.mxu0 0.0
        %2239 = vmatpush.msra.mxu0 0.0
        %2240 = vmatpush.msra.mxu0 0.0
        %2241 = vmatpush.msra.mxu0 0.0
        %2242 = vmatpush.msra.mxu0 0.0
        %2243 = vmatpush.msra.mxu0 0.0
        %2244 = vmatpush.msra.mxu0 0.0
        %2245 = vmatpush.msra.mxu0 0.0
        %2246 = vmatpush.msra.mxu0 0.0
        %2247 = vmatpush.msra.mxu0 0.0
        %2248 = vmatpush.msra.mxu0 0.0
        %2249 = vmatpush.msra.mxu0 %v2226
        %2250 = vmatpush.msra.mxu0 %v2225
        %2251 = vmatpush.msra.mxu0 %v2224
        %2252 = vmatpush.msra.mxu0 %v2223
        %2253 = vmatmul.f32.gmra.mxu0 %v2232
        %v2254 = vpop.f32.mrf.mxu0
        %v2255 = vadd.f32 %v2229, %v2254
        %2256 = vmatmul.f32.gmra.mxu0 %v2235
        %v2257 = vpop.f32.mrf.mxu0
        %v2258 = vadd.f32 %v2229, %v2257
        %2259 = vdwg.mxu0
        %v2260 = vld [vmem:[%s1421] sm:$0xff]
        %v2261 = vld [vmem:[%s1421 + $0x8] sm:$0xff]
        %v2262 = vld [vmem:[%s1421 + $0x10] sm:$0xff]
        %v2263 = vld [vmem:[%s1421 + $0x18] sm:$0xff]
        %v2264 = vld [vmem:[%s1188] sm:$0x1]
        %v2266 = vperm.slane %v2264, 0
        %v2269 = vsel %vm1456, %v1452, 0
        %v2272 = vsel %vm1456, %v1453, 0
        %2274 = vmatpush.msra.mxu0 0.0
        %2275 = vmatpush.msra.mxu0 0.0
        %2276 = vmatpush.msra.mxu0 0.0
        %2277 = vmatpush.msra.mxu0 0.0
        %2278 = vmatpush.msra.mxu0 0.0
        %2279 = vmatpush.msra.mxu0 0.0
        %2280 = vmatpush.msra.mxu0 0.0
        %2281 = vmatpush.msra.mxu0 0.0
        %2282 = vmatpush.msra.mxu0 0.0
        %2283 = vmatpush.msra.mxu0 0.0
        %2284 = vmatpush.msra.mxu0 0.0
        %2285 = vmatpush.msra.mxu0 0.0
        %2286 = vmatpush.msra.mxu0 %v2263
        %2287 = vmatpush.msra.mxu0 %v2262
        %2288 = vmatpush.msra.mxu0 %v2261
        %2289 = vmatpush.msra.mxu0 %v2260
        %2290 = vmatmul.f32.gmra.mxu0 %v2269
        %v2291 = vpop.f32.mrf.mxu0
        %v2292 = vadd.f32 %v2266, %v2291
        %2293 = vmatmul.f32.gmra.mxu0 %v2272
        %v2294 = vpop.f32.mrf.mxu0
        %v2295 = vadd.f32 %v2266, %v2294
        %2296 = vdwg.mxu0
        %v2298 = vsel %vm1564, %v2255, 0
        %v2301 = vsel %vm1564, %v2292, 0
        %2303 = vmatpush.xpose.msra.mxu0 0.0
        %2304 = vmatpush.xpose.msra.mxu0 0.0
        %2305 = vmatpush.xpose.msra.mxu0 0.0
        %2306 = vmatpush.xpose.msra.mxu0 0.0
        %2307 = vmatpush.xpose.msra.mxu0 0.0
        %2308 = vmatpush.xpose.msra.mxu0 0.0
        %2309 = vmatpush.xpose.msra.mxu0 0.0
        %2310 = vmatpush.xpose.msra.mxu0 0.0
        %2311 = vmatpush.xpose.msra.mxu0 0.0
        %2312 = vmatpush.xpose.msra.mxu0 0.0
        %2313 = vmatpush.xpose.msra.mxu0 0.0
        %2314 = vmatpush.xpose.msra.mxu0 0.0
        %2315 = vmatpush.xpose.msra.mxu0 0.0
        %2316 = vmatpush.xpose.msra.mxu0 0.0
        %2317 = vmatpush.xpose.msra.mxu0 0.0
        %2318 = vmatpush.xpose.msra.mxu0 %v2301
        %2319 = vmatmul.f32.gmra.mxu0 %v2298
        %v2320 = vpop.f32.mrf.mxu0
        %v2321 = vadd.f32 0.0, %v2320
        %2322 = vdwg.mxu0
        %v2324 = vsel %vm1564, %v2258, 0
        %v2327 = vsel %vm1564, %v2295, 0
        %2329 = vmatpush.xpose.msra.mxu0 0.0
        %2330 = vmatpush.xpose.msra.mxu0 0.0
        %2331 = vmatpush.xpose.msra.mxu0 0.0
        %2332 = vmatpush.xpose.msra.mxu0 0.0
        %2333 = vmatpush.xpose.msra.mxu0 0.0
        %2334 = vmatpush.xpose.msra.mxu0 0.0
        %2335 = vmatpush.xpose.msra.mxu0 0.0
        %2336 = vmatpush.xpose.msra.mxu0 0.0
        %2337 = vmatpush.xpose.msra.mxu0 0.0
        %2338 = vmatpush.xpose.msra.mxu0 0.0
        %2339 = vmatpush.xpose.msra.mxu0 0.0
        %2340 = vmatpush.xpose.msra.mxu0 0.0
        %2341 = vmatpush.xpose.msra.mxu0 0.0
        %2342 = vmatpush.xpose.msra.mxu0 0.0
        %2343 = vmatpush.xpose.msra.mxu0 0.0
        %2344 = vmatpush.xpose.msra.mxu0 %v2327
        %2345 = vmatmul.f32.gmra.mxu0 %v2324
        %v2346 = vpop.f32.mrf.mxu0
        %v2347 = vadd.f32 0.0, %v2346
        %2348 = vdwg.mxu0
        %v2349 = vmul.f32 %v2321, 0.35355338
        %v2350 = vmul.f32 %v2347, 0.35355338
        %v2351 = vsel %vm1564, %v2349, -inf
        %2352 = vmax.xlane.f32.xlu0 %v2351
        %v2353 = vpop.xlane.xlu0 %2352
        %v2354 = vsel %vm1564, %v2350, -inf
        %2355 = vmax.xlane.f32.xlu0 %v2354
        %v2356 = vpop.xlane.xlu0 %2355
        %v2357 = vsub.f32 %v2349, %v2353
        %v2358 = vsub.f32 %v2350, %v2356
        %v2359 = vmul.f32 %v2357, 1.442695
        %v2360 = vpow.pop %v2359
        %v2361 = vmul.f32 %v2358, 1.442695
        %v2362 = vpow.pop %v2361
        %v2363 = vsel %vm1564, %v2360, 0.0
        %2364 = vadd.xlane.f32.xlu0 %v2363
        %v2365 = vpop.xlane.xlu0 %2364
        %v2366 = vsel %vm1564, %v2362, 0.0
        %2367 = vadd.xlane.f32.xlu0 %v2366
        %v2368 = vpop.xlane.xlu0 %2367
        %v2369 = vrcp.pop %v2365
        %v2370 = vrcp.pop %v2368
        %v2371 = vmul.f32 %v2360, %v2369
        %v2372 = vmul.f32 %v2362, %v2370
        %2373 = vrot.lane.b32.xlu0 %v2292, 96
        %v2374 = vpop.permute.xlu0 %2373
        %v2377 = vsel %vm1564, %v2371, 0
        %2379 = vmatpush.msra.mxu0 0.0
        %2380 = vmatpush.msra.mxu0 0.0
        %2381 = vmatpush.msra.mxu0 0.0
        %2382 = vmatpush.msra.mxu0 0.0
        %2383 = vmatpush.msra.mxu0 0.0
        %2384 = vmatpush.msra.mxu0 0.0
        %2385 = vmatpush.msra.mxu0 0.0
        %2386 = vmatpush.msra.mxu0 0.0
        %2387 = vmatpush.msra.mxu0 0.0
        %2388 = vmatpush.msra.mxu0 0.0
        %2389 = vmatpush.msra.mxu0 0.0
        %2390 = vmatpush.msra.mxu0 0.0
        %2391 = vmatpush.msra.mxu0 0.0
        %2392 = vmatpush.msra.mxu0 0.0
        %2393 = vmatpush.msra.mxu0 0.0
        %2394 = vmatpush.msra.mxu0 %v2374
        %2395 = vmatmul.f32.gmra.mxu0 %v2377
        %v2396 = vpop.f32.mrf.mxu0
        %v2397 = vadd.f32 0.0, %v2396
        %2398 = vdwg.mxu0
        %2399 = vrot.lane.b32.xlu0 %v2295, 96
        %v2400 = vpop.permute.xlu0 %2399
        %v2403 = vsel %vm1564, %v2372, 0
        %2405 = vmatpush.msra.mxu0 0.0
        %2406 = vmatpush.msra.mxu0 0.0
        %2407 = vmatpush.msra.mxu0 0.0
        %2408 = vmatpush.msra.mxu0 0.0
        %2409 = vmatpush.msra.mxu0 0.0
        %2410 = vmatpush.msra.mxu0 0.0
        %2411 = vmatpush.msra.mxu0 0.0
        %2412 = vmatpush.msra.mxu0 0.0
        %2413 = vmatpush.msra.mxu0 0.0
        %2414 = vmatpush.msra.mxu0 0.0
        %2415 = vmatpush.msra.mxu0 0.0
        %2416 = vmatpush.msra.mxu0 0.0
        %2417 = vmatpush.msra.mxu0 0.0
        %2418 = vmatpush.msra.mxu0 0.0
        %2419 = vmatpush.msra.mxu0 0.0
        %2420 = vmatpush.msra.mxu0 %v2400
        %2421 = vmatmul.f32.gmra.mxu0 %v2403
        %v2422 = vpop.f32.mrf.mxu0
        %v2423 = vadd.f32 0.0, %v2422
        %2424 = vdwg.mxu0
        %2425 = vrot.lane.b32.xlu0 %v2255, 120
        %v2426 = vpop.permute.xlu0 %2425
        %2427 = vrot.lane.b32.xlu0 %v2292, 120
        %v2428 = vpop.permute.xlu0 %2427
        %v2429 = vsel %vm1564, %v2426, 0
        %v2431 = vsel %vm1564, %v2428, 0
        %2433 = vmatpush.xpose.msra.mxu0 0.0
        %2434 = vmatpush.xpose.msra.mxu0 0.0
        %2435 = vmatpush.xpose.msra.mxu0 0.0
        %2436 = vmatpush.xpose.msra.mxu0 0.0
        %2437 = vmatpush.xpose.msra.mxu0 0.0
        %2438 = vmatpush.xpose.msra.mxu0 0.0
        %2439 = vmatpush.xpose.msra.mxu0 0.0
        %2440 = vmatpush.xpose.msra.mxu0 0.0
        %2441 = vmatpush.xpose.msra.mxu0 0.0
        %2442 = vmatpush.xpose.msra.mxu0 0.0
        %2443 = vmatpush.xpose.msra.mxu0 0.0
        %2444 = vmatpush.xpose.msra.mxu0 0.0
        %2445 = vmatpush.xpose.msra.mxu0 0.0
        %2446 = vmatpush.xpose.msra.mxu0 0.0
        %2447 = vmatpush.xpose.msra.mxu0 0.0
        %2448 = vmatpush.xpose.msra.mxu0 %v2431
        %2449 = vmatmul.f32.gmra.mxu0 %v2429
        %v2450 = vpop.f32.mrf.mxu0
        %v2451 = vadd.f32 0.0, %v2450
        %2452 = vdwg.mxu0
        %2453 = vrot.lane.b32.xlu0 %v2258, 120
        %v2454 = vpop.permute.xlu0 %2453
        %2455 = vrot.lane.b32.xlu0 %v2295, 120
        %v2456 = vpop.permute.xlu0 %2455
        %v2457 = vsel %vm1564, %v2454, 0
        %v2459 = vsel %vm1564, %v2456, 0
        %2461 = vmatpush.xpose.msra.mxu0 0.0
        %2462 = vmatpush.xpose.msra.mxu0 0.0
        %2463 = vmatpush.xpose.msra.mxu0 0.0
        %2464 = vmatpush.xpose.msra.mxu0 0.0
        %2465 = vmatpush.xpose.msra.mxu0 0.0
        %2466 = vmatpush.xpose.msra.mxu0 0.0
        %2467 = vmatpush.xpose.msra.mxu0 0.0
        %2468 = vmatpush.xpose.msra.mxu0 0.0
        %2469 = vmatpush.xpose.msra.mxu0 0.0
        %2470 = vmatpush.xpose.msra.mxu0 0.0
        %2471 = vmatpush.xpose.msra.mxu0 0.0
        %2472 = vmatpush.xpose.msra.mxu0 0.0
        %2473 = vmatpush.xpose.msra.mxu0 0.0
        %2474 = vmatpush.xpose.msra.mxu0 0.0
        %2475 = vmatpush.xpose.msra.mxu0 0.0
        %2476 = vmatpush.xpose.msra.mxu0 %v2459
        %2477 = vmatmul.f32.gmra.mxu0 %v2457
        %v2478 = vpop.f32.mrf.mxu0
        %v2479 = vadd.f32 0.0, %v2478
        %2480 = vdwg.mxu0
        %v2481 = vmul.f32 %v2451, 0.35355338
        %v2482 = vmul.f32 %v2479, 0.35355338
        %v2483 = vsel %vm1564, %v2481, -inf
        %2484 = vmax.xlane.f32.xlu0 %v2483
        %v2485 = vpop.xlane.xlu0 %2484
        %v2486 = vsel %vm1564, %v2482, -inf
        %2487 = vmax.xlane.f32.xlu0 %v2486
        %v2488 = vpop.xlane.xlu0 %2487
        %v2489 = vsub.f32 %v2481, %v2485
        %v2490 = vsub.f32 %v2482, %v2488
        %v2491 = vmul.f32 %v2489, 1.442695
        %v2492 = vpow.pop %v2491
        %v2493 = vmul.f32 %v2490, 1.442695
        %v2494 = vpow.pop %v2493
        %v2495 = vsel %vm1564, %v2492, 0.0
        %2496 = vadd.xlane.f32.xlu0 %v2495
        %v2497 = vpop.xlane.xlu0 %2496
        %v2498 = vsel %vm1564, %v2494, 0.0
        %2499 = vadd.xlane.f32.xlu0 %v2498
        %v2500 = vpop.xlane.xlu0 %2499
        %v2501 = vrcp.pop %v2497
        %v2502 = vrcp.pop %v2500
        %v2503 = vmul.f32 %v2492, %v2501
        %v2504 = vmul.f32 %v2494, %v2502
        %2505 = vrot.lane.b32.xlu0 %v2292, 88
        %v2506 = vpop.permute.xlu0 %2505
        %v2509 = vsel %vm1564, %v2503, 0
        %2511 = vmatpush.msra.mxu0 0.0
        %2512 = vmatpush.msra.mxu0 0.0
        %2513 = vmatpush.msra.mxu0 0.0
        %2514 = vmatpush.msra.mxu0 0.0
        %2515 = vmatpush.msra.mxu0 0.0
        %2516 = vmatpush.msra.mxu0 0.0
        %2517 = vmatpush.msra.mxu0 0.0
        %2518 = vmatpush.msra.mxu0 0.0
        %2519 = vmatpush.msra.mxu0 0.0
        %2520 = vmatpush.msra.mxu0 0.0
        %2521 = vmatpush.msra.mxu0 0.0
        %2522 = vmatpush.msra.mxu0 0.0
        %2523 = vmatpush.msra.mxu0 0.0
        %2524 = vmatpush.msra.mxu0 0.0
        %2525 = vmatpush.msra.mxu0 0.0
        %2526 = vmatpush.msra.mxu0 %v2506
        %2527 = vmatmul.f32.gmra.mxu0 %v2509
        %v2528 = vpop.f32.mrf.mxu0
        %v2529 = vadd.f32 0.0, %v2528
        %2530 = vdwg.mxu0
        %2531 = vrot.lane.b32.xlu0 %v2295, 88
        %v2532 = vpop.permute.xlu0 %2531
        %v2535 = vsel %vm1564, %v2504, 0
        %2537 = vmatpush.msra.mxu0 0.0
        %2538 = vmatpush.msra.mxu0 0.0
        %2539 = vmatpush.msra.mxu0 0.0
        %2540 = vmatpush.msra.mxu0 0.0
        %2541 = vmatpush.msra.mxu0 0.0
        %2542 = vmatpush.msra.mxu0 0.0
        %2543 = vmatpush.msra.mxu0 0.0
        %2544 = vmatpush.msra.mxu0 0.0
        %2545 = vmatpush.msra.mxu0 0.0
        %2546 = vmatpush.msra.mxu0 0.0
        %2547 = vmatpush.msra.mxu0 0.0
        %2548 = vmatpush.msra.mxu0 0.0
        %2549 = vmatpush.msra.mxu0 0.0
        %2550 = vmatpush.msra.mxu0 0.0
        %2551 = vmatpush.msra.mxu0 0.0
        %2552 = vmatpush.msra.mxu0 %v2532
        %2553 = vmatmul.f32.gmra.mxu0 %v2535
        %v2554 = vpop.f32.mrf.mxu0
        %v2555 = vadd.f32 0.0, %v2554
        %2556 = vdwg.mxu0
        %2557 = vrot.lane.b32.xlu0 %v2255, 112
        %v2558 = vpop.permute.xlu0 %2557
        %2559 = vrot.lane.b32.xlu0 %v2292, 112
        %v2560 = vpop.permute.xlu0 %2559
        %v2561 = vsel %vm1564, %v2558, 0
        %v2563 = vsel %vm1564, %v2560, 0
        %2565 = vmatpush.xpose.msra.mxu0 0.0
        %2566 = vmatpush.xpose.msra.mxu0 0.0
        %2567 = vmatpush.xpose.msra.mxu0 0.0
        %2568 = vmatpush.xpose.msra.mxu0 0.0
        %2569 = vmatpush.xpose.msra.mxu0 0.0
        %2570 = vmatpush.xpose.msra.mxu0 0.0
        %2571 = vmatpush.xpose.msra.mxu0 0.0
        %2572 = vmatpush.xpose.msra.mxu0 0.0
        %2573 = vmatpush.xpose.msra.mxu0 0.0
        %2574 = vmatpush.xpose.msra.mxu0 0.0
        %2575 = vmatpush.xpose.msra.mxu0 0.0
        %2576 = vmatpush.xpose.msra.mxu0 0.0
        %2577 = vmatpush.xpose.msra.mxu0 0.0
        %2578 = vmatpush.xpose.msra.mxu0 0.0
        %2579 = vmatpush.xpose.msra.mxu0 0.0
        %2580 = vmatpush.xpose.msra.mxu0 %v2563
        %2581 = vmatmul.f32.gmra.mxu0 %v2561
        %v2582 = vpop.f32.mrf.mxu0
        %v2583 = vadd.f32 0.0, %v2582
        %2584 = vdwg.mxu0
        %2585 = vrot.lane.b32.xlu0 %v2258, 112
        %v2586 = vpop.permute.xlu0 %2585
        %2587 = vrot.lane.b32.xlu0 %v2295, 112
        %v2588 = vpop.permute.xlu0 %2587
        %v2589 = vsel %vm1564, %v2586, 0
        %v2591 = vsel %vm1564, %v2588, 0
        %2593 = vmatpush.xpose.msra.mxu0 0.0
        %2594 = vmatpush.xpose.msra.mxu0 0.0
        %2595 = vmatpush.xpose.msra.mxu0 0.0
        %2596 = vmatpush.xpose.msra.mxu0 0.0
        %2597 = vmatpush.xpose.msra.mxu0 0.0
        %2598 = vmatpush.xpose.msra.mxu0 0.0
        %2599 = vmatpush.xpose.msra.mxu0 0.0
        %2600 = vmatpush.xpose.msra.mxu0 0.0
        %2601 = vmatpush.xpose.msra.mxu0 0.0
        %2602 = vmatpush.xpose.msra.mxu0 0.0
        %2603 = vmatpush.xpose.msra.mxu0 0.0
        %2604 = vmatpush.xpose.msra.mxu0 0.0
        %2605 = vmatpush.xpose.msra.mxu0 0.0
        %2606 = vmatpush.xpose.msra.mxu0 0.0
        %2607 = vmatpush.xpose.msra.mxu0 0.0
        %2608 = vmatpush.xpose.msra.mxu0 %v2591
        %2609 = vmatmul.f32.gmra.mxu0 %v2589
        %v2610 = vpop.f32.mrf.mxu0
        %v2611 = vadd.f32 0.0, %v2610
        %2612 = vdwg.mxu0
        %v2613 = vmul.f32 %v2583, 0.35355338
        %v2614 = vmul.f32 %v2611, 0.35355338
        %v2615 = vsel %vm1564, %v2613, -inf
        %2616 = vmax.xlane.f32.xlu0 %v2615
        %v2617 = vpop.xlane.xlu0 %2616
        %v2618 = vsel %vm1564, %v2614, -inf
        %2619 = vmax.xlane.f32.xlu0 %v2618
        %v2620 = vpop.xlane.xlu0 %2619
        %v2621 = vsub.f32 %v2613, %v2617
        %v2622 = vsub.f32 %v2614, %v2620
        %v2623 = vmul.f32 %v2621, 1.442695
        %v2624 = vpow.pop %v2623
        %v2625 = vmul.f32 %v2622, 1.442695
        %v2626 = vpow.pop %v2625
        %v2627 = vsel %vm1564, %v2624, 0.0
        %2628 = vadd.xlane.f32.xlu0 %v2627
        %v2629 = vpop.xlane.xlu0 %2628
        %v2630 = vsel %vm1564, %v2626, 0.0
        %2631 = vadd.xlane.f32.xlu0 %v2630
        %v2632 = vpop.xlane.xlu0 %2631
        %v2633 = vrcp.pop %v2629
        %v2634 = vrcp.pop %v2632
        %v2635 = vmul.f32 %v2624, %v2633
        %v2636 = vmul.f32 %v2626, %v2634
        %2637 = vrot.lane.b32.xlu0 %v2292, 80
        %v2638 = vpop.permute.xlu0 %2637
        %v2641 = vsel %vm1564, %v2635, 0
        %2643 = vmatpush.msra.mxu0 0.0
        %2644 = vmatpush.msra.mxu0 0.0
        %2645 = vmatpush.msra.mxu0 0.0
        %2646 = vmatpush.msra.mxu0 0.0
        %2647 = vmatpush.msra.mxu0 0.0
        %2648 = vmatpush.msra.mxu0 0.0
        %2649 = vmatpush.msra.mxu0 0.0
        %2650 = vmatpush.msra.mxu0 0.0
        %2651 = vmatpush.msra.mxu0 0.0
        %2652 = vmatpush.msra.mxu0 0.0
        %2653 = vmatpush.msra.mxu0 0.0
        %2654 = vmatpush.msra.mxu0 0.0
        %2655 = vmatpush.msra.mxu0 0.0
        %2656 = vmatpush.msra.mxu0 0.0
        %2657 = vmatpush.msra.mxu0 0.0
        %2658 = vmatpush.msra.mxu0 %v2638
        %2659 = vmatmul.f32.gmra.mxu0 %v2641
        %v2660 = vpop.f32.mrf.mxu0
        %v2661 = vadd.f32 0.0, %v2660
        %2662 = vdwg.mxu0
        %2663 = vrot.lane.b32.xlu0 %v2295, 80
        %v2664 = vpop.permute.xlu0 %2663
        %v2667 = vsel %vm1564, %v2636, 0
        %2669 = vmatpush.msra.mxu0 0.0
        %2670 = vmatpush.msra.mxu0 0.0
        %2671 = vmatpush.msra.mxu0 0.0
        %2672 = vmatpush.msra.mxu0 0.0
        %2673 = vmatpush.msra.mxu0 0.0
        %2674 = vmatpush.msra.mxu0 0.0
        %2675 = vmatpush.msra.mxu0 0.0
        %2676 = vmatpush.msra.mxu0 0.0
        %2677 = vmatpush.msra.mxu0 0.0
        %2678 = vmatpush.msra.mxu0 0.0
        %2679 = vmatpush.msra.mxu0 0.0
        %2680 = vmatpush.msra.mxu0 0.0
        %2681 = vmatpush.msra.mxu0 0.0
        %2682 = vmatpush.msra.mxu0 0.0
        %2683 = vmatpush.msra.mxu0 0.0
        %2684 = vmatpush.msra.mxu0 %v2664
        %2685 = vmatmul.f32.gmra.mxu0 %v2667
        %v2686 = vpop.f32.mrf.mxu0
        %v2687 = vadd.f32 0.0, %v2686
        %2688 = vdwg.mxu0
        %2689 = vrot.lane.b32.xlu0 %v2255, 104
        %v2690 = vpop.permute.xlu0 %2689
        %2691 = vrot.lane.b32.xlu0 %v2292, 104
        %v2692 = vpop.permute.xlu0 %2691
        %v2693 = vsel %vm1564, %v2690, 0
        %v2695 = vsel %vm1564, %v2692, 0
        %2697 = vmatpush.xpose.msra.mxu0 0.0
        %2698 = vmatpush.xpose.msra.mxu0 0.0
        %2699 = vmatpush.xpose.msra.mxu0 0.0
        %2700 = vmatpush.xpose.msra.mxu0 0.0
        %2701 = vmatpush.xpose.msra.mxu0 0.0
        %2702 = vmatpush.xpose.msra.mxu0 0.0
        %2703 = vmatpush.xpose.msra.mxu0 0.0
        %2704 = vmatpush.xpose.msra.mxu0 0.0
        %2705 = vmatpush.xpose.msra.mxu0 0.0
        %2706 = vmatpush.xpose.msra.mxu0 0.0
        %2707 = vmatpush.xpose.msra.mxu0 0.0
        %2708 = vmatpush.xpose.msra.mxu0 0.0
        %2709 = vmatpush.xpose.msra.mxu0 0.0
        %2710 = vmatpush.xpose.msra.mxu0 0.0
        %2711 = vmatpush.xpose.msra.mxu0 0.0
        %2712 = vmatpush.xpose.msra.mxu0 %v2695
        %2713 = vmatmul.f32.gmra.mxu0 %v2693
        %v2714 = vpop.f32.mrf.mxu0
        %v2715 = vadd.f32 0.0, %v2714
        %2716 = vdwg.mxu0
        %2717 = vrot.lane.b32.xlu0 %v2258, 104
        %v2718 = vpop.permute.xlu0 %2717
        %2719 = vrot.lane.b32.xlu0 %v2295, 104
        %v2720 = vpop.permute.xlu0 %2719
        %v2721 = vsel %vm1564, %v2718, 0
        %v2723 = vsel %vm1564, %v2720, 0
        %2725 = vmatpush.xpose.msra.mxu0 0.0
        %2726 = vmatpush.xpose.msra.mxu0 0.0
        %2727 = vmatpush.xpose.msra.mxu0 0.0
        %2728 = vmatpush.xpose.msra.mxu0 0.0
        %2729 = vmatpush.xpose.msra.mxu0 0.0
        %2730 = vmatpush.xpose.msra.mxu0 0.0
        %2731 = vmatpush.xpose.msra.mxu0 0.0
        %2732 = vmatpush.xpose.msra.mxu0 0.0
        %2733 = vmatpush.xpose.msra.mxu0 0.0
        %2734 = vmatpush.xpose.msra.mxu0 0.0
        %2735 = vmatpush.xpose.msra.mxu0 0.0
        %2736 = vmatpush.xpose.msra.mxu0 0.0
        %2737 = vmatpush.xpose.msra.mxu0 0.0
        %2738 = vmatpush.xpose.msra.mxu0 0.0
        %2739 = vmatpush.xpose.msra.mxu0 0.0
        %2740 = vmatpush.xpose.msra.mxu0 %v2723
        %2741 = vmatmul.f32.gmra.mxu0 %v2721
        %v2742 = vpop.f32.mrf.mxu0
        %v2743 = vadd.f32 0.0, %v2742
        %2744 = vdwg.mxu0
        %v2745 = vmul.f32 %v2715, 0.35355338
        %v2746 = vmul.f32 %v2743, 0.35355338
        %v2747 = vsel %vm1564, %v2745, -inf
        %2748 = vmax.xlane.f32.xlu0 %v2747
        %v2749 = vpop.xlane.xlu0 %2748
        %v2750 = vsel %vm1564, %v2746, -inf
        %2751 = vmax.xlane.f32.xlu0 %v2750
        %v2752 = vpop.xlane.xlu0 %2751
        %v2753 = vsub.f32 %v2745, %v2749
        %v2754 = vsub.f32 %v2746, %v2752
        %v2755 = vmul.f32 %v2753, 1.442695
        %v2756 = vpow.pop %v2755
        %v2757 = vmul.f32 %v2754, 1.442695
        %v2758 = vpow.pop %v2757
        %v2759 = vsel %vm1564, %v2756, 0.0
        %2760 = vadd.xlane.f32.xlu0 %v2759
        %v2761 = vpop.xlane.xlu0 %2760
        %v2762 = vsel %vm1564, %v2758, 0.0
        %2763 = vadd.xlane.f32.xlu0 %v2762
        %v2764 = vpop.xlane.xlu0 %2763
        %v2765 = vrcp.pop %v2761
        %v2766 = vrcp.pop %v2764
        %v2767 = vmul.f32 %v2756, %v2765
        %v2768 = vmul.f32 %v2758, %v2766
        %2769 = vrot.lane.b32.xlu0 %v2292, 72
        %v2770 = vpop.permute.xlu0 %2769
        %v2773 = vsel %vm1564, %v2767, 0
        %2775 = vmatpush.msra.mxu0 0.0
        %2776 = vmatpush.msra.mxu0 0.0
        %2777 = vmatpush.msra.mxu0 0.0
        %2778 = vmatpush.msra.mxu0 0.0
        %2779 = vmatpush.msra.mxu0 0.0
        %2780 = vmatpush.msra.mxu0 0.0
        %2781 = vmatpush.msra.mxu0 0.0
        %2782 = vmatpush.msra.mxu0 0.0
        %2783 = vmatpush.msra.mxu0 0.0
        %2784 = vmatpush.msra.mxu0 0.0
        %2785 = vmatpush.msra.mxu0 0.0
        %2786 = vmatpush.msra.mxu0 0.0
        %2787 = vmatpush.msra.mxu0 0.0
        %2788 = vmatpush.msra.mxu0 0.0
        %2789 = vmatpush.msra.mxu0 0.0
        %2790 = vmatpush.msra.mxu0 %v2770
        %2791 = vmatmul.f32.gmra.mxu0 %v2773
        %v2792 = vpop.f32.mrf.mxu0
        %v2793 = vadd.f32 0.0, %v2792
        %2794 = vdwg.mxu0
        %2795 = vrot.lane.b32.xlu0 %v2295, 72
        %v2796 = vpop.permute.xlu0 %2795
        %v2799 = vsel %vm1564, %v2768, 0
        %2801 = vmatpush.msra.mxu0 0.0
        %2802 = vmatpush.msra.mxu0 0.0
        %2803 = vmatpush.msra.mxu0 0.0
        %2804 = vmatpush.msra.mxu0 0.0
        %2805 = vmatpush.msra.mxu0 0.0
        %2806 = vmatpush.msra.mxu0 0.0
        %2807 = vmatpush.msra.mxu0 0.0
        %2808 = vmatpush.msra.mxu0 0.0
        %2809 = vmatpush.msra.mxu0 0.0
        %2810 = vmatpush.msra.mxu0 0.0
        %2811 = vmatpush.msra.mxu0 0.0
        %2812 = vmatpush.msra.mxu0 0.0
        %2813 = vmatpush.msra.mxu0 0.0
        %2814 = vmatpush.msra.mxu0 0.0
        %2815 = vmatpush.msra.mxu0 0.0
        %2816 = vmatpush.msra.mxu0 %v2796
        %2817 = vmatmul.f32.gmra.mxu0 %v2799
        %v2818 = vpop.f32.mrf.mxu0
        %v2819 = vadd.f32 0.0, %v2818
        %2820 = vdwg.mxu0
        %2823 = vrot.lane.b32.xlu0 %v2529, 8
        %v2824 = vpop.permute.xlu0 %2823
        %2825 = vrot.lane.b32.xlu0 %v2555, 8
        %v2826 = vpop.permute.xlu0 %2825
        %2831 = vrot.lane.b32.xlu0 %v2661, 16
        %v2832 = vpop.permute.xlu0 %2831
        %2833 = vrot.lane.b32.xlu0 %v2687, 16
        %v2834 = vpop.permute.xlu0 %2833
        %2839 = vrot.lane.b32.xlu0 %v2793, 24
        %v2840 = vpop.permute.xlu0 %2839
        %2841 = vrot.lane.b32.xlu0 %v2819, 24
        %v2842 = vpop.permute.xlu0 %2841
        %v2845 = vsel %vm1564, %v2397, %v2824
        %v2846 = vsel %vm1564, %v2423, %v2826
        %v2847 = vsel %vm2122, %v2845, %v2832
        %v2848 = vsel %vm2122, %v2846, %v2834
        %v2849 = vsel %vm2125, %v2847, %v2840
        %v2850 = vsel %vm2125, %v2848, %v2842
        %v2851 = vld [vmem:[%s1426] sm:$0xff]
        %v2852 = vld [vmem:[%s1426 + $0x8] sm:$0xff]
        %v2853 = vld [vmem:[%s1426 + $0x10] sm:$0xff]
        %v2854 = vld [vmem:[%s1426 + $0x18] sm:$0xff]
        %v2855 = vld [vmem:[%s1197] sm:$0x1]
        %v2857 = vperm.slane %v2855, 0
        %v2860 = vsel %vm1456, %v2849, 0
        %v2863 = vsel %vm1456, %v2850, 0
        %2865 = vmatpush.msra.mxu0 0.0
        %2866 = vmatpush.msra.mxu0 0.0
        %2867 = vmatpush.msra.mxu0 0.0
        %2868 = vmatpush.msra.mxu0 0.0
        %2869 = vmatpush.msra.mxu0 0.0
        %2870 = vmatpush.msra.mxu0 0.0
        %2871 = vmatpush.msra.mxu0 0.0
        %2872 = vmatpush.msra.mxu0 0.0
        %2873 = vmatpush.msra.mxu0 0.0
        %2874 = vmatpush.msra.mxu0 0.0
        %2875 = vmatpush.msra.mxu0 0.0
        %2876 = vmatpush.msra.mxu0 0.0
        %2877 = vmatpush.msra.mxu0 %v2854
        %2878 = vmatpush.msra.mxu0 %v2853
        %2879 = vmatpush.msra.mxu0 %v2852
        %2880 = vmatpush.msra.mxu0 %v2851
        %2881 = vmatmul.f32.gmra.mxu0 %v2860
        %v2882 = vpop.f32.mrf.mxu0
        %v2883 = vadd.f32 %v2857, %v2882
        %2884 = vmatmul.f32.gmra.mxu0 %v2863
        %v2885 = vpop.f32.mrf.mxu0
        %v2886 = vadd.f32 %v2857, %v2885
        %2887 = vdwg.mxu0
        %v2888 = vadd.f32 %v2165, %v2883
        %v2889 = vadd.f32 %v2166, %v2886
        %v2890 = vld [vmem:[%s1206] sm:$0x1]
        %v2891 = vld [vmem:[%s1215] sm:$0x1]
        %v2892 = vsel %vm1456, %v2888, 0.0
        %2893 = vadd.xlane.f32.xlu0 %v2892
        %v2894 = vpop.xlane.xlu0 %2893
        %v2895 = vsel %vm1456, %v2889, 0.0
        %2896 = vadd.xlane.f32.xlu0 %v2895
        %v2897 = vpop.xlane.xlu0 %2896
        %v2898 = vmul.f32 %v2894, %v1469
        %v2899 = vmul.f32 %v2897, %v1469
        %v2900 = vsub.f32 %v2888, %v2898
        %v2901 = vsub.f32 %v2889, %v2899
        %v2902 = vmul.f32 %v2900, %v2900
        %v2903 = vmul.f32 %v2901, %v2901
        %v2904 = vsel %vm1456, %v2902, 0.0
        %2905 = vadd.xlane.f32.xlu0 %v2904
        %v2906 = vpop.xlane.xlu0 %2905
        %v2907 = vsel %vm1456, %v2903, 0.0
        %2908 = vadd.xlane.f32.xlu0 %v2907
        %v2909 = vpop.xlane.xlu0 %2908
        %v2910 = vmul.f32 %v2906, %v1469
        %v2911 = vmul.f32 %v2909, %v1469
        %v2912 = vadd.f32 %v2910, 1e-05
        %v2913 = vadd.f32 %v2911, 1e-05
        %v2914 = vrsqrt.pop %v2912
        %v2915 = vmul.f32 %v2914, %v2912
        %v2916 = vmul.f32 %v2915, %v2914
        %v2917 = vmul.f32 0.5, %v2916
        %v2918 = vsub.f32 1.5, %v2917
        %v2919 = vmul.f32 %v2914, %v2918
        %vm2920 = vweird.f32 %v2912
        %vm2921 = vweird.f32 %v2914
        %vm2922 = vmor %vm2920, %vm2921
        %v2923 = vsel %vm2922, %v2914, %v2919
        %v2924 = vrsqrt.pop %v2913
        %v2925 = vmul.f32 %v2924, %v2913
        %v2926 = vmul.f32 %v2925, %v2924
        %v2927 = vmul.f32 0.5, %v2926
        %v2928 = vsub.f32 1.5, %v2927
        %v2929 = vmul.f32 %v2924, %v2928
        %vm2930 = vweird.f32 %v2913
        %vm2931 = vweird.f32 %v2924
        %vm2932 = vmor %vm2930, %vm2931
        %v2933 = vsel %vm2932, %v2924, %v2929
        %v2934 = vmul.f32 %v2900, %v2923
        %v2935 = vmul.f32 %v2901, %v2933
        %v2937 = vperm.slane %v2890, 0
        %v2939 = vmul.f32 %v2934, %v2937
        %v2940 = vmul.f32 %v2935, %v2937
        %v2942 = vperm.slane %v2891, 0
        %v2944 = vadd.f32 %v2939, %v2942
        %v2945 = vadd.f32 %v2940, %v2942
        %v2946 = vld [vmem:[%s1431] sm:$0xff]
        %v2947 = vld [vmem:[%s1431 + $0x8] sm:$0xff]
        %v2948 = vld [vmem:[%s1431 + $0x10] sm:$0xff]
        %v2949 = vld [vmem:[%s1431 + $0x18] sm:$0xff]
        %v2950 = vld [vmem:[%s1224] sm:$0x1]
        %v2952 = vperm.slane %v2950, 0
        %v2955 = vsel %vm1456, %v2944, 0
        %v2958 = vsel %vm1456, %v2945, 0
        %2960 = vmatpush.msra.mxu0 0.0
        %2961 = vmatpush.msra.mxu0 0.0
        %2962 = vmatpush.msra.mxu0 0.0
        %2963 = vmatpush.msra.mxu0 0.0
        %2964 = vmatpush.msra.mxu0 0.0
        %2965 = vmatpush.msra.mxu0 0.0
        %2966 = vmatpush.msra.mxu0 0.0
        %2967 = vmatpush.msra.mxu0 0.0
        %2968 = vmatpush.msra.mxu0 0.0
        %2969 = vmatpush.msra.mxu0 0.0
        %2970 = vmatpush.msra.mxu0 0.0
        %2971 = vmatpush.msra.mxu0 0.0
        %2972 = vmatpush.msra.mxu0 %v2949
        %2973 = vmatpush.msra.mxu0 %v2948
        %2974 = vmatpush.msra.mxu0 %v2947
        %2975 = vmatpush.msra.mxu0 %v2946
        %2976 = vmatmul.f32.gmra.mxu0 %v2955
        %v2977 = vpop.f32.mrf.mxu0
        %v2978 = vadd.f32 %v2952, %v2977
        %2979 = vmatmul.f32.gmra.mxu0 %v2958
        %v2980 = vpop.f32.mrf.mxu0
        %v2981 = vadd.f32 %v2952, %v2980
        %2982 = vdwg.mxu0
        %v2983 = vmul.f32 %v2978, 0.5
        %v2984 = vmul.f32 %v2981, 0.5
        %v2985 = vmul.f32 %v2978, 0.70710677
        %v2986 = vmul.f32 %v2981, 0.70710677
        %v2987 = vmul.f32 %v2985, %v2985
        %v2988 = vmin.f32 16.0, %v2987
        %v2989 = vmul.f32 %v2988, 2.1237322e-06
        %v2990 = vadd.f32 %v2989, 0.00028619796
        %v2991 = vmul.f32 %v2988, %v2990
        %v2992 = vadd.f32 %v2991, 0.0036580483
        %v2993 = vmul.f32 %v2988, %v2992
        %v2994 = vadd.f32 %v2993, 0.05243302
        %v2995 = vmul.f32 %v2988, %v2994
        %v2996 = vadd.f32 %v2995, 0.18741608
        %v2997 = vmul.f32 %v2988, %v2996
        %v2998 = vadd.f32 %v2997, 1.1283791
        %v2999 = vmul.f32 %v2985, %v2998
        %v3000 = vmul.f32 %v2988, 3.8918573e-05
        %v3001 = vadd.f32 %v3000, 0.001143296
        %v3002 = vmul.f32 %v2988, %v3001
        %v3003 = vadd.f32 %v3002, 0.014752088
        %v3004 = vmul.f32 %v2988, %v3003
        %v3005 = vadd.f32 %v3004, 0.112945676
        %v3006 = vmul.f32 %v2988, %v3005
        %v3007 = vadd.f32 %v3006, 0.4994258
        %v3008 = vmul.f32 %v2988, %v3007
        %v3009 = vadd.f32 %v3008, 1.0
        %v3010 = vrcp.pop %v3009
        %v3011 = vmul.f32 %v3009, %v3010
        %v3012 = vsub.f32 1.0, %v3011
        %v3013 = vmul.f32 %v3010, %v3012
        %v3014 = vadd.f32 %v3010, %v3013
        %vm3015 = vweird.f32 %v3009
        %vm3016 = vweird.f32 %v3010
        %vm3017 = vmor %vm3015, %vm3016
        %v3018 = vsel %vm3017, %v3010, %v3014
        %v3019 = vand.u32 2147483647, %v3009
        %vm3020 = vcmp.eq.f32.partialorder %v3019, 8.507059e+37
        %v3021 = vand.u32 %v3009, 2147483648
        %v3022 = vor.u32 1.1754944e-38, %v3021
        %v3023 = vsel %vm3020, %v3022, %v3018
        %v3024 = vmul.f32 %v2999, %v3023
        %v3025 = vmin.f32 %v3024, 1.0
        %v3026 = vmax.f32 %v3025, -1.0
        %v3027 = vmul.f32 %v2986, %v2986
        %v3028 = vmin.f32 16.0, %v3027
        %v3029 = vmul.f32 %v3028, 2.1237322e-06
        %v3030 = vadd.f32 %v3029, 0.00028619796
        %v3031 = vmul.f32 %v3028, %v3030
        %v3032 = vadd.f32 %v3031, 0.0036580483
        %v3033 = vmul.f32 %v3028, %v3032
        %v3034 = vadd.f32 %v3033, 0.05243302
        %v3035 = vmul.f32 %v3028, %v3034
        %v3036 = vadd.f32 %v3035, 0.18741608
        %v3037 = vmul.f32 %v3028, %v3036
        %v3038 = vadd.f32 %v3037, 1.1283791
        %v3039 = vmul.f32 %v2986, %v3038
        %v3040 = vmul.f32 %v3028, 3.8918573e-05
        %v3041 = vadd.f32 %v3040, 0.001143296
        %v3042 = vmul.f32 %v3028, %v3041
        %v3043 = vadd.f32 %v3042, 0.014752088
        %v3044 = vmul.f32 %v3028, %v3043
        %v3045 = vadd.f32 %v3044, 0.112945676
        %v3046 = vmul.f32 %v3028, %v3045
        %v3047 = vadd.f32 %v3046, 0.4994258
        %v3048 = vmul.f32 %v3028, %v3047
        %v3049 = vadd.f32 %v3048, 1.0
        %v3050 = vrcp.pop %v3049
        %v3051 = vmul.f32 %v3049, %v3050
        %v3052 = vsub.f32 1.0, %v3051
        %v3053 = vmul.f32 %v3050, %v3052
        %v3054 = vadd.f32 %v3050, %v3053
        %vm3055 = vweird.f32 %v3049
        %vm3056 = vweird.f32 %v3050
        %vm3057 = vmor %vm3055, %vm3056
        %v3058 = vsel %vm3057, %v3050, %v3054
        %v3059 = vand.u32 2147483647, %v3049
        %vm3060 = vcmp.eq.f32.partialorder %v3059, 8.507059e+37
        %v3061 = vand.u32 %v3049, 2147483648
        %v3062 = vor.u32 1.1754944e-38, %v3061
        %v3063 = vsel %vm3060, %v3062, %v3058
        %v3064 = vmul.f32 %v3039, %v3063
        %v3065 = vmin.f32 %v3064, 1.0
        %v3066 = vmax.f32 %v3065, -1.0
        %v3067 = vadd.f32 %v3026, 1.0
        %v3068 = vadd.f32 %v3066, 1.0
        %v3069 = vmul.f32 %v2983, %v3067
        %v3070 = vmul.f32 %v2984, %v3068
        %v3071 = vld [vmem:[%s1436] sm:$0xff]
        %v3072 = vld [vmem:[%s1436 + $0x8] sm:$0xff]
        %v3073 = vld [vmem:[%s1436 + $0x10] sm:$0xff]
        %v3074 = vld [vmem:[%s1436 + $0x18] sm:$0xff]
        %v3075 = vld [vmem:[%s1436 + $0x20] sm:$0xff]
        %v3076 = vld [vmem:[%s1436 + $0x28] sm:$0xff]
        %v3077 = vld [vmem:[%s1436 + $0x30] sm:$0xff]
        %v3078 = vld [vmem:[%s1436 + $0x38] sm:$0xff]
        %v3079 = vld [vmem:[%s1436 + $0x40] sm:$0xff]
        %v3080 = vld [vmem:[%s1436 + $0x48] sm:$0xff]
        %v3081 = vld [vmem:[%s1436 + $0x50] sm:$0xff]
        %v3082 = vld [vmem:[%s1436 + $0x58] sm:$0xff]
        %v3083 = vld [vmem:[%s1436 + $0x60] sm:$0xff]
        %v3084 = vld [vmem:[%s1436 + $0x68] sm:$0xff]
        %v3085 = vld [vmem:[%s1436 + $0x70] sm:$0xff]
        %v3086 = vld [vmem:[%s1436 + $0x78] sm:$0xff]
        %v3087 = vld [vmem:[%s1233] sm:$0x1]
        %v3089 = vperm.slane %v3087, 0
        %3091 = vmatpush.msra.mxu0 %v3086
        %3092 = vmatpush.msra.mxu0 %v3085
        %3093 = vmatpush.msra.mxu0 %v3084
        %3094 = vmatpush.msra.mxu0 %v3083
        %3095 = vmatpush.msra.mxu0 %v3082
        %3096 = vmatpush.msra.mxu0 %v3081
        %3097 = vmatpush.msra.mxu0 %v3080
        %3098 = vmatpush.msra.mxu0 %v3079
        %3099 = vmatpush.msra.mxu0 %v3078
        %3100 = vmatpush.msra.mxu0 %v3077
        %3101 = vmatpush.msra.mxu0 %v3076
        %3102 = vmatpush.msra.mxu0 %v3075
        %3103 = vmatpush.msra.mxu0 %v3074
        %3104 = vmatpush.msra.mxu0 %v3073
        %3105 = vmatpush.msra.mxu0 %v3072
        %3106 = vmatpush.msra.mxu0 %v3071
        %3107 = vmatmul.f32.gmra.mxu0 %v3069
        %v3108 = vpop.f32.mrf.mxu0
        %v3109 = vadd.f32 %v3089, %v3108
        %3110 = vmatmul.f32.gmra.mxu0 %v3070
        %v3111 = vpop.f32.mrf.mxu0
        %v3112 = vadd.f32 %v3089, %v3111
        %3113 = vdwg.mxu0
        %v3114 = vadd.f32 %v2888, %v3109
        %v3115 = vadd.f32 %v2889, %v3112
        %3116 = vst.msk [vmem:[#allocation2] sm:$0xff] %vm1456, %v3114
        %3117 = vst.msk [vmem:[#allocation2 + $0x8] sm:$0xff] %vm1456, %v3115
        %p3118 = scmp.eq.s32.totalorder %s63, 1
        // Predicated region
        $region205: #{model_forward.3} parent=127 // pred_check
          %p3119 = pneg %p3118
        $region206: #{model_forward.3} parent=127 // pred_check_branch
          %3121 = sbr.rel (%p3119) target = $region208
        $region207: #{model_forward.3} parent=127 // pred_region
          %v3122 = vld [vmem:[#allocation26] sm:$0x1]
          %v3123 = vld [vmem:[#allocation27] sm:$0x1]
          %v3124 = vsel %vm1456, %v3114, 0.0
          %3125 = vadd.xlane.f32.xlu0 %v3124
          %v3126 = vpop.xlane.xlu0 %3125
          %v3127 = vsel %vm1456, %v3115, 0.0
          %3128 = vadd.xlane.f32.xlu0 %v3127
          %v3129 = vpop.xlane.xlu0 %3128
          %v3130 = vmul.f32 %v3126, %v1469
          %v3131 = vmul.f32 %v3129, %v1469
          %v3132 = vsub.f32 %v3114, %v3130
          %v3133 = vsub.f32 %v3115, %v3131
          %v3134 = vmul.f32 %v3132, %v3132
          %v3135 = vmul.f32 %v3133, %v3133
          %v3136 = vsel %vm1456, %v3134, 0.0
          %3137 = vadd.xlane.f32.xlu0 %v3136
          %v3138 = vpop.xlane.xlu0 %3137
          %v3139 = vsel %vm1456, %v3135, 0.0
          %3140 = vadd.xlane.f32.xlu0 %v3139
          %v3141 = vpop.xlane.xlu0 %3140
          %v3142 = vmul.f32 %v3138, %v1469
          %v3143 = vmul.f32 %v3141, %v1469
          %v3144 = vadd.f32 %v3142, 1e-05
          %v3145 = vadd.f32 %v3143, 1e-05
          %v3146 = vrsqrt.pop %v3144
          %v3147 = vmul.f32 %v3146, %v3144
          %v3148 = vmul.f32 %v3147, %v3146
          %v3149 = vmul.f32 0.5, %v3148
          %v3150 = vsub.f32 1.5, %v3149
          %v3151 = vmul.f32 %v3146, %v3150
          %vm3152 = vweird.f32 %v3144
          %vm3153 = vweird.f32 %v3146
          %vm3154 = vmor %vm3152, %vm3153
          %v3155 = vsel %vm3154, %v3146, %v3151
          %v3156 = vrsqrt.pop %v3145
          %v3157 = vmul.f32 %v3156, %v3145
          %v3158 = vmul.f32 %v3157, %v3156
          %v3159 = vmul.f32 0.5, %v3158
          %v3160 = vsub.f32 1.5, %v3159
          %v3161 = vmul.f32 %v3156, %v3160
          %vm3162 = vweird.f32 %v3145
          %vm3163 = vweird.f32 %v3156
          %vm3164 = vmor %vm3162, %vm3163
          %v3165 = vsel %vm3164, %v3156, %v3161
          %v3166 = vmul.f32 %v3132, %v3155
          %v3167 = vmul.f32 %v3133, %v3165
          %v3169 = vperm.slane %v3122, 0
          %v3171 = vmul.f32 %v3166, %v3169
          %v3172 = vmul.f32 %v3167, %v3169
          %v3174 = vperm.slane %v3123, 0
          %v3176 = vadd.f32 %v3171, %v3174
          %v3177 = vadd.f32 %v3172, %v3174
          %v3178 = vld [vmem:[#allocation29] sm:$0xff]
          %v3179 = vld [vmem:[#allocation29 + $0x8] sm:$0xff]
          %v3180 = vld [vmem:[#allocation29 + $0x10] sm:$0xff]
          %v3181 = vld [vmem:[#allocation29 + $0x18] sm:$0xff]
          %v3182 = vld [vmem:[#allocation30] sm:$0x1]
          %v3184 = vperm.slane %v3182, 0
          %v3187 = vsel %vm1456, %v3176, 0
          %v3190 = vsel %vm1456, %v3177, 0
          %3192 = vmatpush.msra.mxu0 0.0
          %3193 = vmatpush.msra.mxu0 0.0
          %3194 = vmatpush.msra.mxu0 0.0
          %3195 = vmatpush.msra.mxu0 0.0
          %3196 = vmatpush.msra.mxu0 0.0
          %3197 = vmatpush.msra.mxu0 0.0
          %3198 = vmatpush.msra.mxu0 0.0
          %3199 = vmatpush.msra.mxu0 0.0
          %3200 = vmatpush.msra.mxu0 0.0
          %3201 = vmatpush.msra.mxu0 0.0
          %3202 = vmatpush.msra.mxu0 0.0
          %3203 = vmatpush.msra.mxu0 0.0
          %3204 = vmatpush.msra.mxu0 %v3181
          %3205 = vmatpush.msra.mxu0 %v3180
          %3206 = vmatpush.msra.mxu0 %v3179
          %3207 = vmatpush.msra.mxu0 %v3178
          %3208 = vmatmul.f32.gmra.mxu0 %v3187
          %v3209 = vpop.f32.mrf.mxu0
          %v3210 = vadd.f32 %v3184, %v3209
          %3211 = vmatmul.f32.gmra.mxu0 %v3190
          %v3212 = vpop.f32.mrf.mxu0
          %v3213 = vadd.f32 %v3184, %v3212
          %3214 = vdwg.mxu0
          %3215 = vst.msk [vmem:[#allocation32] sm:$0xff] %vm1456, %v3210
          %3216 = vst.msk [vmem:[#allocation32 + $0x8] sm:$0xff] %vm1456, %v3213
        $region208: #{model_forward.3} parent=127 // pred_fallthru
          _
        // Predicated region
        $region209: #{model_forward.3} parent=127 // pred_check
          %p3217 = pneg %p743
        $region210: #{model_forward.3} parent=127 // pred_check_branch
          %3219 = sbr.rel (%p3217) target = $region212
        $region211: #{model_forward.3} parent=127 // pred_region
          %3221 = vsyncadd [#allocation5], 0
          %s3222 = sshll.u32 [#allocation32], 4
          %s3223 = int_to_ptr.vmem [resolvable:$true] %s3222
          %s3224 = sshll.u32 %s27, 4
          %s3225 = int_to_ptr.hbm [resolvable:$true] %s3224
          %3230 = dma.vmem_to_hbm [thread:$0]  %s3223, 256, %s3225, [#allocation5], 128, 128, 8
        $region212: #{model_forward.3} parent=127 // pred_fallthru
          _
        // Predicated region
        $region213: #{model_forward.3} parent=127 // pred_check
          %p3231 = pneg %p743
        $region214: #{model_forward.3} parent=127 // pred_check_branch
          %3233 = sbr.rel (%p3231) target = $region216
        $region215: #{model_forward.3} parent=127 // pred_region
          %3235 = dma.done [#allocation5], 256
        $region216: #{model_forward.3} parent=127 // pred_fallthru
          _
      $region128: #{model_forward.3} parent=5 // pred_fallthru
        _
      %p3236 = scmp.le.s32.totalorder 2, %s58
      // Predicated region
      $region217: #{model_forward.3} parent=5 // pred_check
        %p3237 = pneg %p3236
      $region218: #{model_forward.3} parent=5 // pred_check_branch
        %3239 = sbr.rel (%p3237) target = $region220
      $region219: #{model_forward.3} parent=5 // pred_region
        %s3240 = ssub.s32 %s58, 2
      $region220: #{model_forward.3} parent=5 // pred_fallthru
        _
    $region6: #{model_forward.3} parent=1 // loop_footer
      %s62 = sadd.s32 1, %s58
    $region7: #{model_forward.3} parent=1 // loop_footer_branch
      %57 = sbr.rel target = $region3
    $region8: #{model_forward.3} parent=1 // loop_exit
      _
    %3241 = vsyncpa [#allocation4], 1
    %s3242 = scalar_lea.sflag [#allocation4], 1
    %3243 = vsyncpa %s3242, 1
    %3244 = vsyncpa [#allocation7], 1
    %s3245 = scalar_lea.sflag [#allocation7], 1
    %3246 = vsyncpa %s3245, 1
    %3247 = vsyncpa [#allocation10], 1
    %s3248 = scalar_lea.sflag [#allocation10], 1
    %3249 = vsyncpa %s3248, 1
    %3250 = vsyncpa [#allocation13], 1
    %s3251 = scalar_lea.sflag [#allocation13], 1
    %3252 = vsyncpa %s3251, 1
    %3253 = vsyncpa [#allocation16], 1
    %s3254 = scalar_lea.sflag [#allocation16], 1
    %3255 = vsyncpa %s3254, 1
    %3256 = vsyncpa [#allocation19], 1
    %s3257 = scalar_lea.sflag [#allocation19], 1
    %3258 = vsyncpa %s3257, 1
    %3259 = vsyncpa [#allocation22], 1
    %s3260 = scalar_lea.sflag [#allocation22], 1
    %3261 = vsyncpa %s3260, 1
    %3262 = vsyncpa [#allocation25], 1
    %s3263 = scalar_lea.sflag [#allocation25], 1
    %3264 = vsyncpa %s3263, 1
    %3265 = vsyncpa [#allocation28], 1
    %3266 = vsyncpa [#allocation31], 1
    %3267 = vsyncpa [#allocation5], 1
    %s3268 = scalar_lea.sflag [#allocation5], 1
    %3269 = vsyncpa %s3268, 1

</llo_original>
